<compile_context>
chip_gen: v5e
topology: v5e:2x2
jax: 0.10.0
libtpu: 0.0.40
codegen_flags: <defaults>
</compile_context>

<pallas_src>
import functools

import jax
import jax.numpy as jnp
from jax import lax
from jax.experimental import pallas as pl
from jax.experimental.pallas import tpu as pltpu

LOG2PI = 1.8378770664093453
EPS = 1e-5


def _vrnn_gauss_kernel(u_ref, y_ref, eps_ref,
                       um_ref, uis_ref, ym_ref, yis_ref,
                       wpu_ref, bpu_ref, wpy_ref, bpy_ref,
                       whall_ref, bhall_ref, wency_ref,
                       wprms_ref, bprms_ref, wencms_ref, bencms_ref,
                       wpz_ref, bpz_ref, wz4_ref,
                       wdecms_ref, bdecms_ref,
                       wgiu_ref, bgi_ref,
                       loss_ref,
                       yn_scr, ency_scr, giu_scr,
                       *, b_real, dz_real, dy_real):
    T, Bp, CP = u_ref.shape
    Hp = wpu_ref.shape[1]
    Dzp = wpz_ref.shape[0]
    TB = T * Bp

    def dot(a, b):  # bf16 MXU matmul, f32 accumulation
        return jnp.dot(a.astype(jnp.bfloat16), b, preferred_element_type=jnp.float32)

    def relu(x):
        return jnp.maximum(x, 0.0)

    def sigmoid(x):                           # stable, tanh-based (EUP slot)
        return 0.5 * (jnp.tanh(0.5 * x) + 1.0)

    def softplus(x):                          # numerically-stable nn.Softplus
        return jnp.maximum(x, 0.0) + jnp.log(1.0 + jnp.exp(-jnp.abs(x)))

    # ------------------------------------------------------------------
    # Pre-loop: everything that does not read h, batched over all T steps.
    # Padded batch rows are zeroed here once (cheap insurance against any
    # garbage intermediate on padded rows).
    # ------------------------------------------------------------------
    bidx = lax.broadcasted_iota(jnp.int32, (T, Bp, CP), 1)
    row_mask = (bidx < b_real).astype(jnp.float32)

    u_n = ((u_ref[...] - um_ref[...]) * uis_ref[...]) * row_mask   # (T,Bp,CP)
    y_n = ((y_ref[...] - ym_ref[...]) * yis_ref[...]) * row_mask   # (T,Bp,CP)
    yn_scr[...] = y_n

    u2 = u_n.reshape(TB, CP)
    y2 = y_n.reshape(TB, CP)
    phi_u = relu(dot(u2, wpu_ref[...]) + bpu_ref[...])             # (TB, Hp)
    phi_y = relu(dot(y2, wpy_ref[...]) + bpy_ref[...])             # (TB, Hp)
    ency_scr[...] = dot(phi_y, wency_ref[...]).reshape(T, Bp, Hp)
    giu_scr[...] = (dot(phi_u, wgiu_ref[...])
                    + bgi_ref[...]).reshape(T, Bp, 3 * Hp)

    # Only small (1, lanes) bias rows stay hoisted across the recurrence;
    # full weight matrices are re-read from VMEM at their use sites.
    Bhall = bhall_ref[...]
    Bprms = bprms_ref[...]
    Bencms = bencms_ref[...]
    Bpz = bpz_ref[...]
    Bdecms = bdecms_ref[...]

    # ------------------------------------------------------------------
    # Recurrence: only the h-dependent chain remains per step.
    # ------------------------------------------------------------------
    def step(t, carry):
        h, kld, nll = carry
        y_t = yn_scr[t]                              # (Bp, CP)
        e_t = eps_ref[t]                             # (Bp, Dzp) reparam noise

        # Every matmul that reads h fused into one lane-aligned MXU op:
        # [prior_h | enc_h | dec_h | gh_r | gh_z | gh_n]
        h_all = dot(h, whall_ref[...]) + Bhall       # (Bp, 6*Hp)
        pr_h = relu(h_all[:, 0 * Hp:1 * Hp])
        enc_hp = h_all[:, 1 * Hp:2 * Hp]
        dec_hp = h_all[:, 2 * Hp:3 * Hp]

        # prior p(z_t | h_{t-1})  (mu and sigma heads fused)
        pr_ms = dot(pr_h, wprms_ref[...]) + Bprms    # (Bp, 2*Dzp)
        pr_mu = pr_ms[:, :Dzp]
        pr_sig = softplus(pr_ms[:, Dzp:]) + EPS

        # encoder q(z_t | y_t, h_{t-1})  (phi_y @ Wenc_y precomputed)
        en_h = relu(ency_scr[t] + enc_hp)
        en_ms = dot(en_h, wencms_ref[...]) + Bencms  # (Bp, 2*Dzp)
        en_mu = en_ms[:, :Dzp]
        en_sig = softplus(en_ms[:, Dzp:]) + EPS

        # reparameterized sample and its feature
        z = en_mu + en_sig * e_t
        phi_z = relu(dot(z, wpz_ref[...]) + Bpz)

        # fused phi_z-consumer: [decoder_hidden | GRU r | GRU z | GRU n]
        z4 = dot(phi_z, wz4_ref[...])                # (Bp, 4*Hp)
        de_h = relu(z4[:, 0 * Hp:1 * Hp] + dec_hp)

        # decoder p(y_t | z_t, h_{t-1})
        de_ms = dot(de_h, wdecms_ref[...]) + Bdecms  # (Bp, 2*CP)
        de_mu = de_ms[:, :CP]
        de_sig = softplus(de_ms[:, CP:]) + EPS

        # GRU cell (PyTorch gate semantics), input = [phi_u, phi_z].
        # phi_u contribution (incl. b_ih) precomputed in giu_scr.
        gi = giu_scr[t] + z4[:, 1 * Hp:4 * Hp]       # (Bp, 3*Hp)
        r = sigmoid(gi[:, 0 * Hp:1 * Hp] + h_all[:, 3 * Hp:4 * Hp])
        zg = sigmoid(gi[:, 1 * Hp:2 * Hp] + h_all[:, 4 * Hp:5 * Hp])
        n = jnp.tanh(gi[:, 2 * Hp:3 * Hp] + r * h_all[:, 5 * Hp:6 * Hp])
        h_new = (1.0 - zg) * n + zg * h

        # Elementwise accumulation; cross-lane reduction deferred to the end.
        # Divide-free loss math: logs + EUP reciprocals.
        inv_pr = pl.reciprocal(pr_sig, approx=True)
        inv_de = pl.reciprocal(de_sig, approx=True)
        kld_t = (jnp.log(pr_sig) - jnp.log(en_sig)
                 + (en_sig * en_sig + (en_mu - pr_mu) ** 2)
                 * (0.5 * inv_pr * inv_pr) - 0.5)
        nll_t = 0.5 * (LOG2PI + 2.0 * jnp.log(de_sig)
                       + ((y_t - de_mu) * inv_de) ** 2)
        return (h_new, kld + kld_t, nll + nll_t)

    carry0 = (jnp.zeros((Bp, Hp), jnp.float32),
              jnp.zeros((Bp, Dzp), jnp.float32),
              jnp.zeros((Bp, CP), jnp.float32))
    _, kld_acc, nll_acc = lax.fori_loop(0, T, step, carry0, unroll=True)

    # Mask padded batch rows / latent dims / output channels, reduce once.
    rz = lax.broadcasted_iota(jnp.int32, (Bp, Dzp), 0)
    cz = lax.broadcasted_iota(jnp.int32, (Bp, Dzp), 1)
    ry = lax.broadcasted_iota(jnp.int32, (Bp, CP), 0)
    cy = lax.broadcasted_iota(jnp.int32, (Bp, CP), 1)
    zmask = ((rz < b_real) & (cz < dz_real)).astype(jnp.float32)
    ymask = ((ry < b_real) & (cy < dy_real)).astype(jnp.float32)
    total = (jnp.sum(kld_acc * zmask, keepdims=True)
             + jnp.sum(nll_acc * ymask, keepdims=True))
    loss_ref[...] = total / jnp.float32(b_real)


# ----------------------------------------------------------------------------
# Host-side parameter init / packing
# ----------------------------------------------------------------------------

def init_params(key, du, dy, dz, h):
    """Deterministic PyTorch-Linear-style init (uniform +-1/sqrt(fan_in))."""
    def lin(k, fan_in, fan_out):
        k1, k2 = jax.random.split(k)
        bound = 1.0 / float(fan_in) ** 0.5
        w = jax.random.uniform(k1, (fan_in, fan_out), jnp.float32, -bound, bound)
        b = jax.random.uniform(k2, (1, fan_out), jnp.float32, -bound, bound)
        return [w, b]

    keys = jax.random.split(key, 14)
    params = []
    params += lin(keys[0], du, h)          # phi_u
    params += lin(keys[1], dy, h)          # phi_y
    params += lin(keys[2], h, h)           # prior hidden
    params += lin(keys[3], h, dz)          # prior mean
    params += lin(keys[4], h, dz)          # prior std (pre-softplus)
    params += lin(keys[5], 2 * h, h)       # encoder hidden   ([phi_y, h])
    params += lin(keys[6], h, dz)          # encoder mean
    params += lin(keys[7], h, dz)          # encoder std
    params += lin(keys[8], dz, h)          # phi_z
    params += lin(keys[9], 2 * h, h)       # decoder hidden   ([phi_z, h])
    params += lin(keys[10], h, dy)         # decoder mean
    params += lin(keys[11], h, dy)         # decoder std
    params += lin(keys[12], 2 * h, 3 * h)  # GRU input weights  (r|z|n)
    params += lin(keys[13], h, 3 * h)      # GRU hidden weights (r|z|n)
    return params


def _pad2(x, rows, cols):
    r, c = x.shape
    return jnp.pad(x, ((0, rows - r), (0, cols - c)))


def pack_params(params, h, hp, dzp, cp):
    """Zero-pad to 128-lane tiles, fuse matmuls, cast weights to bf16 (host-side)."""
    (Wpu, Bpu, Wpy, Bpy, Wpr, Bpr, Wprm, Bprm, Wprs, Bprs,
     Wenc, Benc, Wencm, Bencm, Wencs, Bencs, Wpz, Bpz,
     Wdec, Bdec, Wdecm, Bdecm, Wdecs, Bdecs, Wgi, Bgi, Wgh, Bgh) = params

    Wenc_y, Wenc_h = Wenc[:h], Wenc[h:]
    Wdec_z, Wdec_h = Wdec[:h], Wdec[h:]
    Wgi_u, Wgi_z = Wgi[:h], Wgi[h:]

    def bf(x):
        return x.astype(jnp.bfloat16)

    def gate_w(w):     # (h, 3h) -> (hp, 3*hp), each gate padded to a 128-lane block
        return jnp.concatenate(
            [_pad2(w[:, g * h:(g + 1) * h], hp, hp) for g in range(3)], axis=1)

    def gate_b(b):     # (1, 3h) -> (1, 3*hp)
        return jnp.concatenate(
            [_pad2(b[:, g * h:(g + 1) * h], 1, hp) for g in range(3)], axis=1)

    # Fused "everything that reads h": [prior | enc_h | dec_h | gh_r | gh_z | gh_n]
    # TODO(synk): for small production H (<128) pack these 6 heads densely
    # (non-128-aligned) to cut MXU column passes further.
    whall = jnp.concatenate(
        [_pad2(Wpr, hp, hp), _pad2(Wenc_h, hp, hp), _pad2(Wdec_h, hp, hp),
         _pad2(Wgh[:, 0:h], hp, hp), _pad2(Wgh[:, h:2 * h], hp, hp),
         _pad2(Wgh[:, 2 * h:3 * h], hp, hp)], axis=1)
    bhall = jnp.concatenate(
        [_pad2(Bpr, 1, hp), _pad2(Benc, 1, hp), _pad2(Bdec, 1, hp),
         _pad2(Bgh[:, 0:h], 1, hp), _pad2(Bgh[:, h:2 * h], 1, hp),
         _pad2(Bgh[:, 2 * h:3 * h], 1, hp)], axis=1)

    # Fused phi_z-consumer: [decoder_hidden | GRU r | GRU z | GRU n]
    wz4 = jnp.concatenate([_pad2(Wdec_z, hp, hp), gate_w(Wgi_z)], axis=1)

    return [
        bf(_pad2(Wpu, cp, hp)), _pad2(Bpu, 1, hp),
        bf(_pad2(Wpy, cp, hp)), _pad2(Bpy, 1, hp),
        bf(whall), bhall, bf(_pad2(Wenc_y, hp, hp)),
        bf(jnp.concatenate([_pad2(Wprm, hp, dzp), _pad2(Wprs, hp, dzp)], axis=1)),
        jnp.concatenate([_pad2(Bprm, 1, dzp), _pad2(Bprs, 1, dzp)], axis=1),
        bf(jnp.concatenate([_pad2(Wencm, hp, dzp), _pad2(Wencs, hp, dzp)], axis=1)),
        jnp.concatenate([_pad2(Bencm, 1, dzp), _pad2(Bencs, 1, dzp)], axis=1),
        bf(_pad2(Wpz, dzp, hp)), _pad2(Bpz, 1, hp),
        bf(wz4),
        bf(jnp.concatenate([_pad2(Wdecm, hp, cp), _pad2(Wdecs, hp, cp)], axis=1)),
        jnp.concatenate([_pad2(Bdecm, 1, cp), _pad2(Bdecs, 1, cp)], axis=1),
        bf(gate_w(Wgi_u)), gate_b(Bgi),
    ]


def dynamic_model_loss(u, y, eps, norm_stats, params,
                       *, hp=128, dzp=128, cp=128, bp=8):
    """DynamicModel.forward(u, y) -> scalar loss.

    u: (B, num_inputs, T), y: (B, num_outputs, T)  (PyTorch NCL layout).
    """
    B, du, T = u.shape
    dy = y.shape[1]
    dz = eps.shape[-1]
    h = params[0].shape[1]
    u_mean, u_std, y_mean, y_std = norm_stats

    def pad_seq(x, c):   # (T, B, C) -> (T, Bp, Cp), zero pad (padded lanes inert)
        return jnp.pad(x, ((0, 0), (0, bp - x.shape[1]), (0, c - x.shape[2])))

    u_tm = pad_seq(jnp.transpose(u, (2, 0, 1)).astype(jnp.float32), cp)
    y_tm = pad_seq(jnp.transpose(y, (2, 0, 1)).astype(jnp.float32), cp)
    eps_tm = pad_seq(eps.astype(jnp.float32), dzp)

    um = _pad2(u_mean.astype(jnp.float32), 1, cp)
    uis = _pad2((1.0 / u_std).astype(jnp.float32), 1, cp)
    ym = _pad2(y_mean.astype(jnp.float32), 1, cp)
    yis = _pad2((1.0 / y_std).astype(jnp.float32), 1, cp)

    packed = pack_params(params, h, hp, dzp, cp)
    args = [u_tm, y_tm, eps_tm, um, uis, ym, yis] + packed

    kernel = functools.partial(_vrnn_gauss_kernel,
                               b_real=B, dz_real=dz, dy_real=dy)

    # TODO(synk): for long sequences / large batch, grid over T chunks (carrying
    # h in VMEM scratch) and add a "parallel" batch grid axis for v7x's 2nd TC.
    loss = pl.pallas_call(
        kernel,
        out_shape=jax.ShapeDtypeStruct((1, 1), jnp.float32),
        in_specs=[pl.BlockSpec(memory_space=pltpu.MemorySpace.VMEM)] * len(args),
        out_specs=pl.BlockSpec(memory_space=pltpu.MemorySpace.VMEM),
        scratch_shapes=[
            pltpu.VMEM((T, bp, cp), jnp.float32),       # normalized y, staged
            pltpu.VMEM((T, bp, hp), jnp.float32),       # phi_y @ Wenc_y, staged
            pltpu.VMEM((T, bp, 3 * hp), jnp.float32),   # phi_u @ Wgi_u + b_gi
        ],
    )(*args)
    return loss[0, 0]


if __name__ == "__main__":
    B, T = 2, 8            # batch, sequence length
    DU, DY = 2, 2          # num_inputs, num_outputs
    DZ, H = 8, 32          # latent dim, hidden dim

    key = jax.random.PRNGKey(0)
    ku, ky, ke, kp = jax.random.split(key, 4)

    u = jax.random.normal(ku, (B, DU, T), jnp.float32)
    y = jax.random.normal(ky, (B, DY, T), jnp.float32)
    # Pre-sampled reparameterization noise (deterministic), time-major.
    eps = jax.random.normal(ke, (T, B, DZ), jnp.float32)

    # "Fitted" per-channel normalizers (normalizer_input / normalizer_output).
    u_mean = jnp.mean(u, axis=(0, 2))[None, :]
    u_std = jnp.std(u, axis=(0, 2))[None, :] + 1e-6
    y_mean = jnp.mean(y, axis=(0, 2))[None, :]
    y_std = jnp.std(y, axis=(0, 2))[None, :] + 1e-6

    params = init_params(kp, DU, DY, DZ, H)

    loss = dynamic_model_loss(u, y, eps, (u_mean, u_std, y_mean, y_std), params)
    jax.block_until_ready(loss)
    assert loss.shape == () and jnp.isfinite(loss)
    print("KERNEL_OK")
</pallas_src>

<mosaic_0001>
module attributes {stable_mosaic.version = 11 : i64} {
  func.func @_vrnn_gauss_kernel(%arg0: memref<8x8x128xf32, #tpu.memory_space<vmem>>, %arg1: memref<8x8x128xf32, #tpu.memory_space<vmem>>, %arg2: memref<8x8x128xf32, #tpu.memory_space<vmem>>, %arg3: memref<1x128xf32, #tpu.memory_space<vmem>>, %arg4: memref<1x128xf32, #tpu.memory_space<vmem>>, %arg5: memref<1x128xf32, #tpu.memory_space<vmem>>, %arg6: memref<1x128xf32, #tpu.memory_space<vmem>>, %arg7: memref<128x128xbf16, #tpu.memory_space<vmem>>, %arg8: memref<1x128xf32, #tpu.memory_space<vmem>>, %arg9: memref<128x128xbf16, #tpu.memory_space<vmem>>, %arg10: memref<1x128xf32, #tpu.memory_space<vmem>>, %arg11: memref<128x768xbf16, #tpu.memory_space<vmem>>, %arg12: memref<1x768xf32, #tpu.memory_space<vmem>>, %arg13: memref<128x128xbf16, #tpu.memory_space<vmem>>, %arg14: memref<128x256xbf16, #tpu.memory_space<vmem>>, %arg15: memref<1x256xf32, #tpu.memory_space<vmem>>, %arg16: memref<128x256xbf16, #tpu.memory_space<vmem>>, %arg17: memref<1x256xf32, #tpu.memory_space<vmem>>, %arg18: memref<128x128xbf16, #tpu.memory_space<vmem>>, %arg19: memref<1x128xf32, #tpu.memory_space<vmem>>, %arg20: memref<128x512xbf16, #tpu.memory_space<vmem>>, %arg21: memref<128x256xbf16, #tpu.memory_space<vmem>>, %arg22: memref<1x256xf32, #tpu.memory_space<vmem>>, %arg23: memref<128x384xbf16, #tpu.memory_space<vmem>>, %arg24: memref<1x384xf32, #tpu.memory_space<vmem>>, %arg25: memref<1x1xf32, #tpu.memory_space<vmem>>, %arg26: memref<8x8x128xf32, #tpu.memory_space<vmem>>, %arg27: memref<8x8x128xf32, #tpu.memory_space<vmem>>, %arg28: memref<8x8x384xf32, #tpu.memory_space<vmem>>) attributes {dimension_semantics = [], scalar_prefetch = 0 : i64, scratch_operands = 3 : i64, tpu.core_type = #tpu.core_type<tc>} {
    %0 = tpu.iota {dimensions = array<i32: 1>} : vector<8x8x128xi32>
    %c2_i32 = arith.constant 2 : i32
    %1 = vector.broadcast %c2_i32 : i32 to vector<8x8x128xi32>
    %2 = arith.cmpi slt, %0, %1 : vector<8x8x128xi32>
    %3 = arith.extui %2 : vector<8x8x128xi1> to vector<8x8x128xi32>
    %4 = arith.sitofp %3 : vector<8x8x128xi32> to vector<8x8x128xf32>
    %c0 = arith.constant 0 : index
    %c0_0 = arith.constant 0 : index
    %c0_1 = arith.constant 0 : index
    %5 = vector.load %arg0[%c0, %c0_0, %c0_1] : memref<8x8x128xf32, #tpu.memory_space<vmem>>, vector<8x8x128xf32>
    %c0_2 = arith.constant 0 : index
    %c0_3 = arith.constant 0 : index
    %6 = vector.load %arg3[%c0_2, %c0_3] : memref<1x128xf32, #tpu.memory_space<vmem>>, vector<1x128xf32>
    %7 = vector.shape_cast %6 : vector<1x128xf32> to vector<1x1x128xf32>
    %8 = vector.broadcast %7 : vector<1x1x128xf32> to vector<8x8x128xf32>
    %9 = arith.subf %5, %8 : vector<8x8x128xf32>
    %c0_4 = arith.constant 0 : index
    %c0_5 = arith.constant 0 : index
    %10 = vector.load %arg4[%c0_4, %c0_5] : memref<1x128xf32, #tpu.memory_space<vmem>>, vector<1x128xf32>
    %11 = vector.shape_cast %10 : vector<1x128xf32> to vector<1x1x128xf32>
    %12 = vector.broadcast %11 : vector<1x1x128xf32> to vector<8x8x128xf32>
    %13 = arith.mulf %9, %12 : vector<8x8x128xf32>
    %14 = arith.mulf %13, %4 : vector<8x8x128xf32>
    %c0_6 = arith.constant 0 : index
    %c0_7 = arith.constant 0 : index
    %c0_8 = arith.constant 0 : index
    %15 = vector.load %arg1[%c0_6, %c0_7, %c0_8] : memref<8x8x128xf32, #tpu.memory_space<vmem>>, vector<8x8x128xf32>
    %c0_9 = arith.constant 0 : index
    %c0_10 = arith.constant 0 : index
    %16 = vector.load %arg5[%c0_9, %c0_10] : memref<1x128xf32, #tpu.memory_space<vmem>>, vector<1x128xf32>
    %17 = vector.shape_cast %16 : vector<1x128xf32> to vector<1x1x128xf32>
    %18 = vector.broadcast %17 : vector<1x1x128xf32> to vector<8x8x128xf32>
    %19 = arith.subf %15, %18 : vector<8x8x128xf32>
    %c0_11 = arith.constant 0 : index
    %c0_12 = arith.constant 0 : index
    %20 = vector.load %arg6[%c0_11, %c0_12] : memref<1x128xf32, #tpu.memory_space<vmem>>, vector<1x128xf32>
    %21 = vector.shape_cast %20 : vector<1x128xf32> to vector<1x1x128xf32>
    %22 = vector.broadcast %21 : vector<1x1x128xf32> to vector<8x8x128xf32>
    %23 = arith.mulf %19, %22 : vector<8x8x128xf32>
    %24 = arith.mulf %23, %4 : vector<8x8x128xf32>
    %c0_13 = arith.constant 0 : index
    %c0_14 = arith.constant 0 : index
    %c0_15 = arith.constant 0 : index
    %25 = vector.load %arg26[%c0_13, %c0_14, %c0_15] : memref<8x8x128xf32, #tpu.memory_space<vmem>>, vector<8x8x128xf32>
    tpu.vector_store %arg26[%c0_13, %c0_14, %c0_15], %24 {strides = array<i32>} : memref<8x8x128xf32, #tpu.memory_space<vmem>>, vector<8x8x128xf32>,
    %26 = vector.shape_cast %14 : vector<8x8x128xf32> to vector<64x128xf32>
    %27 = vector.shape_cast %24 : vector<8x8x128xf32> to vector<64x128xf32>
    %c0_16 = arith.constant 0 : index
    %c0_17 = arith.constant 0 : index
    %28 = vector.load %arg7[%c0_16, %c0_17] : memref<128x128xbf16, #tpu.memory_space<vmem>>, vector<128x128xbf16>
    %29 = arith.truncf %26 : vector<64x128xf32> to vector<64x128xbf16>
    %cst = arith.constant dense<0.000000e+00> : vector<64x128xf32>
    %30 = tpu.matmul %29, %28, %cst {dimension_numbers = #tpu.dot_dimension_numbers<[1], [0], [0], [1], [0, 0, 1, 1], [], []>} : vector<64x128xbf16>, vector<128x128xbf16>, vector<64x128xf32> -> vector<64x128xf32>
    %c0_18 = arith.constant 0 : index
    %c0_19 = arith.constant 0 : index
    %31 = vector.load %arg8[%c0_18, %c0_19] : memref<1x128xf32, #tpu.memory_space<vmem>>, vector<1x128xf32>
    %32 = vector.broadcast %31 : vector<1x128xf32> to vector<64x128xf32>
    %33 = arith.addf %30, %32 : vector<64x128xf32>
    %cst_20 = arith.constant 0.000000e+00 : f32
    %34 = vector.broadcast %cst_20 : f32 to vector<64x128xf32>
    %35 = arith.maximumf %33, %34 : vector<64x128xf32>
    %c0_21 = arith.constant 0 : index
    %c0_22 = arith.constant 0 : index
    %36 = vector.load %arg9[%c0_21, %c0_22] : memref<128x128xbf16, #tpu.memory_space<vmem>>, vector<128x128xbf16>
    %37 = arith.truncf %27 : vector<64x128xf32> to vector<64x128xbf16>
    %cst_23 = arith.constant dense<0.000000e+00> : vector<64x128xf32>
    %38 = tpu.matmul %37, %36, %cst_23 {dimension_numbers = #tpu.dot_dimension_numbers<[1], [0], [0], [1], [0, 0, 1, 1], [], []>} : vector<64x128xbf16>, vector<128x128xbf16>, vector<64x128xf32> -> vector<64x128xf32>
    %c0_24 = arith.constant 0 : index
    %c0_25 = arith.constant 0 : index
    %39 = vector.load %arg10[%c0_24, %c0_25] : memref<1x128xf32, #tpu.memory_space<vmem>>, vector<1x128xf32>
    %40 = vector.broadcast %39 : vector<1x128xf32> to vector<64x128xf32>
    %41 = arith.addf %38, %40 : vector<64x128xf32>
    %cst_26 = arith.constant 0.000000e+00 : f32
    %42 = vector.broadcast %cst_26 : f32 to vector<64x128xf32>
    %43 = arith.maximumf %41, %42 : vector<64x128xf32>
    %c0_27 = arith.constant 0 : index
    %c0_28 = arith.constant 0 : index
    %44 = vector.load %arg13[%c0_27, %c0_28] : memref<128x128xbf16, #tpu.memory_space<vmem>>, vector<128x128xbf16>
    %45 = arith.truncf %43 : vector<64x128xf32> to vector<64x128xbf16>
    %cst_29 = arith.constant dense<0.000000e+00> : vector<64x128xf32>
    %46 = tpu.matmul %45, %44, %cst_29 {dimension_numbers = #tpu.dot_dimension_numbers<[1], [0], [0], [1], [0, 0, 1, 1], [], []>} : vector<64x128xbf16>, vector<128x128xbf16>, vector<64x128xf32> -> vector<64x128xf32>
    %47 = vector.shape_cast %46 : vector<64x128xf32> to vector<8x8x128xf32>
    %c0_30 = arith.constant 0 : index
    %c0_31 = arith.constant 0 : index
    %c0_32 = arith.constant 0 : index
    %48 = vector.load %arg27[%c0_30, %c0_31, %c0_32] : memref<8x8x128xf32, #tpu.memory_space<vmem>>, vector<8x8x128xf32>
    tpu.vector_store %arg27[%c0_30, %c0_31, %c0_32], %47 {strides = array<i32>} : memref<8x8x128xf32, #tpu.memory_space<vmem>>, vector<8x8x128xf32>,
    %c0_33 = arith.constant 0 : index
    %c0_34 = arith.constant 0 : index
    %49 = vector.load %arg23[%c0_33, %c0_34] : memref<128x384xbf16, #tpu.memory_space<vmem>>, vector<128x384xbf16>
    %50 = arith.truncf %35 : vector<64x128xf32> to vector<64x128xbf16>
    %cst_35 = arith.constant dense<0.000000e+00> : vector<64x384xf32>
    %51 = tpu.matmul %50, %49, %cst_35 {dimension_numbers = #tpu.dot_dimension_numbers<[1], [0], [0], [1], [0, 0, 1, 1], [], []>} : vector<64x128xbf16>, vector<128x384xbf16>, vector<64x384xf32> -> vector<64x384xf32>
    %c0_36 = arith.constant 0 : index
    %c0_37 = arith.constant 0 : index
    %52 = vector.load %arg24[%c0_36, %c0_37] : memref<1x384xf32, #tpu.memory_space<vmem>>, vector<1x384xf32>
    %53 = vector.broadcast %52 : vector<1x384xf32> to vector<64x384xf32>
    %54 = arith.addf %51, %53 : vector<64x384xf32>
    %55 = vector.shape_cast %54 : vector<64x384xf32> to vector<8x8x384xf32>
    %c0_38 = arith.constant 0 : index
    %c0_39 = arith.constant 0 : index
    %c0_40 = arith.constant 0 : index
    %56 = vector.load %arg28[%c0_38, %c0_39, %c0_40] : memref<8x8x384xf32, #tpu.memory_space<vmem>>, vector<8x8x384xf32>
    tpu.vector_store %arg28[%c0_38, %c0_39, %c0_40], %55 {strides = array<i32>} : memref<8x8x384xf32, #tpu.memory_space<vmem>>, vector<8x8x384xf32>,
    %c0_41 = arith.constant 0 : index
    %c0_42 = arith.constant 0 : index
    %57 = vector.load %arg12[%c0_41, %c0_42] : memref<1x768xf32, #tpu.memory_space<vmem>>, vector<1x768xf32>
    %c0_43 = arith.constant 0 : index
    %c0_44 = arith.constant 0 : index
    %58 = vector.load %arg15[%c0_43, %c0_44] : memref<1x256xf32, #tpu.memory_space<vmem>>, vector<1x256xf32>
    %c0_45 = arith.constant 0 : index
    %c0_46 = arith.constant 0 : index
    %59 = vector.load %arg17[%c0_45, %c0_46] : memref<1x256xf32, #tpu.memory_space<vmem>>, vector<1x256xf32>
    %c0_47 = arith.constant 0 : index
    %c0_48 = arith.constant 0 : index
    %60 = vector.load %arg19[%c0_47, %c0_48] : memref<1x128xf32, #tpu.memory_space<vmem>>, vector<1x128xf32>
    %c0_49 = arith.constant 0 : index
    %c0_50 = arith.constant 0 : index
    %61 = vector.load %arg22[%c0_49, %c0_50] : memref<1x256xf32, #tpu.memory_space<vmem>>, vector<1x256xf32>
    %cst_51 = arith.constant 0.000000e+00 : f32
    %62 = vector.broadcast %cst_51 : f32 to vector<8x128xf32>
    %cst_52 = arith.constant 0.000000e+00 : f32
    %63 = vector.broadcast %cst_52 : f32 to vector<8x128xf32>
    %cst_53 = arith.constant 0.000000e+00 : f32
    %64 = vector.broadcast %cst_53 : f32 to vector<8x128xf32>
    %c0_i32 = arith.constant 0 : i32
    %65 = arith.index_cast %c0_i32 : i32 to index
    %c0_54 = arith.constant 0 : index
    %c0_55 = arith.constant 0 : index
    %66 = vector.load %arg26[%65, %c0_54, %c0_55] : memref<8x8x128xf32, #tpu.memory_space<vmem>>, vector<1x8x128xf32>
    %67 = vector.shape_cast %66 : vector<1x8x128xf32> to vector<8x128xf32>
    %68 = arith.index_cast %c0_i32 : i32 to index
    %c0_56 = arith.constant 0 : index
    %c0_57 = arith.constant 0 : index
    %69 = vector.load %arg2[%68, %c0_56, %c0_57] : memref<8x8x128xf32, #tpu.memory_space<vmem>>, vector<1x8x128xf32>
    %70 = vector.shape_cast %69 : vector<1x8x128xf32> to vector<8x128xf32>
    %c0_58 = arith.constant 0 : index
    %c0_59 = arith.constant 0 : index
    %71 = vector.load %arg11[%c0_58, %c0_59] : memref<128x768xbf16, #tpu.memory_space<vmem>>, vector<128x768xbf16>
    %72 = arith.truncf %62 : vector<8x128xf32> to vector<8x128xbf16>
    %cst_60 = arith.constant dense<0.000000e+00> : vector<8x768xf32>
    %73 = tpu.matmul %72, %71, %cst_60 {dimension_numbers = #tpu.dot_dimension_numbers<[1], [0], [0], [1], [0, 0, 1, 1], [], []>} : vector<8x128xbf16>, vector<128x768xbf16>, vector<8x768xf32> -> vector<8x768xf32>
    %74 = vector.broadcast %57 : vector<1x768xf32> to vector<8x768xf32>
    %75 = arith.addf %73, %74 : vector<8x768xf32>
    %76 = vector.extract_strided_slice %75 {offsets = [0, 0], sizes = [8, 128], strides = [1, 1]} : vector<8x768xf32> to vector<8x128xf32>
    %cst_61 = arith.constant 0.000000e+00 : f32
    %77 = vector.broadcast %cst_61 : f32 to vector<8x128xf32>
    %78 = arith.maximumf %76, %77 : vector<8x128xf32>
    %79 = vector.extract_strided_slice %75 {offsets = [0, 128], sizes = [8, 128], strides = [1, 1]} : vector<8x768xf32> to vector<8x128xf32>
    %80 = vector.extract_strided_slice %75 {offsets = [0, 256], sizes = [8, 128], strides = [1, 1]} : vector<8x768xf32> to vector<8x128xf32>
    %c0_62 = arith.constant 0 : index
    %c0_63 = arith.constant 0 : index
    %81 = vector.load %arg14[%c0_62, %c0_63] : memref<128x256xbf16, #tpu.memory_space<vmem>>, vector<128x256xbf16>
    %82 = arith.truncf %78 : vector<8x128xf32> to vector<8x128xbf16>
    %cst_64 = arith.constant dense<0.000000e+00> : vector<8x256xf32>
    %83 = tpu.matmul %82, %81, %cst_64 {dimension_numbers = #tpu.dot_dimension_numbers<[1], [0], [0], [1], [0, 0, 1, 1], [], []>} : vector<8x128xbf16>, vector<128x256xbf16>, vector<8x256xf32> -> vector<8x256xf32>
    %84 = vector.broadcast %58 : vector<1x256xf32> to vector<8x256xf32>
    %85 = arith.addf %83, %84 : vector<8x256xf32>
    %86 = vector.extract_strided_slice %85 {offsets = [0, 0], sizes = [8, 128], strides = [1, 1]} : vector<8x256xf32> to vector<8x128xf32>
    %87 = vector.extract_strided_slice %85 {offsets = [0, 128], sizes = [8, 128], strides = [1, 1]} : vector<8x256xf32> to vector<8x128xf32>
    %cst_65 = arith.constant 0.000000e+00 : f32
    %88 = vector.broadcast %cst_65 : f32 to vector<8x128xf32>
    %89 = arith.maximumf %87, %88 : vector<8x128xf32>
    %90 = math.absf %87 : vector<8x128xf32>
    %cst_66 = arith.constant 0.000000e+00 : f32
    %91 = vector.broadcast %cst_66 : f32 to vector<8x128xf32>
    %92 = arith.subf %91, %90 : vector<8x128xf32>
    %93 = math.exp %92 : vector<8x128xf32>
    %cst_67 = arith.constant 1.000000e+00 : f32
    %94 = vector.broadcast %cst_67 : f32 to vector<8x128xf32>
    %95 = arith.addf %94, %93 : vector<8x128xf32>
    %96 = math.log %95 : vector<8x128xf32>
    %97 = arith.addf %89, %96 : vector<8x128xf32>
    %cst_68 = arith.constant 9.99999974E-6 : f32
    %98 = vector.broadcast %cst_68 : f32 to vector<8x128xf32>
    %99 = arith.addf %97, %98 : vector<8x128xf32>
    %100 = arith.index_cast %c0_i32 : i32 to index
    %c0_69 = arith.constant 0 : index
    %c0_70 = arith.constant 0 : index
    %101 = vector.load %arg27[%100, %c0_69, %c0_70] : memref<8x8x128xf32, #tpu.memory_space<vmem>>, vector<1x8x128xf32>
    %102 = vector.shape_cast %101 : vector<1x8x128xf32> to vector<8x128xf32>
    %103 = arith.addf %102, %79 : vector<8x128xf32>
    %cst_71 = arith.constant 0.000000e+00 : f32
    %104 = vector.broadcast %cst_71 : f32 to vector<8x128xf32>
    %105 = arith.maximumf %103, %104 : vector<8x128xf32>
    %c0_72 = arith.constant 0 : index
    %c0_73 = arith.constant 0 : index
    %106 = vector.load %arg16[%c0_72, %c0_73] : memref<128x256xbf16, #tpu.memory_space<vmem>>, vector<128x256xbf16>
    %107 = arith.truncf %105 : vector<8x128xf32> to vector<8x128xbf16>
    %cst_74 = arith.constant dense<0.000000e+00> : vector<8x256xf32>
    %108 = tpu.matmul %107, %106, %cst_74 {dimension_numbers = #tpu.dot_dimension_numbers<[1], [0], [0], [1], [0, 0, 1, 1], [], []>} : vector<8x128xbf16>, vector<128x256xbf16>, vector<8x256xf32> -> vector<8x256xf32>
    %109 = vector.broadcast %59 : vector<1x256xf32> to vector<8x256xf32>
    %110 = arith.addf %108, %109 : vector<8x256xf32>
    %111 = vector.extract_strided_slice %110 {offsets = [0, 0], sizes = [8, 128], strides = [1, 1]} : vector<8x256xf32> to vector<8x128xf32>
    %112 = vector.extract_strided_slice %110 {offsets = [0, 128], sizes = [8, 128], strides = [1, 1]} : vector<8x256xf32> to vector<8x128xf32>
    %cst_75 = arith.constant 0.000000e+00 : f32
    %113 = vector.broadcast %cst_75 : f32 to vector<8x128xf32>
    %114 = arith.maximumf %112, %113 : vector<8x128xf32>
    %115 = math.absf %112 : vector<8x128xf32>
    %cst_76 = arith.constant 0.000000e+00 : f32
    %116 = vector.broadcast %cst_76 : f32 to vector<8x128xf32>
    %117 = arith.subf %116, %115 : vector<8x128xf32>
    %118 = math.exp %117 : vector<8x128xf32>
    %cst_77 = arith.constant 1.000000e+00 : f32
    %119 = vector.broadcast %cst_77 : f32 to vector<8x128xf32>
    %120 = arith.addf %119, %118 : vector<8x128xf32>
    %121 = math.log %120 : vector<8x128xf32>
    %122 = arith.addf %114, %121 : vector<8x128xf32>
    %cst_78 = arith.constant 9.99999974E-6 : f32
    %123 = vector.broadcast %cst_78 : f32 to vector<8x128xf32>
    %124 = arith.addf %122, %123 : vector<8x128xf32>
    %125 = arith.mulf %124, %70 : vector<8x128xf32>
    %126 = arith.addf %111, %125 : vector<8x128xf32>
    %c0_79 = arith.constant 0 : index
    %c0_80 = arith.constant 0 : index
    %127 = vector.load %arg18[%c0_79, %c0_80] : memref<128x128xbf16, #tpu.memory_space<vmem>>, vector<128x128xbf16>
    %128 = arith.truncf %126 : vector<8x128xf32> to vector<8x128xbf16>
    %cst_81 = arith.constant dense<0.000000e+00> : vector<8x128xf32>
    %129 = tpu.matmul %128, %127, %cst_81 {dimension_numbers = #tpu.dot_dimension_numbers<[1], [0], [0], [1], [0, 0, 1, 1], [], []>} : vector<8x128xbf16>, vector<128x128xbf16>, vector<8x128xf32> -> vector<8x128xf32>
    %130 = vector.broadcast %60 : vector<1x128xf32> to vector<8x128xf32>
    %131 = arith.addf %129, %130 : vector<8x128xf32>
    %cst_82 = arith.constant 0.000000e+00 : f32
    %132 = vector.broadcast %cst_82 : f32 to vector<8x128xf32>
    %133 = arith.maximumf %131, %132 : vector<8x128xf32>
    %c0_83 = arith.constant 0 : index
    %c0_84 = arith.constant 0 : index
    %134 = vector.load %arg20[%c0_83, %c0_84] : memref<128x512xbf16, #tpu.memory_space<vmem>>, vector<128x512xbf16>
    %135 = arith.truncf %133 : vector<8x128xf32> to vector<8x128xbf16>
    %cst_85 = arith.constant dense<0.000000e+00> : vector<8x512xf32>
    %136 = tpu.matmul %135, %134, %cst_85 {dimension_numbers = #tpu.dot_dimension_numbers<[1], [0], [0], [1], [0, 0, 1, 1], [], []>} : vector<8x128xbf16>, vector<128x512xbf16>, vector<8x512xf32> -> vector<8x512xf32>
    %137 = vector.extract_strided_slice %136 {offsets = [0, 0], sizes = [8, 128], strides = [1, 1]} : vector<8x512xf32> to vector<8x128xf32>
    %138 = arith.addf %137, %80 : vector<8x128xf32>
    %cst_86 = arith.constant 0.000000e+00 : f32
    %139 = vector.broadcast %cst_86 : f32 to vector<8x128xf32>
    %140 = arith.maximumf %138, %139 : vector<8x128xf32>
    %c0_87 = arith.constant 0 : index
    %c0_88 = arith.constant 0 : index
    %141 = vector.load %arg21[%c0_87, %c0_88] : memref<128x256xbf16, #tpu.memory_space<vmem>>, vector<128x256xbf16>
    %142 = arith.truncf %140 : vector<8x128xf32> to vector<8x128xbf16>
    %cst_89 = arith.constant dense<0.000000e+00> : vector<8x256xf32>
    %143 = tpu.matmul %142, %141, %cst_89 {dimension_numbers = #tpu.dot_dimension_numbers<[1], [0], [0], [1], [0, 0, 1, 1], [], []>} : vector<8x128xbf16>, vector<128x256xbf16>, vector<8x256xf32> -> vector<8x256xf32>
    %144 = vector.broadcast %61 : vector<1x256xf32> to vector<8x256xf32>
    %145 = arith.addf %143, %144 : vector<8x256xf32>
    %146 = vector.extract_strided_slice %145 {offsets = [0, 0], sizes = [8, 128], strides = [1, 1]} : vector<8x256xf32> to vector<8x128xf32>
    %147 = vector.extract_strided_slice %145 {offsets = [0, 128], sizes = [8, 128], strides = [1, 1]} : vector<8x256xf32> to vector<8x128xf32>
    %cst_90 = arith.constant 0.000000e+00 : f32
    %148 = vector.broadcast %cst_90 : f32 to vector<8x128xf32>
    %149 = arith.maximumf %147, %148 : vector<8x128xf32>
    %150 = math.absf %147 : vector<8x128xf32>
    %cst_91 = arith.constant 0.000000e+00 : f32
    %151 = vector.broadcast %cst_91 : f32 to vector<8x128xf32>
    %152 = arith.subf %151, %150 : vector<8x128xf32>
    %153 = math.exp %152 : vector<8x128xf32>
    %cst_92 = arith.constant 1.000000e+00 : f32
    %154 = vector.broadcast %cst_92 : f32 to vector<8x128xf32>
    %155 = arith.addf %154, %153 : vector<8x128xf32>
    %156 = math.log %155 : vector<8x128xf32>
    %157 = arith.addf %149, %156 : vector<8x128xf32>
    %cst_93 = arith.constant 9.99999974E-6 : f32
    %158 = vector.broadcast %cst_93 : f32 to vector<8x128xf32>
    %159 = arith.addf %157, %158 : vector<8x128xf32>
    %160 = arith.index_cast %c0_i32 : i32 to index
    %c0_94 = arith.constant 0 : index
    %c0_95 = arith.constant 0 : index
    %161 = vector.load %arg28[%160, %c0_94, %c0_95] : memref<8x8x384xf32, #tpu.memory_space<vmem>>, vector<1x8x384xf32>
    %162 = vector.shape_cast %161 : vector<1x8x384xf32> to vector<8x384xf32>
    %163 = vector.extract_strided_slice %136 {offsets = [0, 128], sizes = [8, 384], strides = [1, 1]} : vector<8x512xf32> to vector<8x384xf32>
    %164 = arith.addf %162, %163 : vector<8x384xf32>
    %165 = vector.extract_strided_slice %164 {offsets = [0, 0], sizes = [8, 128], strides = [1, 1]} : vector<8x384xf32> to vector<8x128xf32>
    %166 = vector.extract_strided_slice %75 {offsets = [0, 384], sizes = [8, 128], strides = [1, 1]} : vector<8x768xf32> to vector<8x128xf32>
    %167 = arith.addf %165, %166 : vector<8x128xf32>
    %cst_96 = arith.constant 5.000000e-01 : f32
    %168 = vector.broadcast %cst_96 : f32 to vector<8x128xf32>
    %169 = arith.mulf %168, %167 : vector<8x128xf32>
    %170 = math.tanh %169 : vector<8x128xf32>
    %cst_97 = arith.constant 1.000000e+00 : f32
    %171 = vector.broadcast %cst_97 : f32 to vector<8x128xf32>
    %172 = arith.addf %170, %171 : vector<8x128xf32>
    %cst_98 = arith.constant 5.000000e-01 : f32
    %173 = vector.broadcast %cst_98 : f32 to vector<8x128xf32>
    %174 = arith.mulf %173, %172 : vector<8x128xf32>
    %175 = vector.extract_strided_slice %164 {offsets = [0, 128], sizes = [8, 128], strides = [1, 1]} : vector<8x384xf32> to vector<8x128xf32>
    %176 = vector.extract_strided_slice %75 {offsets = [0, 512], sizes = [8, 128], strides = [1, 1]} : vector<8x768xf32> to vector<8x128xf32>
    %177 = arith.addf %175, %176 : vector<8x128xf32>
    %cst_99 = arith.constant 5.000000e-01 : f32
    %178 = vector.broadcast %cst_99 : f32 to vector<8x128xf32>
    %179 = arith.mulf %178, %177 : vector<8x128xf32>
    %180 = math.tanh %179 : vector<8x128xf32>
    %cst_100 = arith.constant 1.000000e+00 : f32
    %181 = vector.broadcast %cst_100 : f32 to vector<8x128xf32>
    %182 = arith.addf %180, %181 : vector<8x128xf32>
    %cst_101 = arith.constant 5.000000e-01 : f32
    %183 = vector.broadcast %cst_101 : f32 to vector<8x128xf32>
    %184 = arith.mulf %183, %182 : vector<8x128xf32>
    %185 = vector.extract_strided_slice %164 {offsets = [0, 256], sizes = [8, 128], strides = [1, 1]} : vector<8x384xf32> to vector<8x128xf32>
    %186 = vector.extract_strided_slice %75 {offsets = [0, 640], sizes = [8, 128], strides = [1, 1]} : vector<8x768xf32> to vector<8x128xf32>
    %187 = arith.mulf %174, %186 : vector<8x128xf32>
    %188 = arith.addf %185, %187 : vector<8x128xf32>
    %189 = math.tanh %188 : vector<8x128xf32>
    %cst_102 = arith.constant 1.000000e+00 : f32
    %190 = vector.broadcast %cst_102 : f32 to vector<8x128xf32>
    %191 = arith.subf %190, %184 : vector<8x128xf32>
    %192 = arith.mulf %191, %189 : vector<8x128xf32>
    %193 = arith.mulf %184, %62 : vector<8x128xf32>
    %194 = arith.addf %192, %193 : vector<8x128xf32>
    %195 = tpu.reciprocal %99 {approx = true} : vector<8x128xf32> -> vector<8x128xf32>
    %196 = tpu.reciprocal %159 {approx = true} : vector<8x128xf32> -> vector<8x128xf32>
    %197 = math.log %99 : vector<8x128xf32>
    %198 = math.log %124 : vector<8x128xf32>
    %199 = arith.subf %197, %198 : vector<8x128xf32>
    %200 = arith.mulf %124, %124 : vector<8x128xf32>
    %201 = arith.subf %111, %86 : vector<8x128xf32>
    %202 = arith.mulf %201, %201 : vector<8x128xf32>
    %203 = arith.addf %200, %202 : vector<8x128xf32>
    %cst_103 = arith.constant 5.000000e-01 : f32
    %204 = vector.broadcast %cst_103 : f32 to vector<8x128xf32>
    %205 = arith.mulf %204, %195 : vector<8x128xf32>
    %206 = arith.mulf %205, %195 : vector<8x128xf32>
    %207 = arith.mulf %203, %206 : vector<8x128xf32>
    %208 = arith.addf %199, %207 : vector<8x128xf32>
    %cst_104 = arith.constant 5.000000e-01 : f32
    %209 = vector.broadcast %cst_104 : f32 to vector<8x128xf32>
    %210 = arith.subf %208, %209 : vector<8x128xf32>
    %211 = math.log %159 : vector<8x128xf32>
    %cst_105 = arith.constant 2.000000e+00 : f32
    %212 = vector.broadcast %cst_105 : f32 to vector<8x128xf32>
    %213 = arith.mulf %212, %211 : vector<8x128xf32>
    %cst_106 = arith.constant 1.83787704 : f32
    %214 = vector.broadcast %cst_106 : f32 to vector<8x128xf32>
    %215 = arith.addf %214, %213 : vector<8x128xf32>
    %216 = arith.subf %67, %146 : vector<8x128xf32>
    %217 = arith.mulf %216, %196 : vector<8x128xf32>
    %218 = arith.mulf %217, %217 : vector<8x128xf32>
    %219 = arith.addf %215, %218 : vector<8x128xf32>
    %cst_107 = arith.constant 5.000000e-01 : f32
    %220 = vector.broadcast %cst_107 : f32 to vector<8x128xf32>
    %221 = arith.mulf %220, %219 : vector<8x128xf32>
    %222 = arith.addf %63, %210 : vector<8x128xf32>
    %223 = arith.addf %64, %221 : vector<8x128xf32>
    %c1_i32 = arith.constant 1 : i32
    %224 = arith.index_cast %c1_i32 : i32 to index
    %c0_108 = arith.constant 0 : index
    %c0_109 = arith.constant 0 : index
    %225 = vector.load %arg26[%224, %c0_108, %c0_109] : memref<8x8x128xf32, #tpu.memory_space<vmem>>, vector<1x8x128xf32>
    %226 = vector.shape_cast %225 : vector<1x8x128xf32> to vector<8x128xf32>
    %227 = arith.index_cast %c1_i32 : i32 to index
    %c0_110 = arith.constant 0 : index
    %c0_111 = arith.constant 0 : index
    %228 = vector.load %arg2[%227, %c0_110, %c0_111] : memref<8x8x128xf32, #tpu.memory_space<vmem>>, vector<1x8x128xf32>
    %229 = vector.shape_cast %228 : vector<1x8x128xf32> to vector<8x128xf32>
    %c0_112 = arith.constant 0 : index
    %c0_113 = arith.constant 0 : index
    %230 = vector.load %arg11[%c0_112, %c0_113] : memref<128x768xbf16, #tpu.memory_space<vmem>>, vector<128x768xbf16>
    %231 = arith.truncf %194 : vector<8x128xf32> to vector<8x128xbf16>
    %cst_114 = arith.constant dense<0.000000e+00> : vector<8x768xf32>
    %232 = tpu.matmul %231, %230, %cst_114 {dimension_numbers = #tpu.dot_dimension_numbers<[1], [0], [0], [1], [0, 0, 1, 1], [], []>} : vector<8x128xbf16>, vector<128x768xbf16>, vector<8x768xf32> -> vector<8x768xf32>
    %233 = vector.broadcast %57 : vector<1x768xf32> to vector<8x768xf32>
    %234 = arith.addf %232, %233 : vector<8x768xf32>
    %235 = vector.extract_strided_slice %234 {offsets = [0, 0], sizes = [8, 128], strides = [1, 1]} : vector<8x768xf32> to vector<8x128xf32>
    %cst_115 = arith.constant 0.000000e+00 : f32
    %236 = vector.broadcast %cst_115 : f32 to vector<8x128xf32>
    %237 = arith.maximumf %235, %236 : vector<8x128xf32>
    %238 = vector.extract_strided_slice %234 {offsets = [0, 128], sizes = [8, 128], strides = [1, 1]} : vector<8x768xf32> to vector<8x128xf32>
    %239 = vector.extract_strided_slice %234 {offsets = [0, 256], sizes = [8, 128], strides = [1, 1]} : vector<8x768xf32> to vector<8x128xf32>
    %c0_116 = arith.constant 0 : index
    %c0_117 = arith.constant 0 : index
    %240 = vector.load %arg14[%c0_116, %c0_117] : memref<128x256xbf16, #tpu.memory_space<vmem>>, vector<128x256xbf16>
    %241 = arith.truncf %237 : vector<8x128xf32> to vector<8x128xbf16>
    %cst_118 = arith.constant dense<0.000000e+00> : vector<8x256xf32>
    %242 = tpu.matmul %241, %240, %cst_118 {dimension_numbers = #tpu.dot_dimension_numbers<[1], [0], [0], [1], [0, 0, 1, 1], [], []>} : vector<8x128xbf16>, vector<128x256xbf16>, vector<8x256xf32> -> vector<8x256xf32>
    %243 = vector.broadcast %58 : vector<1x256xf32> to vector<8x256xf32>
    %244 = arith.addf %242, %243 : vector<8x256xf32>
    %245 = vector.extract_strided_slice %244 {offsets = [0, 0], sizes = [8, 128], strides = [1, 1]} : vector<8x256xf32> to vector<8x128xf32>
    %246 = vector.extract_strided_slice %244 {offsets = [0, 128], sizes = [8, 128], strides = [1, 1]} : vector<8x256xf32> to vector<8x128xf32>
    %cst_119 = arith.constant 0.000000e+00 : f32
    %247 = vector.broadcast %cst_119 : f32 to vector<8x128xf32>
    %248 = arith.maximumf %246, %247 : vector<8x128xf32>
    %249 = math.absf %246 : vector<8x128xf32>
    %cst_120 = arith.constant 0.000000e+00 : f32
    %250 = vector.broadcast %cst_120 : f32 to vector<8x128xf32>
    %251 = arith.subf %250, %249 : vector<8x128xf32>
    %252 = math.exp %251 : vector<8x128xf32>
    %cst_121 = arith.constant 1.000000e+00 : f32
    %253 = vector.broadcast %cst_121 : f32 to vector<8x128xf32>
    %254 = arith.addf %253, %252 : vector<8x128xf32>
    %255 = math.log %254 : vector<8x128xf32>
    %256 = arith.addf %248, %255 : vector<8x128xf32>
    %cst_122 = arith.constant 9.99999974E-6 : f32
    %257 = vector.broadcast %cst_122 : f32 to vector<8x128xf32>
    %258 = arith.addf %256, %257 : vector<8x128xf32>
    %259 = arith.index_cast %c1_i32 : i32 to index
    %c0_123 = arith.constant 0 : index
    %c0_124 = arith.constant 0 : index
    %260 = vector.load %arg27[%259, %c0_123, %c0_124] : memref<8x8x128xf32, #tpu.memory_space<vmem>>, vector<1x8x128xf32>
    %261 = vector.shape_cast %260 : vector<1x8x128xf32> to vector<8x128xf32>
    %262 = arith.addf %261, %238 : vector<8x128xf32>
    %cst_125 = arith.constant 0.000000e+00 : f32
    %263 = vector.broadcast %cst_125 : f32 to vector<8x128xf32>
    %264 = arith.maximumf %262, %263 : vector<8x128xf32>
    %c0_126 = arith.constant 0 : index
    %c0_127 = arith.constant 0 : index
    %265 = vector.load %arg16[%c0_126, %c0_127] : memref<128x256xbf16, #tpu.memory_space<vmem>>, vector<128x256xbf16>
    %266 = arith.truncf %264 : vector<8x128xf32> to vector<8x128xbf16>
    %cst_128 = arith.constant dense<0.000000e+00> : vector<8x256xf32>
    %267 = tpu.matmul %266, %265, %cst_128 {dimension_numbers = #tpu.dot_dimension_numbers<[1], [0], [0], [1], [0, 0, 1, 1], [], []>} : vector<8x128xbf16>, vector<128x256xbf16>, vector<8x256xf32> -> vector<8x256xf32>
    %268 = vector.broadcast %59 : vector<1x256xf32> to vector<8x256xf32>
    %269 = arith.addf %267, %268 : vector<8x256xf32>
    %270 = vector.extract_strided_slice %269 {offsets = [0, 0], sizes = [8, 128], strides = [1, 1]} : vector<8x256xf32> to vector<8x128xf32>
    %271 = vector.extract_strided_slice %269 {offsets = [0, 128], sizes = [8, 128], strides = [1, 1]} : vector<8x256xf32> to vector<8x128xf32>
    %cst_129 = arith.constant 0.000000e+00 : f32
    %272 = vector.broadcast %cst_129 : f32 to vector<8x128xf32>
    %273 = arith.maximumf %271, %272 : vector<8x128xf32>
    %274 = math.absf %271 : vector<8x128xf32>
    %cst_130 = arith.constant 0.000000e+00 : f32
    %275 = vector.broadcast %cst_130 : f32 to vector<8x128xf32>
    %276 = arith.subf %275, %274 : vector<8x128xf32>
    %277 = math.exp %276 : vector<8x128xf32>
    %cst_131 = arith.constant 1.000000e+00 : f32
    %278 = vector.broadcast %cst_131 : f32 to vector<8x128xf32>
    %279 = arith.addf %278, %277 : vector<8x128xf32>
    %280 = math.log %279 : vector<8x128xf32>
    %281 = arith.addf %273, %280 : vector<8x128xf32>
    %cst_132 = arith.constant 9.99999974E-6 : f32
    %282 = vector.broadcast %cst_132 : f32 to vector<8x128xf32>
    %283 = arith.addf %281, %282 : vector<8x128xf32>
    %284 = arith.mulf %283, %229 : vector<8x128xf32>
    %285 = arith.addf %270, %284 : vector<8x128xf32>
    %c0_133 = arith.constant 0 : index
    %c0_134 = arith.constant 0 : index
    %286 = vector.load %arg18[%c0_133, %c0_134] : memref<128x128xbf16, #tpu.memory_space<vmem>>, vector<128x128xbf16>
    %287 = arith.truncf %285 : vector<8x128xf32> to vector<8x128xbf16>
    %cst_135 = arith.constant dense<0.000000e+00> : vector<8x128xf32>
    %288 = tpu.matmul %287, %286, %cst_135 {dimension_numbers = #tpu.dot_dimension_numbers<[1], [0], [0], [1], [0, 0, 1, 1], [], []>} : vector<8x128xbf16>, vector<128x128xbf16>, vector<8x128xf32> -> vector<8x128xf32>
    %289 = vector.broadcast %60 : vector<1x128xf32> to vector<8x128xf32>
    %290 = arith.addf %288, %289 : vector<8x128xf32>
    %cst_136 = arith.constant 0.000000e+00 : f32
    %291 = vector.broadcast %cst_136 : f32 to vector<8x128xf32>
    %292 = arith.maximumf %290, %291 : vector<8x128xf32>
    %c0_137 = arith.constant 0 : index
    %c0_138 = arith.constant 0 : index
    %293 = vector.load %arg20[%c0_137, %c0_138] : memref<128x512xbf16, #tpu.memory_space<vmem>>, vector<128x512xbf16>
    %294 = arith.truncf %292 : vector<8x128xf32> to vector<8x128xbf16>
    %cst_139 = arith.constant dense<0.000000e+00> : vector<8x512xf32>
    %295 = tpu.matmul %294, %293, %cst_139 {dimension_numbers = #tpu.dot_dimension_numbers<[1], [0], [0], [1], [0, 0, 1, 1], [], []>} : vector<8x128xbf16>, vector<128x512xbf16>, vector<8x512xf32> -> vector<8x512xf32>
    %296 = vector.extract_strided_slice %295 {offsets = [0, 0], sizes = [8, 128], strides = [1, 1]} : vector<8x512xf32> to vector<8x128xf32>
    %297 = arith.addf %296, %239 : vector<8x128xf32>
    %cst_140 = arith.constant 0.000000e+00 : f32
    %298 = vector.broadcast %cst_140 : f32 to vector<8x128xf32>
    %299 = arith.maximumf %297, %298 : vector<8x128xf32>
    %c0_141 = arith.constant 0 : index
    %c0_142 = arith.constant 0 : index
    %300 = vector.load %arg21[%c0_141, %c0_142] : memref<128x256xbf16, #tpu.memory_space<vmem>>, vector<128x256xbf16>
    %301 = arith.truncf %299 : vector<8x128xf32> to vector<8x128xbf16>
    %cst_143 = arith.constant dense<0.000000e+00> : vector<8x256xf32>
    %302 = tpu.matmul %301, %300, %cst_143 {dimension_numbers = #tpu.dot_dimension_numbers<[1], [0], [0], [1], [0, 0, 1, 1], [], []>} : vector<8x128xbf16>, vector<128x256xbf16>, vector<8x256xf32> -> vector<8x256xf32>
    %303 = vector.broadcast %61 : vector<1x256xf32> to vector<8x256xf32>
    %304 = arith.addf %302, %303 : vector<8x256xf32>
    %305 = vector.extract_strided_slice %304 {offsets = [0, 0], sizes = [8, 128], strides = [1, 1]} : vector<8x256xf32> to vector<8x128xf32>
    %306 = vector.extract_strided_slice %304 {offsets = [0, 128], sizes = [8, 128], strides = [1, 1]} : vector<8x256xf32> to vector<8x128xf32>
    %cst_144 = arith.constant 0.000000e+00 : f32
    %307 = vector.broadcast %cst_144 : f32 to vector<8x128xf32>
    %308 = arith.maximumf %306, %307 : vector<8x128xf32>
    %309 = math.absf %306 : vector<8x128xf32>
    %cst_145 = arith.constant 0.000000e+00 : f32
    %310 = vector.broadcast %cst_145 : f32 to vector<8x128xf32>
    %311 = arith.subf %310, %309 : vector<8x128xf32>
    %312 = math.exp %311 : vector<8x128xf32>
    %cst_146 = arith.constant 1.000000e+00 : f32
    %313 = vector.broadcast %cst_146 : f32 to vector<8x128xf32>
    %314 = arith.addf %313, %312 : vector<8x128xf32>
    %315 = math.log %314 : vector<8x128xf32>
    %316 = arith.addf %308, %315 : vector<8x128xf32>
    %cst_147 = arith.constant 9.99999974E-6 : f32
    %317 = vector.broadcast %cst_147 : f32 to vector<8x128xf32>
    %318 = arith.addf %316, %317 : vector<8x128xf32>
    %319 = arith.index_cast %c1_i32 : i32 to index
    %c0_148 = arith.constant 0 : index
    %c0_149 = arith.constant 0 : index
    %320 = vector.load %arg28[%319, %c0_148, %c0_149] : memref<8x8x384xf32, #tpu.memory_space<vmem>>, vector<1x8x384xf32>
    %321 = vector.shape_cast %320 : vector<1x8x384xf32> to vector<8x384xf32>
    %322 = vector.extract_strided_slice %295 {offsets = [0, 128], sizes = [8, 384], strides = [1, 1]} : vector<8x512xf32> to vector<8x384xf32>
    %323 = arith.addf %321, %322 : vector<8x384xf32>
    %324 = vector.extract_strided_slice %323 {offsets = [0, 0], sizes = [8, 128], strides = [1, 1]} : vector<8x384xf32> to vector<8x128xf32>
    %325 = vector.extract_strided_slice %234 {offsets = [0, 384], sizes = [8, 128], strides = [1, 1]} : vector<8x768xf32> to vector<8x128xf32>
    %326 = arith.addf %324, %325 : vector<8x128xf32>
    %cst_150 = arith.constant 5.000000e-01 : f32
    %327 = vector.broadcast %cst_150 : f32 to vector<8x128xf32>
    %328 = arith.mulf %327, %326 : vector<8x128xf32>
    %329 = math.tanh %328 : vector<8x128xf32>
    %cst_151 = arith.constant 1.000000e+00 : f32
    %330 = vector.broadcast %cst_151 : f32 to vector<8x128xf32>
    %331 = arith.addf %329, %330 : vector<8x128xf32>
    %cst_152 = arith.constant 5.000000e-01 : f32
    %332 = vector.broadcast %cst_152 : f32 to vector<8x128xf32>
    %333 = arith.mulf %332, %331 : vector<8x128xf32>
    %334 = vector.extract_strided_slice %323 {offsets = [0, 128], sizes = [8, 128], strides = [1, 1]} : vector<8x384xf32> to vector<8x128xf32>
    %335 = vector.extract_strided_slice %234 {offsets = [0, 512], sizes = [8, 128], strides = [1, 1]} : vector<8x768xf32> to vector<8x128xf32>
    %336 = arith.addf %334, %335 : vector<8x128xf32>
    %cst_153 = arith.constant 5.000000e-01 : f32
    %337 = vector.broadcast %cst_153 : f32 to vector<8x128xf32>
    %338 = arith.mulf %337, %336 : vector<8x128xf32>
    %339 = math.tanh %338 : vector<8x128xf32>
    %cst_154 = arith.constant 1.000000e+00 : f32
    %340 = vector.broadcast %cst_154 : f32 to vector<8x128xf32>
    %341 = arith.addf %339, %340 : vector<8x128xf32>
    %cst_155 = arith.constant 5.000000e-01 : f32
    %342 = vector.broadcast %cst_155 : f32 to vector<8x128xf32>
    %343 = arith.mulf %342, %341 : vector<8x128xf32>
    %344 = vector.extract_strided_slice %323 {offsets = [0, 256], sizes = [8, 128], strides = [1, 1]} : vector<8x384xf32> to vector<8x128xf32>
    %345 = vector.extract_strided_slice %234 {offsets = [0, 640], sizes = [8, 128], strides = [1, 1]} : vector<8x768xf32> to vector<8x128xf32>
    %346 = arith.mulf %333, %345 : vector<8x128xf32>
    %347 = arith.addf %344, %346 : vector<8x128xf32>
    %348 = math.tanh %347 : vector<8x128xf32>
    %cst_156 = arith.constant 1.000000e+00 : f32
    %349 = vector.broadcast %cst_156 : f32 to vector<8x128xf32>
    %350 = arith.subf %349, %343 : vector<8x128xf32>
    %351 = arith.mulf %350, %348 : vector<8x128xf32>
    %352 = arith.mulf %343, %194 : vector<8x128xf32>
    %353 = arith.addf %351, %352 : vector<8x128xf32>
    %354 = tpu.reciprocal %258 {approx = true} : vector<8x128xf32> -> vector<8x128xf32>
    %355 = tpu.reciprocal %318 {approx = true} : vector<8x128xf32> -> vector<8x128xf32>
    %356 = math.log %258 : vector<8x128xf32>
    %357 = math.log %283 : vector<8x128xf32>
    %358 = arith.subf %356, %357 : vector<8x128xf32>
    %359 = arith.mulf %283, %283 : vector<8x128xf32>
    %360 = arith.subf %270, %245 : vector<8x128xf32>
    %361 = arith.mulf %360, %360 : vector<8x128xf32>
    %362 = arith.addf %359, %361 : vector<8x128xf32>
    %cst_157 = arith.constant 5.000000e-01 : f32
    %363 = vector.broadcast %cst_157 : f32 to vector<8x128xf32>
    %364 = arith.mulf %363, %354 : vector<8x128xf32>
    %365 = arith.mulf %364, %354 : vector<8x128xf32>
    %366 = arith.mulf %362, %365 : vector<8x128xf32>
    %367 = arith.addf %358, %366 : vector<8x128xf32>
    %cst_158 = arith.constant 5.000000e-01 : f32
    %368 = vector.broadcast %cst_158 : f32 to vector<8x128xf32>
    %369 = arith.subf %367, %368 : vector<8x128xf32>
    %370 = math.log %318 : vector<8x128xf32>
    %cst_159 = arith.constant 2.000000e+00 : f32
    %371 = vector.broadcast %cst_159 : f32 to vector<8x128xf32>
    %372 = arith.mulf %371, %370 : vector<8x128xf32>
    %cst_160 = arith.constant 1.83787704 : f32
    %373 = vector.broadcast %cst_160 : f32 to vector<8x128xf32>
    %374 = arith.addf %373, %372 : vector<8x128xf32>
    %375 = arith.subf %226, %305 : vector<8x128xf32>
    %376 = arith.mulf %375, %355 : vector<8x128xf32>
    %377 = arith.mulf %376, %376 : vector<8x128xf32>
    %378 = arith.addf %374, %377 : vector<8x128xf32>
    %cst_161 = arith.constant 5.000000e-01 : f32
    %379 = vector.broadcast %cst_161 : f32 to vector<8x128xf32>
    %380 = arith.mulf %379, %378 : vector<8x128xf32>
    %381 = arith.addf %222, %369 : vector<8x128xf32>
    %382 = arith.addf %223, %380 : vector<8x128xf32>
    %c2_i32_162 = arith.constant 2 : i32
    %383 = arith.index_cast %c2_i32_162 : i32 to index
    %c0_163 = arith.constant 0 : index
    %c0_164 = arith.constant 0 : index
    %384 = vector.load %arg26[%383, %c0_163, %c0_164] : memref<8x8x128xf32, #tpu.memory_space<vmem>>, vector<1x8x128xf32>
    %385 = vector.shape_cast %384 : vector<1x8x128xf32> to vector<8x128xf32>
    %386 = arith.index_cast %c2_i32_162 : i32 to index
    %c0_165 = arith.constant 0 : index
    %c0_166 = arith.constant 0 : index
    %387 = vector.load %arg2[%386, %c0_165, %c0_166] : memref<8x8x128xf32, #tpu.memory_space<vmem>>, vector<1x8x128xf32>
    %388 = vector.shape_cast %387 : vector<1x8x128xf32> to vector<8x128xf32>
    %c0_167 = arith.constant 0 : index
    %c0_168 = arith.constant 0 : index
    %389 = vector.load %arg11[%c0_167, %c0_168] : memref<128x768xbf16, #tpu.memory_space<vmem>>, vector<128x768xbf16>
    %390 = arith.truncf %353 : vector<8x128xf32> to vector<8x128xbf16>
    %cst_169 = arith.constant dense<0.000000e+00> : vector<8x768xf32>
    %391 = tpu.matmul %390, %389, %cst_169 {dimension_numbers = #tpu.dot_dimension_numbers<[1], [0], [0], [1], [0, 0, 1, 1], [], []>} : vector<8x128xbf16>, vector<128x768xbf16>, vector<8x768xf32> -> vector<8x768xf32>
    %392 = vector.broadcast %57 : vector<1x768xf32> to vector<8x768xf32>
    %393 = arith.addf %391, %392 : vector<8x768xf32>
    %394 = vector.extract_strided_slice %393 {offsets = [0, 0], sizes = [8, 128], strides = [1, 1]} : vector<8x768xf32> to vector<8x128xf32>
    %cst_170 = arith.constant 0.000000e+00 : f32
    %395 = vector.broadcast %cst_170 : f32 to vector<8x128xf32>
    %396 = arith.maximumf %394, %395 : vector<8x128xf32>
    %397 = vector.extract_strided_slice %393 {offsets = [0, 128], sizes = [8, 128], strides = [1, 1]} : vector<8x768xf32> to vector<8x128xf32>
    %398 = vector.extract_strided_slice %393 {offsets = [0, 256], sizes = [8, 128], strides = [1, 1]} : vector<8x768xf32> to vector<8x128xf32>
    %c0_171 = arith.constant 0 : index
    %c0_172 = arith.constant 0 : index
    %399 = vector.load %arg14[%c0_171, %c0_172] : memref<128x256xbf16, #tpu.memory_space<vmem>>, vector<128x256xbf16>
    %400 = arith.truncf %396 : vector<8x128xf32> to vector<8x128xbf16>
    %cst_173 = arith.constant dense<0.000000e+00> : vector<8x256xf32>
    %401 = tpu.matmul %400, %399, %cst_173 {dimension_numbers = #tpu.dot_dimension_numbers<[1], [0], [0], [1], [0, 0, 1, 1], [], []>} : vector<8x128xbf16>, vector<128x256xbf16>, vector<8x256xf32> -> vector<8x256xf32>
    %402 = vector.broadcast %58 : vector<1x256xf32> to vector<8x256xf32>
    %403 = arith.addf %401, %402 : vector<8x256xf32>
    %404 = vector.extract_strided_slice %403 {offsets = [0, 0], sizes = [8, 128], strides = [1, 1]} : vector<8x256xf32> to vector<8x128xf32>
    %405 = vector.extract_strided_slice %403 {offsets = [0, 128], sizes = [8, 128], strides = [1, 1]} : vector<8x256xf32> to vector<8x128xf32>
    %cst_174 = arith.constant 0.000000e+00 : f32
    %406 = vector.broadcast %cst_174 : f32 to vector<8x128xf32>
    %407 = arith.maximumf %405, %406 : vector<8x128xf32>
    %408 = math.absf %405 : vector<8x128xf32>
    %cst_175 = arith.constant 0.000000e+00 : f32
    %409 = vector.broadcast %cst_175 : f32 to vector<8x128xf32>
    %410 = arith.subf %409, %408 : vector<8x128xf32>
    %411 = math.exp %410 : vector<8x128xf32>
    %cst_176 = arith.constant 1.000000e+00 : f32
    %412 = vector.broadcast %cst_176 : f32 to vector<8x128xf32>
    %413 = arith.addf %412, %411 : vector<8x128xf32>
    %414 = math.log %413 : vector<8x128xf32>
    %415 = arith.addf %407, %414 : vector<8x128xf32>
    %cst_177 = arith.constant 9.99999974E-6 : f32
    %416 = vector.broadcast %cst_177 : f32 to vector<8x128xf32>
    %417 = arith.addf %415, %416 : vector<8x128xf32>
    %418 = arith.index_cast %c2_i32_162 : i32 to index
    %c0_178 = arith.constant 0 : index
    %c0_179 = arith.constant 0 : index
    %419 = vector.load %arg27[%418, %c0_178, %c0_179] : memref<8x8x128xf32, #tpu.memory_space<vmem>>, vector<1x8x128xf32>
    %420 = vector.shape_cast %419 : vector<1x8x128xf32> to vector<8x128xf32>
    %421 = arith.addf %420, %397 : vector<8x128xf32>
    %cst_180 = arith.constant 0.000000e+00 : f32
    %422 = vector.broadcast %cst_180 : f32 to vector<8x128xf32>
    %423 = arith.maximumf %421, %422 : vector<8x128xf32>
    %c0_181 = arith.constant 0 : index
    %c0_182 = arith.constant 0 : index
    %424 = vector.load %arg16[%c0_181, %c0_182] : memref<128x256xbf16, #tpu.memory_space<vmem>>, vector<128x256xbf16>
    %425 = arith.truncf %423 : vector<8x128xf32> to vector<8x128xbf16>
    %cst_183 = arith.constant dense<0.000000e+00> : vector<8x256xf32>
    %426 = tpu.matmul %425, %424, %cst_183 {dimension_numbers = #tpu.dot_dimension_numbers<[1], [0], [0], [1], [0, 0, 1, 1], [], []>} : vector<8x128xbf16>, vector<128x256xbf16>, vector<8x256xf32> -> vector<8x256xf32>
    %427 = vector.broadcast %59 : vector<1x256xf32> to vector<8x256xf32>
    %428 = arith.addf %426, %427 : vector<8x256xf32>
    %429 = vector.extract_strided_slice %428 {offsets = [0, 0], sizes = [8, 128], strides = [1, 1]} : vector<8x256xf32> to vector<8x128xf32>
    %430 = vector.extract_strided_slice %428 {offsets = [0, 128], sizes = [8, 128], strides = [1, 1]} : vector<8x256xf32> to vector<8x128xf32>
    %cst_184 = arith.constant 0.000000e+00 : f32
    %431 = vector.broadcast %cst_184 : f32 to vector<8x128xf32>
    %432 = arith.maximumf %430, %431 : vector<8x128xf32>
    %433 = math.absf %430 : vector<8x128xf32>
    %cst_185 = arith.constant 0.000000e+00 : f32
    %434 = vector.broadcast %cst_185 : f32 to vector<8x128xf32>
    %435 = arith.subf %434, %433 : vector<8x128xf32>
    %436 = math.exp %435 : vector<8x128xf32>
    %cst_186 = arith.constant 1.000000e+00 : f32
    %437 = vector.broadcast %cst_186 : f32 to vector<8x128xf32>
    %438 = arith.addf %437, %436 : vector<8x128xf32>
    %439 = math.log %438 : vector<8x128xf32>
    %440 = arith.addf %432, %439 : vector<8x128xf32>
    %cst_187 = arith.constant 9.99999974E-6 : f32
    %441 = vector.broadcast %cst_187 : f32 to vector<8x128xf32>
    %442 = arith.addf %440, %441 : vector<8x128xf32>
    %443 = arith.mulf %442, %388 : vector<8x128xf32>
    %444 = arith.addf %429, %443 : vector<8x128xf32>
    %c0_188 = arith.constant 0 : index
    %c0_189 = arith.constant 0 : index
    %445 = vector.load %arg18[%c0_188, %c0_189] : memref<128x128xbf16, #tpu.memory_space<vmem>>, vector<128x128xbf16>
    %446 = arith.truncf %444 : vector<8x128xf32> to vector<8x128xbf16>
    %cst_190 = arith.constant dense<0.000000e+00> : vector<8x128xf32>
    %447 = tpu.matmul %446, %445, %cst_190 {dimension_numbers = #tpu.dot_dimension_numbers<[1], [0], [0], [1], [0, 0, 1, 1], [], []>} : vector<8x128xbf16>, vector<128x128xbf16>, vector<8x128xf32> -> vector<8x128xf32>
    %448 = vector.broadcast %60 : vector<1x128xf32> to vector<8x128xf32>
    %449 = arith.addf %447, %448 : vector<8x128xf32>
    %cst_191 = arith.constant 0.000000e+00 : f32
    %450 = vector.broadcast %cst_191 : f32 to vector<8x128xf32>
    %451 = arith.maximumf %449, %450 : vector<8x128xf32>
    %c0_192 = arith.constant 0 : index
    %c0_193 = arith.constant 0 : index
    %452 = vector.load %arg20[%c0_192, %c0_193] : memref<128x512xbf16, #tpu.memory_space<vmem>>, vector<128x512xbf16>
    %453 = arith.truncf %451 : vector<8x128xf32> to vector<8x128xbf16>
    %cst_194 = arith.constant dense<0.000000e+00> : vector<8x512xf32>
    %454 = tpu.matmul %453, %452, %cst_194 {dimension_numbers = #tpu.dot_dimension_numbers<[1], [0], [0], [1], [0, 0, 1, 1], [], []>} : vector<8x128xbf16>, vector<128x512xbf16>, vector<8x512xf32> -> vector<8x512xf32>
    %455 = vector.extract_strided_slice %454 {offsets = [0, 0], sizes = [8, 128], strides = [1, 1]} : vector<8x512xf32> to vector<8x128xf32>
    %456 = arith.addf %455, %398 : vector<8x128xf32>
    %cst_195 = arith.constant 0.000000e+00 : f32
    %457 = vector.broadcast %cst_195 : f32 to vector<8x128xf32>
    %458 = arith.maximumf %456, %457 : vector<8x128xf32>
    %c0_196 = arith.constant 0 : index
    %c0_197 = arith.constant 0 : index
    %459 = vector.load %arg21[%c0_196, %c0_197] : memref<128x256xbf16, #tpu.memory_space<vmem>>, vector<128x256xbf16>
    %460 = arith.truncf %458 : vector<8x128xf32> to vector<8x128xbf16>
    %cst_198 = arith.constant dense<0.000000e+00> : vector<8x256xf32>
    %461 = tpu.matmul %460, %459, %cst_198 {dimension_numbers = #tpu.dot_dimension_numbers<[1], [0], [0], [1], [0, 0, 1, 1], [], []>} : vector<8x128xbf16>, vector<128x256xbf16>, vector<8x256xf32> -> vector<8x256xf32>
    %462 = vector.broadcast %61 : vector<1x256xf32> to vector<8x256xf32>
    %463 = arith.addf %461, %462 : vector<8x256xf32>
    %464 = vector.extract_strided_slice %463 {offsets = [0, 0], sizes = [8, 128], strides = [1, 1]} : vector<8x256xf32> to vector<8x128xf32>
    %465 = vector.extract_strided_slice %463 {offsets = [0, 128], sizes = [8, 128], strides = [1, 1]} : vector<8x256xf32> to vector<8x128xf32>
    %cst_199 = arith.constant 0.000000e+00 : f32
    %466 = vector.broadcast %cst_199 : f32 to vector<8x128xf32>
    %467 = arith.maximumf %465, %466 : vector<8x128xf32>
    %468 = math.absf %465 : vector<8x128xf32>
    %cst_200 = arith.constant 0.000000e+00 : f32
    %469 = vector.broadcast %cst_200 : f32 to vector<8x128xf32>
    %470 = arith.subf %469, %468 : vector<8x128xf32>
    %471 = math.exp %470 : vector<8x128xf32>
    %cst_201 = arith.constant 1.000000e+00 : f32
    %472 = vector.broadcast %cst_201 : f32 to vector<8x128xf32>
    %473 = arith.addf %472, %471 : vector<8x128xf32>
    %474 = math.log %473 : vector<8x128xf32>
    %475 = arith.addf %467, %474 : vector<8x128xf32>
    %cst_202 = arith.constant 9.99999974E-6 : f32
    %476 = vector.broadcast %cst_202 : f32 to vector<8x128xf32>
    %477 = arith.addf %475, %476 : vector<8x128xf32>
    %478 = arith.index_cast %c2_i32_162 : i32 to index
    %c0_203 = arith.constant 0 : index
    %c0_204 = arith.constant 0 : index
    %479 = vector.load %arg28[%478, %c0_203, %c0_204] : memref<8x8x384xf32, #tpu.memory_space<vmem>>, vector<1x8x384xf32>
    %480 = vector.shape_cast %479 : vector<1x8x384xf32> to vector<8x384xf32>
    %481 = vector.extract_strided_slice %454 {offsets = [0, 128], sizes = [8, 384], strides = [1, 1]} : vector<8x512xf32> to vector<8x384xf32>
    %482 = arith.addf %480, %481 : vector<8x384xf32>
    %483 = vector.extract_strided_slice %482 {offsets = [0, 0], sizes = [8, 128], strides = [1, 1]} : vector<8x384xf32> to vector<8x128xf32>
    %484 = vector.extract_strided_slice %393 {offsets = [0, 384], sizes = [8, 128], strides = [1, 1]} : vector<8x768xf32> to vector<8x128xf32>
    %485 = arith.addf %483, %484 : vector<8x128xf32>
    %cst_205 = arith.constant 5.000000e-01 : f32
    %486 = vector.broadcast %cst_205 : f32 to vector<8x128xf32>
    %487 = arith.mulf %486, %485 : vector<8x128xf32>
    %488 = math.tanh %487 : vector<8x128xf32>
    %cst_206 = arith.constant 1.000000e+00 : f32
    %489 = vector.broadcast %cst_206 : f32 to vector<8x128xf32>
    %490 = arith.addf %488, %489 : vector<8x128xf32>
    %cst_207 = arith.constant 5.000000e-01 : f32
    %491 = vector.broadcast %cst_207 : f32 to vector<8x128xf32>
    %492 = arith.mulf %491, %490 : vector<8x128xf32>
    %493 = vector.extract_strided_slice %482 {offsets = [0, 128], sizes = [8, 128], strides = [1, 1]} : vector<8x384xf32> to vector<8x128xf32>
    %494 = vector.extract_strided_slice %393 {offsets = [0, 512], sizes = [8, 128], strides = [1, 1]} : vector<8x768xf32> to vector<8x128xf32>
    %495 = arith.addf %493, %494 : vector<8x128xf32>
    %cst_208 = arith.constant 5.000000e-01 : f32
    %496 = vector.broadcast %cst_208 : f32 to vector<8x128xf32>
    %497 = arith.mulf %496, %495 : vector<8x128xf32>
    %498 = math.tanh %497 : vector<8x128xf32>
    %cst_209 = arith.constant 1.000000e+00 : f32
    %499 = vector.broadcast %cst_209 : f32 to vector<8x128xf32>
    %500 = arith.addf %498, %499 : vector<8x128xf32>
    %cst_210 = arith.constant 5.000000e-01 : f32
    %501 = vector.broadcast %cst_210 : f32 to vector<8x128xf32>
    %502 = arith.mulf %501, %500 : vector<8x128xf32>
    %503 = vector.extract_strided_slice %482 {offsets = [0, 256], sizes = [8, 128], strides = [1, 1]} : vector<8x384xf32> to vector<8x128xf32>
    %504 = vector.extract_strided_slice %393 {offsets = [0, 640], sizes = [8, 128], strides = [1, 1]} : vector<8x768xf32> to vector<8x128xf32>
    %505 = arith.mulf %492, %504 : vector<8x128xf32>
    %506 = arith.addf %503, %505 : vector<8x128xf32>
    %507 = math.tanh %506 : vector<8x128xf32>
    %cst_211 = arith.constant 1.000000e+00 : f32
    %508 = vector.broadcast %cst_211 : f32 to vector<8x128xf32>
    %509 = arith.subf %508, %502 : vector<8x128xf32>
    %510 = arith.mulf %509, %507 : vector<8x128xf32>
    %511 = arith.mulf %502, %353 : vector<8x128xf32>
    %512 = arith.addf %510, %511 : vector<8x128xf32>
    %513 = tpu.reciprocal %417 {approx = true} : vector<8x128xf32> -> vector<8x128xf32>
    %514 = tpu.reciprocal %477 {approx = true} : vector<8x128xf32> -> vector<8x128xf32>
    %515 = math.log %417 : vector<8x128xf32>
    %516 = math.log %442 : vector<8x128xf32>
    %517 = arith.subf %515, %516 : vector<8x128xf32>
    %518 = arith.mulf %442, %442 : vector<8x128xf32>
    %519 = arith.subf %429, %404 : vector<8x128xf32>
    %520 = arith.mulf %519, %519 : vector<8x128xf32>
    %521 = arith.addf %518, %520 : vector<8x128xf32>
    %cst_212 = arith.constant 5.000000e-01 : f32
    %522 = vector.broadcast %cst_212 : f32 to vector<8x128xf32>
    %523 = arith.mulf %522, %513 : vector<8x128xf32>
    %524 = arith.mulf %523, %513 : vector<8x128xf32>
    %525 = arith.mulf %521, %524 : vector<8x128xf32>
    %526 = arith.addf %517, %525 : vector<8x128xf32>
    %cst_213 = arith.constant 5.000000e-01 : f32
    %527 = vector.broadcast %cst_213 : f32 to vector<8x128xf32>
    %528 = arith.subf %526, %527 : vector<8x128xf32>
    %529 = math.log %477 : vector<8x128xf32>
    %cst_214 = arith.constant 2.000000e+00 : f32
    %530 = vector.broadcast %cst_214 : f32 to vector<8x128xf32>
    %531 = arith.mulf %530, %529 : vector<8x128xf32>
    %cst_215 = arith.constant 1.83787704 : f32
    %532 = vector.broadcast %cst_215 : f32 to vector<8x128xf32>
    %533 = arith.addf %532, %531 : vector<8x128xf32>
    %534 = arith.subf %385, %464 : vector<8x128xf32>
    %535 = arith.mulf %534, %514 : vector<8x128xf32>
    %536 = arith.mulf %535, %535 : vector<8x128xf32>
    %537 = arith.addf %533, %536 : vector<8x128xf32>
    %cst_216 = arith.constant 5.000000e-01 : f32
    %538 = vector.broadcast %cst_216 : f32 to vector<8x128xf32>
    %539 = arith.mulf %538, %537 : vector<8x128xf32>
    %540 = arith.addf %381, %528 : vector<8x128xf32>
    %541 = arith.addf %382, %539 : vector<8x128xf32>
    %c3_i32 = arith.constant 3 : i32
    %542 = arith.index_cast %c3_i32 : i32 to index
    %c0_217 = arith.constant 0 : index
    %c0_218 = arith.constant 0 : index
    %543 = vector.load %arg26[%542, %c0_217, %c0_218] : memref<8x8x128xf32, #tpu.memory_space<vmem>>, vector<1x8x128xf32>
    %544 = vector.shape_cast %543 : vector<1x8x128xf32> to vector<8x128xf32>
    %545 = arith.index_cast %c3_i32 : i32 to index
    %c0_219 = arith.constant 0 : index
    %c0_220 = arith.constant 0 : index
    %546 = vector.load %arg2[%545, %c0_219, %c0_220] : memref<8x8x128xf32, #tpu.memory_space<vmem>>, vector<1x8x128xf32>
    %547 = vector.shape_cast %546 : vector<1x8x128xf32> to vector<8x128xf32>
    %c0_221 = arith.constant 0 : index
    %c0_222 = arith.constant 0 : index
    %548 = vector.load %arg11[%c0_221, %c0_222] : memref<128x768xbf16, #tpu.memory_space<vmem>>, vector<128x768xbf16>
    %549 = arith.truncf %512 : vector<8x128xf32> to vector<8x128xbf16>
    %cst_223 = arith.constant dense<0.000000e+00> : vector<8x768xf32>
    %550 = tpu.matmul %549, %548, %cst_223 {dimension_numbers = #tpu.dot_dimension_numbers<[1], [0], [0], [1], [0, 0, 1, 1], [], []>} : vector<8x128xbf16>, vector<128x768xbf16>, vector<8x768xf32> -> vector<8x768xf32>
    %551 = vector.broadcast %57 : vector<1x768xf32> to vector<8x768xf32>
    %552 = arith.addf %550, %551 : vector<8x768xf32>
    %553 = vector.extract_strided_slice %552 {offsets = [0, 0], sizes = [8, 128], strides = [1, 1]} : vector<8x768xf32> to vector<8x128xf32>
    %cst_224 = arith.constant 0.000000e+00 : f32
    %554 = vector.broadcast %cst_224 : f32 to vector<8x128xf32>
    %555 = arith.maximumf %553, %554 : vector<8x128xf32>
    %556 = vector.extract_strided_slice %552 {offsets = [0, 128], sizes = [8, 128], strides = [1, 1]} : vector<8x768xf32> to vector<8x128xf32>
    %557 = vector.extract_strided_slice %552 {offsets = [0, 256], sizes = [8, 128], strides = [1, 1]} : vector<8x768xf32> to vector<8x128xf32>
    %c0_225 = arith.constant 0 : index
    %c0_226 = arith.constant 0 : index
    %558 = vector.load %arg14[%c0_225, %c0_226] : memref<128x256xbf16, #tpu.memory_space<vmem>>, vector<128x256xbf16>
    %559 = arith.truncf %555 : vector<8x128xf32> to vector<8x128xbf16>
    %cst_227 = arith.constant dense<0.000000e+00> : vector<8x256xf32>
    %560 = tpu.matmul %559, %558, %cst_227 {dimension_numbers = #tpu.dot_dimension_numbers<[1], [0], [0], [1], [0, 0, 1, 1], [], []>} : vector<8x128xbf16>, vector<128x256xbf16>, vector<8x256xf32> -> vector<8x256xf32>
    %561 = vector.broadcast %58 : vector<1x256xf32> to vector<8x256xf32>
    %562 = arith.addf %560, %561 : vector<8x256xf32>
    %563 = vector.extract_strided_slice %562 {offsets = [0, 0], sizes = [8, 128], strides = [1, 1]} : vector<8x256xf32> to vector<8x128xf32>
    %564 = vector.extract_strided_slice %562 {offsets = [0, 128], sizes = [8, 128], strides = [1, 1]} : vector<8x256xf32> to vector<8x128xf32>
    %cst_228 = arith.constant 0.000000e+00 : f32
    %565 = vector.broadcast %cst_228 : f32 to vector<8x128xf32>
    %566 = arith.maximumf %564, %565 : vector<8x128xf32>
    %567 = math.absf %564 : vector<8x128xf32>
    %cst_229 = arith.constant 0.000000e+00 : f32
    %568 = vector.broadcast %cst_229 : f32 to vector<8x128xf32>
    %569 = arith.subf %568, %567 : vector<8x128xf32>
    %570 = math.exp %569 : vector<8x128xf32>
    %cst_230 = arith.constant 1.000000e+00 : f32
    %571 = vector.broadcast %cst_230 : f32 to vector<8x128xf32>
    %572 = arith.addf %571, %570 : vector<8x128xf32>
    %573 = math.log %572 : vector<8x128xf32>
    %574 = arith.addf %566, %573 : vector<8x128xf32>
    %cst_231 = arith.constant 9.99999974E-6 : f32
    %575 = vector.broadcast %cst_231 : f32 to vector<8x128xf32>
    %576 = arith.addf %574, %575 : vector<8x128xf32>
    %577 = arith.index_cast %c3_i32 : i32 to index
    %c0_232 = arith.constant 0 : index
    %c0_233 = arith.constant 0 : index
    %578 = vector.load %arg27[%577, %c0_232, %c0_233] : memref<8x8x128xf32, #tpu.memory_space<vmem>>, vector<1x8x128xf32>
    %579 = vector.shape_cast %578 : vector<1x8x128xf32> to vector<8x128xf32>
    %580 = arith.addf %579, %556 : vector<8x128xf32>
    %cst_234 = arith.constant 0.000000e+00 : f32
    %581 = vector.broadcast %cst_234 : f32 to vector<8x128xf32>
    %582 = arith.maximumf %580, %581 : vector<8x128xf32>
    %c0_235 = arith.constant 0 : index
    %c0_236 = arith.constant 0 : index
    %583 = vector.load %arg16[%c0_235, %c0_236] : memref<128x256xbf16, #tpu.memory_space<vmem>>, vector<128x256xbf16>
    %584 = arith.truncf %582 : vector<8x128xf32> to vector<8x128xbf16>
    %cst_237 = arith.constant dense<0.000000e+00> : vector<8x256xf32>
    %585 = tpu.matmul %584, %583, %cst_237 {dimension_numbers = #tpu.dot_dimension_numbers<[1], [0], [0], [1], [0, 0, 1, 1], [], []>} : vector<8x128xbf16>, vector<128x256xbf16>, vector<8x256xf32> -> vector<8x256xf32>
    %586 = vector.broadcast %59 : vector<1x256xf32> to vector<8x256xf32>
    %587 = arith.addf %585, %586 : vector<8x256xf32>
    %588 = vector.extract_strided_slice %587 {offsets = [0, 0], sizes = [8, 128], strides = [1, 1]} : vector<8x256xf32> to vector<8x128xf32>
    %589 = vector.extract_strided_slice %587 {offsets = [0, 128], sizes = [8, 128], strides = [1, 1]} : vector<8x256xf32> to vector<8x128xf32>
    %cst_238 = arith.constant 0.000000e+00 : f32
    %590 = vector.broadcast %cst_238 : f32 to vector<8x128xf32>
    %591 = arith.maximumf %589, %590 : vector<8x128xf32>
    %592 = math.absf %589 : vector<8x128xf32>
    %cst_239 = arith.constant 0.000000e+00 : f32
    %593 = vector.broadcast %cst_239 : f32 to vector<8x128xf32>
    %594 = arith.subf %593, %592 : vector<8x128xf32>
    %595 = math.exp %594 : vector<8x128xf32>
    %cst_240 = arith.constant 1.000000e+00 : f32
    %596 = vector.broadcast %cst_240 : f32 to vector<8x128xf32>
    %597 = arith.addf %596, %595 : vector<8x128xf32>
    %598 = math.log %597 : vector<8x128xf32>
    %599 = arith.addf %591, %598 : vector<8x128xf32>
    %cst_241 = arith.constant 9.99999974E-6 : f32
    %600 = vector.broadcast %cst_241 : f32 to vector<8x128xf32>
    %601 = arith.addf %599, %600 : vector<8x128xf32>
    %602 = arith.mulf %601, %547 : vector<8x128xf32>
    %603 = arith.addf %588, %602 : vector<8x128xf32>
    %c0_242 = arith.constant 0 : index
    %c0_243 = arith.constant 0 : index
    %604 = vector.load %arg18[%c0_242, %c0_243] : memref<128x128xbf16, #tpu.memory_space<vmem>>, vector<128x128xbf16>
    %605 = arith.truncf %603 : vector<8x128xf32> to vector<8x128xbf16>
    %cst_244 = arith.constant dense<0.000000e+00> : vector<8x128xf32>
    %606 = tpu.matmul %605, %604, %cst_244 {dimension_numbers = #tpu.dot_dimension_numbers<[1], [0], [0], [1], [0, 0, 1, 1], [], []>} : vector<8x128xbf16>, vector<128x128xbf16>, vector<8x128xf32> -> vector<8x128xf32>
    %607 = vector.broadcast %60 : vector<1x128xf32> to vector<8x128xf32>
    %608 = arith.addf %606, %607 : vector<8x128xf32>
    %cst_245 = arith.constant 0.000000e+00 : f32
    %609 = vector.broadcast %cst_245 : f32 to vector<8x128xf32>
    %610 = arith.maximumf %608, %609 : vector<8x128xf32>
    %c0_246 = arith.constant 0 : index
    %c0_247 = arith.constant 0 : index
    %611 = vector.load %arg20[%c0_246, %c0_247] : memref<128x512xbf16, #tpu.memory_space<vmem>>, vector<128x512xbf16>
    %612 = arith.truncf %610 : vector<8x128xf32> to vector<8x128xbf16>
    %cst_248 = arith.constant dense<0.000000e+00> : vector<8x512xf32>
    %613 = tpu.matmul %612, %611, %cst_248 {dimension_numbers = #tpu.dot_dimension_numbers<[1], [0], [0], [1], [0, 0, 1, 1], [], []>} : vector<8x128xbf16>, vector<128x512xbf16>, vector<8x512xf32> -> vector<8x512xf32>
    %614 = vector.extract_strided_slice %613 {offsets = [0, 0], sizes = [8, 128], strides = [1, 1]} : vector<8x512xf32> to vector<8x128xf32>
    %615 = arith.addf %614, %557 : vector<8x128xf32>
    %cst_249 = arith.constant 0.000000e+00 : f32
    %616 = vector.broadcast %cst_249 : f32 to vector<8x128xf32>
    %617 = arith.maximumf %615, %616 : vector<8x128xf32>
    %c0_250 = arith.constant 0 : index
    %c0_251 = arith.constant 0 : index
    %618 = vector.load %arg21[%c0_250, %c0_251] : memref<128x256xbf16, #tpu.memory_space<vmem>>, vector<128x256xbf16>
    %619 = arith.truncf %617 : vector<8x128xf32> to vector<8x128xbf16>
    %cst_252 = arith.constant dense<0.000000e+00> : vector<8x256xf32>
    %620 = tpu.matmul %619, %618, %cst_252 {dimension_numbers = #tpu.dot_dimension_numbers<[1], [0], [0], [1], [0, 0, 1, 1], [], []>} : vector<8x128xbf16>, vector<128x256xbf16>, vector<8x256xf32> -> vector<8x256xf32>
    %621 = vector.broadcast %61 : vector<1x256xf32> to vector<8x256xf32>
    %622 = arith.addf %620, %621 : vector<8x256xf32>
    %623 = vector.extract_strided_slice %622 {offsets = [0, 0], sizes = [8, 128], strides = [1, 1]} : vector<8x256xf32> to vector<8x128xf32>
    %624 = vector.extract_strided_slice %622 {offsets = [0, 128], sizes = [8, 128], strides = [1, 1]} : vector<8x256xf32> to vector<8x128xf32>
    %cst_253 = arith.constant 0.000000e+00 : f32
    %625 = vector.broadcast %cst_253 : f32 to vector<8x128xf32>
    %626 = arith.maximumf %624, %625 : vector<8x128xf32>
    %627 = math.absf %624 : vector<8x128xf32>
    %cst_254 = arith.constant 0.000000e+00 : f32
    %628 = vector.broadcast %cst_254 : f32 to vector<8x128xf32>
    %629 = arith.subf %628, %627 : vector<8x128xf32>
    %630 = math.exp %629 : vector<8x128xf32>
    %cst_255 = arith.constant 1.000000e+00 : f32
    %631 = vector.broadcast %cst_255 : f32 to vector<8x128xf32>
    %632 = arith.addf %631, %630 : vector<8x128xf32>
    %633 = math.log %632 : vector<8x128xf32>
    %634 = arith.addf %626, %633 : vector<8x128xf32>
    %cst_256 = arith.constant 9.99999974E-6 : f32
    %635 = vector.broadcast %cst_256 : f32 to vector<8x128xf32>
    %636 = arith.addf %634, %635 : vector<8x128xf32>
    %637 = arith.index_cast %c3_i32 : i32 to index
    %c0_257 = arith.constant 0 : index
    %c0_258 = arith.constant 0 : index
    %638 = vector.load %arg28[%637, %c0_257, %c0_258] : memref<8x8x384xf32, #tpu.memory_space<vmem>>, vector<1x8x384xf32>
    %639 = vector.shape_cast %638 : vector<1x8x384xf32> to vector<8x384xf32>
    %640 = vector.extract_strided_slice %613 {offsets = [0, 128], sizes = [8, 384], strides = [1, 1]} : vector<8x512xf32> to vector<8x384xf32>
    %641 = arith.addf %639, %640 : vector<8x384xf32>
    %642 = vector.extract_strided_slice %641 {offsets = [0, 0], sizes = [8, 128], strides = [1, 1]} : vector<8x384xf32> to vector<8x128xf32>
    %643 = vector.extract_strided_slice %552 {offsets = [0, 384], sizes = [8, 128], strides = [1, 1]} : vector<8x768xf32> to vector<8x128xf32>
    %644 = arith.addf %642, %643 : vector<8x128xf32>
    %cst_259 = arith.constant 5.000000e-01 : f32
    %645 = vector.broadcast %cst_259 : f32 to vector<8x128xf32>
    %646 = arith.mulf %645, %644 : vector<8x128xf32>
    %647 = math.tanh %646 : vector<8x128xf32>
    %cst_260 = arith.constant 1.000000e+00 : f32
    %648 = vector.broadcast %cst_260 : f32 to vector<8x128xf32>
    %649 = arith.addf %647, %648 : vector<8x128xf32>
    %cst_261 = arith.constant 5.000000e-01 : f32
    %650 = vector.broadcast %cst_261 : f32 to vector<8x128xf32>
    %651 = arith.mulf %650, %649 : vector<8x128xf32>
    %652 = vector.extract_strided_slice %641 {offsets = [0, 128], sizes = [8, 128], strides = [1, 1]} : vector<8x384xf32> to vector<8x128xf32>
    %653 = vector.extract_strided_slice %552 {offsets = [0, 512], sizes = [8, 128], strides = [1, 1]} : vector<8x768xf32> to vector<8x128xf32>
    %654 = arith.addf %652, %653 : vector<8x128xf32>
    %cst_262 = arith.constant 5.000000e-01 : f32
    %655 = vector.broadcast %cst_262 : f32 to vector<8x128xf32>
    %656 = arith.mulf %655, %654 : vector<8x128xf32>
    %657 = math.tanh %656 : vector<8x128xf32>
    %cst_263 = arith.constant 1.000000e+00 : f32
    %658 = vector.broadcast %cst_263 : f32 to vector<8x128xf32>
    %659 = arith.addf %657, %658 : vector<8x128xf32>
    %cst_264 = arith.constant 5.000000e-01 : f32
    %660 = vector.broadcast %cst_264 : f32 to vector<8x128xf32>
    %661 = arith.mulf %660, %659 : vector<8x128xf32>
    %662 = vector.extract_strided_slice %641 {offsets = [0, 256], sizes = [8, 128], strides = [1, 1]} : vector<8x384xf32> to vector<8x128xf32>
    %663 = vector.extract_strided_slice %552 {offsets = [0, 640], sizes = [8, 128], strides = [1, 1]} : vector<8x768xf32> to vector<8x128xf32>
    %664 = arith.mulf %651, %663 : vector<8x128xf32>
    %665 = arith.addf %662, %664 : vector<8x128xf32>
    %666 = math.tanh %665 : vector<8x128xf32>
    %cst_265 = arith.constant 1.000000e+00 : f32
    %667 = vector.broadcast %cst_265 : f32 to vector<8x128xf32>
    %668 = arith.subf %667, %661 : vector<8x128xf32>
    %669 = arith.mulf %668, %666 : vector<8x128xf32>
    %670 = arith.mulf %661, %512 : vector<8x128xf32>
    %671 = arith.addf %669, %670 : vector<8x128xf32>
    %672 = tpu.reciprocal %576 {approx = true} : vector<8x128xf32> -> vector<8x128xf32>
    %673 = tpu.reciprocal %636 {approx = true} : vector<8x128xf32> -> vector<8x128xf32>
    %674 = math.log %576 : vector<8x128xf32>
    %675 = math.log %601 : vector<8x128xf32>
    %676 = arith.subf %674, %675 : vector<8x128xf32>
    %677 = arith.mulf %601, %601 : vector<8x128xf32>
    %678 = arith.subf %588, %563 : vector<8x128xf32>
    %679 = arith.mulf %678, %678 : vector<8x128xf32>
    %680 = arith.addf %677, %679 : vector<8x128xf32>
    %cst_266 = arith.constant 5.000000e-01 : f32
    %681 = vector.broadcast %cst_266 : f32 to vector<8x128xf32>
    %682 = arith.mulf %681, %672 : vector<8x128xf32>
    %683 = arith.mulf %682, %672 : vector<8x128xf32>
    %684 = arith.mulf %680, %683 : vector<8x128xf32>
    %685 = arith.addf %676, %684 : vector<8x128xf32>
    %cst_267 = arith.constant 5.000000e-01 : f32
    %686 = vector.broadcast %cst_267 : f32 to vector<8x128xf32>
    %687 = arith.subf %685, %686 : vector<8x128xf32>
    %688 = math.log %636 : vector<8x128xf32>
    %cst_268 = arith.constant 2.000000e+00 : f32
    %689 = vector.broadcast %cst_268 : f32 to vector<8x128xf32>
    %690 = arith.mulf %689, %688 : vector<8x128xf32>
    %cst_269 = arith.constant 1.83787704 : f32
    %691 = vector.broadcast %cst_269 : f32 to vector<8x128xf32>
    %692 = arith.addf %691, %690 : vector<8x128xf32>
    %693 = arith.subf %544, %623 : vector<8x128xf32>
    %694 = arith.mulf %693, %673 : vector<8x128xf32>
    %695 = arith.mulf %694, %694 : vector<8x128xf32>
    %696 = arith.addf %692, %695 : vector<8x128xf32>
    %cst_270 = arith.constant 5.000000e-01 : f32
    %697 = vector.broadcast %cst_270 : f32 to vector<8x128xf32>
    %698 = arith.mulf %697, %696 : vector<8x128xf32>
    %699 = arith.addf %540, %687 : vector<8x128xf32>
    %700 = arith.addf %541, %698 : vector<8x128xf32>
    %c4_i32 = arith.constant 4 : i32
    %701 = arith.index_cast %c4_i32 : i32 to index
    %c0_271 = arith.constant 0 : index
    %c0_272 = arith.constant 0 : index
    %702 = vector.load %arg26[%701, %c0_271, %c0_272] : memref<8x8x128xf32, #tpu.memory_space<vmem>>, vector<1x8x128xf32>
    %703 = vector.shape_cast %702 : vector<1x8x128xf32> to vector<8x128xf32>
    %704 = arith.index_cast %c4_i32 : i32 to index
    %c0_273 = arith.constant 0 : index
    %c0_274 = arith.constant 0 : index
    %705 = vector.load %arg2[%704, %c0_273, %c0_274] : memref<8x8x128xf32, #tpu.memory_space<vmem>>, vector<1x8x128xf32>
    %706 = vector.shape_cast %705 : vector<1x8x128xf32> to vector<8x128xf32>
    %c0_275 = arith.constant 0 : index
    %c0_276 = arith.constant 0 : index
    %707 = vector.load %arg11[%c0_275, %c0_276] : memref<128x768xbf16, #tpu.memory_space<vmem>>, vector<128x768xbf16>
    %708 = arith.truncf %671 : vector<8x128xf32> to vector<8x128xbf16>
    %cst_277 = arith.constant dense<0.000000e+00> : vector<8x768xf32>
    %709 = tpu.matmul %708, %707, %cst_277 {dimension_numbers = #tpu.dot_dimension_numbers<[1], [0], [0], [1], [0, 0, 1, 1], [], []>} : vector<8x128xbf16>, vector<128x768xbf16>, vector<8x768xf32> -> vector<8x768xf32>
    %710 = vector.broadcast %57 : vector<1x768xf32> to vector<8x768xf32>
    %711 = arith.addf %709, %710 : vector<8x768xf32>
    %712 = vector.extract_strided_slice %711 {offsets = [0, 0], sizes = [8, 128], strides = [1, 1]} : vector<8x768xf32> to vector<8x128xf32>
    %cst_278 = arith.constant 0.000000e+00 : f32
    %713 = vector.broadcast %cst_278 : f32 to vector<8x128xf32>
    %714 = arith.maximumf %712, %713 : vector<8x128xf32>
    %715 = vector.extract_strided_slice %711 {offsets = [0, 128], sizes = [8, 128], strides = [1, 1]} : vector<8x768xf32> to vector<8x128xf32>
    %716 = vector.extract_strided_slice %711 {offsets = [0, 256], sizes = [8, 128], strides = [1, 1]} : vector<8x768xf32> to vector<8x128xf32>
    %c0_279 = arith.constant 0 : index
    %c0_280 = arith.constant 0 : index
    %717 = vector.load %arg14[%c0_279, %c0_280] : memref<128x256xbf16, #tpu.memory_space<vmem>>, vector<128x256xbf16>
    %718 = arith.truncf %714 : vector<8x128xf32> to vector<8x128xbf16>
    %cst_281 = arith.constant dense<0.000000e+00> : vector<8x256xf32>
    %719 = tpu.matmul %718, %717, %cst_281 {dimension_numbers = #tpu.dot_dimension_numbers<[1], [0], [0], [1], [0, 0, 1, 1], [], []>} : vector<8x128xbf16>, vector<128x256xbf16>, vector<8x256xf32> -> vector<8x256xf32>
    %720 = vector.broadcast %58 : vector<1x256xf32> to vector<8x256xf32>
    %721 = arith.addf %719, %720 : vector<8x256xf32>
    %722 = vector.extract_strided_slice %721 {offsets = [0, 0], sizes = [8, 128], strides = [1, 1]} : vector<8x256xf32> to vector<8x128xf32>
    %723 = vector.extract_strided_slice %721 {offsets = [0, 128], sizes = [8, 128], strides = [1, 1]} : vector<8x256xf32> to vector<8x128xf32>
    %cst_282 = arith.constant 0.000000e+00 : f32
    %724 = vector.broadcast %cst_282 : f32 to vector<8x128xf32>
    %725 = arith.maximumf %723, %724 : vector<8x128xf32>
    %726 = math.absf %723 : vector<8x128xf32>
    %cst_283 = arith.constant 0.000000e+00 : f32
    %727 = vector.broadcast %cst_283 : f32 to vector<8x128xf32>
    %728 = arith.subf %727, %726 : vector<8x128xf32>
    %729 = math.exp %728 : vector<8x128xf32>
    %cst_284 = arith.constant 1.000000e+00 : f32
    %730 = vector.broadcast %cst_284 : f32 to vector<8x128xf32>
    %731 = arith.addf %730, %729 : vector<8x128xf32>
    %732 = math.log %731 : vector<8x128xf32>
    %733 = arith.addf %725, %732 : vector<8x128xf32>
    %cst_285 = arith.constant 9.99999974E-6 : f32
    %734 = vector.broadcast %cst_285 : f32 to vector<8x128xf32>
    %735 = arith.addf %733, %734 : vector<8x128xf32>
    %736 = arith.index_cast %c4_i32 : i32 to index
    %c0_286 = arith.constant 0 : index
    %c0_287 = arith.constant 0 : index
    %737 = vector.load %arg27[%736, %c0_286, %c0_287] : memref<8x8x128xf32, #tpu.memory_space<vmem>>, vector<1x8x128xf32>
    %738 = vector.shape_cast %737 : vector<1x8x128xf32> to vector<8x128xf32>
    %739 = arith.addf %738, %715 : vector<8x128xf32>
    %cst_288 = arith.constant 0.000000e+00 : f32
    %740 = vector.broadcast %cst_288 : f32 to vector<8x128xf32>
    %741 = arith.maximumf %739, %740 : vector<8x128xf32>
    %c0_289 = arith.constant 0 : index
    %c0_290 = arith.constant 0 : index
    %742 = vector.load %arg16[%c0_289, %c0_290] : memref<128x256xbf16, #tpu.memory_space<vmem>>, vector<128x256xbf16>
    %743 = arith.truncf %741 : vector<8x128xf32> to vector<8x128xbf16>
    %cst_291 = arith.constant dense<0.000000e+00> : vector<8x256xf32>
    %744 = tpu.matmul %743, %742, %cst_291 {dimension_numbers = #tpu.dot_dimension_numbers<[1], [0], [0], [1], [0, 0, 1, 1], [], []>} : vector<8x128xbf16>, vector<128x256xbf16>, vector<8x256xf32> -> vector<8x256xf32>
    %745 = vector.broadcast %59 : vector<1x256xf32> to vector<8x256xf32>
    %746 = arith.addf %744, %745 : vector<8x256xf32>
    %747 = vector.extract_strided_slice %746 {offsets = [0, 0], sizes = [8, 128], strides = [1, 1]} : vector<8x256xf32> to vector<8x128xf32>
    %748 = vector.extract_strided_slice %746 {offsets = [0, 128], sizes = [8, 128], strides = [1, 1]} : vector<8x256xf32> to vector<8x128xf32>
    %cst_292 = arith.constant 0.000000e+00 : f32
    %749 = vector.broadcast %cst_292 : f32 to vector<8x128xf32>
    %750 = arith.maximumf %748, %749 : vector<8x128xf32>
    %751 = math.absf %748 : vector<8x128xf32>
    %cst_293 = arith.constant 0.000000e+00 : f32
    %752 = vector.broadcast %cst_293 : f32 to vector<8x128xf32>
    %753 = arith.subf %752, %751 : vector<8x128xf32>
    %754 = math.exp %753 : vector<8x128xf32>
    %cst_294 = arith.constant 1.000000e+00 : f32
    %755 = vector.broadcast %cst_294 : f32 to vector<8x128xf32>
    %756 = arith.addf %755, %754 : vector<8x128xf32>
    %757 = math.log %756 : vector<8x128xf32>
    %758 = arith.addf %750, %757 : vector<8x128xf32>
    %cst_295 = arith.constant 9.99999974E-6 : f32
    %759 = vector.broadcast %cst_295 : f32 to vector<8x128xf32>
    %760 = arith.addf %758, %759 : vector<8x128xf32>
    %761 = arith.mulf %760, %706 : vector<8x128xf32>
    %762 = arith.addf %747, %761 : vector<8x128xf32>
    %c0_296 = arith.constant 0 : index
    %c0_297 = arith.constant 0 : index
    %763 = vector.load %arg18[%c0_296, %c0_297] : memref<128x128xbf16, #tpu.memory_space<vmem>>, vector<128x128xbf16>
    %764 = arith.truncf %762 : vector<8x128xf32> to vector<8x128xbf16>
    %cst_298 = arith.constant dense<0.000000e+00> : vector<8x128xf32>
    %765 = tpu.matmul %764, %763, %cst_298 {dimension_numbers = #tpu.dot_dimension_numbers<[1], [0], [0], [1], [0, 0, 1, 1], [], []>} : vector<8x128xbf16>, vector<128x128xbf16>, vector<8x128xf32> -> vector<8x128xf32>
    %766 = vector.broadcast %60 : vector<1x128xf32> to vector<8x128xf32>
    %767 = arith.addf %765, %766 : vector<8x128xf32>
    %cst_299 = arith.constant 0.000000e+00 : f32
    %768 = vector.broadcast %cst_299 : f32 to vector<8x128xf32>
    %769 = arith.maximumf %767, %768 : vector<8x128xf32>
    %c0_300 = arith.constant 0 : index
    %c0_301 = arith.constant 0 : index
    %770 = vector.load %arg20[%c0_300, %c0_301] : memref<128x512xbf16, #tpu.memory_space<vmem>>, vector<128x512xbf16>
    %771 = arith.truncf %769 : vector<8x128xf32> to vector<8x128xbf16>
    %cst_302 = arith.constant dense<0.000000e+00> : vector<8x512xf32>
    %772 = tpu.matmul %771, %770, %cst_302 {dimension_numbers = #tpu.dot_dimension_numbers<[1], [0], [0], [1], [0, 0, 1, 1], [], []>} : vector<8x128xbf16>, vector<128x512xbf16>, vector<8x512xf32> -> vector<8x512xf32>
    %773 = vector.extract_strided_slice %772 {offsets = [0, 0], sizes = [8, 128], strides = [1, 1]} : vector<8x512xf32> to vector<8x128xf32>
    %774 = arith.addf %773, %716 : vector<8x128xf32>
    %cst_303 = arith.constant 0.000000e+00 : f32
    %775 = vector.broadcast %cst_303 : f32 to vector<8x128xf32>
    %776 = arith.maximumf %774, %775 : vector<8x128xf32>
    %c0_304 = arith.constant 0 : index
    %c0_305 = arith.constant 0 : index
    %777 = vector.load %arg21[%c0_304, %c0_305] : memref<128x256xbf16, #tpu.memory_space<vmem>>, vector<128x256xbf16>
    %778 = arith.truncf %776 : vector<8x128xf32> to vector<8x128xbf16>
    %cst_306 = arith.constant dense<0.000000e+00> : vector<8x256xf32>
    %779 = tpu.matmul %778, %777, %cst_306 {dimension_numbers = #tpu.dot_dimension_numbers<[1], [0], [0], [1], [0, 0, 1, 1], [], []>} : vector<8x128xbf16>, vector<128x256xbf16>, vector<8x256xf32> -> vector<8x256xf32>
    %780 = vector.broadcast %61 : vector<1x256xf32> to vector<8x256xf32>
    %781 = arith.addf %779, %780 : vector<8x256xf32>
    %782 = vector.extract_strided_slice %781 {offsets = [0, 0], sizes = [8, 128], strides = [1, 1]} : vector<8x256xf32> to vector<8x128xf32>
    %783 = vector.extract_strided_slice %781 {offsets = [0, 128], sizes = [8, 128], strides = [1, 1]} : vector<8x256xf32> to vector<8x128xf32>
    %cst_307 = arith.constant 0.000000e+00 : f32
    %784 = vector.broadcast %cst_307 : f32 to vector<8x128xf32>
    %785 = arith.maximumf %783, %784 : vector<8x128xf32>
    %786 = math.absf %783 : vector<8x128xf32>
    %cst_308 = arith.constant 0.000000e+00 : f32
    %787 = vector.broadcast %cst_308 : f32 to vector<8x128xf32>
    %788 = arith.subf %787, %786 : vector<8x128xf32>
    %789 = math.exp %788 : vector<8x128xf32>
    %cst_309 = arith.constant 1.000000e+00 : f32
    %790 = vector.broadcast %cst_309 : f32 to vector<8x128xf32>
    %791 = arith.addf %790, %789 : vector<8x128xf32>
    %792 = math.log %791 : vector<8x128xf32>
    %793 = arith.addf %785, %792 : vector<8x128xf32>
    %cst_310 = arith.constant 9.99999974E-6 : f32
    %794 = vector.broadcast %cst_310 : f32 to vector<8x128xf32>
    %795 = arith.addf %793, %794 : vector<8x128xf32>
    %796 = arith.index_cast %c4_i32 : i32 to index
    %c0_311 = arith.constant 0 : index
    %c0_312 = arith.constant 0 : index
    %797 = vector.load %arg28[%796, %c0_311, %c0_312] : memref<8x8x384xf32, #tpu.memory_space<vmem>>, vector<1x8x384xf32>
    %798 = vector.shape_cast %797 : vector<1x8x384xf32> to vector<8x384xf32>
    %799 = vector.extract_strided_slice %772 {offsets = [0, 128], sizes = [8, 384], strides = [1, 1]} : vector<8x512xf32> to vector<8x384xf32>
    %800 = arith.addf %798, %799 : vector<8x384xf32>
    %801 = vector.extract_strided_slice %800 {offsets = [0, 0], sizes = [8, 128], strides = [1, 1]} : vector<8x384xf32> to vector<8x128xf32>
    %802 = vector.extract_strided_slice %711 {offsets = [0, 384], sizes = [8, 128], strides = [1, 1]} : vector<8x768xf32> to vector<8x128xf32>
    %803 = arith.addf %801, %802 : vector<8x128xf32>
    %cst_313 = arith.constant 5.000000e-01 : f32
    %804 = vector.broadcast %cst_313 : f32 to vector<8x128xf32>
    %805 = arith.mulf %804, %803 : vector<8x128xf32>
    %806 = math.tanh %805 : vector<8x128xf32>
    %cst_314 = arith.constant 1.000000e+00 : f32
    %807 = vector.broadcast %cst_314 : f32 to vector<8x128xf32>
    %808 = arith.addf %806, %807 : vector<8x128xf32>
    %cst_315 = arith.constant 5.000000e-01 : f32
    %809 = vector.broadcast %cst_315 : f32 to vector<8x128xf32>
    %810 = arith.mulf %809, %808 : vector<8x128xf32>
    %811 = vector.extract_strided_slice %800 {offsets = [0, 128], sizes = [8, 128], strides = [1, 1]} : vector<8x384xf32> to vector<8x128xf32>
    %812 = vector.extract_strided_slice %711 {offsets = [0, 512], sizes = [8, 128], strides = [1, 1]} : vector<8x768xf32> to vector<8x128xf32>
    %813 = arith.addf %811, %812 : vector<8x128xf32>
    %cst_316 = arith.constant 5.000000e-01 : f32
    %814 = vector.broadcast %cst_316 : f32 to vector<8x128xf32>
    %815 = arith.mulf %814, %813 : vector<8x128xf32>
    %816 = math.tanh %815 : vector<8x128xf32>
    %cst_317 = arith.constant 1.000000e+00 : f32
    %817 = vector.broadcast %cst_317 : f32 to vector<8x128xf32>
    %818 = arith.addf %816, %817 : vector<8x128xf32>
    %cst_318 = arith.constant 5.000000e-01 : f32
    %819 = vector.broadcast %cst_318 : f32 to vector<8x128xf32>
    %820 = arith.mulf %819, %818 : vector<8x128xf32>
    %821 = vector.extract_strided_slice %800 {offsets = [0, 256], sizes = [8, 128], strides = [1, 1]} : vector<8x384xf32> to vector<8x128xf32>
    %822 = vector.extract_strided_slice %711 {offsets = [0, 640], sizes = [8, 128], strides = [1, 1]} : vector<8x768xf32> to vector<8x128xf32>
    %823 = arith.mulf %810, %822 : vector<8x128xf32>
    %824 = arith.addf %821, %823 : vector<8x128xf32>
    %825 = math.tanh %824 : vector<8x128xf32>
    %cst_319 = arith.constant 1.000000e+00 : f32
    %826 = vector.broadcast %cst_319 : f32 to vector<8x128xf32>
    %827 = arith.subf %826, %820 : vector<8x128xf32>
    %828 = arith.mulf %827, %825 : vector<8x128xf32>
    %829 = arith.mulf %820, %671 : vector<8x128xf32>
    %830 = arith.addf %828, %829 : vector<8x128xf32>
    %831 = tpu.reciprocal %735 {approx = true} : vector<8x128xf32> -> vector<8x128xf32>
    %832 = tpu.reciprocal %795 {approx = true} : vector<8x128xf32> -> vector<8x128xf32>
    %833 = math.log %735 : vector<8x128xf32>
    %834 = math.log %760 : vector<8x128xf32>
    %835 = arith.subf %833, %834 : vector<8x128xf32>
    %836 = arith.mulf %760, %760 : vector<8x128xf32>
    %837 = arith.subf %747, %722 : vector<8x128xf32>
    %838 = arith.mulf %837, %837 : vector<8x128xf32>
    %839 = arith.addf %836, %838 : vector<8x128xf32>
    %cst_320 = arith.constant 5.000000e-01 : f32
    %840 = vector.broadcast %cst_320 : f32 to vector<8x128xf32>
    %841 = arith.mulf %840, %831 : vector<8x128xf32>
    %842 = arith.mulf %841, %831 : vector<8x128xf32>
    %843 = arith.mulf %839, %842 : vector<8x128xf32>
    %844 = arith.addf %835, %843 : vector<8x128xf32>
    %cst_321 = arith.constant 5.000000e-01 : f32
    %845 = vector.broadcast %cst_321 : f32 to vector<8x128xf32>
    %846 = arith.subf %844, %845 : vector<8x128xf32>
    %847 = math.log %795 : vector<8x128xf32>
    %cst_322 = arith.constant 2.000000e+00 : f32
    %848 = vector.broadcast %cst_322 : f32 to vector<8x128xf32>
    %849 = arith.mulf %848, %847 : vector<8x128xf32>
    %cst_323 = arith.constant 1.83787704 : f32
    %850 = vector.broadcast %cst_323 : f32 to vector<8x128xf32>
    %851 = arith.addf %850, %849 : vector<8x128xf32>
    %852 = arith.subf %703, %782 : vector<8x128xf32>
    %853 = arith.mulf %852, %832 : vector<8x128xf32>
    %854 = arith.mulf %853, %853 : vector<8x128xf32>
    %855 = arith.addf %851, %854 : vector<8x128xf32>
    %cst_324 = arith.constant 5.000000e-01 : f32
    %856 = vector.broadcast %cst_324 : f32 to vector<8x128xf32>
    %857 = arith.mulf %856, %855 : vector<8x128xf32>
    %858 = arith.addf %699, %846 : vector<8x128xf32>
    %859 = arith.addf %700, %857 : vector<8x128xf32>
    %c5_i32 = arith.constant 5 : i32
    %860 = arith.index_cast %c5_i32 : i32 to index
    %c0_325 = arith.constant 0 : index
    %c0_326 = arith.constant 0 : index
    %861 = vector.load %arg26[%860, %c0_325, %c0_326] : memref<8x8x128xf32, #tpu.memory_space<vmem>>, vector<1x8x128xf32>
    %862 = vector.shape_cast %861 : vector<1x8x128xf32> to vector<8x128xf32>
    %863 = arith.index_cast %c5_i32 : i32 to index
    %c0_327 = arith.constant 0 : index
    %c0_328 = arith.constant 0 : index
    %864 = vector.load %arg2[%863, %c0_327, %c0_328] : memref<8x8x128xf32, #tpu.memory_space<vmem>>, vector<1x8x128xf32>
    %865 = vector.shape_cast %864 : vector<1x8x128xf32> to vector<8x128xf32>
    %c0_329 = arith.constant 0 : index
    %c0_330 = arith.constant 0 : index
    %866 = vector.load %arg11[%c0_329, %c0_330] : memref<128x768xbf16, #tpu.memory_space<vmem>>, vector<128x768xbf16>
    %867 = arith.truncf %830 : vector<8x128xf32> to vector<8x128xbf16>
    %cst_331 = arith.constant dense<0.000000e+00> : vector<8x768xf32>
    %868 = tpu.matmul %867, %866, %cst_331 {dimension_numbers = #tpu.dot_dimension_numbers<[1], [0], [0], [1], [0, 0, 1, 1], [], []>} : vector<8x128xbf16>, vector<128x768xbf16>, vector<8x768xf32> -> vector<8x768xf32>
    %869 = vector.broadcast %57 : vector<1x768xf32> to vector<8x768xf32>
    %870 = arith.addf %868, %869 : vector<8x768xf32>
    %871 = vector.extract_strided_slice %870 {offsets = [0, 0], sizes = [8, 128], strides = [1, 1]} : vector<8x768xf32> to vector<8x128xf32>
    %cst_332 = arith.constant 0.000000e+00 : f32
    %872 = vector.broadcast %cst_332 : f32 to vector<8x128xf32>
    %873 = arith.maximumf %871, %872 : vector<8x128xf32>
    %874 = vector.extract_strided_slice %870 {offsets = [0, 128], sizes = [8, 128], strides = [1, 1]} : vector<8x768xf32> to vector<8x128xf32>
    %875 = vector.extract_strided_slice %870 {offsets = [0, 256], sizes = [8, 128], strides = [1, 1]} : vector<8x768xf32> to vector<8x128xf32>
    %c0_333 = arith.constant 0 : index
    %c0_334 = arith.constant 0 : index
    %876 = vector.load %arg14[%c0_333, %c0_334] : memref<128x256xbf16, #tpu.memory_space<vmem>>, vector<128x256xbf16>
    %877 = arith.truncf %873 : vector<8x128xf32> to vector<8x128xbf16>
    %cst_335 = arith.constant dense<0.000000e+00> : vector<8x256xf32>
    %878 = tpu.matmul %877, %876, %cst_335 {dimension_numbers = #tpu.dot_dimension_numbers<[1], [0], [0], [1], [0, 0, 1, 1], [], []>} : vector<8x128xbf16>, vector<128x256xbf16>, vector<8x256xf32> -> vector<8x256xf32>
    %879 = vector.broadcast %58 : vector<1x256xf32> to vector<8x256xf32>
    %880 = arith.addf %878, %879 : vector<8x256xf32>
    %881 = vector.extract_strided_slice %880 {offsets = [0, 0], sizes = [8, 128], strides = [1, 1]} : vector<8x256xf32> to vector<8x128xf32>
    %882 = vector.extract_strided_slice %880 {offsets = [0, 128], sizes = [8, 128], strides = [1, 1]} : vector<8x256xf32> to vector<8x128xf32>
    %cst_336 = arith.constant 0.000000e+00 : f32
    %883 = vector.broadcast %cst_336 : f32 to vector<8x128xf32>
    %884 = arith.maximumf %882, %883 : vector<8x128xf32>
    %885 = math.absf %882 : vector<8x128xf32>
    %cst_337 = arith.constant 0.000000e+00 : f32
    %886 = vector.broadcast %cst_337 : f32 to vector<8x128xf32>
    %887 = arith.subf %886, %885 : vector<8x128xf32>
    %888 = math.exp %887 : vector<8x128xf32>
    %cst_338 = arith.constant 1.000000e+00 : f32
    %889 = vector.broadcast %cst_338 : f32 to vector<8x128xf32>
    %890 = arith.addf %889, %888 : vector<8x128xf32>
    %891 = math.log %890 : vector<8x128xf32>
    %892 = arith.addf %884, %891 : vector<8x128xf32>
    %cst_339 = arith.constant 9.99999974E-6 : f32
    %893 = vector.broadcast %cst_339 : f32 to vector<8x128xf32>
    %894 = arith.addf %892, %893 : vector<8x128xf32>
    %895 = arith.index_cast %c5_i32 : i32 to index
    %c0_340 = arith.constant 0 : index
    %c0_341 = arith.constant 0 : index
    %896 = vector.load %arg27[%895, %c0_340, %c0_341] : memref<8x8x128xf32, #tpu.memory_space<vmem>>, vector<1x8x128xf32>
    %897 = vector.shape_cast %896 : vector<1x8x128xf32> to vector<8x128xf32>
    %898 = arith.addf %897, %874 : vector<8x128xf32>
    %cst_342 = arith.constant 0.000000e+00 : f32
    %899 = vector.broadcast %cst_342 : f32 to vector<8x128xf32>
    %900 = arith.maximumf %898, %899 : vector<8x128xf32>
    %c0_343 = arith.constant 0 : index
    %c0_344 = arith.constant 0 : index
    %901 = vector.load %arg16[%c0_343, %c0_344] : memref<128x256xbf16, #tpu.memory_space<vmem>>, vector<128x256xbf16>
    %902 = arith.truncf %900 : vector<8x128xf32> to vector<8x128xbf16>
    %cst_345 = arith.constant dense<0.000000e+00> : vector<8x256xf32>
    %903 = tpu.matmul %902, %901, %cst_345 {dimension_numbers = #tpu.dot_dimension_numbers<[1], [0], [0], [1], [0, 0, 1, 1], [], []>} : vector<8x128xbf16>, vector<128x256xbf16>, vector<8x256xf32> -> vector<8x256xf32>
    %904 = vector.broadcast %59 : vector<1x256xf32> to vector<8x256xf32>
    %905 = arith.addf %903, %904 : vector<8x256xf32>
    %906 = vector.extract_strided_slice %905 {offsets = [0, 0], sizes = [8, 128], strides = [1, 1]} : vector<8x256xf32> to vector<8x128xf32>
    %907 = vector.extract_strided_slice %905 {offsets = [0, 128], sizes = [8, 128], strides = [1, 1]} : vector<8x256xf32> to vector<8x128xf32>
    %cst_346 = arith.constant 0.000000e+00 : f32
    %908 = vector.broadcast %cst_346 : f32 to vector<8x128xf32>
    %909 = arith.maximumf %907, %908 : vector<8x128xf32>
    %910 = math.absf %907 : vector<8x128xf32>
    %cst_347 = arith.constant 0.000000e+00 : f32
    %911 = vector.broadcast %cst_347 : f32 to vector<8x128xf32>
    %912 = arith.subf %911, %910 : vector<8x128xf32>
    %913 = math.exp %912 : vector<8x128xf32>
    %cst_348 = arith.constant 1.000000e+00 : f32
    %914 = vector.broadcast %cst_348 : f32 to vector<8x128xf32>
    %915 = arith.addf %914, %913 : vector<8x128xf32>
    %916 = math.log %915 : vector<8x128xf32>
    %917 = arith.addf %909, %916 : vector<8x128xf32>
    %cst_349 = arith.constant 9.99999974E-6 : f32
    %918 = vector.broadcast %cst_349 : f32 to vector<8x128xf32>
    %919 = arith.addf %917, %918 : vector<8x128xf32>
    %920 = arith.mulf %919, %865 : vector<8x128xf32>
    %921 = arith.addf %906, %920 : vector<8x128xf32>
    %c0_350 = arith.constant 0 : index
    %c0_351 = arith.constant 0 : index
    %922 = vector.load %arg18[%c0_350, %c0_351] : memref<128x128xbf16, #tpu.memory_space<vmem>>, vector<128x128xbf16>
    %923 = arith.truncf %921 : vector<8x128xf32> to vector<8x128xbf16>
    %cst_352 = arith.constant dense<0.000000e+00> : vector<8x128xf32>
    %924 = tpu.matmul %923, %922, %cst_352 {dimension_numbers = #tpu.dot_dimension_numbers<[1], [0], [0], [1], [0, 0, 1, 1], [], []>} : vector<8x128xbf16>, vector<128x128xbf16>, vector<8x128xf32> -> vector<8x128xf32>
    %925 = vector.broadcast %60 : vector<1x128xf32> to vector<8x128xf32>
    %926 = arith.addf %924, %925 : vector<8x128xf32>
    %cst_353 = arith.constant 0.000000e+00 : f32
    %927 = vector.broadcast %cst_353 : f32 to vector<8x128xf32>
    %928 = arith.maximumf %926, %927 : vector<8x128xf32>
    %c0_354 = arith.constant 0 : index
    %c0_355 = arith.constant 0 : index
    %929 = vector.load %arg20[%c0_354, %c0_355] : memref<128x512xbf16, #tpu.memory_space<vmem>>, vector<128x512xbf16>
    %930 = arith.truncf %928 : vector<8x128xf32> to vector<8x128xbf16>
    %cst_356 = arith.constant dense<0.000000e+00> : vector<8x512xf32>
    %931 = tpu.matmul %930, %929, %cst_356 {dimension_numbers = #tpu.dot_dimension_numbers<[1], [0], [0], [1], [0, 0, 1, 1], [], []>} : vector<8x128xbf16>, vector<128x512xbf16>, vector<8x512xf32> -> vector<8x512xf32>
    %932 = vector.extract_strided_slice %931 {offsets = [0, 0], sizes = [8, 128], strides = [1, 1]} : vector<8x512xf32> to vector<8x128xf32>
    %933 = arith.addf %932, %875 : vector<8x128xf32>
    %cst_357 = arith.constant 0.000000e+00 : f32
    %934 = vector.broadcast %cst_357 : f32 to vector<8x128xf32>
    %935 = arith.maximumf %933, %934 : vector<8x128xf32>
    %c0_358 = arith.constant 0 : index
    %c0_359 = arith.constant 0 : index
    %936 = vector.load %arg21[%c0_358, %c0_359] : memref<128x256xbf16, #tpu.memory_space<vmem>>, vector<128x256xbf16>
    %937 = arith.truncf %935 : vector<8x128xf32> to vector<8x128xbf16>
    %cst_360 = arith.constant dense<0.000000e+00> : vector<8x256xf32>
    %938 = tpu.matmul %937, %936, %cst_360 {dimension_numbers = #tpu.dot_dimension_numbers<[1], [0], [0], [1], [0, 0, 1, 1], [], []>} : vector<8x128xbf16>, vector<128x256xbf16>, vector<8x256xf32> -> vector<8x256xf32>
    %939 = vector.broadcast %61 : vector<1x256xf32> to vector<8x256xf32>
    %940 = arith.addf %938, %939 : vector<8x256xf32>
    %941 = vector.extract_strided_slice %940 {offsets = [0, 0], sizes = [8, 128], strides = [1, 1]} : vector<8x256xf32> to vector<8x128xf32>
    %942 = vector.extract_strided_slice %940 {offsets = [0, 128], sizes = [8, 128], strides = [1, 1]} : vector<8x256xf32> to vector<8x128xf32>
    %cst_361 = arith.constant 0.000000e+00 : f32
    %943 = vector.broadcast %cst_361 : f32 to vector<8x128xf32>
    %944 = arith.maximumf %942, %943 : vector<8x128xf32>
    %945 = math.absf %942 : vector<8x128xf32>
    %cst_362 = arith.constant 0.000000e+00 : f32
    %946 = vector.broadcast %cst_362 : f32 to vector<8x128xf32>
    %947 = arith.subf %946, %945 : vector<8x128xf32>
    %948 = math.exp %947 : vector<8x128xf32>
    %cst_363 = arith.constant 1.000000e+00 : f32
    %949 = vector.broadcast %cst_363 : f32 to vector<8x128xf32>
    %950 = arith.addf %949, %948 : vector<8x128xf32>
    %951 = math.log %950 : vector<8x128xf32>
    %952 = arith.addf %944, %951 : vector<8x128xf32>
    %cst_364 = arith.constant 9.99999974E-6 : f32
    %953 = vector.broadcast %cst_364 : f32 to vector<8x128xf32>
    %954 = arith.addf %952, %953 : vector<8x128xf32>
    %955 = arith.index_cast %c5_i32 : i32 to index
    %c0_365 = arith.constant 0 : index
    %c0_366 = arith.constant 0 : index
    %956 = vector.load %arg28[%955, %c0_365, %c0_366] : memref<8x8x384xf32, #tpu.memory_space<vmem>>, vector<1x8x384xf32>
    %957 = vector.shape_cast %956 : vector<1x8x384xf32> to vector<8x384xf32>
    %958 = vector.extract_strided_slice %931 {offsets = [0, 128], sizes = [8, 384], strides = [1, 1]} : vector<8x512xf32> to vector<8x384xf32>
    %959 = arith.addf %957, %958 : vector<8x384xf32>
    %960 = vector.extract_strided_slice %959 {offsets = [0, 0], sizes = [8, 128], strides = [1, 1]} : vector<8x384xf32> to vector<8x128xf32>
    %961 = vector.extract_strided_slice %870 {offsets = [0, 384], sizes = [8, 128], strides = [1, 1]} : vector<8x768xf32> to vector<8x128xf32>
    %962 = arith.addf %960, %961 : vector<8x128xf32>
    %cst_367 = arith.constant 5.000000e-01 : f32
    %963 = vector.broadcast %cst_367 : f32 to vector<8x128xf32>
    %964 = arith.mulf %963, %962 : vector<8x128xf32>
    %965 = math.tanh %964 : vector<8x128xf32>
    %cst_368 = arith.constant 1.000000e+00 : f32
    %966 = vector.broadcast %cst_368 : f32 to vector<8x128xf32>
    %967 = arith.addf %965, %966 : vector<8x128xf32>
    %cst_369 = arith.constant 5.000000e-01 : f32
    %968 = vector.broadcast %cst_369 : f32 to vector<8x128xf32>
    %969 = arith.mulf %968, %967 : vector<8x128xf32>
    %970 = vector.extract_strided_slice %959 {offsets = [0, 128], sizes = [8, 128], strides = [1, 1]} : vector<8x384xf32> to vector<8x128xf32>
    %971 = vector.extract_strided_slice %870 {offsets = [0, 512], sizes = [8, 128], strides = [1, 1]} : vector<8x768xf32> to vector<8x128xf32>
    %972 = arith.addf %970, %971 : vector<8x128xf32>
    %cst_370 = arith.constant 5.000000e-01 : f32
    %973 = vector.broadcast %cst_370 : f32 to vector<8x128xf32>
    %974 = arith.mulf %973, %972 : vector<8x128xf32>
    %975 = math.tanh %974 : vector<8x128xf32>
    %cst_371 = arith.constant 1.000000e+00 : f32
    %976 = vector.broadcast %cst_371 : f32 to vector<8x128xf32>
    %977 = arith.addf %975, %976 : vector<8x128xf32>
    %cst_372 = arith.constant 5.000000e-01 : f32
    %978 = vector.broadcast %cst_372 : f32 to vector<8x128xf32>
    %979 = arith.mulf %978, %977 : vector<8x128xf32>
    %980 = vector.extract_strided_slice %959 {offsets = [0, 256], sizes = [8, 128], strides = [1, 1]} : vector<8x384xf32> to vector<8x128xf32>
    %981 = vector.extract_strided_slice %870 {offsets = [0, 640], sizes = [8, 128], strides = [1, 1]} : vector<8x768xf32> to vector<8x128xf32>
    %982 = arith.mulf %969, %981 : vector<8x128xf32>
    %983 = arith.addf %980, %982 : vector<8x128xf32>
    %984 = math.tanh %983 : vector<8x128xf32>
    %cst_373 = arith.constant 1.000000e+00 : f32
    %985 = vector.broadcast %cst_373 : f32 to vector<8x128xf32>
    %986 = arith.subf %985, %979 : vector<8x128xf32>
    %987 = arith.mulf %986, %984 : vector<8x128xf32>
    %988 = arith.mulf %979, %830 : vector<8x128xf32>
    %989 = arith.addf %987, %988 : vector<8x128xf32>
    %990 = tpu.reciprocal %894 {approx = true} : vector<8x128xf32> -> vector<8x128xf32>
    %991 = tpu.reciprocal %954 {approx = true} : vector<8x128xf32> -> vector<8x128xf32>
    %992 = math.log %894 : vector<8x128xf32>
    %993 = math.log %919 : vector<8x128xf32>
    %994 = arith.subf %992, %993 : vector<8x128xf32>
    %995 = arith.mulf %919, %919 : vector<8x128xf32>
    %996 = arith.subf %906, %881 : vector<8x128xf32>
    %997 = arith.mulf %996, %996 : vector<8x128xf32>
    %998 = arith.addf %995, %997 : vector<8x128xf32>
    %cst_374 = arith.constant 5.000000e-01 : f32
    %999 = vector.broadcast %cst_374 : f32 to vector<8x128xf32>
    %1000 = arith.mulf %999, %990 : vector<8x128xf32>
    %1001 = arith.mulf %1000, %990 : vector<8x128xf32>
    %1002 = arith.mulf %998, %1001 : vector<8x128xf32>
    %1003 = arith.addf %994, %1002 : vector<8x128xf32>
    %cst_375 = arith.constant 5.000000e-01 : f32
    %1004 = vector.broadcast %cst_375 : f32 to vector<8x128xf32>
    %1005 = arith.subf %1003, %1004 : vector<8x128xf32>
    %1006 = math.log %954 : vector<8x128xf32>
    %cst_376 = arith.constant 2.000000e+00 : f32
    %1007 = vector.broadcast %cst_376 : f32 to vector<8x128xf32>
    %1008 = arith.mulf %1007, %1006 : vector<8x128xf32>
    %cst_377 = arith.constant 1.83787704 : f32
    %1009 = vector.broadcast %cst_377 : f32 to vector<8x128xf32>
    %1010 = arith.addf %1009, %1008 : vector<8x128xf32>
    %1011 = arith.subf %862, %941 : vector<8x128xf32>
    %1012 = arith.mulf %1011, %991 : vector<8x128xf32>
    %1013 = arith.mulf %1012, %1012 : vector<8x128xf32>
    %1014 = arith.addf %1010, %1013 : vector<8x128xf32>
    %cst_378 = arith.constant 5.000000e-01 : f32
    %1015 = vector.broadcast %cst_378 : f32 to vector<8x128xf32>
    %1016 = arith.mulf %1015, %1014 : vector<8x128xf32>
    %1017 = arith.addf %858, %1005 : vector<8x128xf32>
    %1018 = arith.addf %859, %1016 : vector<8x128xf32>
    %c6_i32 = arith.constant 6 : i32
    %1019 = arith.index_cast %c6_i32 : i32 to index
    %c0_379 = arith.constant 0 : index
    %c0_380 = arith.constant 0 : index
    %1020 = vector.load %arg26[%1019, %c0_379, %c0_380] : memref<8x8x128xf32, #tpu.memory_space<vmem>>, vector<1x8x128xf32>
    %1021 = vector.shape_cast %1020 : vector<1x8x128xf32> to vector<8x128xf32>
    %1022 = arith.index_cast %c6_i32 : i32 to index
    %c0_381 = arith.constant 0 : index
    %c0_382 = arith.constant 0 : index
    %1023 = vector.load %arg2[%1022, %c0_381, %c0_382] : memref<8x8x128xf32, #tpu.memory_space<vmem>>, vector<1x8x128xf32>
    %1024 = vector.shape_cast %1023 : vector<1x8x128xf32> to vector<8x128xf32>
    %c0_383 = arith.constant 0 : index
    %c0_384 = arith.constant 0 : index
    %1025 = vector.load %arg11[%c0_383, %c0_384] : memref<128x768xbf16, #tpu.memory_space<vmem>>, vector<128x768xbf16>
    %1026 = arith.truncf %989 : vector<8x128xf32> to vector<8x128xbf16>
    %cst_385 = arith.constant dense<0.000000e+00> : vector<8x768xf32>
    %1027 = tpu.matmul %1026, %1025, %cst_385 {dimension_numbers = #tpu.dot_dimension_numbers<[1], [0], [0], [1], [0, 0, 1, 1], [], []>} : vector<8x128xbf16>, vector<128x768xbf16>, vector<8x768xf32> -> vector<8x768xf32>
    %1028 = vector.broadcast %57 : vector<1x768xf32> to vector<8x768xf32>
    %1029 = arith.addf %1027, %1028 : vector<8x768xf32>
    %1030 = vector.extract_strided_slice %1029 {offsets = [0, 0], sizes = [8, 128], strides = [1, 1]} : vector<8x768xf32> to vector<8x128xf32>
    %cst_386 = arith.constant 0.000000e+00 : f32
    %1031 = vector.broadcast %cst_386 : f32 to vector<8x128xf32>
    %1032 = arith.maximumf %1030, %1031 : vector<8x128xf32>
    %1033 = vector.extract_strided_slice %1029 {offsets = [0, 128], sizes = [8, 128], strides = [1, 1]} : vector<8x768xf32> to vector<8x128xf32>
    %1034 = vector.extract_strided_slice %1029 {offsets = [0, 256], sizes = [8, 128], strides = [1, 1]} : vector<8x768xf32> to vector<8x128xf32>
    %c0_387 = arith.constant 0 : index
    %c0_388 = arith.constant 0 : index
    %1035 = vector.load %arg14[%c0_387, %c0_388] : memref<128x256xbf16, #tpu.memory_space<vmem>>, vector<128x256xbf16>
    %1036 = arith.truncf %1032 : vector<8x128xf32> to vector<8x128xbf16>
    %cst_389 = arith.constant dense<0.000000e+00> : vector<8x256xf32>
    %1037 = tpu.matmul %1036, %1035, %cst_389 {dimension_numbers = #tpu.dot_dimension_numbers<[1], [0], [0], [1], [0, 0, 1, 1], [], []>} : vector<8x128xbf16>, vector<128x256xbf16>, vector<8x256xf32> -> vector<8x256xf32>
    %1038 = vector.broadcast %58 : vector<1x256xf32> to vector<8x256xf32>
    %1039 = arith.addf %1037, %1038 : vector<8x256xf32>
    %1040 = vector.extract_strided_slice %1039 {offsets = [0, 0], sizes = [8, 128], strides = [1, 1]} : vector<8x256xf32> to vector<8x128xf32>
    %1041 = vector.extract_strided_slice %1039 {offsets = [0, 128], sizes = [8, 128], strides = [1, 1]} : vector<8x256xf32> to vector<8x128xf32>
    %cst_390 = arith.constant 0.000000e+00 : f32
    %1042 = vector.broadcast %cst_390 : f32 to vector<8x128xf32>
    %1043 = arith.maximumf %1041, %1042 : vector<8x128xf32>
    %1044 = math.absf %1041 : vector<8x128xf32>
    %cst_391 = arith.constant 0.000000e+00 : f32
    %1045 = vector.broadcast %cst_391 : f32 to vector<8x128xf32>
    %1046 = arith.subf %1045, %1044 : vector<8x128xf32>
    %1047 = math.exp %1046 : vector<8x128xf32>
    %cst_392 = arith.constant 1.000000e+00 : f32
    %1048 = vector.broadcast %cst_392 : f32 to vector<8x128xf32>
    %1049 = arith.addf %1048, %1047 : vector<8x128xf32>
    %1050 = math.log %1049 : vector<8x128xf32>
    %1051 = arith.addf %1043, %1050 : vector<8x128xf32>
    %cst_393 = arith.constant 9.99999974E-6 : f32
    %1052 = vector.broadcast %cst_393 : f32 to vector<8x128xf32>
    %1053 = arith.addf %1051, %1052 : vector<8x128xf32>
    %1054 = arith.index_cast %c6_i32 : i32 to index
    %c0_394 = arith.constant 0 : index
    %c0_395 = arith.constant 0 : index
    %1055 = vector.load %arg27[%1054, %c0_394, %c0_395] : memref<8x8x128xf32, #tpu.memory_space<vmem>>, vector<1x8x128xf32>
    %1056 = vector.shape_cast %1055 : vector<1x8x128xf32> to vector<8x128xf32>
    %1057 = arith.addf %1056, %1033 : vector<8x128xf32>
    %cst_396 = arith.constant 0.000000e+00 : f32
    %1058 = vector.broadcast %cst_396 : f32 to vector<8x128xf32>
    %1059 = arith.maximumf %1057, %1058 : vector<8x128xf32>
    %c0_397 = arith.constant 0 : index
    %c0_398 = arith.constant 0 : index
    %1060 = vector.load %arg16[%c0_397, %c0_398] : memref<128x256xbf16, #tpu.memory_space<vmem>>, vector<128x256xbf16>
    %1061 = arith.truncf %1059 : vector<8x128xf32> to vector<8x128xbf16>
    %cst_399 = arith.constant dense<0.000000e+00> : vector<8x256xf32>
    %1062 = tpu.matmul %1061, %1060, %cst_399 {dimension_numbers = #tpu.dot_dimension_numbers<[1], [0], [0], [1], [0, 0, 1, 1], [], []>} : vector<8x128xbf16>, vector<128x256xbf16>, vector<8x256xf32> -> vector<8x256xf32>
    %1063 = vector.broadcast %59 : vector<1x256xf32> to vector<8x256xf32>
    %1064 = arith.addf %1062, %1063 : vector<8x256xf32>
    %1065 = vector.extract_strided_slice %1064 {offsets = [0, 0], sizes = [8, 128], strides = [1, 1]} : vector<8x256xf32> to vector<8x128xf32>
    %1066 = vector.extract_strided_slice %1064 {offsets = [0, 128], sizes = [8, 128], strides = [1, 1]} : vector<8x256xf32> to vector<8x128xf32>
    %cst_400 = arith.constant 0.000000e+00 : f32
    %1067 = vector.broadcast %cst_400 : f32 to vector<8x128xf32>
    %1068 = arith.maximumf %1066, %1067 : vector<8x128xf32>
    %1069 = math.absf %1066 : vector<8x128xf32>
    %cst_401 = arith.constant 0.000000e+00 : f32
    %1070 = vector.broadcast %cst_401 : f32 to vector<8x128xf32>
    %1071 = arith.subf %1070, %1069 : vector<8x128xf32>
    %1072 = math.exp %1071 : vector<8x128xf32>
    %cst_402 = arith.constant 1.000000e+00 : f32
    %1073 = vector.broadcast %cst_402 : f32 to vector<8x128xf32>
    %1074 = arith.addf %1073, %1072 : vector<8x128xf32>
    %1075 = math.log %1074 : vector<8x128xf32>
    %1076 = arith.addf %1068, %1075 : vector<8x128xf32>
    %cst_403 = arith.constant 9.99999974E-6 : f32
    %1077 = vector.broadcast %cst_403 : f32 to vector<8x128xf32>
    %1078 = arith.addf %1076, %1077 : vector<8x128xf32>
    %1079 = arith.mulf %1078, %1024 : vector<8x128xf32>
    %1080 = arith.addf %1065, %1079 : vector<8x128xf32>
    %c0_404 = arith.constant 0 : index
    %c0_405 = arith.constant 0 : index
    %1081 = vector.load %arg18[%c0_404, %c0_405] : memref<128x128xbf16, #tpu.memory_space<vmem>>, vector<128x128xbf16>
    %1082 = arith.truncf %1080 : vector<8x128xf32> to vector<8x128xbf16>
    %cst_406 = arith.constant dense<0.000000e+00> : vector<8x128xf32>
    %1083 = tpu.matmul %1082, %1081, %cst_406 {dimension_numbers = #tpu.dot_dimension_numbers<[1], [0], [0], [1], [0, 0, 1, 1], [], []>} : vector<8x128xbf16>, vector<128x128xbf16>, vector<8x128xf32> -> vector<8x128xf32>
    %1084 = vector.broadcast %60 : vector<1x128xf32> to vector<8x128xf32>
    %1085 = arith.addf %1083, %1084 : vector<8x128xf32>
    %cst_407 = arith.constant 0.000000e+00 : f32
    %1086 = vector.broadcast %cst_407 : f32 to vector<8x128xf32>
    %1087 = arith.maximumf %1085, %1086 : vector<8x128xf32>
    %c0_408 = arith.constant 0 : index
    %c0_409 = arith.constant 0 : index
    %1088 = vector.load %arg20[%c0_408, %c0_409] : memref<128x512xbf16, #tpu.memory_space<vmem>>, vector<128x512xbf16>
    %1089 = arith.truncf %1087 : vector<8x128xf32> to vector<8x128xbf16>
    %cst_410 = arith.constant dense<0.000000e+00> : vector<8x512xf32>
    %1090 = tpu.matmul %1089, %1088, %cst_410 {dimension_numbers = #tpu.dot_dimension_numbers<[1], [0], [0], [1], [0, 0, 1, 1], [], []>} : vector<8x128xbf16>, vector<128x512xbf16>, vector<8x512xf32> -> vector<8x512xf32>
    %1091 = vector.extract_strided_slice %1090 {offsets = [0, 0], sizes = [8, 128], strides = [1, 1]} : vector<8x512xf32> to vector<8x128xf32>
    %1092 = arith.addf %1091, %1034 : vector<8x128xf32>
    %cst_411 = arith.constant 0.000000e+00 : f32
    %1093 = vector.broadcast %cst_411 : f32 to vector<8x128xf32>
    %1094 = arith.maximumf %1092, %1093 : vector<8x128xf32>
    %c0_412 = arith.constant 0 : index
    %c0_413 = arith.constant 0 : index
    %1095 = vector.load %arg21[%c0_412, %c0_413] : memref<128x256xbf16, #tpu.memory_space<vmem>>, vector<128x256xbf16>
    %1096 = arith.truncf %1094 : vector<8x128xf32> to vector<8x128xbf16>
    %cst_414 = arith.constant dense<0.000000e+00> : vector<8x256xf32>
    %1097 = tpu.matmul %1096, %1095, %cst_414 {dimension_numbers = #tpu.dot_dimension_numbers<[1], [0], [0], [1], [0, 0, 1, 1], [], []>} : vector<8x128xbf16>, vector<128x256xbf16>, vector<8x256xf32> -> vector<8x256xf32>
    %1098 = vector.broadcast %61 : vector<1x256xf32> to vector<8x256xf32>
    %1099 = arith.addf %1097, %1098 : vector<8x256xf32>
    %1100 = vector.extract_strided_slice %1099 {offsets = [0, 0], sizes = [8, 128], strides = [1, 1]} : vector<8x256xf32> to vector<8x128xf32>
    %1101 = vector.extract_strided_slice %1099 {offsets = [0, 128], sizes = [8, 128], strides = [1, 1]} : vector<8x256xf32> to vector<8x128xf32>
    %cst_415 = arith.constant 0.000000e+00 : f32
    %1102 = vector.broadcast %cst_415 : f32 to vector<8x128xf32>
    %1103 = arith.maximumf %1101, %1102 : vector<8x128xf32>
    %1104 = math.absf %1101 : vector<8x128xf32>
    %cst_416 = arith.constant 0.000000e+00 : f32
    %1105 = vector.broadcast %cst_416 : f32 to vector<8x128xf32>
    %1106 = arith.subf %1105, %1104 : vector<8x128xf32>
    %1107 = math.exp %1106 : vector<8x128xf32>
    %cst_417 = arith.constant 1.000000e+00 : f32
    %1108 = vector.broadcast %cst_417 : f32 to vector<8x128xf32>
    %1109 = arith.addf %1108, %1107 : vector<8x128xf32>
    %1110 = math.log %1109 : vector<8x128xf32>
    %1111 = arith.addf %1103, %1110 : vector<8x128xf32>
    %cst_418 = arith.constant 9.99999974E-6 : f32
    %1112 = vector.broadcast %cst_418 : f32 to vector<8x128xf32>
    %1113 = arith.addf %1111, %1112 : vector<8x128xf32>
    %1114 = arith.index_cast %c6_i32 : i32 to index
    %c0_419 = arith.constant 0 : index
    %c0_420 = arith.constant 0 : index
    %1115 = vector.load %arg28[%1114, %c0_419, %c0_420] : memref<8x8x384xf32, #tpu.memory_space<vmem>>, vector<1x8x384xf32>
    %1116 = vector.shape_cast %1115 : vector<1x8x384xf32> to vector<8x384xf32>
    %1117 = vector.extract_strided_slice %1090 {offsets = [0, 128], sizes = [8, 384], strides = [1, 1]} : vector<8x512xf32> to vector<8x384xf32>
    %1118 = arith.addf %1116, %1117 : vector<8x384xf32>
    %1119 = vector.extract_strided_slice %1118 {offsets = [0, 0], sizes = [8, 128], strides = [1, 1]} : vector<8x384xf32> to vector<8x128xf32>
    %1120 = vector.extract_strided_slice %1029 {offsets = [0, 384], sizes = [8, 128], strides = [1, 1]} : vector<8x768xf32> to vector<8x128xf32>
    %1121 = arith.addf %1119, %1120 : vector<8x128xf32>
    %cst_421 = arith.constant 5.000000e-01 : f32
    %1122 = vector.broadcast %cst_421 : f32 to vector<8x128xf32>
    %1123 = arith.mulf %1122, %1121 : vector<8x128xf32>
    %1124 = math.tanh %1123 : vector<8x128xf32>
    %cst_422 = arith.constant 1.000000e+00 : f32
    %1125 = vector.broadcast %cst_422 : f32 to vector<8x128xf32>
    %1126 = arith.addf %1124, %1125 : vector<8x128xf32>
    %cst_423 = arith.constant 5.000000e-01 : f32
    %1127 = vector.broadcast %cst_423 : f32 to vector<8x128xf32>
    %1128 = arith.mulf %1127, %1126 : vector<8x128xf32>
    %1129 = vector.extract_strided_slice %1118 {offsets = [0, 128], sizes = [8, 128], strides = [1, 1]} : vector<8x384xf32> to vector<8x128xf32>
    %1130 = vector.extract_strided_slice %1029 {offsets = [0, 512], sizes = [8, 128], strides = [1, 1]} : vector<8x768xf32> to vector<8x128xf32>
    %1131 = arith.addf %1129, %1130 : vector<8x128xf32>
    %cst_424 = arith.constant 5.000000e-01 : f32
    %1132 = vector.broadcast %cst_424 : f32 to vector<8x128xf32>
    %1133 = arith.mulf %1132, %1131 : vector<8x128xf32>
    %1134 = math.tanh %1133 : vector<8x128xf32>
    %cst_425 = arith.constant 1.000000e+00 : f32
    %1135 = vector.broadcast %cst_425 : f32 to vector<8x128xf32>
    %1136 = arith.addf %1134, %1135 : vector<8x128xf32>
    %cst_426 = arith.constant 5.000000e-01 : f32
    %1137 = vector.broadcast %cst_426 : f32 to vector<8x128xf32>
    %1138 = arith.mulf %1137, %1136 : vector<8x128xf32>
    %1139 = vector.extract_strided_slice %1118 {offsets = [0, 256], sizes = [8, 128], strides = [1, 1]} : vector<8x384xf32> to vector<8x128xf32>
    %1140 = vector.extract_strided_slice %1029 {offsets = [0, 640], sizes = [8, 128], strides = [1, 1]} : vector<8x768xf32> to vector<8x128xf32>
    %1141 = arith.mulf %1128, %1140 : vector<8x128xf32>
    %1142 = arith.addf %1139, %1141 : vector<8x128xf32>
    %1143 = math.tanh %1142 : vector<8x128xf32>
    %cst_427 = arith.constant 1.000000e+00 : f32
    %1144 = vector.broadcast %cst_427 : f32 to vector<8x128xf32>
    %1145 = arith.subf %1144, %1138 : vector<8x128xf32>
    %1146 = arith.mulf %1145, %1143 : vector<8x128xf32>
    %1147 = arith.mulf %1138, %989 : vector<8x128xf32>
    %1148 = arith.addf %1146, %1147 : vector<8x128xf32>
    %1149 = tpu.reciprocal %1053 {approx = true} : vector<8x128xf32> -> vector<8x128xf32>
    %1150 = tpu.reciprocal %1113 {approx = true} : vector<8x128xf32> -> vector<8x128xf32>
    %1151 = math.log %1053 : vector<8x128xf32>
    %1152 = math.log %1078 : vector<8x128xf32>
    %1153 = arith.subf %1151, %1152 : vector<8x128xf32>
    %1154 = arith.mulf %1078, %1078 : vector<8x128xf32>
    %1155 = arith.subf %1065, %1040 : vector<8x128xf32>
    %1156 = arith.mulf %1155, %1155 : vector<8x128xf32>
    %1157 = arith.addf %1154, %1156 : vector<8x128xf32>
    %cst_428 = arith.constant 5.000000e-01 : f32
    %1158 = vector.broadcast %cst_428 : f32 to vector<8x128xf32>
    %1159 = arith.mulf %1158, %1149 : vector<8x128xf32>
    %1160 = arith.mulf %1159, %1149 : vector<8x128xf32>
    %1161 = arith.mulf %1157, %1160 : vector<8x128xf32>
    %1162 = arith.addf %1153, %1161 : vector<8x128xf32>
    %cst_429 = arith.constant 5.000000e-01 : f32
    %1163 = vector.broadcast %cst_429 : f32 to vector<8x128xf32>
    %1164 = arith.subf %1162, %1163 : vector<8x128xf32>
    %1165 = math.log %1113 : vector<8x128xf32>
    %cst_430 = arith.constant 2.000000e+00 : f32
    %1166 = vector.broadcast %cst_430 : f32 to vector<8x128xf32>
    %1167 = arith.mulf %1166, %1165 : vector<8x128xf32>
    %cst_431 = arith.constant 1.83787704 : f32
    %1168 = vector.broadcast %cst_431 : f32 to vector<8x128xf32>
    %1169 = arith.addf %1168, %1167 : vector<8x128xf32>
    %1170 = arith.subf %1021, %1100 : vector<8x128xf32>
    %1171 = arith.mulf %1170, %1150 : vector<8x128xf32>
    %1172 = arith.mulf %1171, %1171 : vector<8x128xf32>
    %1173 = arith.addf %1169, %1172 : vector<8x128xf32>
    %cst_432 = arith.constant 5.000000e-01 : f32
    %1174 = vector.broadcast %cst_432 : f32 to vector<8x128xf32>
    %1175 = arith.mulf %1174, %1173 : vector<8x128xf32>
    %1176 = arith.addf %1017, %1164 : vector<8x128xf32>
    %1177 = arith.addf %1018, %1175 : vector<8x128xf32>
    %c7_i32 = arith.constant 7 : i32
    %1178 = arith.index_cast %c7_i32 : i32 to index
    %c0_433 = arith.constant 0 : index
    %c0_434 = arith.constant 0 : index
    %1179 = vector.load %arg26[%1178, %c0_433, %c0_434] : memref<8x8x128xf32, #tpu.memory_space<vmem>>, vector<1x8x128xf32>
    %1180 = vector.shape_cast %1179 : vector<1x8x128xf32> to vector<8x128xf32>
    %1181 = arith.index_cast %c7_i32 : i32 to index
    %c0_435 = arith.constant 0 : index
    %c0_436 = arith.constant 0 : index
    %1182 = vector.load %arg2[%1181, %c0_435, %c0_436] : memref<8x8x128xf32, #tpu.memory_space<vmem>>, vector<1x8x128xf32>
    %1183 = vector.shape_cast %1182 : vector<1x8x128xf32> to vector<8x128xf32>
    %c0_437 = arith.constant 0 : index
    %c0_438 = arith.constant 0 : index
    %1184 = vector.load %arg11[%c0_437, %c0_438] : memref<128x768xbf16, #tpu.memory_space<vmem>>, vector<128x768xbf16>
    %1185 = arith.truncf %1148 : vector<8x128xf32> to vector<8x128xbf16>
    %cst_439 = arith.constant dense<0.000000e+00> : vector<8x768xf32>
    %1186 = tpu.matmul %1185, %1184, %cst_439 {dimension_numbers = #tpu.dot_dimension_numbers<[1], [0], [0], [1], [0, 0, 1, 1], [], []>} : vector<8x128xbf16>, vector<128x768xbf16>, vector<8x768xf32> -> vector<8x768xf32>
    %1187 = vector.broadcast %57 : vector<1x768xf32> to vector<8x768xf32>
    %1188 = arith.addf %1186, %1187 : vector<8x768xf32>
    %1189 = vector.extract_strided_slice %1188 {offsets = [0, 0], sizes = [8, 128], strides = [1, 1]} : vector<8x768xf32> to vector<8x128xf32>
    %cst_440 = arith.constant 0.000000e+00 : f32
    %1190 = vector.broadcast %cst_440 : f32 to vector<8x128xf32>
    %1191 = arith.maximumf %1189, %1190 : vector<8x128xf32>
    %1192 = vector.extract_strided_slice %1188 {offsets = [0, 128], sizes = [8, 128], strides = [1, 1]} : vector<8x768xf32> to vector<8x128xf32>
    %1193 = vector.extract_strided_slice %1188 {offsets = [0, 256], sizes = [8, 128], strides = [1, 1]} : vector<8x768xf32> to vector<8x128xf32>
    %c0_441 = arith.constant 0 : index
    %c0_442 = arith.constant 0 : index
    %1194 = vector.load %arg14[%c0_441, %c0_442] : memref<128x256xbf16, #tpu.memory_space<vmem>>, vector<128x256xbf16>
    %1195 = arith.truncf %1191 : vector<8x128xf32> to vector<8x128xbf16>
    %cst_443 = arith.constant dense<0.000000e+00> : vector<8x256xf32>
    %1196 = tpu.matmul %1195, %1194, %cst_443 {dimension_numbers = #tpu.dot_dimension_numbers<[1], [0], [0], [1], [0, 0, 1, 1], [], []>} : vector<8x128xbf16>, vector<128x256xbf16>, vector<8x256xf32> -> vector<8x256xf32>
    %1197 = vector.broadcast %58 : vector<1x256xf32> to vector<8x256xf32>
    %1198 = arith.addf %1196, %1197 : vector<8x256xf32>
    %1199 = vector.extract_strided_slice %1198 {offsets = [0, 0], sizes = [8, 128], strides = [1, 1]} : vector<8x256xf32> to vector<8x128xf32>
    %1200 = vector.extract_strided_slice %1198 {offsets = [0, 128], sizes = [8, 128], strides = [1, 1]} : vector<8x256xf32> to vector<8x128xf32>
    %cst_444 = arith.constant 0.000000e+00 : f32
    %1201 = vector.broadcast %cst_444 : f32 to vector<8x128xf32>
    %1202 = arith.maximumf %1200, %1201 : vector<8x128xf32>
    %1203 = math.absf %1200 : vector<8x128xf32>
    %cst_445 = arith.constant 0.000000e+00 : f32
    %1204 = vector.broadcast %cst_445 : f32 to vector<8x128xf32>
    %1205 = arith.subf %1204, %1203 : vector<8x128xf32>
    %1206 = math.exp %1205 : vector<8x128xf32>
    %cst_446 = arith.constant 1.000000e+00 : f32
    %1207 = vector.broadcast %cst_446 : f32 to vector<8x128xf32>
    %1208 = arith.addf %1207, %1206 : vector<8x128xf32>
    %1209 = math.log %1208 : vector<8x128xf32>
    %1210 = arith.addf %1202, %1209 : vector<8x128xf32>
    %cst_447 = arith.constant 9.99999974E-6 : f32
    %1211 = vector.broadcast %cst_447 : f32 to vector<8x128xf32>
    %1212 = arith.addf %1210, %1211 : vector<8x128xf32>
    %1213 = arith.index_cast %c7_i32 : i32 to index
    %c0_448 = arith.constant 0 : index
    %c0_449 = arith.constant 0 : index
    %1214 = vector.load %arg27[%1213, %c0_448, %c0_449] : memref<8x8x128xf32, #tpu.memory_space<vmem>>, vector<1x8x128xf32>
    %1215 = vector.shape_cast %1214 : vector<1x8x128xf32> to vector<8x128xf32>
    %1216 = arith.addf %1215, %1192 : vector<8x128xf32>
    %cst_450 = arith.constant 0.000000e+00 : f32
    %1217 = vector.broadcast %cst_450 : f32 to vector<8x128xf32>
    %1218 = arith.maximumf %1216, %1217 : vector<8x128xf32>
    %c0_451 = arith.constant 0 : index
    %c0_452 = arith.constant 0 : index
    %1219 = vector.load %arg16[%c0_451, %c0_452] : memref<128x256xbf16, #tpu.memory_space<vmem>>, vector<128x256xbf16>
    %1220 = arith.truncf %1218 : vector<8x128xf32> to vector<8x128xbf16>
    %cst_453 = arith.constant dense<0.000000e+00> : vector<8x256xf32>
    %1221 = tpu.matmul %1220, %1219, %cst_453 {dimension_numbers = #tpu.dot_dimension_numbers<[1], [0], [0], [1], [0, 0, 1, 1], [], []>} : vector<8x128xbf16>, vector<128x256xbf16>, vector<8x256xf32> -> vector<8x256xf32>
    %1222 = vector.broadcast %59 : vector<1x256xf32> to vector<8x256xf32>
    %1223 = arith.addf %1221, %1222 : vector<8x256xf32>
    %1224 = vector.extract_strided_slice %1223 {offsets = [0, 0], sizes = [8, 128], strides = [1, 1]} : vector<8x256xf32> to vector<8x128xf32>
    %1225 = vector.extract_strided_slice %1223 {offsets = [0, 128], sizes = [8, 128], strides = [1, 1]} : vector<8x256xf32> to vector<8x128xf32>
    %cst_454 = arith.constant 0.000000e+00 : f32
    %1226 = vector.broadcast %cst_454 : f32 to vector<8x128xf32>
    %1227 = arith.maximumf %1225, %1226 : vector<8x128xf32>
    %1228 = math.absf %1225 : vector<8x128xf32>
    %cst_455 = arith.constant 0.000000e+00 : f32
    %1229 = vector.broadcast %cst_455 : f32 to vector<8x128xf32>
    %1230 = arith.subf %1229, %1228 : vector<8x128xf32>
    %1231 = math.exp %1230 : vector<8x128xf32>
    %cst_456 = arith.constant 1.000000e+00 : f32
    %1232 = vector.broadcast %cst_456 : f32 to vector<8x128xf32>
    %1233 = arith.addf %1232, %1231 : vector<8x128xf32>
    %1234 = math.log %1233 : vector<8x128xf32>
    %1235 = arith.addf %1227, %1234 : vector<8x128xf32>
    %cst_457 = arith.constant 9.99999974E-6 : f32
    %1236 = vector.broadcast %cst_457 : f32 to vector<8x128xf32>
    %1237 = arith.addf %1235, %1236 : vector<8x128xf32>
    %1238 = arith.mulf %1237, %1183 : vector<8x128xf32>
    %1239 = arith.addf %1224, %1238 : vector<8x128xf32>
    %c0_458 = arith.constant 0 : index
    %c0_459 = arith.constant 0 : index
    %1240 = vector.load %arg18[%c0_458, %c0_459] : memref<128x128xbf16, #tpu.memory_space<vmem>>, vector<128x128xbf16>
    %1241 = arith.truncf %1239 : vector<8x128xf32> to vector<8x128xbf16>
    %cst_460 = arith.constant dense<0.000000e+00> : vector<8x128xf32>
    %1242 = tpu.matmul %1241, %1240, %cst_460 {dimension_numbers = #tpu.dot_dimension_numbers<[1], [0], [0], [1], [0, 0, 1, 1], [], []>} : vector<8x128xbf16>, vector<128x128xbf16>, vector<8x128xf32> -> vector<8x128xf32>
    %1243 = vector.broadcast %60 : vector<1x128xf32> to vector<8x128xf32>
    %1244 = arith.addf %1242, %1243 : vector<8x128xf32>
    %cst_461 = arith.constant 0.000000e+00 : f32
    %1245 = vector.broadcast %cst_461 : f32 to vector<8x128xf32>
    %1246 = arith.maximumf %1244, %1245 : vector<8x128xf32>
    %c0_462 = arith.constant 0 : index
    %c0_463 = arith.constant 0 : index
    %1247 = vector.load %arg20[%c0_462, %c0_463] : memref<128x512xbf16, #tpu.memory_space<vmem>>, vector<128x512xbf16>
    %1248 = arith.truncf %1246 : vector<8x128xf32> to vector<8x128xbf16>
    %cst_464 = arith.constant dense<0.000000e+00> : vector<8x512xf32>
    %1249 = tpu.matmul %1248, %1247, %cst_464 {dimension_numbers = #tpu.dot_dimension_numbers<[1], [0], [0], [1], [0, 0, 1, 1], [], []>} : vector<8x128xbf16>, vector<128x512xbf16>, vector<8x512xf32> -> vector<8x512xf32>
    %1250 = vector.extract_strided_slice %1249 {offsets = [0, 0], sizes = [8, 128], strides = [1, 1]} : vector<8x512xf32> to vector<8x128xf32>
    %1251 = arith.addf %1250, %1193 : vector<8x128xf32>
    %cst_465 = arith.constant 0.000000e+00 : f32
    %1252 = vector.broadcast %cst_465 : f32 to vector<8x128xf32>
    %1253 = arith.maximumf %1251, %1252 : vector<8x128xf32>
    %c0_466 = arith.constant 0 : index
    %c0_467 = arith.constant 0 : index
    %1254 = vector.load %arg21[%c0_466, %c0_467] : memref<128x256xbf16, #tpu.memory_space<vmem>>, vector<128x256xbf16>
    %1255 = arith.truncf %1253 : vector<8x128xf32> to vector<8x128xbf16>
    %cst_468 = arith.constant dense<0.000000e+00> : vector<8x256xf32>
    %1256 = tpu.matmul %1255, %1254, %cst_468 {dimension_numbers = #tpu.dot_dimension_numbers<[1], [0], [0], [1], [0, 0, 1, 1], [], []>} : vector<8x128xbf16>, vector<128x256xbf16>, vector<8x256xf32> -> vector<8x256xf32>
    %1257 = vector.broadcast %61 : vector<1x256xf32> to vector<8x256xf32>
    %1258 = arith.addf %1256, %1257 : vector<8x256xf32>
    %1259 = vector.extract_strided_slice %1258 {offsets = [0, 0], sizes = [8, 128], strides = [1, 1]} : vector<8x256xf32> to vector<8x128xf32>
    %1260 = vector.extract_strided_slice %1258 {offsets = [0, 128], sizes = [8, 128], strides = [1, 1]} : vector<8x256xf32> to vector<8x128xf32>
    %cst_469 = arith.constant 0.000000e+00 : f32
    %1261 = vector.broadcast %cst_469 : f32 to vector<8x128xf32>
    %1262 = arith.maximumf %1260, %1261 : vector<8x128xf32>
    %1263 = math.absf %1260 : vector<8x128xf32>
    %cst_470 = arith.constant 0.000000e+00 : f32
    %1264 = vector.broadcast %cst_470 : f32 to vector<8x128xf32>
    %1265 = arith.subf %1264, %1263 : vector<8x128xf32>
    %1266 = math.exp %1265 : vector<8x128xf32>
    %cst_471 = arith.constant 1.000000e+00 : f32
    %1267 = vector.broadcast %cst_471 : f32 to vector<8x128xf32>
    %1268 = arith.addf %1267, %1266 : vector<8x128xf32>
    %1269 = math.log %1268 : vector<8x128xf32>
    %1270 = arith.addf %1262, %1269 : vector<8x128xf32>
    %cst_472 = arith.constant 9.99999974E-6 : f32
    %1271 = vector.broadcast %cst_472 : f32 to vector<8x128xf32>
    %1272 = arith.addf %1270, %1271 : vector<8x128xf32>
    %1273 = arith.index_cast %c7_i32 : i32 to index
    %c0_473 = arith.constant 0 : index
    %c0_474 = arith.constant 0 : index
    %1274 = vector.load %arg28[%1273, %c0_473, %c0_474] : memref<8x8x384xf32, #tpu.memory_space<vmem>>, vector<1x8x384xf32>
    %1275 = vector.shape_cast %1274 : vector<1x8x384xf32> to vector<8x384xf32>
    %1276 = vector.extract_strided_slice %1249 {offsets = [0, 128], sizes = [8, 384], strides = [1, 1]} : vector<8x512xf32> to vector<8x384xf32>
    %1277 = arith.addf %1275, %1276 : vector<8x384xf32>
    %1278 = vector.extract_strided_slice %1277 {offsets = [0, 0], sizes = [8, 128], strides = [1, 1]} : vector<8x384xf32> to vector<8x128xf32>
    %1279 = vector.extract_strided_slice %1188 {offsets = [0, 384], sizes = [8, 128], strides = [1, 1]} : vector<8x768xf32> to vector<8x128xf32>
    %1280 = arith.addf %1278, %1279 : vector<8x128xf32>
    %cst_475 = arith.constant 5.000000e-01 : f32
    %1281 = vector.broadcast %cst_475 : f32 to vector<8x128xf32>
    %1282 = arith.mulf %1281, %1280 : vector<8x128xf32>
    %1283 = math.tanh %1282 : vector<8x128xf32>
    %cst_476 = arith.constant 1.000000e+00 : f32
    %1284 = vector.broadcast %cst_476 : f32 to vector<8x128xf32>
    %1285 = arith.addf %1283, %1284 : vector<8x128xf32>
    %cst_477 = arith.constant 5.000000e-01 : f32
    %1286 = vector.broadcast %cst_477 : f32 to vector<8x128xf32>
    %1287 = arith.mulf %1286, %1285 : vector<8x128xf32>
    %1288 = vector.extract_strided_slice %1277 {offsets = [0, 128], sizes = [8, 128], strides = [1, 1]} : vector<8x384xf32> to vector<8x128xf32>
    %1289 = vector.extract_strided_slice %1188 {offsets = [0, 512], sizes = [8, 128], strides = [1, 1]} : vector<8x768xf32> to vector<8x128xf32>
    %1290 = arith.addf %1288, %1289 : vector<8x128xf32>
    %cst_478 = arith.constant 5.000000e-01 : f32
    %1291 = vector.broadcast %cst_478 : f32 to vector<8x128xf32>
    %1292 = arith.mulf %1291, %1290 : vector<8x128xf32>
    %1293 = math.tanh %1292 : vector<8x128xf32>
    %cst_479 = arith.constant 1.000000e+00 : f32
    %1294 = vector.broadcast %cst_479 : f32 to vector<8x128xf32>
    %1295 = arith.addf %1293, %1294 : vector<8x128xf32>
    %cst_480 = arith.constant 5.000000e-01 : f32
    %1296 = vector.broadcast %cst_480 : f32 to vector<8x128xf32>
    %1297 = arith.mulf %1296, %1295 : vector<8x128xf32>
    %1298 = vector.extract_strided_slice %1277 {offsets = [0, 256], sizes = [8, 128], strides = [1, 1]} : vector<8x384xf32> to vector<8x128xf32>
    %1299 = vector.extract_strided_slice %1188 {offsets = [0, 640], sizes = [8, 128], strides = [1, 1]} : vector<8x768xf32> to vector<8x128xf32>
    %1300 = arith.mulf %1287, %1299 : vector<8x128xf32>
    %1301 = arith.addf %1298, %1300 : vector<8x128xf32>
    %1302 = math.tanh %1301 : vector<8x128xf32>
    %cst_481 = arith.constant 1.000000e+00 : f32
    %1303 = vector.broadcast %cst_481 : f32 to vector<8x128xf32>
    %1304 = arith.subf %1303, %1297 : vector<8x128xf32>
    %1305 = arith.mulf %1304, %1302 : vector<8x128xf32>
    %1306 = arith.mulf %1297, %1148 : vector<8x128xf32>
    %1307 = arith.addf %1305, %1306 : vector<8x128xf32>
    %1308 = tpu.reciprocal %1212 {approx = true} : vector<8x128xf32> -> vector<8x128xf32>
    %1309 = tpu.reciprocal %1272 {approx = true} : vector<8x128xf32> -> vector<8x128xf32>
    %1310 = math.log %1212 : vector<8x128xf32>
    %1311 = math.log %1237 : vector<8x128xf32>
    %1312 = arith.subf %1310, %1311 : vector<8x128xf32>
    %1313 = arith.mulf %1237, %1237 : vector<8x128xf32>
    %1314 = arith.subf %1224, %1199 : vector<8x128xf32>
    %1315 = arith.mulf %1314, %1314 : vector<8x128xf32>
    %1316 = arith.addf %1313, %1315 : vector<8x128xf32>
    %cst_482 = arith.constant 5.000000e-01 : f32
    %1317 = vector.broadcast %cst_482 : f32 to vector<8x128xf32>
    %1318 = arith.mulf %1317, %1308 : vector<8x128xf32>
    %1319 = arith.mulf %1318, %1308 : vector<8x128xf32>
    %1320 = arith.mulf %1316, %1319 : vector<8x128xf32>
    %1321 = arith.addf %1312, %1320 : vector<8x128xf32>
    %cst_483 = arith.constant 5.000000e-01 : f32
    %1322 = vector.broadcast %cst_483 : f32 to vector<8x128xf32>
    %1323 = arith.subf %1321, %1322 : vector<8x128xf32>
    %1324 = math.log %1272 : vector<8x128xf32>
    %cst_484 = arith.constant 2.000000e+00 : f32
    %1325 = vector.broadcast %cst_484 : f32 to vector<8x128xf32>
    %1326 = arith.mulf %1325, %1324 : vector<8x128xf32>
    %cst_485 = arith.constant 1.83787704 : f32
    %1327 = vector.broadcast %cst_485 : f32 to vector<8x128xf32>
    %1328 = arith.addf %1327, %1326 : vector<8x128xf32>
    %1329 = arith.subf %1180, %1259 : vector<8x128xf32>
    %1330 = arith.mulf %1329, %1309 : vector<8x128xf32>
    %1331 = arith.mulf %1330, %1330 : vector<8x128xf32>
    %1332 = arith.addf %1328, %1331 : vector<8x128xf32>
    %cst_486 = arith.constant 5.000000e-01 : f32
    %1333 = vector.broadcast %cst_486 : f32 to vector<8x128xf32>
    %1334 = arith.mulf %1333, %1332 : vector<8x128xf32>
    %1335 = arith.addf %1176, %1323 : vector<8x128xf32>
    %1336 = arith.addf %1177, %1334 : vector<8x128xf32>
    %c8_i32 = arith.constant 8 : i32
    %1337 = tpu.iota {dimensions = array<i32: 0>} : vector<8x128xi32>
    %1338 = tpu.iota {dimensions = array<i32: 1>} : vector<8x128xi32>
    %1339 = tpu.iota {dimensions = array<i32: 0>} : vector<8x128xi32>
    %1340 = tpu.iota {dimensions = array<i32: 1>} : vector<8x128xi32>
    %c2_i32_487 = arith.constant 2 : i32
    %1341 = vector.broadcast %c2_i32_487 : i32 to vector<8x128xi32>
    %1342 = arith.cmpi slt, %1337, %1341 : vector<8x128xi32>
    %c8_i32_488 = arith.constant 8 : i32
    %1343 = vector.broadcast %c8_i32_488 : i32 to vector<8x128xi32>
    %1344 = arith.cmpi slt, %1338, %1343 : vector<8x128xi32>
    %1345 = arith.andi %1342, %1344 : vector<8x128xi1>
    %1346 = arith.extui %1345 : vector<8x128xi1> to vector<8x128xi32>
    %1347 = arith.sitofp %1346 : vector<8x128xi32> to vector<8x128xf32>
    %c2_i32_489 = arith.constant 2 : i32
    %1348 = vector.broadcast %c2_i32_489 : i32 to vector<8x128xi32>
    %1349 = arith.cmpi slt, %1339, %1348 : vector<8x128xi32>
    %c2_i32_490 = arith.constant 2 : i32
    %1350 = vector.broadcast %c2_i32_490 : i32 to vector<8x128xi32>
    %1351 = arith.cmpi slt, %1340, %1350 : vector<8x128xi32>
    %1352 = arith.andi %1349, %1351 : vector<8x128xi1>
    %1353 = arith.extui %1352 : vector<8x128xi1> to vector<8x128xi32>
    %1354 = arith.sitofp %1353 : vector<8x128xi32> to vector<8x128xf32>
    %1355 = arith.mulf %1335, %1347 : vector<8x128xf32>
    %1356 = vector.shape_cast %1355 : vector<8x128xf32> to vector<1x8x128xf32>
    %cst_491 = arith.constant dense<0.000000e+00> : vector<1xf32>
    %1357 = vector.multi_reduction <add>, %1356, %cst_491 [1, 2] : vector<1x8x128xf32> to vector<1xf32>
    %1358 = vector.shape_cast %1357 : vector<1xf32> to vector<1x1x1xf32>
    %1359 = vector.extract %1358[0, 0, 0] : f32 from vector<1x1x1xf32>
    %1360 = vector.broadcast %1359 : f32 to vector<1x1xf32>
    %1361 = arith.mulf %1336, %1354 : vector<8x128xf32>
    %1362 = vector.shape_cast %1361 : vector<8x128xf32> to vector<1x8x128xf32>
    %cst_492 = arith.constant dense<0.000000e+00> : vector<1xf32>
    %1363 = vector.multi_reduction <add>, %1362, %cst_492 [1, 2] : vector<1x8x128xf32> to vector<1xf32>
    %1364 = vector.shape_cast %1363 : vector<1xf32> to vector<1x1x1xf32>
    %1365 = vector.extract %1364[0, 0, 0] : f32 from vector<1x1x1xf32>
    %1366 = vector.broadcast %1365 : f32 to vector<1x1xf32>
    %1367 = arith.addf %1360, %1366 : vector<1x1xf32>
    %cst_493 = arith.constant 2.000000e+00 : f32
    %1368 = vector.broadcast %cst_493 : f32 to vector<1x1xf32>
    %1369 = arith.divf %1367, %1368 : vector<1x1xf32>
    %c0_494 = arith.constant 0 : index
    %c0_495 = arith.constant 0 : index
    %1370 = vector.load %arg25[%c0_494, %c0_495] : memref<1x1xf32, #tpu.memory_space<vmem>>, vector<1x1xf32>
    tpu.vector_store %arg25[%c0_494, %c0_495], %1369 {strides = array<i32>} : memref<1x1xf32, #tpu.memory_space<vmem>>, vector<1x1xf32>,
    return
  }
}

</mosaic_0001>

<llo_original>
// kernel: tpu_custom_call.1
$region0: #{tpu_custom_call.1}
  #allocation0 [shape = 'u32[]', space=smem, size = 0x4, offset = 0x4, fixed_abs, tag = 'smem constant byte address 0x4 - core index']
  #allocation1 [shape = 'u32[72,128]{1,0:T(1,128)}', space=vmem, size = 0x9000, scoped, tag = 'internal scratch']
  #allocation2 [shape = 'f32[8,8,128]{2,1,0:T(8,128)}', space=vmem, size = 0x8000, scoped, tag = 'scratch operand']
  #allocation3 [shape = 'f32[8,8,128]{2,1,0:T(8,128)}', space=vmem, size = 0x8000, scoped, tag = 'scratch operand']
  #allocation4 [shape = 'f32[8,8,384]{2,1,0:T(8,128)}', space=vmem, size = 0x18000, scoped, tag = 'scratch operand']
  %s0 = inlined_call_operand.hbm [shape: f32[8,8,128], index: 0, kind: input, shape index: {}]
  %s1 = inlined_call_operand.hbm [shape: f32[8,8,128], index: 1, kind: input, shape index: {}]
  %s2 = inlined_call_operand.hbm [shape: f32[8,8,128], index: 2, kind: input, shape index: {}]
  %s3 = inlined_call_operand.hbm [shape: f32[1,128], index: 3, kind: input, shape index: {}]
  %s4 = inlined_call_operand.hbm [shape: f32[1,128], index: 4, kind: input, shape index: {}]
  %s5 = inlined_call_operand.hbm [shape: f32[1,128], index: 5, kind: input, shape index: {}]
  %s6 = inlined_call_operand.hbm [shape: f32[1,128], index: 6, kind: input, shape index: {}]
  %s7 = inlined_call_operand.hbm [shape: bf16[128,128], index: 7, kind: input, shape index: {}]
  %s8 = inlined_call_operand.hbm [shape: f32[1,128], index: 8, kind: input, shape index: {}]
  %s9 = inlined_call_operand.hbm [shape: bf16[128,128], index: 9, kind: input, shape index: {}]
  %s10 = inlined_call_operand.hbm [shape: f32[1,128], index: 10, kind: input, shape index: {}]
  %s11 = inlined_call_operand.hbm [shape: bf16[128,768], index: 11, kind: input, shape index: {}]
  %s12 = inlined_call_operand.vmem [shape: f32[1,768], index: 12, kind: input, shape index: {}]
  %s13 = inlined_call_operand.hbm [shape: bf16[128,128], index: 13, kind: input, shape index: {}]
  %s14 = inlined_call_operand.hbm [shape: bf16[128,256], index: 14, kind: input, shape index: {}]
  %s15 = inlined_call_operand.vmem [shape: f32[1,256], index: 15, kind: input, shape index: {}]
  %s16 = inlined_call_operand.hbm [shape: bf16[128,256], index: 16, kind: input, shape index: {}]
  %s17 = inlined_call_operand.vmem [shape: f32[1,256], index: 17, kind: input, shape index: {}]
  %s18 = inlined_call_operand.hbm [shape: bf16[128,128], index: 18, kind: input, shape index: {}]
  %s19 = inlined_call_operand.vmem [shape: f32[1,128], index: 19, kind: input, shape index: {}]
  %s20 = inlined_call_operand.hbm [shape: bf16[128,512], index: 20, kind: input, shape index: {}]
  %s21 = inlined_call_operand.hbm [shape: bf16[128,256], index: 21, kind: input, shape index: {}]
  %s22 = inlined_call_operand.vmem [shape: f32[1,256], index: 22, kind: input, shape index: {}]
  %s23 = inlined_call_operand.hbm [shape: bf16[128,384], index: 23, kind: input, shape index: {}]
  %s24 = inlined_call_operand.vmem [shape: f32[1,384], index: 24, kind: input, shape index: {}]
  %s25 = inlined_call_operand.hbm [shape: f32[1,1], index: 25, kind: output, shape index: {}]
  %s26 = sld [smem:[#allocation0]]
  $region186: #{tpu_custom_call.1} parent=0
    _
  %s28 = ssub.s32 1, %s26
  %s29 = scalar_select 0, %s28, %s26
  $region1: #{tpu_custom_call.1} parent=0
    #allocation5 [shape = 'u8[32768]{0}', space=vmem, size = 0x8000, scoped, tag = 'input window, operand 0, single buffered']
    #allocation6 [shape = 's32[1]{0}', space=sflag, size = 0x4, scoped, tag = 'scoped memory for tpu_custom_call.1']
    #allocation7 [shape = 's32[1]{0}', space=sflag, size = 0x4, scoped, tag = 'scoped memory for tpu_custom_call.1']
    #allocation8 [shape = 'u8[32768]{0}', space=vmem, size = 0x8000, scoped, tag = 'input window, operand 1, single buffered']
    #allocation9 [shape = 's32[1]{0}', space=sflag, size = 0x4, scoped, tag = 'scoped memory for tpu_custom_call.1']
    #allocation10 [shape = 'u8[32768]{0}', space=vmem, size = 0x8000, scoped, tag = 'input window, operand 2, single buffered']
    #allocation11 [shape = 'u8[512]{0}', space=vmem, size = 0x400, scoped, tag = 'input window, operand 3, single buffered']
    #allocation12 [shape = 's32[1]{0}', space=sflag, size = 0x4, scoped, tag = 'scoped memory for tpu_custom_call.1']
    #allocation13 [shape = 'u8[512]{0}', space=vmem, size = 0x400, scoped, tag = 'input window, operand 4, single buffered']
    #allocation14 [shape = 'u8[512]{0}', space=vmem, size = 0x400, scoped, tag = 'input window, operand 5, single buffered']
    #allocation15 [shape = 's32[1]{0}', space=sflag, size = 0x4, scoped, tag = 'scoped memory for tpu_custom_call.1']
    #allocation16 [shape = 'u8[512]{0}', space=vmem, size = 0x400, scoped, tag = 'input window, operand 6, single buffered']
    #allocation17 [shape = 'u8[32768]{0}', space=vmem, size = 0x8000, scoped, tag = 'input window, operand 7, single buffered']
    #allocation18 [shape = 's32[1]{0}', space=sflag, size = 0x4, scoped, tag = 'scoped memory for tpu_custom_call.1']
    #allocation19 [shape = 'u8[512]{0}', space=vmem, size = 0x400, scoped, tag = 'input window, operand 8, single buffered']
    #allocation20 [shape = 'u8[32768]{0}', space=vmem, size = 0x8000, scoped, tag = 'input window, operand 9, single buffered']
    #allocation21 [shape = 's32[1]{0}', space=sflag, size = 0x4, scoped, tag = 'scoped memory for tpu_custom_call.1']
    #allocation22 [shape = 'u8[512]{0}', space=vmem, size = 0x400, scoped, tag = 'input window, operand 10, single buffered']
    #allocation23 [shape = 'u8[196608]{0}', space=vmem, size = 0x30000, scoped, tag = 'input window, operand 11, single buffered']
    #allocation24 [shape = 's32[1]{0}', space=sflag, size = 0x4, scoped, tag = 'scoped memory for tpu_custom_call.1']
    #allocation25 [shape = 'u8[32768]{0}', space=vmem, size = 0x8000, scoped, tag = 'input window, operand 13, single buffered']
    #allocation26 [shape = 'u8[65536]{0}', space=vmem, size = 0x10000, scoped, tag = 'input window, operand 14, single buffered']
    #allocation27 [shape = 's32[1]{0}', space=sflag, size = 0x4, scoped, tag = 'scoped memory for tpu_custom_call.1']
    #allocation28 [shape = 'u8[65536]{0}', space=vmem, size = 0x10000, scoped, tag = 'input window, operand 16, single buffered']
    #allocation29 [shape = 'u8[32768]{0}', space=vmem, size = 0x8000, scoped, tag = 'input window, operand 18, single buffered']
    #allocation30 [shape = 's32[1]{0}', space=sflag, size = 0x4, scoped, tag = 'scoped memory for tpu_custom_call.1']
    #allocation31 [shape = 'u8[131072]{0}', space=vmem, size = 0x20000, scoped, tag = 'input window, operand 20, single buffered']
    #allocation32 [shape = 'u8[65536]{0}', space=vmem, size = 0x10000, scoped, tag = 'input window, operand 21, single buffered']
    #allocation33 [shape = 's32[1]{0}', space=sflag, size = 0x4, scoped, tag = 'scoped memory for tpu_custom_call.1']
    #allocation34 [shape = 'u8[98304]{0}', space=vmem, size = 0x18000, scoped, tag = 'input window, operand 23, single buffered']
    #allocation35 [shape = 'u8[512]{0}', space=vmem, size = 0x400, scoped, tag = 'output window, operand 0, single buffered']
    %30 = vsyncpa [#allocation6], 0
    %31 = vsyncpa [#allocation9], 0
    %32 = vsyncpa [#allocation12], 0
    %33 = vsyncpa [#allocation15], 0
    %34 = vsyncpa [#allocation18], 0
    %35 = vsyncpa [#allocation21], 0
    %36 = vsyncpa [#allocation24], 0
    %37 = vsyncpa [#allocation27], 0
    %38 = vsyncpa [#allocation30], 0
    %39 = vsyncpa [#allocation33], 0
    %40 = vsyncpa [#allocation7], 0
    // Predicated region
    $region2: #{tpu_custom_call.1} parent=1 // pred_check
      _
    $region3: #{tpu_custom_call.1} parent=1 // pred_check_branch
      %42 = sbr.rel (0) target = $region5
    $region4: #{tpu_custom_call.1} parent=1 // pred_region
      %44 = vsyncadd [#allocation6], 0
      %s45 = sshll.u32 %s0, 4
      %s46 = int_to_ptr.hbm [resolvable:$true] %s45
      %s47 = sshll.u32 [#allocation5], 4
      %s48 = int_to_ptr.vmem [resolvable:$true] %s47
      %53 = dma.hbm_to_vmem [thread:$0]  %s46, 1024, %s48, [#allocation6], 128, 128, 8
    $region5: #{tpu_custom_call.1} parent=1 // pred_fallthru
      _
    // Predicated region
    $region6: #{tpu_custom_call.1} parent=1 // pred_check
      _
    $region7: #{tpu_custom_call.1} parent=1 // pred_check_branch
      %55 = sbr.rel (0) target = $region9
    $region8: #{tpu_custom_call.1} parent=1 // pred_region
      %57 = vsyncadd [#allocation9], 0
      %s58 = sshll.u32 %s1, 4
      %s59 = int_to_ptr.hbm [resolvable:$true] %s58
      %s60 = sshll.u32 [#allocation8], 4
      %s61 = int_to_ptr.vmem [resolvable:$true] %s60
      %66 = dma.hbm_to_vmem [thread:$0]  %s59, 1024, %s61, [#allocation9], 128, 128, 8
    $region9: #{tpu_custom_call.1} parent=1 // pred_fallthru
      _
    // Predicated region
    $region10: #{tpu_custom_call.1} parent=1 // pred_check
      _
    $region11: #{tpu_custom_call.1} parent=1 // pred_check_branch
      %68 = sbr.rel (0) target = $region13
    $region12: #{tpu_custom_call.1} parent=1 // pred_region
      %70 = vsyncadd [#allocation9], 0
      %s71 = sshll.u32 %s2, 4
      %s72 = int_to_ptr.hbm [resolvable:$true] %s71
      %s73 = sshll.u32 [#allocation10], 4
      %s74 = int_to_ptr.vmem [resolvable:$true] %s73
      %79 = dma.hbm_to_vmem [thread:$0]  %s72, 1024, %s74, [#allocation9], 128, 128, 8
    $region13: #{tpu_custom_call.1} parent=1 // pred_fallthru
      _
    // Predicated region
    $region14: #{tpu_custom_call.1} parent=1 // pred_check
      _
    $region15: #{tpu_custom_call.1} parent=1 // pred_check_branch
      %81 = sbr.rel (0) target = $region17
    $region16: #{tpu_custom_call.1} parent=1 // pred_region
      %83 = vsyncadd [#allocation12], 0
      %s85 = sshll.u32 %s3, 4
      %s86 = int_to_ptr.hbm [resolvable:$true] %s85
      %s87 = sshll.u32 [#allocation11], 4
      %s88 = int_to_ptr.vmem [resolvable:$true] %s87
      %90 = dma.hbm_to_vmem [thread:$0]  %s86, 16, %s88, [#allocation12]
    $region17: #{tpu_custom_call.1} parent=1 // pred_fallthru
      _
    // Predicated region
    $region18: #{tpu_custom_call.1} parent=1 // pred_check
      _
    $region19: #{tpu_custom_call.1} parent=1 // pred_check_branch
      %92 = sbr.rel (0) target = $region21
    $region20: #{tpu_custom_call.1} parent=1 // pred_region
      %94 = vsyncadd [#allocation12], 0
      %s96 = sshll.u32 %s4, 4
      %s97 = int_to_ptr.hbm [resolvable:$true] %s96
      %s98 = sshll.u32 [#allocation13], 4
      %s99 = int_to_ptr.vmem [resolvable:$true] %s98
      %101 = dma.hbm_to_vmem [thread:$0]  %s97, 16, %s99, [#allocation12]
    $region21: #{tpu_custom_call.1} parent=1 // pred_fallthru
      _
    // Predicated region
    $region22: #{tpu_custom_call.1} parent=1 // pred_check
      _
    $region23: #{tpu_custom_call.1} parent=1 // pred_check_branch
      %103 = sbr.rel (0) target = $region25
    $region24: #{tpu_custom_call.1} parent=1 // pred_region
      %105 = vsyncadd [#allocation15], 0
      %s107 = sshll.u32 %s5, 4
      %s108 = int_to_ptr.hbm [resolvable:$true] %s107
      %s109 = sshll.u32 [#allocation14], 4
      %s110 = int_to_ptr.vmem [resolvable:$true] %s109
      %112 = dma.hbm_to_vmem [thread:$0]  %s108, 16, %s110, [#allocation15]
    $region25: #{tpu_custom_call.1} parent=1 // pred_fallthru
      _
    // Predicated region
    $region26: #{tpu_custom_call.1} parent=1 // pred_check
      _
    $region27: #{tpu_custom_call.1} parent=1 // pred_check_branch
      %114 = sbr.rel (0) target = $region29
    $region28: #{tpu_custom_call.1} parent=1 // pred_region
      %116 = vsyncadd [#allocation15], 0
      %s118 = sshll.u32 %s6, 4
      %s119 = int_to_ptr.hbm [resolvable:$true] %s118
      %s120 = sshll.u32 [#allocation16], 4
      %s121 = int_to_ptr.vmem [resolvable:$true] %s120
      %123 = dma.hbm_to_vmem [thread:$0]  %s119, 16, %s121, [#allocation15]
    $region29: #{tpu_custom_call.1} parent=1 // pred_fallthru
      _
    // Predicated region
    $region30: #{tpu_custom_call.1} parent=1 // pred_check
      _
    $region31: #{tpu_custom_call.1} parent=1 // pred_check_branch
      %125 = sbr.rel (0) target = $region33
    $region32: #{tpu_custom_call.1} parent=1 // pred_region
      %127 = vsyncadd [#allocation18], 0
      %s128 = sshll.u32 %s7, 4
      %s129 = int_to_ptr.hbm [resolvable:$true] %s128
      %s130 = sshll.u32 [#allocation17], 4
      %s131 = int_to_ptr.vmem [resolvable:$true] %s130
      %136 = dma.hbm_to_vmem [thread:$0]  %s129, 1024, %s131, [#allocation18], 64, 64, 4
    $region33: #{tpu_custom_call.1} parent=1 // pred_fallthru
      _
    // Predicated region
    $region34: #{tpu_custom_call.1} parent=1 // pred_check
      _
    $region35: #{tpu_custom_call.1} parent=1 // pred_check_branch
      %138 = sbr.rel (0) target = $region37
    $region36: #{tpu_custom_call.1} parent=1 // pred_region
      %140 = vsyncadd [#allocation18], 0
      %s142 = sshll.u32 %s8, 4
      %s143 = int_to_ptr.hbm [resolvable:$true] %s142
      %s144 = sshll.u32 [#allocation19], 4
      %s145 = int_to_ptr.vmem [resolvable:$true] %s144
      %147 = dma.hbm_to_vmem [thread:$0]  %s143, 16, %s145, [#allocation18]
    $region37: #{tpu_custom_call.1} parent=1 // pred_fallthru
      _
    // Predicated region
    $region38: #{tpu_custom_call.1} parent=1 // pred_check
      _
    $region39: #{tpu_custom_call.1} parent=1 // pred_check_branch
      %149 = sbr.rel (0) target = $region41
    $region40: #{tpu_custom_call.1} parent=1 // pred_region
      %151 = vsyncadd [#allocation21], 0
      %s152 = sshll.u32 %s9, 4
      %s153 = int_to_ptr.hbm [resolvable:$true] %s152
      %s154 = sshll.u32 [#allocation20], 4
      %s155 = int_to_ptr.vmem [resolvable:$true] %s154
      %160 = dma.hbm_to_vmem [thread:$0]  %s153, 1024, %s155, [#allocation21], 64, 64, 4
    $region41: #{tpu_custom_call.1} parent=1 // pred_fallthru
      _
    // Predicated region
    $region42: #{tpu_custom_call.1} parent=1 // pred_check
      _
    $region43: #{tpu_custom_call.1} parent=1 // pred_check_branch
      %162 = sbr.rel (0) target = $region45
    $region44: #{tpu_custom_call.1} parent=1 // pred_region
      %164 = vsyncadd [#allocation21], 0
      %s166 = sshll.u32 %s10, 4
      %s167 = int_to_ptr.hbm [resolvable:$true] %s166
      %s168 = sshll.u32 [#allocation22], 4
      %s169 = int_to_ptr.vmem [resolvable:$true] %s168
      %171 = dma.hbm_to_vmem [thread:$0]  %s167, 16, %s169, [#allocation21]
    $region45: #{tpu_custom_call.1} parent=1 // pred_fallthru
      _
    // Predicated region
    $region46: #{tpu_custom_call.1} parent=1 // pred_check
      _
    $region47: #{tpu_custom_call.1} parent=1 // pred_check_branch
      %173 = sbr.rel (0) target = $region49
    $region48: #{tpu_custom_call.1} parent=1 // pred_region
      %175 = vsyncadd [#allocation24], 0
      %s176 = sshll.u32 %s11, 4
      %s177 = int_to_ptr.hbm [resolvable:$true] %s176
      %s178 = sshll.u32 [#allocation23], 4
      %s179 = int_to_ptr.vmem [resolvable:$true] %s178
      %184 = dma.hbm_to_vmem [thread:$0]  %s177, 6144, %s179, [#allocation24], 384, 384, 24
    $region49: #{tpu_custom_call.1} parent=1 // pred_fallthru
      _
    // Predicated region
    $region50: #{tpu_custom_call.1} parent=1 // pred_check
      _
    $region51: #{tpu_custom_call.1} parent=1 // pred_check_branch
      %186 = sbr.rel (0) target = $region53
    $region52: #{tpu_custom_call.1} parent=1 // pred_region
      _
    $region53: #{tpu_custom_call.1} parent=1 // pred_fallthru
      _
    // Predicated region
    $region54: #{tpu_custom_call.1} parent=1 // pred_check
      _
    $region55: #{tpu_custom_call.1} parent=1 // pred_check_branch
      %188 = sbr.rel (0) target = $region57
    $region56: #{tpu_custom_call.1} parent=1 // pred_region
      %190 = vsyncadd [#allocation24], 0
      %s191 = sshll.u32 %s13, 4
      %s192 = int_to_ptr.hbm [resolvable:$true] %s191
      %s193 = sshll.u32 [#allocation25], 4
      %s194 = int_to_ptr.vmem [resolvable:$true] %s193
      %199 = dma.hbm_to_vmem [thread:$0]  %s192, 1024, %s194, [#allocation24], 64, 64, 4
    $region57: #{tpu_custom_call.1} parent=1 // pred_fallthru
      _
    // Predicated region
    $region58: #{tpu_custom_call.1} parent=1 // pred_check
      _
    $region59: #{tpu_custom_call.1} parent=1 // pred_check_branch
      %201 = sbr.rel (0) target = $region61
    $region60: #{tpu_custom_call.1} parent=1 // pred_region
      %203 = vsyncadd [#allocation27], 0
      %s204 = sshll.u32 %s14, 4
      %s205 = int_to_ptr.hbm [resolvable:$true] %s204
      %s206 = sshll.u32 [#allocation26], 4
      %s207 = int_to_ptr.vmem [resolvable:$true] %s206
      %212 = dma.hbm_to_vmem [thread:$0]  %s205, 2048, %s207, [#allocation27], 128, 128, 8
    $region61: #{tpu_custom_call.1} parent=1 // pred_fallthru
      _
    // Predicated region
    $region62: #{tpu_custom_call.1} parent=1 // pred_check
      _
    $region63: #{tpu_custom_call.1} parent=1 // pred_check_branch
      %214 = sbr.rel (0) target = $region65
    $region64: #{tpu_custom_call.1} parent=1 // pred_region
      _
    $region65: #{tpu_custom_call.1} parent=1 // pred_fallthru
      _
    // Predicated region
    $region66: #{tpu_custom_call.1} parent=1 // pred_check
      _
    $region67: #{tpu_custom_call.1} parent=1 // pred_check_branch
      %216 = sbr.rel (0) target = $region69
    $region68: #{tpu_custom_call.1} parent=1 // pred_region
      %218 = vsyncadd [#allocation27], 0
      %s219 = sshll.u32 %s16, 4
      %s220 = int_to_ptr.hbm [resolvable:$true] %s219
      %s221 = sshll.u32 [#allocation28], 4
      %s222 = int_to_ptr.vmem [resolvable:$true] %s221
      %227 = dma.hbm_to_vmem [thread:$0]  %s220, 2048, %s222, [#allocation27], 128, 128, 8
    $region69: #{tpu_custom_call.1} parent=1 // pred_fallthru
      _
    // Predicated region
    $region70: #{tpu_custom_call.1} parent=1 // pred_check
      _
    $region71: #{tpu_custom_call.1} parent=1 // pred_check_branch
      %229 = sbr.rel (0) target = $region73
    $region72: #{tpu_custom_call.1} parent=1 // pred_region
      _
    $region73: #{tpu_custom_call.1} parent=1 // pred_fallthru
      _
    // Predicated region
    $region74: #{tpu_custom_call.1} parent=1 // pred_check
      _
    $region75: #{tpu_custom_call.1} parent=1 // pred_check_branch
      %231 = sbr.rel (0) target = $region77
    $region76: #{tpu_custom_call.1} parent=1 // pred_region
      %233 = vsyncadd [#allocation30], 0
      %s234 = sshll.u32 %s18, 4
      %s235 = int_to_ptr.hbm [resolvable:$true] %s234
      %s236 = sshll.u32 [#allocation29], 4
      %s237 = int_to_ptr.vmem [resolvable:$true] %s236
      %242 = dma.hbm_to_vmem [thread:$0]  %s235, 1024, %s237, [#allocation30], 64, 64, 4
    $region77: #{tpu_custom_call.1} parent=1 // pred_fallthru
      _
    // Predicated region
    $region78: #{tpu_custom_call.1} parent=1 // pred_check
      _
    $region79: #{tpu_custom_call.1} parent=1 // pred_check_branch
      %244 = sbr.rel (0) target = $region81
    $region80: #{tpu_custom_call.1} parent=1 // pred_region
      _
    $region81: #{tpu_custom_call.1} parent=1 // pred_fallthru
      _
    // Predicated region
    $region82: #{tpu_custom_call.1} parent=1 // pred_check
      _
    $region83: #{tpu_custom_call.1} parent=1 // pred_check_branch
      %246 = sbr.rel (0) target = $region85
    $region84: #{tpu_custom_call.1} parent=1 // pred_region
      %248 = vsyncadd [#allocation30], 0
      %s249 = sshll.u32 %s20, 4
      %s250 = int_to_ptr.hbm [resolvable:$true] %s249
      %s251 = sshll.u32 [#allocation31], 4
      %s252 = int_to_ptr.vmem [resolvable:$true] %s251
      %257 = dma.hbm_to_vmem [thread:$0]  %s250, 4096, %s252, [#allocation30], 256, 256, 16
    $region85: #{tpu_custom_call.1} parent=1 // pred_fallthru
      _
    // Predicated region
    $region86: #{tpu_custom_call.1} parent=1 // pred_check
      _
    $region87: #{tpu_custom_call.1} parent=1 // pred_check_branch
      %259 = sbr.rel (0) target = $region89
    $region88: #{tpu_custom_call.1} parent=1 // pred_region
      %261 = vsyncadd [#allocation33], 0
      %s262 = sshll.u32 %s21, 4
      %s263 = int_to_ptr.hbm [resolvable:$true] %s262
      %s264 = sshll.u32 [#allocation32], 4
      %s265 = int_to_ptr.vmem [resolvable:$true] %s264
      %270 = dma.hbm_to_vmem [thread:$0]  %s263, 2048, %s265, [#allocation33], 128, 128, 8
    $region89: #{tpu_custom_call.1} parent=1 // pred_fallthru
      _
    // Predicated region
    $region90: #{tpu_custom_call.1} parent=1 // pred_check
      _
    $region91: #{tpu_custom_call.1} parent=1 // pred_check_branch
      %272 = sbr.rel (0) target = $region93
    $region92: #{tpu_custom_call.1} parent=1 // pred_region
      _
    $region93: #{tpu_custom_call.1} parent=1 // pred_fallthru
      _
    // Predicated region
    $region94: #{tpu_custom_call.1} parent=1 // pred_check
      _
    $region95: #{tpu_custom_call.1} parent=1 // pred_check_branch
      %274 = sbr.rel (0) target = $region97
    $region96: #{tpu_custom_call.1} parent=1 // pred_region
      %276 = vsyncadd [#allocation33], 0
      %s277 = sshll.u32 %s23, 4
      %s278 = int_to_ptr.hbm [resolvable:$true] %s277
      %s279 = sshll.u32 [#allocation34], 4
      %s280 = int_to_ptr.vmem [resolvable:$true] %s279
      %285 = dma.hbm_to_vmem [thread:$0]  %s278, 3072, %s280, [#allocation33], 192, 192, 12
    $region97: #{tpu_custom_call.1} parent=1 // pred_fallthru
      _
    // Predicated region
    $region98: #{tpu_custom_call.1} parent=1 // pred_check
      _
    $region99: #{tpu_custom_call.1} parent=1 // pred_check_branch
      %287 = sbr.rel (0) target = $region101
    $region100: #{tpu_custom_call.1} parent=1 // pred_region
      _
    $region101: #{tpu_custom_call.1} parent=1 // pred_fallthru
      _
    // Predicated region
    $region102: #{tpu_custom_call.1} parent=1 // pred_check
      _
    $region103: #{tpu_custom_call.1} parent=1 // pred_check_branch
      %289 = sbr.rel (0) target = $region105
    $region104: #{tpu_custom_call.1} parent=1 // pred_region
      %291 = dma.done [#allocation6], 1024
    $region105: #{tpu_custom_call.1} parent=1 // pred_fallthru
      _
    // Predicated region
    $region106: #{tpu_custom_call.1} parent=1 // pred_check
      _
    $region107: #{tpu_custom_call.1} parent=1 // pred_check_branch
      %293 = sbr.rel (0) target = $region109
    $region108: #{tpu_custom_call.1} parent=1 // pred_region
      %295 = dma.done [#allocation9], 1024
    $region109: #{tpu_custom_call.1} parent=1 // pred_fallthru
      _
    // Predicated region
    $region110: #{tpu_custom_call.1} parent=1 // pred_check
      _
    $region111: #{tpu_custom_call.1} parent=1 // pred_check_branch
      %297 = sbr.rel (0) target = $region113
    $region112: #{tpu_custom_call.1} parent=1 // pred_region
      %299 = dma.done [#allocation9], 1024
    $region113: #{tpu_custom_call.1} parent=1 // pred_fallthru
      _
    // Predicated region
    $region114: #{tpu_custom_call.1} parent=1 // pred_check
      _
    $region115: #{tpu_custom_call.1} parent=1 // pred_check_branch
      %301 = sbr.rel (0) target = $region117
    $region116: #{tpu_custom_call.1} parent=1 // pred_region
      %303 = dma.done [#allocation12], 16
    $region117: #{tpu_custom_call.1} parent=1 // pred_fallthru
      _
    // Predicated region
    $region118: #{tpu_custom_call.1} parent=1 // pred_check
      _
    $region119: #{tpu_custom_call.1} parent=1 // pred_check_branch
      %305 = sbr.rel (0) target = $region121
    $region120: #{tpu_custom_call.1} parent=1 // pred_region
      %307 = dma.done [#allocation12], 16
    $region121: #{tpu_custom_call.1} parent=1 // pred_fallthru
      _
    // Predicated region
    $region122: #{tpu_custom_call.1} parent=1 // pred_check
      _
    $region123: #{tpu_custom_call.1} parent=1 // pred_check_branch
      %309 = sbr.rel (0) target = $region125
    $region124: #{tpu_custom_call.1} parent=1 // pred_region
      %311 = dma.done [#allocation15], 16
    $region125: #{tpu_custom_call.1} parent=1 // pred_fallthru
      _
    // Predicated region
    $region126: #{tpu_custom_call.1} parent=1 // pred_check
      _
    $region127: #{tpu_custom_call.1} parent=1 // pred_check_branch
      %313 = sbr.rel (0) target = $region129
    $region128: #{tpu_custom_call.1} parent=1 // pred_region
      %315 = dma.done [#allocation15], 16
    $region129: #{tpu_custom_call.1} parent=1 // pred_fallthru
      _
    // Predicated region
    $region130: #{tpu_custom_call.1} parent=1 // pred_check
      _
    $region131: #{tpu_custom_call.1} parent=1 // pred_check_branch
      %317 = sbr.rel (0) target = $region133
    $region132: #{tpu_custom_call.1} parent=1 // pred_region
      %319 = dma.done [#allocation18], 1024
    $region133: #{tpu_custom_call.1} parent=1 // pred_fallthru
      _
    // Predicated region
    $region134: #{tpu_custom_call.1} parent=1 // pred_check
      _
    $region135: #{tpu_custom_call.1} parent=1 // pred_check_branch
      %321 = sbr.rel (0) target = $region137
    $region136: #{tpu_custom_call.1} parent=1 // pred_region
      %323 = dma.done [#allocation18], 16
    $region137: #{tpu_custom_call.1} parent=1 // pred_fallthru
      _
    // Predicated region
    $region138: #{tpu_custom_call.1} parent=1 // pred_check
      _
    $region139: #{tpu_custom_call.1} parent=1 // pred_check_branch
      %325 = sbr.rel (0) target = $region141
    $region140: #{tpu_custom_call.1} parent=1 // pred_region
      %327 = dma.done [#allocation21], 1024
    $region141: #{tpu_custom_call.1} parent=1 // pred_fallthru
      _
    // Predicated region
    $region142: #{tpu_custom_call.1} parent=1 // pred_check
      _
    $region143: #{tpu_custom_call.1} parent=1 // pred_check_branch
      %329 = sbr.rel (0) target = $region145
    $region144: #{tpu_custom_call.1} parent=1 // pred_region
      %331 = dma.done [#allocation21], 16
    $region145: #{tpu_custom_call.1} parent=1 // pred_fallthru
      _
    // Predicated region
    $region146: #{tpu_custom_call.1} parent=1 // pred_check
      _
    $region147: #{tpu_custom_call.1} parent=1 // pred_check_branch
      %333 = sbr.rel (0) target = $region149
    $region148: #{tpu_custom_call.1} parent=1 // pred_region
      %335 = dma.done [#allocation24], 6144
    $region149: #{tpu_custom_call.1} parent=1 // pred_fallthru
      _
    // Predicated region
    $region150: #{tpu_custom_call.1} parent=1 // pred_check
      _
    $region151: #{tpu_custom_call.1} parent=1 // pred_check_branch
      %337 = sbr.rel (0) target = $region153
    $region152: #{tpu_custom_call.1} parent=1 // pred_region
      %339 = dma.done [#allocation24], 1024
    $region153: #{tpu_custom_call.1} parent=1 // pred_fallthru
      _
    // Predicated region
    $region154: #{tpu_custom_call.1} parent=1 // pred_check
      _
    $region155: #{tpu_custom_call.1} parent=1 // pred_check_branch
      %341 = sbr.rel (0) target = $region157
    $region156: #{tpu_custom_call.1} parent=1 // pred_region
      %343 = dma.done [#allocation27], 2048
    $region157: #{tpu_custom_call.1} parent=1 // pred_fallthru
      _
    // Predicated region
    $region158: #{tpu_custom_call.1} parent=1 // pred_check
      _
    $region159: #{tpu_custom_call.1} parent=1 // pred_check_branch
      %345 = sbr.rel (0) target = $region161
    $region160: #{tpu_custom_call.1} parent=1 // pred_region
      %347 = dma.done [#allocation27], 2048
    $region161: #{tpu_custom_call.1} parent=1 // pred_fallthru
      _
    // Predicated region
    $region162: #{tpu_custom_call.1} parent=1 // pred_check
      _
    $region163: #{tpu_custom_call.1} parent=1 // pred_check_branch
      %349 = sbr.rel (0) target = $region165
    $region164: #{tpu_custom_call.1} parent=1 // pred_region
      %351 = dma.done [#allocation30], 1024
    $region165: #{tpu_custom_call.1} parent=1 // pred_fallthru
      _
    // Predicated region
    $region166: #{tpu_custom_call.1} parent=1 // pred_check
      _
    $region167: #{tpu_custom_call.1} parent=1 // pred_check_branch
      %353 = sbr.rel (0) target = $region169
    $region168: #{tpu_custom_call.1} parent=1 // pred_region
      %355 = dma.done [#allocation30], 4096
    $region169: #{tpu_custom_call.1} parent=1 // pred_fallthru
      _
    // Predicated region
    $region170: #{tpu_custom_call.1} parent=1 // pred_check
      _
    $region171: #{tpu_custom_call.1} parent=1 // pred_check_branch
      %357 = sbr.rel (0) target = $region173
    $region172: #{tpu_custom_call.1} parent=1 // pred_region
      %359 = dma.done [#allocation33], 2048
    $region173: #{tpu_custom_call.1} parent=1 // pred_fallthru
      _
    // Predicated region
    $region174: #{tpu_custom_call.1} parent=1 // pred_check
      _
    $region175: #{tpu_custom_call.1} parent=1 // pred_check_branch
      %361 = sbr.rel (0) target = $region177
    $region176: #{tpu_custom_call.1} parent=1 // pred_region
      %363 = dma.done [#allocation33], 3072
    $region177: #{tpu_custom_call.1} parent=1 // pred_fallthru
      _
    %v365 = vlaneseq
    %v366 = vshrl.u32 %v365, 7
    %vm367 = vcmp.lt.s32.totalorder %v366, 2
    %v368 = vsel %vm367, 1, 0
    %v369 = vcvt.s32.f32 %v368
    %v370 = vld [vmem:[#allocation5] sm:$0xff]
    %v371 = vld [vmem:[#allocation5 + $0x8] sm:$0xff]
    %v372 = vld [vmem:[#allocation5 + $0x10] sm:$0xff]
    %v373 = vld [vmem:[#allocation5 + $0x18] sm:$0xff]
    %v374 = vld [vmem:[#allocation5 + $0x20] sm:$0xff]
    %v375 = vld [vmem:[#allocation5 + $0x28] sm:$0xff]
    %v376 = vld [vmem:[#allocation5 + $0x30] sm:$0xff]
    %v377 = vld [vmem:[#allocation5 + $0x38] sm:$0xff]
    %v378 = vld [vmem:[#allocation11] sm:$0x1]
    %v380 = vperm.slane %v378, 0
    %v382 = vsub.f32 %v370, %v380
    %v383 = vsub.f32 %v371, %v380
    %v384 = vsub.f32 %v372, %v380
    %v385 = vsub.f32 %v373, %v380
    %v386 = vsub.f32 %v374, %v380
    %v387 = vsub.f32 %v375, %v380
    %v388 = vsub.f32 %v376, %v380
    %v389 = vsub.f32 %v377, %v380
    %v390 = vld [vmem:[#allocation13] sm:$0x1]
    %v392 = vperm.slane %v390, 0
    %v394 = vmul.f32 %v382, %v392
    %v395 = vmul.f32 %v383, %v392
    %v396 = vmul.f32 %v384, %v392
    %v397 = vmul.f32 %v385, %v392
    %v398 = vmul.f32 %v386, %v392
    %v399 = vmul.f32 %v387, %v392
    %v400 = vmul.f32 %v388, %v392
    %v401 = vmul.f32 %v389, %v392
    %v402 = vmul.f32 %v394, %v369
    %v403 = vmul.f32 %v395, %v369
    %v404 = vmul.f32 %v396, %v369
    %v405 = vmul.f32 %v397, %v369
    %v406 = vmul.f32 %v398, %v369
    %v407 = vmul.f32 %v399, %v369
    %v408 = vmul.f32 %v400, %v369
    %v409 = vmul.f32 %v401, %v369
    %v410 = vld [vmem:[#allocation8] sm:$0xff]
    %v411 = vld [vmem:[#allocation8 + $0x8] sm:$0xff]
    %v412 = vld [vmem:[#allocation8 + $0x10] sm:$0xff]
    %v413 = vld [vmem:[#allocation8 + $0x18] sm:$0xff]
    %v414 = vld [vmem:[#allocation8 + $0x20] sm:$0xff]
    %v415 = vld [vmem:[#allocation8 + $0x28] sm:$0xff]
    %v416 = vld [vmem:[#allocation8 + $0x30] sm:$0xff]
    %v417 = vld [vmem:[#allocation8 + $0x38] sm:$0xff]
    %v418 = vld [vmem:[#allocation14] sm:$0x1]
    %v420 = vperm.slane %v418, 0
    %v422 = vsub.f32 %v410, %v420
    %v423 = vsub.f32 %v411, %v420
    %v424 = vsub.f32 %v412, %v420
    %v425 = vsub.f32 %v413, %v420
    %v426 = vsub.f32 %v414, %v420
    %v427 = vsub.f32 %v415, %v420
    %v428 = vsub.f32 %v416, %v420
    %v429 = vsub.f32 %v417, %v420
    %v430 = vld [vmem:[#allocation16] sm:$0x1]
    %v432 = vperm.slane %v430, 0
    %v434 = vmul.f32 %v422, %v432
    %v435 = vmul.f32 %v423, %v432
    %v436 = vmul.f32 %v424, %v432
    %v437 = vmul.f32 %v425, %v432
    %v438 = vmul.f32 %v426, %v432
    %v439 = vmul.f32 %v427, %v432
    %v440 = vmul.f32 %v428, %v432
    %v441 = vmul.f32 %v429, %v432
    %v442 = vmul.f32 %v434, %v369
    %v443 = vmul.f32 %v435, %v369
    %v444 = vmul.f32 %v436, %v369
    %v445 = vmul.f32 %v437, %v369
    %v446 = vmul.f32 %v438, %v369
    %v447 = vmul.f32 %v439, %v369
    %v448 = vmul.f32 %v440, %v369
    %v449 = vmul.f32 %v441, %v369
    %450 = vst [vmem:[#allocation2] sm:$0xff] %v442
    %451 = vst [vmem:[#allocation2 + $0x8] sm:$0xff] %v443
    %452 = vst [vmem:[#allocation2 + $0x10] sm:$0xff] %v444
    %453 = vst [vmem:[#allocation2 + $0x18] sm:$0xff] %v445
    %454 = vst [vmem:[#allocation2 + $0x20] sm:$0xff] %v446
    %455 = vst [vmem:[#allocation2 + $0x28] sm:$0xff] %v447
    %456 = vst [vmem:[#allocation2 + $0x30] sm:$0xff] %v448
    %457 = vst [vmem:[#allocation2 + $0x38] sm:$0xff] %v449
    %v458 = vld [vmem:[#allocation17] sm:$0xf]
    %v459 = vld [vmem:[#allocation17 + $0x4] sm:$0xf]
    %v460 = vld [vmem:[#allocation17 + $0x8] sm:$0xf]
    %v461 = vld [vmem:[#allocation17 + $0xc] sm:$0xf]
    %v462 = vld [vmem:[#allocation17 + $0x10] sm:$0xf]
    %v463 = vld [vmem:[#allocation17 + $0x14] sm:$0xf]
    %v464 = vld [vmem:[#allocation17 + $0x18] sm:$0xf]
    %v465 = vld [vmem:[#allocation17 + $0x1c] sm:$0xf]
    %v466 = vld [vmem:[#allocation17 + $0x20] sm:$0xf]
    %v467 = vld [vmem:[#allocation17 + $0x24] sm:$0xf]
    %v468 = vld [vmem:[#allocation17 + $0x28] sm:$0xf]
    %v469 = vld [vmem:[#allocation17 + $0x2c] sm:$0xf]
    %v470 = vld [vmem:[#allocation17 + $0x30] sm:$0xf]
    %v471 = vld [vmem:[#allocation17 + $0x34] sm:$0xf]
    %v472 = vld [vmem:[#allocation17 + $0x38] sm:$0xf]
    %v473 = vld [vmem:[#allocation17 + $0x3c] sm:$0xf]
    %v474 = vpack.c.bf16 %v403, %v402
    %v475 = vpack.c.bf16 %v405, %v404
    %v476 = vpack.c.bf16 %v407, %v406
    %v477 = vpack.c.bf16 %v409, %v408
    %v478 = vld [vmem:[#allocation19] sm:$0x1]
    %v480 = vperm.slane %v478, 0
    %v498 = vunpack.c.l.b16 %v458
    %v499 = vunpack.c.l.b16 %v459
    %v500 = vunpack.c.l.b16 %v460
    %v501 = vunpack.c.l.b16 %v461
    %v502 = vunpack.c.l.b16 %v462
    %v503 = vunpack.c.l.b16 %v463
    %v504 = vunpack.c.l.b16 %v464
    %v505 = vunpack.c.l.b16 %v465
    %v506 = vunpack.c.l.b16 %v466
    %v507 = vunpack.c.l.b16 %v467
    %v508 = vunpack.c.l.b16 %v468
    %v509 = vunpack.c.l.b16 %v469
    %v510 = vunpack.c.l.b16 %v470
    %v511 = vunpack.c.l.b16 %v471
    %v512 = vunpack.c.l.b16 %v472
    %v513 = vunpack.c.l.b16 %v473
    %v514 = vpack.c.b16 %v499, %v498
    %v515 = vpack.c.b16 %v501, %v500
    %v516 = vpack.c.b16 %v503, %v502
    %v517 = vpack.c.b16 %v505, %v504
    %v518 = vpack.c.b16 %v507, %v506
    %v519 = vpack.c.b16 %v509, %v508
    %v520 = vpack.c.b16 %v511, %v510
    %v521 = vpack.c.b16 %v513, %v512
    %530 = vmatpush.bf16.msra.mxu0 %v521
    %531 = vmatpush.bf16.msra.mxu0 %v520
    %532 = vmatpush.bf16.msra.mxu0 %v519
    %533 = vmatpush.bf16.msra.mxu0 %v518
    %534 = vmatpush.bf16.msra.mxu0 %v517
    %535 = vmatpush.bf16.msra.mxu0 %v516
    %536 = vmatpush.bf16.msra.mxu0 %v515
    %537 = vmatpush.bf16.msra.mxu0 %v514
    %538 = vmatmul.bf16.gmra.mxu0 %v474
    %v539 = vpop.f32.mrf.mxu0
    %v540 = vadd.f32 %v480, %v539
    %v541 = vpop.f32.mrf.mxu0
    %v542 = vadd.f32 %v480, %v541
    %543 = vmatmul.bf16.gmra.mxu0 %v475
    %v544 = vpop.f32.mrf.mxu0
    %v545 = vadd.f32 %v480, %v544
    %v546 = vpop.f32.mrf.mxu0
    %v547 = vadd.f32 %v480, %v546
    %548 = vmatmul.bf16.gmra.mxu0 %v476
    %v549 = vpop.f32.mrf.mxu0
    %v550 = vadd.f32 %v480, %v549
    %v551 = vpop.f32.mrf.mxu0
    %v552 = vadd.f32 %v480, %v551
    %553 = vmatmul.bf16.gmra.mxu0 %v477
    %v554 = vpop.f32.mrf.mxu0
    %v555 = vadd.f32 %v480, %v554
    %v556 = vpop.f32.mrf.mxu0
    %v557 = vadd.f32 %v480, %v556
    %558 = vdwg.mxu0
    %v559 = vmax.f32 %v540, 0.0
    %v560 = vmax.f32 %v542, 0.0
    %v561 = vmax.f32 %v545, 0.0
    %v562 = vmax.f32 %v547, 0.0
    %v563 = vmax.f32 %v550, 0.0
    %v564 = vmax.f32 %v552, 0.0
    %v565 = vmax.f32 %v555, 0.0
    %v566 = vmax.f32 %v557, 0.0
    %v567 = vld [vmem:[#allocation20] sm:$0xf]
    %v568 = vld [vmem:[#allocation20 + $0x4] sm:$0xf]
    %v569 = vld [vmem:[#allocation20 + $0x8] sm:$0xf]
    %v570 = vld [vmem:[#allocation20 + $0xc] sm:$0xf]
    %v571 = vld [vmem:[#allocation20 + $0x10] sm:$0xf]
    %v572 = vld [vmem:[#allocation20 + $0x14] sm:$0xf]
    %v573 = vld [vmem:[#allocation20 + $0x18] sm:$0xf]
    %v574 = vld [vmem:[#allocation20 + $0x1c] sm:$0xf]
    %v575 = vld [vmem:[#allocation20 + $0x20] sm:$0xf]
    %v576 = vld [vmem:[#allocation20 + $0x24] sm:$0xf]
    %v577 = vld [vmem:[#allocation20 + $0x28] sm:$0xf]
    %v578 = vld [vmem:[#allocation20 + $0x2c] sm:$0xf]
    %v579 = vld [vmem:[#allocation20 + $0x30] sm:$0xf]
    %v580 = vld [vmem:[#allocation20 + $0x34] sm:$0xf]
    %v581 = vld [vmem:[#allocation20 + $0x38] sm:$0xf]
    %v582 = vld [vmem:[#allocation20 + $0x3c] sm:$0xf]
    %v583 = vpack.c.bf16 %v443, %v442
    %v584 = vpack.c.bf16 %v445, %v444
    %v585 = vpack.c.bf16 %v447, %v446
    %v586 = vpack.c.bf16 %v449, %v448
    %v587 = vld [vmem:[#allocation22] sm:$0x1]
    %v589 = vperm.slane %v587, 0
    %v607 = vunpack.c.l.b16 %v567
    %v608 = vunpack.c.l.b16 %v568
    %v609 = vunpack.c.l.b16 %v569
    %v610 = vunpack.c.l.b16 %v570
    %v611 = vunpack.c.l.b16 %v571
    %v612 = vunpack.c.l.b16 %v572
    %v613 = vunpack.c.l.b16 %v573
    %v614 = vunpack.c.l.b16 %v574
    %v615 = vunpack.c.l.b16 %v575
    %v616 = vunpack.c.l.b16 %v576
    %v617 = vunpack.c.l.b16 %v577
    %v618 = vunpack.c.l.b16 %v578
    %v619 = vunpack.c.l.b16 %v579
    %v620 = vunpack.c.l.b16 %v580
    %v621 = vunpack.c.l.b16 %v581
    %v622 = vunpack.c.l.b16 %v582
    %v623 = vpack.c.b16 %v608, %v607
    %v624 = vpack.c.b16 %v610, %v609
    %v625 = vpack.c.b16 %v612, %v611
    %v626 = vpack.c.b16 %v614, %v613
    %v627 = vpack.c.b16 %v616, %v615
    %v628 = vpack.c.b16 %v618, %v617
    %v629 = vpack.c.b16 %v620, %v619
    %v630 = vpack.c.b16 %v622, %v621
    %639 = vmatpush.bf16.msra.mxu0 %v630
    %640 = vmatpush.bf16.msra.mxu0 %v629
    %641 = vmatpush.bf16.msra.mxu0 %v628
    %642 = vmatpush.bf16.msra.mxu0 %v627
    %643 = vmatpush.bf16.msra.mxu0 %v626
    %644 = vmatpush.bf16.msra.mxu0 %v625
    %645 = vmatpush.bf16.msra.mxu0 %v624
    %646 = vmatpush.bf16.msra.mxu0 %v623
    %647 = vmatmul.bf16.gmra.mxu0 %v583
    %v648 = vpop.f32.mrf.mxu0
    %v649 = vadd.f32 %v589, %v648
    %v650 = vpop.f32.mrf.mxu0
    %v651 = vadd.f32 %v589, %v650
    %652 = vmatmul.bf16.gmra.mxu0 %v584
    %v653 = vpop.f32.mrf.mxu0
    %v654 = vadd.f32 %v589, %v653
    %v655 = vpop.f32.mrf.mxu0
    %v656 = vadd.f32 %v589, %v655
    %657 = vmatmul.bf16.gmra.mxu0 %v585
    %v658 = vpop.f32.mrf.mxu0
    %v659 = vadd.f32 %v589, %v658
    %v660 = vpop.f32.mrf.mxu0
    %v661 = vadd.f32 %v589, %v660
    %662 = vmatmul.bf16.gmra.mxu0 %v586
    %v663 = vpop.f32.mrf.mxu0
    %v664 = vadd.f32 %v589, %v663
    %v665 = vpop.f32.mrf.mxu0
    %v666 = vadd.f32 %v589, %v665
    %667 = vdwg.mxu0
    %v668 = vmax.f32 %v649, 0.0
    %v669 = vmax.f32 %v651, 0.0
    %v670 = vmax.f32 %v654, 0.0
    %v671 = vmax.f32 %v656, 0.0
    %v672 = vmax.f32 %v659, 0.0
    %v673 = vmax.f32 %v661, 0.0
    %v674 = vmax.f32 %v664, 0.0
    %v675 = vmax.f32 %v666, 0.0
    %v676 = vld [vmem:[#allocation25] sm:$0xf]
    %v677 = vld [vmem:[#allocation25 + $0x4] sm:$0xf]
    %v678 = vld [vmem:[#allocation25 + $0x8] sm:$0xf]
    %v679 = vld [vmem:[#allocation25 + $0xc] sm:$0xf]
    %v680 = vld [vmem:[#allocation25 + $0x10] sm:$0xf]
    %v681 = vld [vmem:[#allocation25 + $0x14] sm:$0xf]
    %v682 = vld [vmem:[#allocation25 + $0x18] sm:$0xf]
    %v683 = vld [vmem:[#allocation25 + $0x1c] sm:$0xf]
    %v684 = vld [vmem:[#allocation25 + $0x20] sm:$0xf]
    %v685 = vld [vmem:[#allocation25 + $0x24] sm:$0xf]
    %v686 = vld [vmem:[#allocation25 + $0x28] sm:$0xf]
    %v687 = vld [vmem:[#allocation25 + $0x2c] sm:$0xf]
    %v688 = vld [vmem:[#allocation25 + $0x30] sm:$0xf]
    %v689 = vld [vmem:[#allocation25 + $0x34] sm:$0xf]
    %v690 = vld [vmem:[#allocation25 + $0x38] sm:$0xf]
    %v691 = vld [vmem:[#allocation25 + $0x3c] sm:$0xf]
    %v692 = vpack.c.bf16 %v669, %v668
    %v693 = vpack.c.bf16 %v671, %v670
    %v694 = vpack.c.bf16 %v673, %v672
    %v695 = vpack.c.bf16 %v675, %v674
    %v712 = vunpack.c.l.b16 %v676
    %v713 = vunpack.c.l.b16 %v677
    %v714 = vunpack.c.l.b16 %v678
    %v715 = vunpack.c.l.b16 %v679
    %v716 = vunpack.c.l.b16 %v680
    %v717 = vunpack.c.l.b16 %v681
    %v718 = vunpack.c.l.b16 %v682
    %v719 = vunpack.c.l.b16 %v683
    %v720 = vunpack.c.l.b16 %v684
    %v721 = vunpack.c.l.b16 %v685
    %v722 = vunpack.c.l.b16 %v686
    %v723 = vunpack.c.l.b16 %v687
    %v724 = vunpack.c.l.b16 %v688
    %v725 = vunpack.c.l.b16 %v689
    %v726 = vunpack.c.l.b16 %v690
    %v727 = vunpack.c.l.b16 %v691
    %v728 = vpack.c.b16 %v713, %v712
    %v729 = vpack.c.b16 %v715, %v714
    %v730 = vpack.c.b16 %v717, %v716
    %v731 = vpack.c.b16 %v719, %v718
    %v732 = vpack.c.b16 %v721, %v720
    %v733 = vpack.c.b16 %v723, %v722
    %v734 = vpack.c.b16 %v725, %v724
    %v735 = vpack.c.b16 %v727, %v726
    %744 = vmatpush.bf16.msra.mxu0 %v735
    %745 = vmatpush.bf16.msra.mxu0 %v734
    %746 = vmatpush.bf16.msra.mxu0 %v733
    %747 = vmatpush.bf16.msra.mxu0 %v732
    %748 = vmatpush.bf16.msra.mxu0 %v731
    %749 = vmatpush.bf16.msra.mxu0 %v730
    %750 = vmatpush.bf16.msra.mxu0 %v729
    %751 = vmatpush.bf16.msra.mxu0 %v728
    %752 = vmatmul.bf16.gmra.mxu0 %v692
    %v753 = vpop.f32.mrf.mxu0
    %v754 = vadd.f32 0.0, %v753
    %v755 = vpop.f32.mrf.mxu0
    %v756 = vadd.f32 0.0, %v755
    %757 = vmatmul.bf16.gmra.mxu0 %v693
    %v758 = vpop.f32.mrf.mxu0
    %v759 = vadd.f32 0.0, %v758
    %v760 = vpop.f32.mrf.mxu0
    %v761 = vadd.f32 0.0, %v760
    %762 = vmatmul.bf16.gmra.mxu0 %v694
    %v763 = vpop.f32.mrf.mxu0
    %v764 = vadd.f32 0.0, %v763
    %v765 = vpop.f32.mrf.mxu0
    %v766 = vadd.f32 0.0, %v765
    %767 = vmatmul.bf16.gmra.mxu0 %v695
    %v768 = vpop.f32.mrf.mxu0
    %v769 = vadd.f32 0.0, %v768
    %v770 = vpop.f32.mrf.mxu0
    %v771 = vadd.f32 0.0, %v770
    %772 = vdwg.mxu0
    %773 = vst [vmem:[#allocation3] sm:$0xff] %v754
    %774 = vst [vmem:[#allocation3 + $0x8] sm:$0xff] %v756
    %775 = vst [vmem:[#allocation3 + $0x10] sm:$0xff] %v759
    %776 = vst [vmem:[#allocation3 + $0x18] sm:$0xff] %v761
    %777 = vst [vmem:[#allocation3 + $0x20] sm:$0xff] %v764
    %778 = vst [vmem:[#allocation3 + $0x28] sm:$0xff] %v766
    %779 = vst [vmem:[#allocation3 + $0x30] sm:$0xff] %v769
    %780 = vst [vmem:[#allocation3 + $0x38] sm:$0xff] %v771
    %v781 = vld [vmem:[#allocation34] sm:$0xff]
    %v782 = vld [vmem:[#allocation34 + $0x8] sm:$0xf]
    %v783 = vld [vmem:[#allocation34 + $0xc] sm:$0xff]
    %v784 = vld [vmem:[#allocation34 + $0x14] sm:$0xf]
    %v785 = vld [vmem:[#allocation34 + $0x18] sm:$0xff]
    %v786 = vld [vmem:[#allocation34 + $0x20] sm:$0xf]
    %v787 = vld [vmem:[#allocation34 + $0x24] sm:$0xff]
    %v788 = vld [vmem:[#allocation34 + $0x2c] sm:$0xf]
    %v789 = vld [vmem:[#allocation34 + $0x30] sm:$0xff]
    %v790 = vld [vmem:[#allocation34 + $0x38] sm:$0xf]
    %v791 = vld [vmem:[#allocation34 + $0x3c] sm:$0xff]
    %v792 = vld [vmem:[#allocation34 + $0x44] sm:$0xf]
    %v793 = vld [vmem:[#allocation34 + $0x48] sm:$0xff]
    %v794 = vld [vmem:[#allocation34 + $0x50] sm:$0xf]
    %v795 = vld [vmem:[#allocation34 + $0x54] sm:$0xff]
    %v796 = vld [vmem:[#allocation34 + $0x5c] sm:$0xf]
    %v797 = vld [vmem:[#allocation34 + $0x60] sm:$0xff]
    %v798 = vld [vmem:[#allocation34 + $0x68] sm:$0xf]
    %v799 = vld [vmem:[#allocation34 + $0x6c] sm:$0xff]
    %v800 = vld [vmem:[#allocation34 + $0x74] sm:$0xf]
    %v801 = vld [vmem:[#allocation34 + $0x78] sm:$0xff]
    %v802 = vld [vmem:[#allocation34 + $0x80] sm:$0xf]
    %v803 = vld [vmem:[#allocation34 + $0x84] sm:$0xff]
    %v804 = vld [vmem:[#allocation34 + $0x8c] sm:$0xf]
    %v805 = vld [vmem:[#allocation34 + $0x90] sm:$0xff]
    %v806 = vld [vmem:[#allocation34 + $0x98] sm:$0xf]
    %v807 = vld [vmem:[#allocation34 + $0x9c] sm:$0xff]
    %v808 = vld [vmem:[#allocation34 + $0xa4] sm:$0xf]
    %v809 = vld [vmem:[#allocation34 + $0xa8] sm:$0xff]
    %v810 = vld [vmem:[#allocation34 + $0xb0] sm:$0xf]
    %v811 = vld [vmem:[#allocation34 + $0xb4] sm:$0xff]
    %v812 = vld [vmem:[#allocation34 + $0xbc] sm:$0xf]
    %v813 = vpack.c.bf16 %v560, %v559
    %v814 = vpack.c.bf16 %v562, %v561
    %v815 = vpack.c.bf16 %v564, %v563
    %v816 = vpack.c.bf16 %v566, %v565
    %v817 = vld [vmem:[%s24] sm:$0x7]
    %v819 = vperm.slane %v817, 0
    %v820 = vperm.slane %v817, 1
    %v821 = vperm.slane %v817, 2
    %v857 = vunpack.c.l.b16 %v781
    %v858 = vunpack.c.h.b16 %v781
    %v859 = vunpack.c.l.b16 %v782
    %v860 = vunpack.c.l.b16 %v783
    %v861 = vunpack.c.h.b16 %v783
    %v862 = vunpack.c.l.b16 %v784
    %v863 = vunpack.c.l.b16 %v785
    %v864 = vunpack.c.h.b16 %v785
    %v865 = vunpack.c.l.b16 %v786
    %v866 = vunpack.c.l.b16 %v787
    %v867 = vunpack.c.h.b16 %v787
    %v868 = vunpack.c.l.b16 %v788
    %v869 = vunpack.c.l.b16 %v789
    %v870 = vunpack.c.h.b16 %v789
    %v871 = vunpack.c.l.b16 %v790
    %v872 = vunpack.c.l.b16 %v791
    %v873 = vunpack.c.h.b16 %v791
    %v874 = vunpack.c.l.b16 %v792
    %v875 = vunpack.c.l.b16 %v793
    %v876 = vunpack.c.h.b16 %v793
    %v877 = vunpack.c.l.b16 %v794
    %v878 = vunpack.c.l.b16 %v795
    %v879 = vunpack.c.h.b16 %v795
    %v880 = vunpack.c.l.b16 %v796
    %v881 = vunpack.c.l.b16 %v797
    %v882 = vunpack.c.h.b16 %v797
    %v883 = vunpack.c.l.b16 %v798
    %v884 = vunpack.c.l.b16 %v799
    %v885 = vunpack.c.h.b16 %v799
    %v886 = vunpack.c.l.b16 %v800
    %v887 = vunpack.c.l.b16 %v801
    %v888 = vunpack.c.h.b16 %v801
    %v889 = vunpack.c.l.b16 %v802
    %v890 = vunpack.c.l.b16 %v803
    %v891 = vunpack.c.h.b16 %v803
    %v892 = vunpack.c.l.b16 %v804
    %v893 = vunpack.c.l.b16 %v805
    %v894 = vunpack.c.h.b16 %v805
    %v895 = vunpack.c.l.b16 %v806
    %v896 = vunpack.c.l.b16 %v807
    %v897 = vunpack.c.h.b16 %v807
    %v898 = vunpack.c.l.b16 %v808
    %v899 = vunpack.c.l.b16 %v809
    %v900 = vunpack.c.h.b16 %v809
    %v901 = vunpack.c.l.b16 %v810
    %v902 = vunpack.c.l.b16 %v811
    %v903 = vunpack.c.h.b16 %v811
    %v904 = vunpack.c.l.b16 %v812
    %v905 = vpack.c.b16 %v860, %v857
    %v906 = vpack.c.b16 %v861, %v858
    %v907 = vpack.c.b16 %v862, %v859
    %v908 = vpack.c.b16 %v866, %v863
    %v909 = vpack.c.b16 %v867, %v864
    %v910 = vpack.c.b16 %v868, %v865
    %v911 = vpack.c.b16 %v872, %v869
    %v912 = vpack.c.b16 %v873, %v870
    %v913 = vpack.c.b16 %v874, %v871
    %v914 = vpack.c.b16 %v878, %v875
    %v915 = vpack.c.b16 %v879, %v876
    %v916 = vpack.c.b16 %v880, %v877
    %v917 = vpack.c.b16 %v884, %v881
    %v918 = vpack.c.b16 %v885, %v882
    %v919 = vpack.c.b16 %v886, %v883
    %v920 = vpack.c.b16 %v890, %v887
    %v921 = vpack.c.b16 %v891, %v888
    %v922 = vpack.c.b16 %v892, %v889
    %v923 = vpack.c.b16 %v896, %v893
    %v924 = vpack.c.b16 %v897, %v894
    %v925 = vpack.c.b16 %v898, %v895
    %v926 = vpack.c.b16 %v902, %v899
    %v927 = vpack.c.b16 %v903, %v900
    %v928 = vpack.c.b16 %v904, %v901
    %953 = vmatpush.bf16.msra.mxu0 %v926
    %954 = vmatpush.bf16.msra.mxu0 %v923
    %955 = vmatpush.bf16.msra.mxu0 %v920
    %956 = vmatpush.bf16.msra.mxu0 %v917
    %957 = vmatpush.bf16.msra.mxu0 %v914
    %958 = vmatpush.bf16.msra.mxu0 %v911
    %959 = vmatpush.bf16.msra.mxu0 %v908
    %960 = vmatpush.bf16.msra.mxu0 %v905
    %961 = vmatmul.bf16.gmra.mxu0 %v813
    %v962 = vpop.f32.mrf.mxu0
    %v963 = vadd.f32 %v819, %v962
    %v964 = vpop.f32.mrf.mxu0
    %v965 = vadd.f32 %v819, %v964
    %966 = vmatmul.bf16.gmra.mxu0 %v814
    %v967 = vpop.f32.mrf.mxu0
    %v968 = vadd.f32 %v819, %v967
    %v969 = vpop.f32.mrf.mxu0
    %v970 = vadd.f32 %v819, %v969
    %971 = vmatmul.bf16.gmra.mxu0 %v815
    %v972 = vpop.f32.mrf.mxu0
    %v973 = vadd.f32 %v819, %v972
    %v974 = vpop.f32.mrf.mxu0
    %v975 = vadd.f32 %v819, %v974
    %976 = vmatmul.bf16.gmra.mxu0 %v816
    %v977 = vpop.f32.mrf.mxu0
    %v978 = vadd.f32 %v819, %v977
    %v979 = vpop.f32.mrf.mxu0
    %v980 = vadd.f32 %v819, %v979
    %981 = vdwg.mxu0
    %982 = vmatpush.bf16.msra.mxu0 %v927
    %983 = vmatpush.bf16.msra.mxu0 %v924
    %984 = vmatpush.bf16.msra.mxu0 %v921
    %985 = vmatpush.bf16.msra.mxu0 %v918
    %986 = vmatpush.bf16.msra.mxu0 %v915
    %987 = vmatpush.bf16.msra.mxu0 %v912
    %988 = vmatpush.bf16.msra.mxu0 %v909
    %989 = vmatpush.bf16.msra.mxu0 %v906
    %990 = vmatmul.bf16.gmra.mxu0 %v813
    %v991 = vpop.f32.mrf.mxu0
    %v992 = vadd.f32 %v820, %v991
    %v993 = vpop.f32.mrf.mxu0
    %v994 = vadd.f32 %v820, %v993
    %995 = vmatmul.bf16.gmra.mxu0 %v814
    %v996 = vpop.f32.mrf.mxu0
    %v997 = vadd.f32 %v820, %v996
    %v998 = vpop.f32.mrf.mxu0
    %v999 = vadd.f32 %v820, %v998
    %1000 = vmatmul.bf16.gmra.mxu0 %v815
    %v1001 = vpop.f32.mrf.mxu0
    %v1002 = vadd.f32 %v820, %v1001
    %v1003 = vpop.f32.mrf.mxu0
    %v1004 = vadd.f32 %v820, %v1003
    %1005 = vmatmul.bf16.gmra.mxu0 %v816
    %v1006 = vpop.f32.mrf.mxu0
    %v1007 = vadd.f32 %v820, %v1006
    %v1008 = vpop.f32.mrf.mxu0
    %v1009 = vadd.f32 %v820, %v1008
    %1010 = vdwg.mxu0
    %1011 = vmatpush.bf16.msra.mxu0 %v928
    %1012 = vmatpush.bf16.msra.mxu0 %v925
    %1013 = vmatpush.bf16.msra.mxu0 %v922
    %1014 = vmatpush.bf16.msra.mxu0 %v919
    %1015 = vmatpush.bf16.msra.mxu0 %v916
    %1016 = vmatpush.bf16.msra.mxu0 %v913
    %1017 = vmatpush.bf16.msra.mxu0 %v910
    %1018 = vmatpush.bf16.msra.mxu0 %v907
    %1019 = vmatmul.bf16.gmra.mxu0 %v813
    %v1020 = vpop.f32.mrf.mxu0
    %v1021 = vadd.f32 %v821, %v1020
    %v1022 = vpop.f32.mrf.mxu0
    %v1023 = vadd.f32 %v821, %v1022
    %1024 = vmatmul.bf16.gmra.mxu0 %v814
    %v1025 = vpop.f32.mrf.mxu0
    %v1026 = vadd.f32 %v821, %v1025
    %v1027 = vpop.f32.mrf.mxu0
    %v1028 = vadd.f32 %v821, %v1027
    %1029 = vmatmul.bf16.gmra.mxu0 %v815
    %v1030 = vpop.f32.mrf.mxu0
    %v1031 = vadd.f32 %v821, %v1030
    %v1032 = vpop.f32.mrf.mxu0
    %v1033 = vadd.f32 %v821, %v1032
    %1034 = vmatmul.bf16.gmra.mxu0 %v816
    %v1035 = vpop.f32.mrf.mxu0
    %v1036 = vadd.f32 %v821, %v1035
    %v1037 = vpop.f32.mrf.mxu0
    %v1038 = vadd.f32 %v821, %v1037
    %1039 = vdwg.mxu0
    %1040 = vst [vmem:[#allocation4] sm:$0xff] %v963
    %1041 = vst [vmem:[#allocation4 + $0x8] sm:$0xff] %v992
    %1042 = vst [vmem:[#allocation4 + $0x10] sm:$0xff] %v1021
    %1043 = vst [vmem:[#allocation4 + $0x18] sm:$0xff] %v965
    %1044 = vst [vmem:[#allocation4 + $0x20] sm:$0xff] %v994
    %1045 = vst [vmem:[#allocation4 + $0x28] sm:$0xff] %v1023
    %1046 = vst [vmem:[#allocation4 + $0x30] sm:$0xff] %v968
    %1047 = vst [vmem:[#allocation4 + $0x38] sm:$0xff] %v997
    %1048 = vst [vmem:[#allocation4 + $0x40] sm:$0xff] %v1026
    %1049 = vst [vmem:[#allocation4 + $0x48] sm:$0xff] %v970
    %1050 = vst [vmem:[#allocation4 + $0x50] sm:$0xff] %v999
    %1051 = vst [vmem:[#allocation4 + $0x58] sm:$0xff] %v1028
    %1052 = vst [vmem:[#allocation4 + $0x60] sm:$0xff] %v973
    %1053 = vst [vmem:[#allocation4 + $0x68] sm:$0xff] %v1002
    %1054 = vst [vmem:[#allocation4 + $0x70] sm:$0xff] %v1031
    %1055 = vst [vmem:[#allocation4 + $0x78] sm:$0xff] %v975
    %1056 = vst [vmem:[#allocation4 + $0x80] sm:$0xff] %v1004
    %1057 = vst [vmem:[#allocation4 + $0x88] sm:$0xff] %v1033
    %1058 = vst [vmem:[#allocation4 + $0x90] sm:$0xff] %v978
    %1059 = vst [vmem:[#allocation4 + $0x98] sm:$0xff] %v1007
    %1060 = vst [vmem:[#allocation4 + $0xa0] sm:$0xff] %v1036
    %1061 = vst [vmem:[#allocation4 + $0xa8] sm:$0xff] %v980
    %1062 = vst [vmem:[#allocation4 + $0xb0] sm:$0xff] %v1009
    %1063 = vst [vmem:[#allocation4 + $0xb8] sm:$0xff] %v1038
    %v1064 = vld [vmem:[%s12] sm:$0x3f]
    %v1065 = vld [vmem:[%s15] sm:$0x3]
    %v1066 = vld [vmem:[%s17] sm:$0x3]
    %v1067 = vld [vmem:[%s19] sm:$0x1]
    %v1068 = vld [vmem:[%s22] sm:$0x3]
    %v1069 = vld [vmem:[#allocation2] sm:$0xff]
    %v1070 = vld [vmem:[#allocation10] sm:$0xff]
    %v1071 = vld [vmem:[#allocation23] sm:$0xff]
    %v1072 = vld [vmem:[#allocation23 + $0x8] sm:$0xff]
    %v1073 = vld [vmem:[#allocation23 + $0x10] sm:$0xff]
    %v1074 = vld [vmem:[#allocation23 + $0x18] sm:$0xff]
    %v1075 = vld [vmem:[#allocation23 + $0x20] sm:$0xff]
    %v1076 = vld [vmem:[#allocation23 + $0x28] sm:$0xff]
    %v1077 = vld [vmem:[#allocation23 + $0x30] sm:$0xff]
    %v1078 = vld [vmem:[#allocation23 + $0x38] sm:$0xff]
    %v1079 = vld [vmem:[#allocation23 + $0x40] sm:$0xff]
    %v1080 = vld [vmem:[#allocation23 + $0x48] sm:$0xff]
    %v1081 = vld [vmem:[#allocation23 + $0x50] sm:$0xff]
    %v1082 = vld [vmem:[#allocation23 + $0x58] sm:$0xff]
    %v1083 = vld [vmem:[#allocation23 + $0x60] sm:$0xff]
    %v1084 = vld [vmem:[#allocation23 + $0x68] sm:$0xff]
    %v1085 = vld [vmem:[#allocation23 + $0x70] sm:$0xff]
    %v1086 = vld [vmem:[#allocation23 + $0x78] sm:$0xff]
    %v1087 = vld [vmem:[#allocation23 + $0x80] sm:$0xff]
    %v1088 = vld [vmem:[#allocation23 + $0x88] sm:$0xff]
    %v1089 = vld [vmem:[#allocation23 + $0x90] sm:$0xff]
    %v1090 = vld [vmem:[#allocation23 + $0x98] sm:$0xff]
    %v1091 = vld [vmem:[#allocation23 + $0xa0] sm:$0xff]
    %v1092 = vld [vmem:[#allocation23 + $0xa8] sm:$0xff]
    %v1093 = vld [vmem:[#allocation23 + $0xb0] sm:$0xff]
    %v1094 = vld [vmem:[#allocation23 + $0xb8] sm:$0xff]
    %v1095 = vld [vmem:[#allocation23 + $0xc0] sm:$0xff]
    %v1096 = vld [vmem:[#allocation23 + $0xc8] sm:$0xff]
    %v1097 = vld [vmem:[#allocation23 + $0xd0] sm:$0xff]
    %v1098 = vld [vmem:[#allocation23 + $0xd8] sm:$0xff]
    %v1099 = vld [vmem:[#allocation23 + $0xe0] sm:$0xff]
    %v1100 = vld [vmem:[#allocation23 + $0xe8] sm:$0xff]
    %v1101 = vld [vmem:[#allocation23 + $0xf0] sm:$0xff]
    %v1102 = vld [vmem:[#allocation23 + $0xf8] sm:$0xff]
    %v1103 = vld [vmem:[#allocation23 + $0x100] sm:$0xff]
    %v1104 = vld [vmem:[#allocation23 + $0x108] sm:$0xff]
    %v1105 = vld [vmem:[#allocation23 + $0x110] sm:$0xff]
    %v1106 = vld [vmem:[#allocation23 + $0x118] sm:$0xff]
    %v1107 = vld [vmem:[#allocation23 + $0x120] sm:$0xff]
    %v1108 = vld [vmem:[#allocation23 + $0x128] sm:$0xff]
    %v1109 = vld [vmem:[#allocation23 + $0x130] sm:$0xff]
    %v1110 = vld [vmem:[#allocation23 + $0x138] sm:$0xff]
    %v1111 = vld [vmem:[#allocation23 + $0x140] sm:$0xff]
    %v1112 = vld [vmem:[#allocation23 + $0x148] sm:$0xff]
    %v1113 = vld [vmem:[#allocation23 + $0x150] sm:$0xff]
    %v1114 = vld [vmem:[#allocation23 + $0x158] sm:$0xff]
    %v1115 = vld [vmem:[#allocation23 + $0x160] sm:$0xff]
    %v1116 = vld [vmem:[#allocation23 + $0x168] sm:$0xff]
    %v1117 = vld [vmem:[#allocation23 + $0x170] sm:$0xff]
    %v1118 = vld [vmem:[#allocation23 + $0x178] sm:$0xff]
    %v1120 = vperm.slane %v1064, 0
    %v1121 = vperm.slane %v1064, 1
    %v1122 = vperm.slane %v1064, 2
    %v1123 = vperm.slane %v1064, 3
    %v1124 = vperm.slane %v1064, 4
    %v1125 = vperm.slane %v1064, 5
    %v1180 = vunpack.c.l.b16 %v1071
    %v1181 = vunpack.c.h.b16 %v1071
    %v1182 = vunpack.c.l.b16 %v1072
    %v1183 = vunpack.c.h.b16 %v1072
    %v1184 = vunpack.c.l.b16 %v1073
    %v1185 = vunpack.c.h.b16 %v1073
    %v1186 = vunpack.c.l.b16 %v1074
    %v1187 = vunpack.c.h.b16 %v1074
    %v1188 = vunpack.c.l.b16 %v1075
    %v1189 = vunpack.c.h.b16 %v1075
    %v1190 = vunpack.c.l.b16 %v1076
    %v1191 = vunpack.c.h.b16 %v1076
    %v1192 = vunpack.c.l.b16 %v1077
    %v1193 = vunpack.c.h.b16 %v1077
    %v1194 = vunpack.c.l.b16 %v1078
    %v1195 = vunpack.c.h.b16 %v1078
    %v1196 = vunpack.c.l.b16 %v1079
    %v1197 = vunpack.c.h.b16 %v1079
    %v1198 = vunpack.c.l.b16 %v1080
    %v1199 = vunpack.c.h.b16 %v1080
    %v1200 = vunpack.c.l.b16 %v1081
    %v1201 = vunpack.c.h.b16 %v1081
    %v1202 = vunpack.c.l.b16 %v1082
    %v1203 = vunpack.c.h.b16 %v1082
    %v1204 = vunpack.c.l.b16 %v1083
    %v1205 = vunpack.c.h.b16 %v1083
    %v1206 = vunpack.c.l.b16 %v1084
    %v1207 = vunpack.c.h.b16 %v1084
    %v1208 = vunpack.c.l.b16 %v1085
    %v1209 = vunpack.c.h.b16 %v1085
    %v1210 = vunpack.c.l.b16 %v1086
    %v1211 = vunpack.c.h.b16 %v1086
    %v1212 = vunpack.c.l.b16 %v1087
    %v1213 = vunpack.c.h.b16 %v1087
    %v1214 = vunpack.c.l.b16 %v1088
    %v1215 = vunpack.c.h.b16 %v1088
    %v1216 = vunpack.c.l.b16 %v1089
    %v1217 = vunpack.c.h.b16 %v1089
    %v1218 = vunpack.c.l.b16 %v1090
    %v1219 = vunpack.c.h.b16 %v1090
    %v1220 = vunpack.c.l.b16 %v1091
    %v1221 = vunpack.c.h.b16 %v1091
    %v1222 = vunpack.c.l.b16 %v1092
    %v1223 = vunpack.c.h.b16 %v1092
    %v1224 = vunpack.c.l.b16 %v1093
    %v1225 = vunpack.c.h.b16 %v1093
    %v1226 = vunpack.c.l.b16 %v1094
    %v1227 = vunpack.c.h.b16 %v1094
    %v1228 = vunpack.c.l.b16 %v1095
    %v1229 = vunpack.c.h.b16 %v1095
    %v1230 = vunpack.c.l.b16 %v1096
    %v1231 = vunpack.c.h.b16 %v1096
    %v1232 = vunpack.c.l.b16 %v1097
    %v1233 = vunpack.c.h.b16 %v1097
    %v1234 = vunpack.c.l.b16 %v1098
    %v1235 = vunpack.c.h.b16 %v1098
    %v1236 = vunpack.c.l.b16 %v1099
    %v1237 = vunpack.c.h.b16 %v1099
    %v1238 = vunpack.c.l.b16 %v1100
    %v1239 = vunpack.c.h.b16 %v1100
    %v1240 = vunpack.c.l.b16 %v1101
    %v1241 = vunpack.c.h.b16 %v1101
    %v1242 = vunpack.c.l.b16 %v1102
    %v1243 = vunpack.c.h.b16 %v1102
    %v1244 = vunpack.c.l.b16 %v1103
    %v1245 = vunpack.c.h.b16 %v1103
    %v1246 = vunpack.c.l.b16 %v1104
    %v1247 = vunpack.c.h.b16 %v1104
    %v1248 = vunpack.c.l.b16 %v1105
    %v1249 = vunpack.c.h.b16 %v1105
    %v1250 = vunpack.c.l.b16 %v1106
    %v1251 = vunpack.c.h.b16 %v1106
    %v1252 = vunpack.c.l.b16 %v1107
    %v1253 = vunpack.c.h.b16 %v1107
    %v1254 = vunpack.c.l.b16 %v1108
    %v1255 = vunpack.c.h.b16 %v1108
    %v1256 = vunpack.c.l.b16 %v1109
    %v1257 = vunpack.c.h.b16 %v1109
    %v1258 = vunpack.c.l.b16 %v1110
    %v1259 = vunpack.c.h.b16 %v1110
    %v1260 = vunpack.c.l.b16 %v1111
    %v1261 = vunpack.c.h.b16 %v1111
    %v1262 = vunpack.c.l.b16 %v1112
    %v1263 = vunpack.c.h.b16 %v1112
    %v1264 = vunpack.c.l.b16 %v1113
    %v1265 = vunpack.c.h.b16 %v1113
    %v1266 = vunpack.c.l.b16 %v1114
    %v1267 = vunpack.c.h.b16 %v1114
    %v1268 = vunpack.c.l.b16 %v1115
    %v1269 = vunpack.c.h.b16 %v1115
    %v1270 = vunpack.c.l.b16 %v1116
    %v1271 = vunpack.c.h.b16 %v1116
    %v1272 = vunpack.c.l.b16 %v1117
    %v1273 = vunpack.c.h.b16 %v1117
    %v1274 = vunpack.c.l.b16 %v1118
    %v1275 = vunpack.c.h.b16 %v1118
    %v1276 = vpack.c.b16 %v1186, %v1180
    %v1277 = vpack.c.b16 %v1187, %v1181
    %v1278 = vpack.c.b16 %v1188, %v1182
    %v1279 = vpack.c.b16 %v1189, %v1183
    %v1280 = vpack.c.b16 %v1190, %v1184
    %v1281 = vpack.c.b16 %v1191, %v1185
    %v1282 = vpack.c.b16 %v1198, %v1192
    %v1283 = vpack.c.b16 %v1199, %v1193
    %v1284 = vpack.c.b16 %v1200, %v1194
    %v1285 = vpack.c.b16 %v1201, %v1195
    %v1286 = vpack.c.b16 %v1202, %v1196
    %v1287 = vpack.c.b16 %v1203, %v1197
    %v1288 = vpack.c.b16 %v1210, %v1204
    %v1289 = vpack.c.b16 %v1211, %v1205
    %v1290 = vpack.c.b16 %v1212, %v1206
    %v1291 = vpack.c.b16 %v1213, %v1207
    %v1292 = vpack.c.b16 %v1214, %v1208
    %v1293 = vpack.c.b16 %v1215, %v1209
    %v1294 = vpack.c.b16 %v1222, %v1216
    %v1295 = vpack.c.b16 %v1223, %v1217
    %v1296 = vpack.c.b16 %v1224, %v1218
    %v1297 = vpack.c.b16 %v1225, %v1219
    %v1298 = vpack.c.b16 %v1226, %v1220
    %v1299 = vpack.c.b16 %v1227, %v1221
    %v1300 = vpack.c.b16 %v1234, %v1228
    %v1301 = vpack.c.b16 %v1235, %v1229
    %v1302 = vpack.c.b16 %v1236, %v1230
    %v1303 = vpack.c.b16 %v1237, %v1231
    %v1304 = vpack.c.b16 %v1238, %v1232
    %v1305 = vpack.c.b16 %v1239, %v1233
    %v1306 = vpack.c.b16 %v1246, %v1240
    %v1307 = vpack.c.b16 %v1247, %v1241
    %v1308 = vpack.c.b16 %v1248, %v1242
    %v1309 = vpack.c.b16 %v1249, %v1243
    %v1310 = vpack.c.b16 %v1250, %v1244
    %v1311 = vpack.c.b16 %v1251, %v1245
    %v1312 = vpack.c.b16 %v1258, %v1252
    %v1313 = vpack.c.b16 %v1259, %v1253
    %v1314 = vpack.c.b16 %v1260, %v1254
    %v1315 = vpack.c.b16 %v1261, %v1255
    %v1316 = vpack.c.b16 %v1262, %v1256
    %v1317 = vpack.c.b16 %v1263, %v1257
    %v1318 = vpack.c.b16 %v1270, %v1264
    %v1319 = vpack.c.b16 %v1271, %v1265
    %v1320 = vpack.c.b16 %v1272, %v1266
    %v1321 = vpack.c.b16 %v1273, %v1267
    %v1322 = vpack.c.b16 %v1274, %v1268
    %v1323 = vpack.c.b16 %v1275, %v1269
    %1372 = vmatpush.bf16.msra.mxu0 %v1318
    %1373 = vmatpush.bf16.msra.mxu0 %v1312
    %1374 = vmatpush.bf16.msra.mxu0 %v1306
    %1375 = vmatpush.bf16.msra.mxu0 %v1300
    %1376 = vmatpush.bf16.msra.mxu0 %v1294
    %1377 = vmatpush.bf16.msra.mxu0 %v1288
    %1378 = vmatpush.bf16.msra.mxu0 %v1282
    %1379 = vmatpush.bf16.msra.mxu0 %v1276
    %1380 = vmatmul.bf16.gmra.mxu0 0
    %v1381 = vpop.f32.mrf.mxu0
    %v1382 = vadd.f32 %v1120, %v1381
    %v1383 = vpop.f32.mrf.mxu0
    %1384 = vdwg.mxu0
    %1385 = vmatpush.bf16.msra.mxu0 %v1319
    %1386 = vmatpush.bf16.msra.mxu0 %v1313
    %1387 = vmatpush.bf16.msra.mxu0 %v1307
    %1388 = vmatpush.bf16.msra.mxu0 %v1301
    %1389 = vmatpush.bf16.msra.mxu0 %v1295
    %1390 = vmatpush.bf16.msra.mxu0 %v1289
    %1391 = vmatpush.bf16.msra.mxu0 %v1283
    %1392 = vmatpush.bf16.msra.mxu0 %v1277
    %1393 = vmatmul.bf16.gmra.mxu0 0
    %v1394 = vpop.f32.mrf.mxu0
    %v1395 = vadd.f32 %v1121, %v1394
    %v1396 = vpop.f32.mrf.mxu0
    %1397 = vdwg.mxu0
    %1398 = vmatpush.bf16.msra.mxu0 %v1320
    %1399 = vmatpush.bf16.msra.mxu0 %v1314
    %1400 = vmatpush.bf16.msra.mxu0 %v1308
    %1401 = vmatpush.bf16.msra.mxu0 %v1302
    %1402 = vmatpush.bf16.msra.mxu0 %v1296
    %1403 = vmatpush.bf16.msra.mxu0 %v1290
    %1404 = vmatpush.bf16.msra.mxu0 %v1284
    %1405 = vmatpush.bf16.msra.mxu0 %v1278
    %1406 = vmatmul.bf16.gmra.mxu0 0
    %v1407 = vpop.f32.mrf.mxu0
    %v1408 = vadd.f32 %v1122, %v1407
    %v1409 = vpop.f32.mrf.mxu0
    %1410 = vdwg.mxu0
    %1411 = vmatpush.bf16.msra.mxu0 %v1321
    %1412 = vmatpush.bf16.msra.mxu0 %v1315
    %1413 = vmatpush.bf16.msra.mxu0 %v1309
    %1414 = vmatpush.bf16.msra.mxu0 %v1303
    %1415 = vmatpush.bf16.msra.mxu0 %v1297
    %1416 = vmatpush.bf16.msra.mxu0 %v1291
    %1417 = vmatpush.bf16.msra.mxu0 %v1285
    %1418 = vmatpush.bf16.msra.mxu0 %v1279
    %1419 = vmatmul.bf16.gmra.mxu0 0
    %v1420 = vpop.f32.mrf.mxu0
    %v1421 = vadd.f32 %v1123, %v1420
    %v1422 = vpop.f32.mrf.mxu0
    %1423 = vdwg.mxu0
    %1424 = vmatpush.bf16.msra.mxu0 %v1322
    %1425 = vmatpush.bf16.msra.mxu0 %v1316
    %1426 = vmatpush.bf16.msra.mxu0 %v1310
    %1427 = vmatpush.bf16.msra.mxu0 %v1304
    %1428 = vmatpush.bf16.msra.mxu0 %v1298
    %1429 = vmatpush.bf16.msra.mxu0 %v1292
    %1430 = vmatpush.bf16.msra.mxu0 %v1286
    %1431 = vmatpush.bf16.msra.mxu0 %v1280
    %1432 = vmatmul.bf16.gmra.mxu0 0
    %v1433 = vpop.f32.mrf.mxu0
    %v1434 = vadd.f32 %v1124, %v1433
    %v1435 = vpop.f32.mrf.mxu0
    %1436 = vdwg.mxu0
    %1437 = vmatpush.bf16.msra.mxu0 %v1323
    %1438 = vmatpush.bf16.msra.mxu0 %v1317
    %1439 = vmatpush.bf16.msra.mxu0 %v1311
    %1440 = vmatpush.bf16.msra.mxu0 %v1305
    %1441 = vmatpush.bf16.msra.mxu0 %v1299
    %1442 = vmatpush.bf16.msra.mxu0 %v1293
    %1443 = vmatpush.bf16.msra.mxu0 %v1287
    %1444 = vmatpush.bf16.msra.mxu0 %v1281
    %1445 = vmatmul.bf16.gmra.mxu0 0
    %v1446 = vpop.f32.mrf.mxu0
    %v1447 = vadd.f32 %v1125, %v1446
    %v1448 = vpop.f32.mrf.mxu0
    %1449 = vdwg.mxu0
    %v1450 = vmax.f32 %v1382, 0.0
    %v1451 = vld [vmem:[#allocation26] sm:$0xff]
    %v1452 = vld [vmem:[#allocation26 + $0x8] sm:$0xff]
    %v1453 = vld [vmem:[#allocation26 + $0x10] sm:$0xff]
    %v1454 = vld [vmem:[#allocation26 + $0x18] sm:$0xff]
    %v1455 = vld [vmem:[#allocation26 + $0x20] sm:$0xff]
    %v1456 = vld [vmem:[#allocation26 + $0x28] sm:$0xff]
    %v1457 = vld [vmem:[#allocation26 + $0x30] sm:$0xff]
    %v1458 = vld [vmem:[#allocation26 + $0x38] sm:$0xff]
    %v1459 = vld [vmem:[#allocation26 + $0x40] sm:$0xff]
    %v1460 = vld [vmem:[#allocation26 + $0x48] sm:$0xff]
    %v1461 = vld [vmem:[#allocation26 + $0x50] sm:$0xff]
    %v1462 = vld [vmem:[#allocation26 + $0x58] sm:$0xff]
    %v1463 = vld [vmem:[#allocation26 + $0x60] sm:$0xff]
    %v1464 = vld [vmem:[#allocation26 + $0x68] sm:$0xff]
    %v1465 = vld [vmem:[#allocation26 + $0x70] sm:$0xff]
    %v1466 = vld [vmem:[#allocation26 + $0x78] sm:$0xff]
    %v1467 = vpack.c.bf16 %v1450, %v1450
    %v1469 = vperm.slane %v1065, 0
    %v1470 = vperm.slane %v1065, 1
    %v1489 = vunpack.c.l.b16 %v1451
    %v1490 = vunpack.c.h.b16 %v1451
    %v1491 = vunpack.c.l.b16 %v1452
    %v1492 = vunpack.c.h.b16 %v1452
    %v1493 = vunpack.c.l.b16 %v1453
    %v1494 = vunpack.c.h.b16 %v1453
    %v1495 = vunpack.c.l.b16 %v1454
    %v1496 = vunpack.c.h.b16 %v1454
    %v1497 = vunpack.c.l.b16 %v1455
    %v1498 = vunpack.c.h.b16 %v1455
    %v1499 = vunpack.c.l.b16 %v1456
    %v1500 = vunpack.c.h.b16 %v1456
    %v1501 = vunpack.c.l.b16 %v1457
    %v1502 = vunpack.c.h.b16 %v1457
    %v1503 = vunpack.c.l.b16 %v1458
    %v1504 = vunpack.c.h.b16 %v1458
    %v1505 = vunpack.c.l.b16 %v1459
    %v1506 = vunpack.c.h.b16 %v1459
    %v1507 = vunpack.c.l.b16 %v1460
    %v1508 = vunpack.c.h.b16 %v1460
    %v1509 = vunpack.c.l.b16 %v1461
    %v1510 = vunpack.c.h.b16 %v1461
    %v1511 = vunpack.c.l.b16 %v1462
    %v1512 = vunpack.c.h.b16 %v1462
    %v1513 = vunpack.c.l.b16 %v1463
    %v1514 = vunpack.c.h.b16 %v1463
    %v1515 = vunpack.c.l.b16 %v1464
    %v1516 = vunpack.c.h.b16 %v1464
    %v1517 = vunpack.c.l.b16 %v1465
    %v1518 = vunpack.c.h.b16 %v1465
    %v1519 = vunpack.c.l.b16 %v1466
    %v1520 = vunpack.c.h.b16 %v1466
    %v1521 = vpack.c.b16 %v1491, %v1489
    %v1522 = vpack.c.b16 %v1492, %v1490
    %v1523 = vpack.c.b16 %v1495, %v1493
    %v1524 = vpack.c.b16 %v1496, %v1494
    %v1525 = vpack.c.b16 %v1499, %v1497
    %v1526 = vpack.c.b16 %v1500, %v1498
    %v1527 = vpack.c.b16 %v1503, %v1501
    %v1528 = vpack.c.b16 %v1504, %v1502
    %v1529 = vpack.c.b16 %v1507, %v1505
    %v1530 = vpack.c.b16 %v1508, %v1506
    %v1531 = vpack.c.b16 %v1511, %v1509
    %v1532 = vpack.c.b16 %v1512, %v1510
    %v1533 = vpack.c.b16 %v1515, %v1513
    %v1534 = vpack.c.b16 %v1516, %v1514
    %v1535 = vpack.c.b16 %v1519, %v1517
    %v1536 = vpack.c.b16 %v1520, %v1518
    %1553 = vmatpush.bf16.msra.mxu0 %v1535
    %1554 = vmatpush.bf16.msra.mxu0 %v1533
    %1555 = vmatpush.bf16.msra.mxu0 %v1531
    %1556 = vmatpush.bf16.msra.mxu0 %v1529
    %1557 = vmatpush.bf16.msra.mxu0 %v1527
    %1558 = vmatpush.bf16.msra.mxu0 %v1525
    %1559 = vmatpush.bf16.msra.mxu0 %v1523
    %1560 = vmatpush.bf16.msra.mxu0 %v1521
    %1561 = vmatmul.bf16.gmra.mxu0 %v1467
    %v1562 = vpop.f32.mrf.mxu0
    %v1563 = vadd.f32 %v1469, %v1562
    %v1564 = vpop.f32.mrf.mxu0
    %1565 = vdwg.mxu0
    %1566 = vmatpush.bf16.msra.mxu0 %v1536
    %1567 = vmatpush.bf16.msra.mxu0 %v1534
    %1568 = vmatpush.bf16.msra.mxu0 %v1532
    %1569 = vmatpush.bf16.msra.mxu0 %v1530
    %1570 = vmatpush.bf16.msra.mxu0 %v1528
    %1571 = vmatpush.bf16.msra.mxu0 %v1526
    %1572 = vmatpush.bf16.msra.mxu0 %v1524
    %1573 = vmatpush.bf16.msra.mxu0 %v1522
    %1574 = vmatmul.bf16.gmra.mxu0 %v1467
    %v1575 = vpop.f32.mrf.mxu0
    %v1576 = vadd.f32 %v1470, %v1575
    %v1577 = vpop.f32.mrf.mxu0
    %1578 = vdwg.mxu0
    %v1579 = vmax.f32 %v1576, 0.0
    %v1580 = vand.u32 2147483647, %v1576
    %v1581 = vsub.f32 0.0, %v1580
    %v1582 = vmul.f32 %v1581, 1.442695
    %v1583 = vpow.pop %v1582
    %v1584 = vadd.f32 %v1583, 1.0
    %v1585 = vlog2.pop %v1584
    %v1586 = vmul.f32 %v1585, 0.6931472
    %v1587 = vadd.f32 %v1579, %v1586
    %v1588 = vadd.f32 %v1587, 1e-05
    %v1589 = vld [vmem:[#allocation3] sm:$0xff]
    %v1590 = vadd.f32 %v1589, %v1395
    %v1591 = vmax.f32 %v1590, 0.0
    %v1592 = vld [vmem:[#allocation28] sm:$0xff]
    %v1593 = vld [vmem:[#allocation28 + $0x8] sm:$0xff]
    %v1594 = vld [vmem:[#allocation28 + $0x10] sm:$0xff]
    %v1595 = vld [vmem:[#allocation28 + $0x18] sm:$0xff]
    %v1596 = vld [vmem:[#allocation28 + $0x20] sm:$0xff]
    %v1597 = vld [vmem:[#allocation28 + $0x28] sm:$0xff]
    %v1598 = vld [vmem:[#allocation28 + $0x30] sm:$0xff]
    %v1599 = vld [vmem:[#allocation28 + $0x38] sm:$0xff]
    %v1600 = vld [vmem:[#allocation28 + $0x40] sm:$0xff]
    %v1601 = vld [vmem:[#allocation28 + $0x48] sm:$0xff]
    %v1602 = vld [vmem:[#allocation28 + $0x50] sm:$0xff]
    %v1603 = vld [vmem:[#allocation28 + $0x58] sm:$0xff]
    %v1604 = vld [vmem:[#allocation28 + $0x60] sm:$0xff]
    %v1605 = vld [vmem:[#allocation28 + $0x68] sm:$0xff]
    %v1606 = vld [vmem:[#allocation28 + $0x70] sm:$0xff]
    %v1607 = vld [vmem:[#allocation28 + $0x78] sm:$0xff]
    %v1608 = vpack.c.bf16 %v1591, %v1591
    %v1610 = vperm.slane %v1066, 0
    %v1611 = vperm.slane %v1066, 1
    %v1630 = vunpack.c.l.b16 %v1592
    %v1631 = vunpack.c.h.b16 %v1592
    %v1632 = vunpack.c.l.b16 %v1593
    %v1633 = vunpack.c.h.b16 %v1593
    %v1634 = vunpack.c.l.b16 %v1594
    %v1635 = vunpack.c.h.b16 %v1594
    %v1636 = vunpack.c.l.b16 %v1595
    %v1637 = vunpack.c.h.b16 %v1595
    %v1638 = vunpack.c.l.b16 %v1596
    %v1639 = vunpack.c.h.b16 %v1596
    %v1640 = vunpack.c.l.b16 %v1597
    %v1641 = vunpack.c.h.b16 %v1597
    %v1642 = vunpack.c.l.b16 %v1598
    %v1643 = vunpack.c.h.b16 %v1598
    %v1644 = vunpack.c.l.b16 %v1599
    %v1645 = vunpack.c.h.b16 %v1599
    %v1646 = vunpack.c.l.b16 %v1600
    %v1647 = vunpack.c.h.b16 %v1600
    %v1648 = vunpack.c.l.b16 %v1601
    %v1649 = vunpack.c.h.b16 %v1601
    %v1650 = vunpack.c.l.b16 %v1602
    %v1651 = vunpack.c.h.b16 %v1602
    %v1652 = vunpack.c.l.b16 %v1603
    %v1653 = vunpack.c.h.b16 %v1603
    %v1654 = vunpack.c.l.b16 %v1604
    %v1655 = vunpack.c.h.b16 %v1604
    %v1656 = vunpack.c.l.b16 %v1605
    %v1657 = vunpack.c.h.b16 %v1605
    %v1658 = vunpack.c.l.b16 %v1606
    %v1659 = vunpack.c.h.b16 %v1606
    %v1660 = vunpack.c.l.b16 %v1607
    %v1661 = vunpack.c.h.b16 %v1607
    %v1662 = vpack.c.b16 %v1632, %v1630
    %v1663 = vpack.c.b16 %v1633, %v1631
    %v1664 = vpack.c.b16 %v1636, %v1634
    %v1665 = vpack.c.b16 %v1637, %v1635
    %v1666 = vpack.c.b16 %v1640, %v1638
    %v1667 = vpack.c.b16 %v1641, %v1639
    %v1668 = vpack.c.b16 %v1644, %v1642
    %v1669 = vpack.c.b16 %v1645, %v1643
    %v1670 = vpack.c.b16 %v1648, %v1646
    %v1671 = vpack.c.b16 %v1649, %v1647
    %v1672 = vpack.c.b16 %v1652, %v1650
    %v1673 = vpack.c.b16 %v1653, %v1651
    %v1674 = vpack.c.b16 %v1656, %v1654
    %v1675 = vpack.c.b16 %v1657, %v1655
    %v1676 = vpack.c.b16 %v1660, %v1658
    %v1677 = vpack.c.b16 %v1661, %v1659
    %1694 = vmatpush.bf16.msra.mxu0 %v1676
    %1695 = vmatpush.bf16.msra.mxu0 %v1674
    %1696 = vmatpush.bf16.msra.mxu0 %v1672
    %1697 = vmatpush.bf16.msra.mxu0 %v1670
    %1698 = vmatpush.bf16.msra.mxu0 %v1668
    %1699 = vmatpush.bf16.msra.mxu0 %v1666
    %1700 = vmatpush.bf16.msra.mxu0 %v1664
    %1701 = vmatpush.bf16.msra.mxu0 %v1662
    %1702 = vmatmul.bf16.gmra.mxu0 %v1608
    %v1703 = vpop.f32.mrf.mxu0
    %v1704 = vadd.f32 %v1610, %v1703
    %v1705 = vpop.f32.mrf.mxu0
    %1706 = vdwg.mxu0
    %1707 = vmatpush.bf16.msra.mxu0 %v1677
    %1708 = vmatpush.bf16.msra.mxu0 %v1675
    %1709 = vmatpush.bf16.msra.mxu0 %v1673
    %1710 = vmatpush.bf16.msra.mxu0 %v1671
    %1711 = vmatpush.bf16.msra.mxu0 %v1669
    %1712 = vmatpush.bf16.msra.mxu0 %v1667
    %1713 = vmatpush.bf16.msra.mxu0 %v1665
    %1714 = vmatpush.bf16.msra.mxu0 %v1663
    %1715 = vmatmul.bf16.gmra.mxu0 %v1608
    %v1716 = vpop.f32.mrf.mxu0
    %v1717 = vadd.f32 %v1611, %v1716
    %v1718 = vpop.f32.mrf.mxu0
    %1719 = vdwg.mxu0
    %v1720 = vmax.f32 %v1717, 0.0
    %v1721 = vand.u32 2147483647, %v1717
    %v1722 = vsub.f32 0.0, %v1721
    %v1723 = vmul.f32 %v1722, 1.442695
    %v1724 = vpow.pop %v1723
    %v1725 = vadd.f32 %v1724, 1.0
    %v1726 = vlog2.pop %v1725
    %v1727 = vmul.f32 %v1726, 0.6931472
    %v1728 = vadd.f32 %v1720, %v1727
    %v1729 = vadd.f32 %v1728, 1e-05
    %v1730 = vmul.f32 %v1729, %v1070
    %v1731 = vadd.f32 %v1704, %v1730
    %v1732 = vld [vmem:[#allocation29] sm:$0xf]
    %v1733 = vld [vmem:[#allocation29 + $0x4] sm:$0xf]
    %v1734 = vld [vmem:[#allocation29 + $0x8] sm:$0xf]
    %v1735 = vld [vmem:[#allocation29 + $0xc] sm:$0xf]
    %v1736 = vld [vmem:[#allocation29 + $0x10] sm:$0xf]
    %v1737 = vld [vmem:[#allocation29 + $0x14] sm:$0xf]
    %v1738 = vld [vmem:[#allocation29 + $0x18] sm:$0xf]
    %v1739 = vld [vmem:[#allocation29 + $0x1c] sm:$0xf]
    %v1740 = vld [vmem:[#allocation29 + $0x20] sm:$0xf]
    %v1741 = vld [vmem:[#allocation29 + $0x24] sm:$0xf]
    %v1742 = vld [vmem:[#allocation29 + $0x28] sm:$0xf]
    %v1743 = vld [vmem:[#allocation29 + $0x2c] sm:$0xf]
    %v1744 = vld [vmem:[#allocation29 + $0x30] sm:$0xf]
    %v1745 = vld [vmem:[#allocation29 + $0x34] sm:$0xf]
    %v1746 = vld [vmem:[#allocation29 + $0x38] sm:$0xf]
    %v1747 = vld [vmem:[#allocation29 + $0x3c] sm:$0xf]
    %v1748 = vpack.c.bf16 %v1731, %v1731
    %v1750 = vperm.slane %v1067, 0
    %v1768 = vunpack.c.l.b16 %v1732
    %v1769 = vunpack.c.l.b16 %v1733
    %v1770 = vunpack.c.l.b16 %v1734
    %v1771 = vunpack.c.l.b16 %v1735
    %v1772 = vunpack.c.l.b16 %v1736
    %v1773 = vunpack.c.l.b16 %v1737
    %v1774 = vunpack.c.l.b16 %v1738
    %v1775 = vunpack.c.l.b16 %v1739
    %v1776 = vunpack.c.l.b16 %v1740
    %v1777 = vunpack.c.l.b16 %v1741
    %v1778 = vunpack.c.l.b16 %v1742
    %v1779 = vunpack.c.l.b16 %v1743
    %v1780 = vunpack.c.l.b16 %v1744
    %v1781 = vunpack.c.l.b16 %v1745
    %v1782 = vunpack.c.l.b16 %v1746
    %v1783 = vunpack.c.l.b16 %v1747
    %v1784 = vpack.c.b16 %v1769, %v1768
    %v1785 = vpack.c.b16 %v1771, %v1770
    %v1786 = vpack.c.b16 %v1773, %v1772
    %v1787 = vpack.c.b16 %v1775, %v1774
    %v1788 = vpack.c.b16 %v1777, %v1776
    %v1789 = vpack.c.b16 %v1779, %v1778
    %v1790 = vpack.c.b16 %v1781, %v1780
    %v1791 = vpack.c.b16 %v1783, %v1782
    %1800 = vmatpush.bf16.msra.mxu0 %v1791
    %1801 = vmatpush.bf16.msra.mxu0 %v1790
    %1802 = vmatpush.bf16.msra.mxu0 %v1789
    %1803 = vmatpush.bf16.msra.mxu0 %v1788
    %1804 = vmatpush.bf16.msra.mxu0 %v1787
    %1805 = vmatpush.bf16.msra.mxu0 %v1786
    %1806 = vmatpush.bf16.msra.mxu0 %v1785
    %1807 = vmatpush.bf16.msra.mxu0 %v1784
    %1808 = vmatmul.bf16.gmra.mxu0 %v1748
    %v1809 = vpop.f32.mrf.mxu0
    %v1810 = vadd.f32 %v1750, %v1809
    %v1811 = vpop.f32.mrf.mxu0
    %1812 = vdwg.mxu0
    %v1813 = vmax.f32 %v1810, 0.0
    %v1814 = vld [vmem:[#allocation31] sm:$0xff]
    %v1815 = vld [vmem:[#allocation31 + $0x8] sm:$0xff]
    %v1816 = vld [vmem:[#allocation31 + $0x10] sm:$0xff]
    %v1817 = vld [vmem:[#allocation31 + $0x18] sm:$0xff]
    %v1818 = vld [vmem:[#allocation31 + $0x20] sm:$0xff]
    %v1819 = vld [vmem:[#allocation31 + $0x28] sm:$0xff]
    %v1820 = vld [vmem:[#allocation31 + $0x30] sm:$0xff]
    %v1821 = vld [vmem:[#allocation31 + $0x38] sm:$0xff]
    %v1822 = vld [vmem:[#allocation31 + $0x40] sm:$0xff]
    %v1823 = vld [vmem:[#allocation31 + $0x48] sm:$0xff]
    %v1824 = vld [vmem:[#allocation31 + $0x50] sm:$0xff]
    %v1825 = vld [vmem:[#allocation31 + $0x58] sm:$0xff]
    %v1826 = vld [vmem:[#allocation31 + $0x60] sm:$0xff]
    %v1827 = vld [vmem:[#allocation31 + $0x68] sm:$0xff]
    %v1828 = vld [vmem:[#allocation31 + $0x70] sm:$0xff]
    %v1829 = vld [vmem:[#allocation31 + $0x78] sm:$0xff]
    %v1830 = vld [vmem:[#allocation31 + $0x80] sm:$0xff]
    %v1831 = vld [vmem:[#allocation31 + $0x88] sm:$0xff]
    %v1832 = vld [vmem:[#allocation31 + $0x90] sm:$0xff]
    %v1833 = vld [vmem:[#allocation31 + $0x98] sm:$0xff]
    %v1834 = vld [vmem:[#allocation31 + $0xa0] sm:$0xff]
    %v1835 = vld [vmem:[#allocation31 + $0xa8] sm:$0xff]
    %v1836 = vld [vmem:[#allocation31 + $0xb0] sm:$0xff]
    %v1837 = vld [vmem:[#allocation31 + $0xb8] sm:$0xff]
    %v1838 = vld [vmem:[#allocation31 + $0xc0] sm:$0xff]
    %v1839 = vld [vmem:[#allocation31 + $0xc8] sm:$0xff]
    %v1840 = vld [vmem:[#allocation31 + $0xd0] sm:$0xff]
    %v1841 = vld [vmem:[#allocation31 + $0xd8] sm:$0xff]
    %v1842 = vld [vmem:[#allocation31 + $0xe0] sm:$0xff]
    %v1843 = vld [vmem:[#allocation31 + $0xe8] sm:$0xff]
    %v1844 = vld [vmem:[#allocation31 + $0xf0] sm:$0xff]
    %v1845 = vld [vmem:[#allocation31 + $0xf8] sm:$0xff]
    %v1846 = vpack.c.bf16 %v1813, %v1813
    %v1879 = vunpack.c.l.b16 %v1814
    %v1880 = vunpack.c.h.b16 %v1814
    %v1881 = vunpack.c.l.b16 %v1815
    %v1882 = vunpack.c.h.b16 %v1815
    %v1883 = vunpack.c.l.b16 %v1816
    %v1884 = vunpack.c.h.b16 %v1816
    %v1885 = vunpack.c.l.b16 %v1817
    %v1886 = vunpack.c.h.b16 %v1817
    %v1887 = vunpack.c.l.b16 %v1818
    %v1888 = vunpack.c.h.b16 %v1818
    %v1889 = vunpack.c.l.b16 %v1819
    %v1890 = vunpack.c.h.b16 %v1819
    %v1891 = vunpack.c.l.b16 %v1820
    %v1892 = vunpack.c.h.b16 %v1820
    %v1893 = vunpack.c.l.b16 %v1821
    %v1894 = vunpack.c.h.b16 %v1821
    %v1895 = vunpack.c.l.b16 %v1822
    %v1896 = vunpack.c.h.b16 %v1822
    %v1897 = vunpack.c.l.b16 %v1823
    %v1898 = vunpack.c.h.b16 %v1823
    %v1899 = vunpack.c.l.b16 %v1824
    %v1900 = vunpack.c.h.b16 %v1824
    %v1901 = vunpack.c.l.b16 %v1825
    %v1902 = vunpack.c.h.b16 %v1825
    %v1903 = vunpack.c.l.b16 %v1826
    %v1904 = vunpack.c.h.b16 %v1826
    %v1905 = vunpack.c.l.b16 %v1827
    %v1906 = vunpack.c.h.b16 %v1827
    %v1907 = vunpack.c.l.b16 %v1828
    %v1908 = vunpack.c.h.b16 %v1828
    %v1909 = vunpack.c.l.b16 %v1829
    %v1910 = vunpack.c.h.b16 %v1829
    %v1911 = vunpack.c.l.b16 %v1830
    %v1912 = vunpack.c.h.b16 %v1830
    %v1913 = vunpack.c.l.b16 %v1831
    %v1914 = vunpack.c.h.b16 %v1831
    %v1915 = vunpack.c.l.b16 %v1832
    %v1916 = vunpack.c.h.b16 %v1832
    %v1917 = vunpack.c.l.b16 %v1833
    %v1918 = vunpack.c.h.b16 %v1833
    %v1919 = vunpack.c.l.b16 %v1834
    %v1920 = vunpack.c.h.b16 %v1834
    %v1921 = vunpack.c.l.b16 %v1835
    %v1922 = vunpack.c.h.b16 %v1835
    %v1923 = vunpack.c.l.b16 %v1836
    %v1924 = vunpack.c.h.b16 %v1836
    %v1925 = vunpack.c.l.b16 %v1837
    %v1926 = vunpack.c.h.b16 %v1837
    %v1927 = vunpack.c.l.b16 %v1838
    %v1928 = vunpack.c.h.b16 %v1838
    %v1929 = vunpack.c.l.b16 %v1839
    %v1930 = vunpack.c.h.b16 %v1839
    %v1931 = vunpack.c.l.b16 %v1840
    %v1932 = vunpack.c.h.b16 %v1840
    %v1933 = vunpack.c.l.b16 %v1841
    %v1934 = vunpack.c.h.b16 %v1841
    %v1935 = vunpack.c.l.b16 %v1842
    %v1936 = vunpack.c.h.b16 %v1842
    %v1937 = vunpack.c.l.b16 %v1843
    %v1938 = vunpack.c.h.b16 %v1843
    %v1939 = vunpack.c.l.b16 %v1844
    %v1940 = vunpack.c.h.b16 %v1844
    %v1941 = vunpack.c.l.b16 %v1845
    %v1942 = vunpack.c.h.b16 %v1845
    %v1943 = vpack.c.b16 %v1883, %v1879
    %v1944 = vpack.c.b16 %v1884, %v1880
    %v1945 = vpack.c.b16 %v1885, %v1881
    %v1946 = vpack.c.b16 %v1886, %v1882
    %v1947 = vpack.c.b16 %v1891, %v1887
    %v1948 = vpack.c.b16 %v1892, %v1888
    %v1949 = vpack.c.b16 %v1893, %v1889
    %v1950 = vpack.c.b16 %v1894, %v1890
    %v1951 = vpack.c.b16 %v1899, %v1895
    %v1952 = vpack.c.b16 %v1900, %v1896
    %v1953 = vpack.c.b16 %v1901, %v1897
    %v1954 = vpack.c.b16 %v1902, %v1898
    %v1955 = vpack.c.b16 %v1907, %v1903
    %v1956 = vpack.c.b16 %v1908, %v1904
    %v1957 = vpack.c.b16 %v1909, %v1905
    %v1958 = vpack.c.b16 %v1910, %v1906
    %v1959 = vpack.c.b16 %v1915, %v1911
    %v1960 = vpack.c.b16 %v1916, %v1912
    %v1961 = vpack.c.b16 %v1917, %v1913
    %v1962 = vpack.c.b16 %v1918, %v1914
    %v1963 = vpack.c.b16 %v1923, %v1919
    %v1964 = vpack.c.b16 %v1924, %v1920
    %v1965 = vpack.c.b16 %v1925, %v1921
    %v1966 = vpack.c.b16 %v1926, %v1922
    %v1967 = vpack.c.b16 %v1931, %v1927
    %v1968 = vpack.c.b16 %v1932, %v1928
    %v1969 = vpack.c.b16 %v1933, %v1929
    %v1970 = vpack.c.b16 %v1934, %v1930
    %v1971 = vpack.c.b16 %v1939, %v1935
    %v1972 = vpack.c.b16 %v1940, %v1936
    %v1973 = vpack.c.b16 %v1941, %v1937
    %v1974 = vpack.c.b16 %v1942, %v1938
    %2007 = vmatpush.bf16.msra.mxu0 %v1971
    %2008 = vmatpush.bf16.msra.mxu0 %v1967
    %2009 = vmatpush.bf16.msra.mxu0 %v1963
    %2010 = vmatpush.bf16.msra.mxu0 %v1959
    %2011 = vmatpush.bf16.msra.mxu0 %v1955
    %2012 = vmatpush.bf16.msra.mxu0 %v1951
    %2013 = vmatpush.bf16.msra.mxu0 %v1947
    %2014 = vmatpush.bf16.msra.mxu0 %v1943
    %2015 = vmatmul.bf16.gmra.mxu0 %v1846
    %v2016 = vpop.f32.mrf.mxu0
    %v2017 = vadd.f32 0.0, %v2016
    %v2018 = vpop.f32.mrf.mxu0
    %2019 = vdwg.mxu0
    %2020 = vmatpush.bf16.msra.mxu0 %v1972
    %2021 = vmatpush.bf16.msra.mxu0 %v1968
    %2022 = vmatpush.bf16.msra.mxu0 %v1964
    %2023 = vmatpush.bf16.msra.mxu0 %v1960
    %2024 = vmatpush.bf16.msra.mxu0 %v1956
    %2025 = vmatpush.bf16.msra.mxu0 %v1952
    %2026 = vmatpush.bf16.msra.mxu0 %v1948
    %2027 = vmatpush.bf16.msra.mxu0 %v1944
    %2028 = vmatmul.bf16.gmra.mxu0 %v1846
    %v2029 = vpop.f32.mrf.mxu0
    %v2030 = vadd.f32 0.0, %v2029
    %v2031 = vpop.f32.mrf.mxu0
    %2032 = vdwg.mxu0
    %2033 = vmatpush.bf16.msra.mxu0 %v1973
    %2034 = vmatpush.bf16.msra.mxu0 %v1969
    %2035 = vmatpush.bf16.msra.mxu0 %v1965
    %2036 = vmatpush.bf16.msra.mxu0 %v1961
    %2037 = vmatpush.bf16.msra.mxu0 %v1957
    %2038 = vmatpush.bf16.msra.mxu0 %v1953
    %2039 = vmatpush.bf16.msra.mxu0 %v1949
    %2040 = vmatpush.bf16.msra.mxu0 %v1945
    %2041 = vmatmul.bf16.gmra.mxu0 %v1846
    %v2042 = vpop.f32.mrf.mxu0
    %v2043 = vadd.f32 0.0, %v2042
    %v2044 = vpop.f32.mrf.mxu0
    %2045 = vdwg.mxu0
    %2046 = vmatpush.bf16.msra.mxu0 %v1974
    %2047 = vmatpush.bf16.msra.mxu0 %v1970
    %2048 = vmatpush.bf16.msra.mxu0 %v1966
    %2049 = vmatpush.bf16.msra.mxu0 %v1962
    %2050 = vmatpush.bf16.msra.mxu0 %v1958
    %2051 = vmatpush.bf16.msra.mxu0 %v1954
    %2052 = vmatpush.bf16.msra.mxu0 %v1950
    %2053 = vmatpush.bf16.msra.mxu0 %v1946
    %2054 = vmatmul.bf16.gmra.mxu0 %v1846
    %v2055 = vpop.f32.mrf.mxu0
    %v2056 = vadd.f32 0.0, %v2055
    %v2057 = vpop.f32.mrf.mxu0
    %2058 = vdwg.mxu0
    %v2059 = vadd.f32 %v2017, %v1408
    %v2060 = vmax.f32 %v2059, 0.0
    %v2061 = vld [vmem:[#allocation32] sm:$0xff]
    %v2062 = vld [vmem:[#allocation32 + $0x8] sm:$0xff]
    %v2063 = vld [vmem:[#allocation32 + $0x10] sm:$0xff]
    %v2064 = vld [vmem:[#allocation32 + $0x18] sm:$0xff]
    %v2065 = vld [vmem:[#allocation32 + $0x20] sm:$0xff]
    %v2066 = vld [vmem:[#allocation32 + $0x28] sm:$0xff]
    %v2067 = vld [vmem:[#allocation32 + $0x30] sm:$0xff]
    %v2068 = vld [vmem:[#allocation32 + $0x38] sm:$0xff]
    %v2069 = vld [vmem:[#allocation32 + $0x40] sm:$0xff]
    %v2070 = vld [vmem:[#allocation32 + $0x48] sm:$0xff]
    %v2071 = vld [vmem:[#allocation32 + $0x50] sm:$0xff]
    %v2072 = vld [vmem:[#allocation32 + $0x58] sm:$0xff]
    %v2073 = vld [vmem:[#allocation32 + $0x60] sm:$0xff]
    %v2074 = vld [vmem:[#allocation32 + $0x68] sm:$0xff]
    %v2075 = vld [vmem:[#allocation32 + $0x70] sm:$0xff]
    %v2076 = vld [vmem:[#allocation32 + $0x78] sm:$0xff]
    %v2077 = vpack.c.bf16 %v2060, %v2060
    %v2079 = vperm.slane %v1068, 0
    %v2080 = vperm.slane %v1068, 1
    %v2099 = vunpack.c.l.b16 %v2061
    %v2100 = vunpack.c.h.b16 %v2061
    %v2101 = vunpack.c.l.b16 %v2062
    %v2102 = vunpack.c.h.b16 %v2062
    %v2103 = vunpack.c.l.b16 %v2063
    %v2104 = vunpack.c.h.b16 %v2063
    %v2105 = vunpack.c.l.b16 %v2064
    %v2106 = vunpack.c.h.b16 %v2064
    %v2107 = vunpack.c.l.b16 %v2065
    %v2108 = vunpack.c.h.b16 %v2065
    %v2109 = vunpack.c.l.b16 %v2066
    %v2110 = vunpack.c.h.b16 %v2066
    %v2111 = vunpack.c.l.b16 %v2067
    %v2112 = vunpack.c.h.b16 %v2067
    %v2113 = vunpack.c.l.b16 %v2068
    %v2114 = vunpack.c.h.b16 %v2068
    %v2115 = vunpack.c.l.b16 %v2069
    %v2116 = vunpack.c.h.b16 %v2069
    %v2117 = vunpack.c.l.b16 %v2070
    %v2118 = vunpack.c.h.b16 %v2070
    %v2119 = vunpack.c.l.b16 %v2071
    %v2120 = vunpack.c.h.b16 %v2071
    %v2121 = vunpack.c.l.b16 %v2072
    %v2122 = vunpack.c.h.b16 %v2072
    %v2123 = vunpack.c.l.b16 %v2073
    %v2124 = vunpack.c.h.b16 %v2073
    %v2125 = vunpack.c.l.b16 %v2074
    %v2126 = vunpack.c.h.b16 %v2074
    %v2127 = vunpack.c.l.b16 %v2075
    %v2128 = vunpack.c.h.b16 %v2075
    %v2129 = vunpack.c.l.b16 %v2076
    %v2130 = vunpack.c.h.b16 %v2076
    %v2131 = vpack.c.b16 %v2101, %v2099
    %v2132 = vpack.c.b16 %v2102, %v2100
    %v2133 = vpack.c.b16 %v2105, %v2103
    %v2134 = vpack.c.b16 %v2106, %v2104
    %v2135 = vpack.c.b16 %v2109, %v2107
    %v2136 = vpack.c.b16 %v2110, %v2108
    %v2137 = vpack.c.b16 %v2113, %v2111
    %v2138 = vpack.c.b16 %v2114, %v2112
    %v2139 = vpack.c.b16 %v2117, %v2115
    %v2140 = vpack.c.b16 %v2118, %v2116
    %v2141 = vpack.c.b16 %v2121, %v2119
    %v2142 = vpack.c.b16 %v2122, %v2120
    %v2143 = vpack.c.b16 %v2125, %v2123
    %v2144 = vpack.c.b16 %v2126, %v2124
    %v2145 = vpack.c.b16 %v2129, %v2127
    %v2146 = vpack.c.b16 %v2130, %v2128
    %2163 = vmatpush.bf16.msra.mxu0 %v2145
    %2164 = vmatpush.bf16.msra.mxu0 %v2143
    %2165 = vmatpush.bf16.msra.mxu0 %v2141
    %2166 = vmatpush.bf16.msra.mxu0 %v2139
    %2167 = vmatpush.bf16.msra.mxu0 %v2137
    %2168 = vmatpush.bf16.msra.mxu0 %v2135
    %2169 = vmatpush.bf16.msra.mxu0 %v2133
    %2170 = vmatpush.bf16.msra.mxu0 %v2131
    %2171 = vmatmul.bf16.gmra.mxu0 %v2077
    %v2172 = vpop.f32.mrf.mxu0
    %v2173 = vadd.f32 %v2079, %v2172
    %v2174 = vpop.f32.mrf.mxu0
    %2175 = vdwg.mxu0
    %2176 = vmatpush.bf16.msra.mxu0 %v2146
    %2177 = vmatpush.bf16.msra.mxu0 %v2144
    %2178 = vmatpush.bf16.msra.mxu0 %v2142
    %2179 = vmatpush.bf16.msra.mxu0 %v2140
    %2180 = vmatpush.bf16.msra.mxu0 %v2138
    %2181 = vmatpush.bf16.msra.mxu0 %v2136
    %2182 = vmatpush.bf16.msra.mxu0 %v2134
    %2183 = vmatpush.bf16.msra.mxu0 %v2132
    %2184 = vmatmul.bf16.gmra.mxu0 %v2077
    %v2185 = vpop.f32.mrf.mxu0
    %v2186 = vadd.f32 %v2080, %v2185
    %v2187 = vpop.f32.mrf.mxu0
    %2188 = vdwg.mxu0
    %v2189 = vmax.f32 %v2186, 0.0
    %v2190 = vand.u32 2147483647, %v2186
    %v2191 = vsub.f32 0.0, %v2190
    %v2192 = vmul.f32 %v2191, 1.442695
    %v2193 = vpow.pop %v2192
    %v2194 = vadd.f32 %v2193, 1.0
    %v2195 = vlog2.pop %v2194
    %v2196 = vmul.f32 %v2195, 0.6931472
    %v2197 = vadd.f32 %v2189, %v2196
    %v2198 = vadd.f32 %v2197, 1e-05
    %v2199 = vld [vmem:[#allocation4] sm:$0xff]
    %v2200 = vld [vmem:[#allocation4 + $0x8] sm:$0xff]
    %v2201 = vld [vmem:[#allocation4 + $0x10] sm:$0xff]
    %v2202 = vadd.f32 %v2199, %v2030
    %v2203 = vadd.f32 %v2200, %v2043
    %v2204 = vadd.f32 %v2201, %v2056
    %v2205 = vadd.f32 %v2202, %v1421
    %v2206 = vmul.f32 %v2205, 0.5
    %v2207 = vtanh.pop %v2206
    %v2208 = vadd.f32 %v2207, 1.0
    %v2209 = vmul.f32 %v2208, 0.5
    %v2210 = vadd.f32 %v2203, %v1434
    %v2211 = vmul.f32 %v2210, 0.5
    %v2212 = vtanh.pop %v2211
    %v2213 = vadd.f32 %v2212, 1.0
    %v2214 = vmul.f32 %v2213, 0.5
    %v2215 = vmul.f32 %v2209, %v1447
    %v2216 = vadd.f32 %v2204, %v2215
    %v2217 = vtanh.pop %v2216
    %v2218 = vsub.f32 1.0, %v2214
    %v2219 = vmul.f32 %v2218, %v2217
    %v2220 = vmul.f32 %v2214, 0.0
    %v2221 = vadd.f32 %v2219, %v2220
    %v2222 = vrcp.pop %v1588
    %v2223 = vrcp.pop %v2198
    %v2224 = vlog2.pop %v1588
    %v2225 = vmul.f32 %v2224, 0.6931472
    %v2226 = vlog2.pop %v1729
    %v2227 = vmul.f32 %v2226, 0.6931472
    %v2228 = vsub.f32 %v2225, %v2227
    %v2229 = vmul.f32 %v1729, %v1729
    %v2230 = vsub.f32 %v1704, %v1563
    %v2231 = vmul.f32 %v2230, %v2230
    %v2232 = vadd.f32 %v2229, %v2231
    %v2233 = vmul.f32 %v2222, 0.5
    %v2234 = vmul.f32 %v2233, %v2222
    %v2235 = vmul.f32 %v2232, %v2234
    %v2236 = vadd.f32 %v2228, %v2235
    %v2237 = vsub.f32 %v2236, 0.5
    %v2238 = vlog2.pop %v2198
    %v2239 = vmul.f32 %v2238, 0.6931472
    %v2240 = vmul.f32 %v2239, 2.0
    %v2241 = vadd.f32 %v2240, 1.837877
    %v2242 = vsub.f32 %v1069, %v2173
    %v2243 = vmul.f32 %v2242, %v2223
    %v2244 = vmul.f32 %v2243, %v2243
    %v2245 = vadd.f32 %v2241, %v2244
    %v2246 = vmul.f32 %v2245, 0.5
    %v2247 = vadd.f32 %v2237, 0.0
    %v2248 = vadd.f32 %v2246, 0.0
    %s2249 = scalar_lea.vmem [#allocation2], 8
    %v2250 = vld [vmem:[%s2249] sm:$0xff]
    %s2251 = scalar_lea.vmem [#allocation10], 8
    %v2252 = vld [vmem:[%s2251] sm:$0xff]
    %v2253 = vpack.c.bf16 %v2221, %v2221
    %2254 = vmatpush.bf16.msra.mxu0 %v1318
    %2255 = vmatpush.bf16.msra.mxu0 %v1312
    %2256 = vmatpush.bf16.msra.mxu0 %v1306
    %2257 = vmatpush.bf16.msra.mxu0 %v1300
    %2258 = vmatpush.bf16.msra.mxu0 %v1294
    %2259 = vmatpush.bf16.msra.mxu0 %v1288
    %2260 = vmatpush.bf16.msra.mxu0 %v1282
    %2261 = vmatpush.bf16.msra.mxu0 %v1276
    %2262 = vmatmul.bf16.gmra.mxu0 %v2253
    %v2263 = vpop.f32.mrf.mxu0
    %v2264 = vadd.f32 %v1120, %v2263
    %v2265 = vpop.f32.mrf.mxu0
    %2266 = vdwg.mxu0
    %2267 = vmatpush.bf16.msra.mxu0 %v1319
    %2268 = vmatpush.bf16.msra.mxu0 %v1313
    %2269 = vmatpush.bf16.msra.mxu0 %v1307
    %2270 = vmatpush.bf16.msra.mxu0 %v1301
    %2271 = vmatpush.bf16.msra.mxu0 %v1295
    %2272 = vmatpush.bf16.msra.mxu0 %v1289
    %2273 = vmatpush.bf16.msra.mxu0 %v1283
    %2274 = vmatpush.bf16.msra.mxu0 %v1277
    %2275 = vmatmul.bf16.gmra.mxu0 %v2253
    %v2276 = vpop.f32.mrf.mxu0
    %v2277 = vadd.f32 %v1121, %v2276
    %v2278 = vpop.f32.mrf.mxu0
    %2279 = vdwg.mxu0
    %2280 = vmatpush.bf16.msra.mxu0 %v1320
    %2281 = vmatpush.bf16.msra.mxu0 %v1314
    %2282 = vmatpush.bf16.msra.mxu0 %v1308
    %2283 = vmatpush.bf16.msra.mxu0 %v1302
    %2284 = vmatpush.bf16.msra.mxu0 %v1296
    %2285 = vmatpush.bf16.msra.mxu0 %v1290
    %2286 = vmatpush.bf16.msra.mxu0 %v1284
    %2287 = vmatpush.bf16.msra.mxu0 %v1278
    %2288 = vmatmul.bf16.gmra.mxu0 %v2253
    %v2289 = vpop.f32.mrf.mxu0
    %v2290 = vadd.f32 %v1122, %v2289
    %v2291 = vpop.f32.mrf.mxu0
    %2292 = vdwg.mxu0
    %2293 = vmatpush.bf16.msra.mxu0 %v1321
    %2294 = vmatpush.bf16.msra.mxu0 %v1315
    %2295 = vmatpush.bf16.msra.mxu0 %v1309
    %2296 = vmatpush.bf16.msra.mxu0 %v1303
    %2297 = vmatpush.bf16.msra.mxu0 %v1297
    %2298 = vmatpush.bf16.msra.mxu0 %v1291
    %2299 = vmatpush.bf16.msra.mxu0 %v1285
    %2300 = vmatpush.bf16.msra.mxu0 %v1279
    %2301 = vmatmul.bf16.gmra.mxu0 %v2253
    %v2302 = vpop.f32.mrf.mxu0
    %v2303 = vadd.f32 %v1123, %v2302
    %v2304 = vpop.f32.mrf.mxu0
    %2305 = vdwg.mxu0
    %2306 = vmatpush.bf16.msra.mxu0 %v1322
    %2307 = vmatpush.bf16.msra.mxu0 %v1316
    %2308 = vmatpush.bf16.msra.mxu0 %v1310
    %2309 = vmatpush.bf16.msra.mxu0 %v1304
    %2310 = vmatpush.bf16.msra.mxu0 %v1298
    %2311 = vmatpush.bf16.msra.mxu0 %v1292
    %2312 = vmatpush.bf16.msra.mxu0 %v1286
    %2313 = vmatpush.bf16.msra.mxu0 %v1280
    %2314 = vmatmul.bf16.gmra.mxu0 %v2253
    %v2315 = vpop.f32.mrf.mxu0
    %v2316 = vadd.f32 %v1124, %v2315
    %v2317 = vpop.f32.mrf.mxu0
    %2318 = vdwg.mxu0
    %2319 = vmatpush.bf16.msra.mxu0 %v1323
    %2320 = vmatpush.bf16.msra.mxu0 %v1317
    %2321 = vmatpush.bf16.msra.mxu0 %v1311
    %2322 = vmatpush.bf16.msra.mxu0 %v1305
    %2323 = vmatpush.bf16.msra.mxu0 %v1299
    %2324 = vmatpush.bf16.msra.mxu0 %v1293
    %2325 = vmatpush.bf16.msra.mxu0 %v1287
    %2326 = vmatpush.bf16.msra.mxu0 %v1281
    %2327 = vmatmul.bf16.gmra.mxu0 %v2253
    %v2328 = vpop.f32.mrf.mxu0
    %v2329 = vadd.f32 %v1125, %v2328
    %v2330 = vpop.f32.mrf.mxu0
    %2331 = vdwg.mxu0
    %v2332 = vmax.f32 %v2264, 0.0
    %v2333 = vpack.c.bf16 %v2332, %v2332
    %2334 = vmatpush.bf16.msra.mxu0 %v1535
    %2335 = vmatpush.bf16.msra.mxu0 %v1533
    %2336 = vmatpush.bf16.msra.mxu0 %v1531
    %2337 = vmatpush.bf16.msra.mxu0 %v1529
    %2338 = vmatpush.bf16.msra.mxu0 %v1527
    %2339 = vmatpush.bf16.msra.mxu0 %v1525
    %2340 = vmatpush.bf16.msra.mxu0 %v1523
    %2341 = vmatpush.bf16.msra.mxu0 %v1521
    %2342 = vmatmul.bf16.gmra.mxu0 %v2333
    %v2343 = vpop.f32.mrf.mxu0
    %v2344 = vadd.f32 %v1469, %v2343
    %v2345 = vpop.f32.mrf.mxu0
    %2346 = vdwg.mxu0
    %2347 = vmatpush.bf16.msra.mxu0 %v1536
    %2348 = vmatpush.bf16.msra.mxu0 %v1534
    %2349 = vmatpush.bf16.msra.mxu0 %v1532
    %2350 = vmatpush.bf16.msra.mxu0 %v1530
    %2351 = vmatpush.bf16.msra.mxu0 %v1528
    %2352 = vmatpush.bf16.msra.mxu0 %v1526
    %2353 = vmatpush.bf16.msra.mxu0 %v1524
    %2354 = vmatpush.bf16.msra.mxu0 %v1522
    %2355 = vmatmul.bf16.gmra.mxu0 %v2333
    %v2356 = vpop.f32.mrf.mxu0
    %v2357 = vadd.f32 %v1470, %v2356
    %v2358 = vpop.f32.mrf.mxu0
    %2359 = vdwg.mxu0
    %v2360 = vmax.f32 %v2357, 0.0
    %v2361 = vand.u32 2147483647, %v2357
    %v2362 = vsub.f32 0.0, %v2361
    %v2363 = vmul.f32 %v2362, 1.442695
    %v2364 = vpow.pop %v2363
    %v2365 = vadd.f32 %v2364, 1.0
    %v2366 = vlog2.pop %v2365
    %v2367 = vmul.f32 %v2366, 0.6931472
    %v2368 = vadd.f32 %v2360, %v2367
    %v2369 = vadd.f32 %v2368, 1e-05
    %s2370 = scalar_lea.vmem [#allocation3], 8
    %v2371 = vld [vmem:[%s2370] sm:$0xff]
    %v2372 = vadd.f32 %v2371, %v2277
    %v2373 = vmax.f32 %v2372, 0.0
    %v2374 = vpack.c.bf16 %v2373, %v2373
    %2375 = vmatpush.bf16.msra.mxu0 %v1676
    %2376 = vmatpush.bf16.msra.mxu0 %v1674
    %2377 = vmatpush.bf16.msra.mxu0 %v1672
    %2378 = vmatpush.bf16.msra.mxu0 %v1670
    %2379 = vmatpush.bf16.msra.mxu0 %v1668
    %2380 = vmatpush.bf16.msra.mxu0 %v1666
    %2381 = vmatpush.bf16.msra.mxu0 %v1664
    %2382 = vmatpush.bf16.msra.mxu0 %v1662
    %2383 = vmatmul.bf16.gmra.mxu0 %v2374
    %v2384 = vpop.f32.mrf.mxu0
    %v2385 = vadd.f32 %v1610, %v2384
    %v2386 = vpop.f32.mrf.mxu0
    %2387 = vdwg.mxu0
    %2388 = vmatpush.bf16.msra.mxu0 %v1677
    %2389 = vmatpush.bf16.msra.mxu0 %v1675
    %2390 = vmatpush.bf16.msra.mxu0 %v1673
    %2391 = vmatpush.bf16.msra.mxu0 %v1671
    %2392 = vmatpush.bf16.msra.mxu0 %v1669
    %2393 = vmatpush.bf16.msra.mxu0 %v1667
    %2394 = vmatpush.bf16.msra.mxu0 %v1665
    %2395 = vmatpush.bf16.msra.mxu0 %v1663
    %2396 = vmatmul.bf16.gmra.mxu0 %v2374
    %v2397 = vpop.f32.mrf.mxu0
    %v2398 = vadd.f32 %v1611, %v2397
    %v2399 = vpop.f32.mrf.mxu0
    %2400 = vdwg.mxu0
    %v2401 = vmax.f32 %v2398, 0.0
    %v2402 = vand.u32 2147483647, %v2398
    %v2403 = vsub.f32 0.0, %v2402
    %v2404 = vmul.f32 %v2403, 1.442695
    %v2405 = vpow.pop %v2404
    %v2406 = vadd.f32 %v2405, 1.0
    %v2407 = vlog2.pop %v2406
    %v2408 = vmul.f32 %v2407, 0.6931472
    %v2409 = vadd.f32 %v2401, %v2408
    %v2410 = vadd.f32 %v2409, 1e-05
    %v2411 = vmul.f32 %v2410, %v2252
    %v2412 = vadd.f32 %v2385, %v2411
    %v2413 = vpack.c.bf16 %v2412, %v2412
    %2414 = vmatpush.bf16.msra.mxu0 %v1791
    %2415 = vmatpush.bf16.msra.mxu0 %v1790
    %2416 = vmatpush.bf16.msra.mxu0 %v1789
    %2417 = vmatpush.bf16.msra.mxu0 %v1788
    %2418 = vmatpush.bf16.msra.mxu0 %v1787
    %2419 = vmatpush.bf16.msra.mxu0 %v1786
    %2420 = vmatpush.bf16.msra.mxu0 %v1785
    %2421 = vmatpush.bf16.msra.mxu0 %v1784
    %2422 = vmatmul.bf16.gmra.mxu0 %v2413
    %v2423 = vpop.f32.mrf.mxu0
    %v2424 = vadd.f32 %v1750, %v2423
    %v2425 = vpop.f32.mrf.mxu0
    %2426 = vdwg.mxu0
    %v2427 = vmax.f32 %v2424, 0.0
    %v2428 = vpack.c.bf16 %v2427, %v2427
    %2429 = vmatpush.bf16.msra.mxu0 %v1971
    %2430 = vmatpush.bf16.msra.mxu0 %v1967
    %2431 = vmatpush.bf16.msra.mxu0 %v1963
    %2432 = vmatpush.bf16.msra.mxu0 %v1959
    %2433 = vmatpush.bf16.msra.mxu0 %v1955
    %2434 = vmatpush.bf16.msra.mxu0 %v1951
    %2435 = vmatpush.bf16.msra.mxu0 %v1947
    %2436 = vmatpush.bf16.msra.mxu0 %v1943
    %2437 = vmatmul.bf16.gmra.mxu0 %v2428
    %v2438 = vpop.f32.mrf.mxu0
    %v2439 = vadd.f32 0.0, %v2438
    %v2440 = vpop.f32.mrf.mxu0
    %2441 = vdwg.mxu0
    %2442 = vmatpush.bf16.msra.mxu0 %v1972
    %2443 = vmatpush.bf16.msra.mxu0 %v1968
    %2444 = vmatpush.bf16.msra.mxu0 %v1964
    %2445 = vmatpush.bf16.msra.mxu0 %v1960
    %2446 = vmatpush.bf16.msra.mxu0 %v1956
    %2447 = vmatpush.bf16.msra.mxu0 %v1952
    %2448 = vmatpush.bf16.msra.mxu0 %v1948
    %2449 = vmatpush.bf16.msra.mxu0 %v1944
    %2450 = vmatmul.bf16.gmra.mxu0 %v2428
    %v2451 = vpop.f32.mrf.mxu0
    %v2452 = vadd.f32 0.0, %v2451
    %v2453 = vpop.f32.mrf.mxu0
    %2454 = vdwg.mxu0
    %2455 = vmatpush.bf16.msra.mxu0 %v1973
    %2456 = vmatpush.bf16.msra.mxu0 %v1969
    %2457 = vmatpush.bf16.msra.mxu0 %v1965
    %2458 = vmatpush.bf16.msra.mxu0 %v1961
    %2459 = vmatpush.bf16.msra.mxu0 %v1957
    %2460 = vmatpush.bf16.msra.mxu0 %v1953
    %2461 = vmatpush.bf16.msra.mxu0 %v1949
    %2462 = vmatpush.bf16.msra.mxu0 %v1945
    %2463 = vmatmul.bf16.gmra.mxu0 %v2428
    %v2464 = vpop.f32.mrf.mxu0
    %v2465 = vadd.f32 0.0, %v2464
    %v2466 = vpop.f32.mrf.mxu0
    %2467 = vdwg.mxu0
    %2468 = vmatpush.bf16.msra.mxu0 %v1974
    %2469 = vmatpush.bf16.msra.mxu0 %v1970
    %2470 = vmatpush.bf16.msra.mxu0 %v1966
    %2471 = vmatpush.bf16.msra.mxu0 %v1962
    %2472 = vmatpush.bf16.msra.mxu0 %v1958
    %2473 = vmatpush.bf16.msra.mxu0 %v1954
    %2474 = vmatpush.bf16.msra.mxu0 %v1950
    %2475 = vmatpush.bf16.msra.mxu0 %v1946
    %2476 = vmatmul.bf16.gmra.mxu0 %v2428
    %v2477 = vpop.f32.mrf.mxu0
    %v2478 = vadd.f32 0.0, %v2477
    %v2479 = vpop.f32.mrf.mxu0
    %2480 = vdwg.mxu0
    %v2481 = vadd.f32 %v2439, %v2290
    %v2482 = vmax.f32 %v2481, 0.0
    %v2483 = vpack.c.bf16 %v2482, %v2482
    %2484 = vmatpush.bf16.msra.mxu0 %v2145
    %2485 = vmatpush.bf16.msra.mxu0 %v2143
    %2486 = vmatpush.bf16.msra.mxu0 %v2141
    %2487 = vmatpush.bf16.msra.mxu0 %v2139
    %2488 = vmatpush.bf16.msra.mxu0 %v2137
    %2489 = vmatpush.bf16.msra.mxu0 %v2135
    %2490 = vmatpush.bf16.msra.mxu0 %v2133
    %2491 = vmatpush.bf16.msra.mxu0 %v2131
    %2492 = vmatmul.bf16.gmra.mxu0 %v2483
    %v2493 = vpop.f32.mrf.mxu0
    %v2494 = vadd.f32 %v2079, %v2493
    %v2495 = vpop.f32.mrf.mxu0
    %2496 = vdwg.mxu0
    %2497 = vmatpush.bf16.msra.mxu0 %v2146
    %2498 = vmatpush.bf16.msra.mxu0 %v2144
    %2499 = vmatpush.bf16.msra.mxu0 %v2142
    %2500 = vmatpush.bf16.msra.mxu0 %v2140
    %2501 = vmatpush.bf16.msra.mxu0 %v2138
    %2502 = vmatpush.bf16.msra.mxu0 %v2136
    %2503 = vmatpush.bf16.msra.mxu0 %v2134
    %2504 = vmatpush.bf16.msra.mxu0 %v2132
    %2505 = vmatmul.bf16.gmra.mxu0 %v2483
    %v2506 = vpop.f32.mrf.mxu0
    %v2507 = vadd.f32 %v2080, %v2506
    %v2508 = vpop.f32.mrf.mxu0
    %2509 = vdwg.mxu0
    %v2510 = vmax.f32 %v2507, 0.0
    %v2511 = vand.u32 2147483647, %v2507
    %v2512 = vsub.f32 0.0, %v2511
    %v2513 = vmul.f32 %v2512, 1.442695
    %v2514 = vpow.pop %v2513
    %v2515 = vadd.f32 %v2514, 1.0
    %v2516 = vlog2.pop %v2515
    %v2517 = vmul.f32 %v2516, 0.6931472
    %v2518 = vadd.f32 %v2510, %v2517
    %v2519 = vadd.f32 %v2518, 1e-05
    %s2520 = scalar_lea.vmem [#allocation4], 24
    %v2521 = vld [vmem:[%s2520] sm:$0xff]
    %v2522 = vld [vmem:[%s2520 + $0x8] sm:$0xff]
    %v2523 = vld [vmem:[%s2520 + $0x10] sm:$0xff]
    %v2524 = vadd.f32 %v2521, %v2452
    %v2525 = vadd.f32 %v2522, %v2465
    %v2526 = vadd.f32 %v2523, %v2478
    %v2527 = vadd.f32 %v2524, %v2303
    %v2528 = vmul.f32 %v2527, 0.5
    %v2529 = vtanh.pop %v2528
    %v2530 = vadd.f32 %v2529, 1.0
    %v2531 = vmul.f32 %v2530, 0.5
    %v2532 = vadd.f32 %v2525, %v2316
    %v2533 = vmul.f32 %v2532, 0.5
    %v2534 = vtanh.pop %v2533
    %v2535 = vadd.f32 %v2534, 1.0
    %v2536 = vmul.f32 %v2535, 0.5
    %v2537 = vmul.f32 %v2531, %v2329
    %v2538 = vadd.f32 %v2526, %v2537
    %v2539 = vtanh.pop %v2538
    %v2540 = vsub.f32 1.0, %v2536
    %v2541 = vmul.f32 %v2540, %v2539
    %v2542 = vmul.f32 %v2536, %v2221
    %v2543 = vadd.f32 %v2541, %v2542
    %v2544 = vrcp.pop %v2369
    %v2545 = vrcp.pop %v2519
    %v2546 = vlog2.pop %v2369
    %v2547 = vmul.f32 %v2546, 0.6931472
    %v2548 = vlog2.pop %v2410
    %v2549 = vmul.f32 %v2548, 0.6931472
    %v2550 = vsub.f32 %v2547, %v2549
    %v2551 = vmul.f32 %v2410, %v2410
    %v2552 = vsub.f32 %v2385, %v2344
    %v2553 = vmul.f32 %v2552, %v2552
    %v2554 = vadd.f32 %v2551, %v2553
    %v2555 = vmul.f32 %v2544, 0.5
    %v2556 = vmul.f32 %v2555, %v2544
    %v2557 = vmul.f32 %v2554, %v2556
    %v2558 = vadd.f32 %v2550, %v2557
    %v2559 = vsub.f32 %v2558, 0.5
    %v2560 = vlog2.pop %v2519
    %v2561 = vmul.f32 %v2560, 0.6931472
    %v2562 = vmul.f32 %v2561, 2.0
    %v2563 = vadd.f32 %v2562, 1.837877
    %v2564 = vsub.f32 %v2250, %v2494
    %v2565 = vmul.f32 %v2564, %v2545
    %v2566 = vmul.f32 %v2565, %v2565
    %v2567 = vadd.f32 %v2563, %v2566
    %v2568 = vmul.f32 %v2567, 0.5
    %v2569 = vadd.f32 %v2247, %v2559
    %v2570 = vadd.f32 %v2248, %v2568
    %s2571 = scalar_lea.vmem [#allocation2], 16
    %v2572 = vld [vmem:[%s2571] sm:$0xff]
    %s2573 = scalar_lea.vmem [#allocation10], 16
    %v2574 = vld [vmem:[%s2573] sm:$0xff]
    %v2575 = vpack.c.bf16 %v2543, %v2543
    %2576 = vmatpush.bf16.msra.mxu0 %v1318
    %2577 = vmatpush.bf16.msra.mxu0 %v1312
    %2578 = vmatpush.bf16.msra.mxu0 %v1306
    %2579 = vmatpush.bf16.msra.mxu0 %v1300
    %2580 = vmatpush.bf16.msra.mxu0 %v1294
    %2581 = vmatpush.bf16.msra.mxu0 %v1288
    %2582 = vmatpush.bf16.msra.mxu0 %v1282
    %2583 = vmatpush.bf16.msra.mxu0 %v1276
    %2584 = vmatmul.bf16.gmra.mxu0 %v2575
    %v2585 = vpop.f32.mrf.mxu0
    %v2586 = vadd.f32 %v1120, %v2585
    %v2587 = vpop.f32.mrf.mxu0
    %2588 = vdwg.mxu0
    %2589 = vmatpush.bf16.msra.mxu0 %v1319
    %2590 = vmatpush.bf16.msra.mxu0 %v1313
    %2591 = vmatpush.bf16.msra.mxu0 %v1307
    %2592 = vmatpush.bf16.msra.mxu0 %v1301
    %2593 = vmatpush.bf16.msra.mxu0 %v1295
    %2594 = vmatpush.bf16.msra.mxu0 %v1289
    %2595 = vmatpush.bf16.msra.mxu0 %v1283
    %2596 = vmatpush.bf16.msra.mxu0 %v1277
    %2597 = vmatmul.bf16.gmra.mxu0 %v2575
    %v2598 = vpop.f32.mrf.mxu0
    %v2599 = vadd.f32 %v1121, %v2598
    %v2600 = vpop.f32.mrf.mxu0
    %2601 = vdwg.mxu0
    %2602 = vmatpush.bf16.msra.mxu0 %v1320
    %2603 = vmatpush.bf16.msra.mxu0 %v1314
    %2604 = vmatpush.bf16.msra.mxu0 %v1308
    %2605 = vmatpush.bf16.msra.mxu0 %v1302
    %2606 = vmatpush.bf16.msra.mxu0 %v1296
    %2607 = vmatpush.bf16.msra.mxu0 %v1290
    %2608 = vmatpush.bf16.msra.mxu0 %v1284
    %2609 = vmatpush.bf16.msra.mxu0 %v1278
    %2610 = vmatmul.bf16.gmra.mxu0 %v2575
    %v2611 = vpop.f32.mrf.mxu0
    %v2612 = vadd.f32 %v1122, %v2611
    %v2613 = vpop.f32.mrf.mxu0
    %2614 = vdwg.mxu0
    %2615 = vmatpush.bf16.msra.mxu0 %v1321
    %2616 = vmatpush.bf16.msra.mxu0 %v1315
    %2617 = vmatpush.bf16.msra.mxu0 %v1309
    %2618 = vmatpush.bf16.msra.mxu0 %v1303
    %2619 = vmatpush.bf16.msra.mxu0 %v1297
    %2620 = vmatpush.bf16.msra.mxu0 %v1291
    %2621 = vmatpush.bf16.msra.mxu0 %v1285
    %2622 = vmatpush.bf16.msra.mxu0 %v1279
    %2623 = vmatmul.bf16.gmra.mxu0 %v2575
    %v2624 = vpop.f32.mrf.mxu0
    %v2625 = vadd.f32 %v1123, %v2624
    %v2626 = vpop.f32.mrf.mxu0
    %2627 = vdwg.mxu0
    %2628 = vmatpush.bf16.msra.mxu0 %v1322
    %2629 = vmatpush.bf16.msra.mxu0 %v1316
    %2630 = vmatpush.bf16.msra.mxu0 %v1310
    %2631 = vmatpush.bf16.msra.mxu0 %v1304
    %2632 = vmatpush.bf16.msra.mxu0 %v1298
    %2633 = vmatpush.bf16.msra.mxu0 %v1292
    %2634 = vmatpush.bf16.msra.mxu0 %v1286
    %2635 = vmatpush.bf16.msra.mxu0 %v1280
    %2636 = vmatmul.bf16.gmra.mxu0 %v2575
    %v2637 = vpop.f32.mrf.mxu0
    %v2638 = vadd.f32 %v1124, %v2637
    %v2639 = vpop.f32.mrf.mxu0
    %2640 = vdwg.mxu0
    %2641 = vmatpush.bf16.msra.mxu0 %v1323
    %2642 = vmatpush.bf16.msra.mxu0 %v1317
    %2643 = vmatpush.bf16.msra.mxu0 %v1311
    %2644 = vmatpush.bf16.msra.mxu0 %v1305
    %2645 = vmatpush.bf16.msra.mxu0 %v1299
    %2646 = vmatpush.bf16.msra.mxu0 %v1293
    %2647 = vmatpush.bf16.msra.mxu0 %v1287
    %2648 = vmatpush.bf16.msra.mxu0 %v1281
    %2649 = vmatmul.bf16.gmra.mxu0 %v2575
    %v2650 = vpop.f32.mrf.mxu0
    %v2651 = vadd.f32 %v1125, %v2650
    %v2652 = vpop.f32.mrf.mxu0
    %2653 = vdwg.mxu0
    %v2654 = vmax.f32 %v2586, 0.0
    %v2655 = vpack.c.bf16 %v2654, %v2654
    %2656 = vmatpush.bf16.msra.mxu0 %v1535
    %2657 = vmatpush.bf16.msra.mxu0 %v1533
    %2658 = vmatpush.bf16.msra.mxu0 %v1531
    %2659 = vmatpush.bf16.msra.mxu0 %v1529
    %2660 = vmatpush.bf16.msra.mxu0 %v1527
    %2661 = vmatpush.bf16.msra.mxu0 %v1525
    %2662 = vmatpush.bf16.msra.mxu0 %v1523
    %2663 = vmatpush.bf16.msra.mxu0 %v1521
    %2664 = vmatmul.bf16.gmra.mxu0 %v2655
    %v2665 = vpop.f32.mrf.mxu0
    %v2666 = vadd.f32 %v1469, %v2665
    %v2667 = vpop.f32.mrf.mxu0
    %2668 = vdwg.mxu0
    %2669 = vmatpush.bf16.msra.mxu0 %v1536
    %2670 = vmatpush.bf16.msra.mxu0 %v1534
    %2671 = vmatpush.bf16.msra.mxu0 %v1532
    %2672 = vmatpush.bf16.msra.mxu0 %v1530
    %2673 = vmatpush.bf16.msra.mxu0 %v1528
    %2674 = vmatpush.bf16.msra.mxu0 %v1526
    %2675 = vmatpush.bf16.msra.mxu0 %v1524
    %2676 = vmatpush.bf16.msra.mxu0 %v1522
    %2677 = vmatmul.bf16.gmra.mxu0 %v2655
    %v2678 = vpop.f32.mrf.mxu0
    %v2679 = vadd.f32 %v1470, %v2678
    %v2680 = vpop.f32.mrf.mxu0
    %2681 = vdwg.mxu0
    %v2682 = vmax.f32 %v2679, 0.0
    %v2683 = vand.u32 2147483647, %v2679
    %v2684 = vsub.f32 0.0, %v2683
    %v2685 = vmul.f32 %v2684, 1.442695
    %v2686 = vpow.pop %v2685
    %v2687 = vadd.f32 %v2686, 1.0
    %v2688 = vlog2.pop %v2687
    %v2689 = vmul.f32 %v2688, 0.6931472
    %v2690 = vadd.f32 %v2682, %v2689
    %v2691 = vadd.f32 %v2690, 1e-05
    %s2692 = scalar_lea.vmem [#allocation3], 16
    %v2693 = vld [vmem:[%s2692] sm:$0xff]
    %v2694 = vadd.f32 %v2693, %v2599
    %v2695 = vmax.f32 %v2694, 0.0
    %v2696 = vpack.c.bf16 %v2695, %v2695
    %2697 = vmatpush.bf16.msra.mxu0 %v1676
    %2698 = vmatpush.bf16.msra.mxu0 %v1674
    %2699 = vmatpush.bf16.msra.mxu0 %v1672
    %2700 = vmatpush.bf16.msra.mxu0 %v1670
    %2701 = vmatpush.bf16.msra.mxu0 %v1668
    %2702 = vmatpush.bf16.msra.mxu0 %v1666
    %2703 = vmatpush.bf16.msra.mxu0 %v1664
    %2704 = vmatpush.bf16.msra.mxu0 %v1662
    %2705 = vmatmul.bf16.gmra.mxu0 %v2696
    %v2706 = vpop.f32.mrf.mxu0
    %v2707 = vadd.f32 %v1610, %v2706
    %v2708 = vpop.f32.mrf.mxu0
    %2709 = vdwg.mxu0
    %2710 = vmatpush.bf16.msra.mxu0 %v1677
    %2711 = vmatpush.bf16.msra.mxu0 %v1675
    %2712 = vmatpush.bf16.msra.mxu0 %v1673
    %2713 = vmatpush.bf16.msra.mxu0 %v1671
    %2714 = vmatpush.bf16.msra.mxu0 %v1669
    %2715 = vmatpush.bf16.msra.mxu0 %v1667
    %2716 = vmatpush.bf16.msra.mxu0 %v1665
    %2717 = vmatpush.bf16.msra.mxu0 %v1663
    %2718 = vmatmul.bf16.gmra.mxu0 %v2696
    %v2719 = vpop.f32.mrf.mxu0
    %v2720 = vadd.f32 %v1611, %v2719
    %v2721 = vpop.f32.mrf.mxu0
    %2722 = vdwg.mxu0
    %v2723 = vmax.f32 %v2720, 0.0
    %v2724 = vand.u32 2147483647, %v2720
    %v2725 = vsub.f32 0.0, %v2724
    %v2726 = vmul.f32 %v2725, 1.442695
    %v2727 = vpow.pop %v2726
    %v2728 = vadd.f32 %v2727, 1.0
    %v2729 = vlog2.pop %v2728
    %v2730 = vmul.f32 %v2729, 0.6931472
    %v2731 = vadd.f32 %v2723, %v2730
    %v2732 = vadd.f32 %v2731, 1e-05
    %v2733 = vmul.f32 %v2732, %v2574
    %v2734 = vadd.f32 %v2707, %v2733
    %v2735 = vpack.c.bf16 %v2734, %v2734
    %2736 = vmatpush.bf16.msra.mxu0 %v1791
    %2737 = vmatpush.bf16.msra.mxu0 %v1790
    %2738 = vmatpush.bf16.msra.mxu0 %v1789
    %2739 = vmatpush.bf16.msra.mxu0 %v1788
    %2740 = vmatpush.bf16.msra.mxu0 %v1787
    %2741 = vmatpush.bf16.msra.mxu0 %v1786
    %2742 = vmatpush.bf16.msra.mxu0 %v1785
    %2743 = vmatpush.bf16.msra.mxu0 %v1784
    %2744 = vmatmul.bf16.gmra.mxu0 %v2735
    %v2745 = vpop.f32.mrf.mxu0
    %v2746 = vadd.f32 %v1750, %v2745
    %v2747 = vpop.f32.mrf.mxu0
    %2748 = vdwg.mxu0
    %v2749 = vmax.f32 %v2746, 0.0
    %v2750 = vpack.c.bf16 %v2749, %v2749
    %2751 = vmatpush.bf16.msra.mxu0 %v1971
    %2752 = vmatpush.bf16.msra.mxu0 %v1967
    %2753 = vmatpush.bf16.msra.mxu0 %v1963
    %2754 = vmatpush.bf16.msra.mxu0 %v1959
    %2755 = vmatpush.bf16.msra.mxu0 %v1955
    %2756 = vmatpush.bf16.msra.mxu0 %v1951
    %2757 = vmatpush.bf16.msra.mxu0 %v1947
    %2758 = vmatpush.bf16.msra.mxu0 %v1943
    %2759 = vmatmul.bf16.gmra.mxu0 %v2750
    %v2760 = vpop.f32.mrf.mxu0
    %v2761 = vadd.f32 0.0, %v2760
    %v2762 = vpop.f32.mrf.mxu0
    %2763 = vdwg.mxu0
    %2764 = vmatpush.bf16.msra.mxu0 %v1972
    %2765 = vmatpush.bf16.msra.mxu0 %v1968
    %2766 = vmatpush.bf16.msra.mxu0 %v1964
    %2767 = vmatpush.bf16.msra.mxu0 %v1960
    %2768 = vmatpush.bf16.msra.mxu0 %v1956
    %2769 = vmatpush.bf16.msra.mxu0 %v1952
    %2770 = vmatpush.bf16.msra.mxu0 %v1948
    %2771 = vmatpush.bf16.msra.mxu0 %v1944
    %2772 = vmatmul.bf16.gmra.mxu0 %v2750
    %v2773 = vpop.f32.mrf.mxu0
    %v2774 = vadd.f32 0.0, %v2773
    %v2775 = vpop.f32.mrf.mxu0
    %2776 = vdwg.mxu0
    %2777 = vmatpush.bf16.msra.mxu0 %v1973
    %2778 = vmatpush.bf16.msra.mxu0 %v1969
    %2779 = vmatpush.bf16.msra.mxu0 %v1965
    %2780 = vmatpush.bf16.msra.mxu0 %v1961
    %2781 = vmatpush.bf16.msra.mxu0 %v1957
    %2782 = vmatpush.bf16.msra.mxu0 %v1953
    %2783 = vmatpush.bf16.msra.mxu0 %v1949
    %2784 = vmatpush.bf16.msra.mxu0 %v1945
    %2785 = vmatmul.bf16.gmra.mxu0 %v2750
    %v2786 = vpop.f32.mrf.mxu0
    %v2787 = vadd.f32 0.0, %v2786
    %v2788 = vpop.f32.mrf.mxu0
    %2789 = vdwg.mxu0
    %2790 = vmatpush.bf16.msra.mxu0 %v1974
    %2791 = vmatpush.bf16.msra.mxu0 %v1970
    %2792 = vmatpush.bf16.msra.mxu0 %v1966
    %2793 = vmatpush.bf16.msra.mxu0 %v1962
    %2794 = vmatpush.bf16.msra.mxu0 %v1958
    %2795 = vmatpush.bf16.msra.mxu0 %v1954
    %2796 = vmatpush.bf16.msra.mxu0 %v1950
    %2797 = vmatpush.bf16.msra.mxu0 %v1946
    %2798 = vmatmul.bf16.gmra.mxu0 %v2750
    %v2799 = vpop.f32.mrf.mxu0
    %v2800 = vadd.f32 0.0, %v2799
    %v2801 = vpop.f32.mrf.mxu0
    %2802 = vdwg.mxu0
    %v2803 = vadd.f32 %v2761, %v2612
    %v2804 = vmax.f32 %v2803, 0.0
    %v2805 = vpack.c.bf16 %v2804, %v2804
    %2806 = vmatpush.bf16.msra.mxu0 %v2145
    %2807 = vmatpush.bf16.msra.mxu0 %v2143
    %2808 = vmatpush.bf16.msra.mxu0 %v2141
    %2809 = vmatpush.bf16.msra.mxu0 %v2139
    %2810 = vmatpush.bf16.msra.mxu0 %v2137
    %2811 = vmatpush.bf16.msra.mxu0 %v2135
    %2812 = vmatpush.bf16.msra.mxu0 %v2133
    %2813 = vmatpush.bf16.msra.mxu0 %v2131
    %2814 = vmatmul.bf16.gmra.mxu0 %v2805
    %v2815 = vpop.f32.mrf.mxu0
    %v2816 = vadd.f32 %v2079, %v2815
    %v2817 = vpop.f32.mrf.mxu0
    %2818 = vdwg.mxu0
    %2819 = vmatpush.bf16.msra.mxu0 %v2146
    %2820 = vmatpush.bf16.msra.mxu0 %v2144
    %2821 = vmatpush.bf16.msra.mxu0 %v2142
    %2822 = vmatpush.bf16.msra.mxu0 %v2140
    %2823 = vmatpush.bf16.msra.mxu0 %v2138
    %2824 = vmatpush.bf16.msra.mxu0 %v2136
    %2825 = vmatpush.bf16.msra.mxu0 %v2134
    %2826 = vmatpush.bf16.msra.mxu0 %v2132
    %2827 = vmatmul.bf16.gmra.mxu0 %v2805
    %v2828 = vpop.f32.mrf.mxu0
    %v2829 = vadd.f32 %v2080, %v2828
    %v2830 = vpop.f32.mrf.mxu0
    %2831 = vdwg.mxu0
    %v2832 = vmax.f32 %v2829, 0.0
    %v2833 = vand.u32 2147483647, %v2829
    %v2834 = vsub.f32 0.0, %v2833
    %v2835 = vmul.f32 %v2834, 1.442695
    %v2836 = vpow.pop %v2835
    %v2837 = vadd.f32 %v2836, 1.0
    %v2838 = vlog2.pop %v2837
    %v2839 = vmul.f32 %v2838, 0.6931472
    %v2840 = vadd.f32 %v2832, %v2839
    %v2841 = vadd.f32 %v2840, 1e-05
    %s2842 = scalar_lea.vmem [#allocation4], 48
    %v2843 = vld [vmem:[%s2842] sm:$0xff]
    %v2844 = vld [vmem:[%s2842 + $0x8] sm:$0xff]
    %v2845 = vld [vmem:[%s2842 + $0x10] sm:$0xff]
    %v2846 = vadd.f32 %v2843, %v2774
    %v2847 = vadd.f32 %v2844, %v2787
    %v2848 = vadd.f32 %v2845, %v2800
    %v2849 = vadd.f32 %v2846, %v2625
    %v2850 = vmul.f32 %v2849, 0.5
    %v2851 = vtanh.pop %v2850
    %v2852 = vadd.f32 %v2851, 1.0
    %v2853 = vmul.f32 %v2852, 0.5
    %v2854 = vadd.f32 %v2847, %v2638
    %v2855 = vmul.f32 %v2854, 0.5
    %v2856 = vtanh.pop %v2855
    %v2857 = vadd.f32 %v2856, 1.0
    %v2858 = vmul.f32 %v2857, 0.5
    %v2859 = vmul.f32 %v2853, %v2651
    %v2860 = vadd.f32 %v2848, %v2859
    %v2861 = vtanh.pop %v2860
    %v2862 = vsub.f32 1.0, %v2858
    %v2863 = vmul.f32 %v2862, %v2861
    %v2864 = vmul.f32 %v2858, %v2543
    %v2865 = vadd.f32 %v2863, %v2864
    %v2866 = vrcp.pop %v2691
    %v2867 = vrcp.pop %v2841
    %v2868 = vlog2.pop %v2691
    %v2869 = vmul.f32 %v2868, 0.6931472
    %v2870 = vlog2.pop %v2732
    %v2871 = vmul.f32 %v2870, 0.6931472
    %v2872 = vsub.f32 %v2869, %v2871
    %v2873 = vmul.f32 %v2732, %v2732
    %v2874 = vsub.f32 %v2707, %v2666
    %v2875 = vmul.f32 %v2874, %v2874
    %v2876 = vadd.f32 %v2873, %v2875
    %v2877 = vmul.f32 %v2866, 0.5
    %v2878 = vmul.f32 %v2877, %v2866
    %v2879 = vmul.f32 %v2876, %v2878
    %v2880 = vadd.f32 %v2872, %v2879
    %v2881 = vsub.f32 %v2880, 0.5
    %v2882 = vlog2.pop %v2841
    %v2883 = vmul.f32 %v2882, 0.6931472
    %v2884 = vmul.f32 %v2883, 2.0
    %v2885 = vadd.f32 %v2884, 1.837877
    %v2886 = vsub.f32 %v2572, %v2816
    %v2887 = vmul.f32 %v2886, %v2867
    %v2888 = vmul.f32 %v2887, %v2887
    %v2889 = vadd.f32 %v2885, %v2888
    %v2890 = vmul.f32 %v2889, 0.5
    %v2891 = vadd.f32 %v2569, %v2881
    %v2892 = vadd.f32 %v2570, %v2890
    %s2893 = scalar_lea.vmem [#allocation2], 24
    %v2894 = vld [vmem:[%s2893] sm:$0xff]
    %s2895 = scalar_lea.vmem [#allocation10], 24
    %v2896 = vld [vmem:[%s2895] sm:$0xff]
    %v2897 = vpack.c.bf16 %v2865, %v2865
    %2898 = vmatpush.bf16.msra.mxu0 %v1318
    %2899 = vmatpush.bf16.msra.mxu0 %v1312
    %2900 = vmatpush.bf16.msra.mxu0 %v1306
    %2901 = vmatpush.bf16.msra.mxu0 %v1300
    %2902 = vmatpush.bf16.msra.mxu0 %v1294
    %2903 = vmatpush.bf16.msra.mxu0 %v1288
    %2904 = vmatpush.bf16.msra.mxu0 %v1282
    %2905 = vmatpush.bf16.msra.mxu0 %v1276
    %2906 = vmatmul.bf16.gmra.mxu0 %v2897
    %v2907 = vpop.f32.mrf.mxu0
    %v2908 = vadd.f32 %v1120, %v2907
    %v2909 = vpop.f32.mrf.mxu0
    %2910 = vdwg.mxu0
    %2911 = vmatpush.bf16.msra.mxu0 %v1319
    %2912 = vmatpush.bf16.msra.mxu0 %v1313
    %2913 = vmatpush.bf16.msra.mxu0 %v1307
    %2914 = vmatpush.bf16.msra.mxu0 %v1301
    %2915 = vmatpush.bf16.msra.mxu0 %v1295
    %2916 = vmatpush.bf16.msra.mxu0 %v1289
    %2917 = vmatpush.bf16.msra.mxu0 %v1283
    %2918 = vmatpush.bf16.msra.mxu0 %v1277
    %2919 = vmatmul.bf16.gmra.mxu0 %v2897
    %v2920 = vpop.f32.mrf.mxu0
    %v2921 = vadd.f32 %v1121, %v2920
    %v2922 = vpop.f32.mrf.mxu0
    %2923 = vdwg.mxu0
    %2924 = vmatpush.bf16.msra.mxu0 %v1320
    %2925 = vmatpush.bf16.msra.mxu0 %v1314
    %2926 = vmatpush.bf16.msra.mxu0 %v1308
    %2927 = vmatpush.bf16.msra.mxu0 %v1302
    %2928 = vmatpush.bf16.msra.mxu0 %v1296
    %2929 = vmatpush.bf16.msra.mxu0 %v1290
    %2930 = vmatpush.bf16.msra.mxu0 %v1284
    %2931 = vmatpush.bf16.msra.mxu0 %v1278
    %2932 = vmatmul.bf16.gmra.mxu0 %v2897
    %v2933 = vpop.f32.mrf.mxu0
    %v2934 = vadd.f32 %v1122, %v2933
    %v2935 = vpop.f32.mrf.mxu0
    %2936 = vdwg.mxu0
    %2937 = vmatpush.bf16.msra.mxu0 %v1321
    %2938 = vmatpush.bf16.msra.mxu0 %v1315
    %2939 = vmatpush.bf16.msra.mxu0 %v1309
    %2940 = vmatpush.bf16.msra.mxu0 %v1303
    %2941 = vmatpush.bf16.msra.mxu0 %v1297
    %2942 = vmatpush.bf16.msra.mxu0 %v1291
    %2943 = vmatpush.bf16.msra.mxu0 %v1285
    %2944 = vmatpush.bf16.msra.mxu0 %v1279
    %2945 = vmatmul.bf16.gmra.mxu0 %v2897
    %v2946 = vpop.f32.mrf.mxu0
    %v2947 = vadd.f32 %v1123, %v2946
    %v2948 = vpop.f32.mrf.mxu0
    %2949 = vdwg.mxu0
    %2950 = vmatpush.bf16.msra.mxu0 %v1322
    %2951 = vmatpush.bf16.msra.mxu0 %v1316
    %2952 = vmatpush.bf16.msra.mxu0 %v1310
    %2953 = vmatpush.bf16.msra.mxu0 %v1304
    %2954 = vmatpush.bf16.msra.mxu0 %v1298
    %2955 = vmatpush.bf16.msra.mxu0 %v1292
    %2956 = vmatpush.bf16.msra.mxu0 %v1286
    %2957 = vmatpush.bf16.msra.mxu0 %v1280
    %2958 = vmatmul.bf16.gmra.mxu0 %v2897
    %v2959 = vpop.f32.mrf.mxu0
    %v2960 = vadd.f32 %v1124, %v2959
    %v2961 = vpop.f32.mrf.mxu0
    %2962 = vdwg.mxu0
    %2963 = vmatpush.bf16.msra.mxu0 %v1323
    %2964 = vmatpush.bf16.msra.mxu0 %v1317
    %2965 = vmatpush.bf16.msra.mxu0 %v1311
    %2966 = vmatpush.bf16.msra.mxu0 %v1305
    %2967 = vmatpush.bf16.msra.mxu0 %v1299
    %2968 = vmatpush.bf16.msra.mxu0 %v1293
    %2969 = vmatpush.bf16.msra.mxu0 %v1287
    %2970 = vmatpush.bf16.msra.mxu0 %v1281
    %2971 = vmatmul.bf16.gmra.mxu0 %v2897
    %v2972 = vpop.f32.mrf.mxu0
    %v2973 = vadd.f32 %v1125, %v2972
    %v2974 = vpop.f32.mrf.mxu0
    %2975 = vdwg.mxu0
    %v2976 = vmax.f32 %v2908, 0.0
    %v2977 = vpack.c.bf16 %v2976, %v2976
    %2978 = vmatpush.bf16.msra.mxu0 %v1535
    %2979 = vmatpush.bf16.msra.mxu0 %v1533
    %2980 = vmatpush.bf16.msra.mxu0 %v1531
    %2981 = vmatpush.bf16.msra.mxu0 %v1529
    %2982 = vmatpush.bf16.msra.mxu0 %v1527
    %2983 = vmatpush.bf16.msra.mxu0 %v1525
    %2984 = vmatpush.bf16.msra.mxu0 %v1523
    %2985 = vmatpush.bf16.msra.mxu0 %v1521
    %2986 = vmatmul.bf16.gmra.mxu0 %v2977
    %v2987 = vpop.f32.mrf.mxu0
    %v2988 = vadd.f32 %v1469, %v2987
    %v2989 = vpop.f32.mrf.mxu0
    %2990 = vdwg.mxu0
    %2991 = vmatpush.bf16.msra.mxu0 %v1536
    %2992 = vmatpush.bf16.msra.mxu0 %v1534
    %2993 = vmatpush.bf16.msra.mxu0 %v1532
    %2994 = vmatpush.bf16.msra.mxu0 %v1530
    %2995 = vmatpush.bf16.msra.mxu0 %v1528
    %2996 = vmatpush.bf16.msra.mxu0 %v1526
    %2997 = vmatpush.bf16.msra.mxu0 %v1524
    %2998 = vmatpush.bf16.msra.mxu0 %v1522
    %2999 = vmatmul.bf16.gmra.mxu0 %v2977
    %v3000 = vpop.f32.mrf.mxu0
    %v3001 = vadd.f32 %v1470, %v3000
    %v3002 = vpop.f32.mrf.mxu0
    %3003 = vdwg.mxu0
    %v3004 = vmax.f32 %v3001, 0.0
    %v3005 = vand.u32 2147483647, %v3001
    %v3006 = vsub.f32 0.0, %v3005
    %v3007 = vmul.f32 %v3006, 1.442695
    %v3008 = vpow.pop %v3007
    %v3009 = vadd.f32 %v3008, 1.0
    %v3010 = vlog2.pop %v3009
    %v3011 = vmul.f32 %v3010, 0.6931472
    %v3012 = vadd.f32 %v3004, %v3011
    %v3013 = vadd.f32 %v3012, 1e-05
    %s3014 = scalar_lea.vmem [#allocation3], 24
    %v3015 = vld [vmem:[%s3014] sm:$0xff]
    %v3016 = vadd.f32 %v3015, %v2921
    %v3017 = vmax.f32 %v3016, 0.0
    %v3018 = vpack.c.bf16 %v3017, %v3017
    %3019 = vmatpush.bf16.msra.mxu0 %v1676
    %3020 = vmatpush.bf16.msra.mxu0 %v1674
    %3021 = vmatpush.bf16.msra.mxu0 %v1672
    %3022 = vmatpush.bf16.msra.mxu0 %v1670
    %3023 = vmatpush.bf16.msra.mxu0 %v1668
    %3024 = vmatpush.bf16.msra.mxu0 %v1666
    %3025 = vmatpush.bf16.msra.mxu0 %v1664
    %3026 = vmatpush.bf16.msra.mxu0 %v1662
    %3027 = vmatmul.bf16.gmra.mxu0 %v3018
    %v3028 = vpop.f32.mrf.mxu0
    %v3029 = vadd.f32 %v1610, %v3028
    %v3030 = vpop.f32.mrf.mxu0
    %3031 = vdwg.mxu0
    %3032 = vmatpush.bf16.msra.mxu0 %v1677
    %3033 = vmatpush.bf16.msra.mxu0 %v1675
    %3034 = vmatpush.bf16.msra.mxu0 %v1673
    %3035 = vmatpush.bf16.msra.mxu0 %v1671
    %3036 = vmatpush.bf16.msra.mxu0 %v1669
    %3037 = vmatpush.bf16.msra.mxu0 %v1667
    %3038 = vmatpush.bf16.msra.mxu0 %v1665
    %3039 = vmatpush.bf16.msra.mxu0 %v1663
    %3040 = vmatmul.bf16.gmra.mxu0 %v3018
    %v3041 = vpop.f32.mrf.mxu0
    %v3042 = vadd.f32 %v1611, %v3041
    %v3043 = vpop.f32.mrf.mxu0
    %3044 = vdwg.mxu0
    %v3045 = vmax.f32 %v3042, 0.0
    %v3046 = vand.u32 2147483647, %v3042
    %v3047 = vsub.f32 0.0, %v3046
    %v3048 = vmul.f32 %v3047, 1.442695
    %v3049 = vpow.pop %v3048
    %v3050 = vadd.f32 %v3049, 1.0
    %v3051 = vlog2.pop %v3050
    %v3052 = vmul.f32 %v3051, 0.6931472
    %v3053 = vadd.f32 %v3045, %v3052
    %v3054 = vadd.f32 %v3053, 1e-05
    %v3055 = vmul.f32 %v3054, %v2896
    %v3056 = vadd.f32 %v3029, %v3055
    %v3057 = vpack.c.bf16 %v3056, %v3056
    %3058 = vmatpush.bf16.msra.mxu0 %v1791
    %3059 = vmatpush.bf16.msra.mxu0 %v1790
    %3060 = vmatpush.bf16.msra.mxu0 %v1789
    %3061 = vmatpush.bf16.msra.mxu0 %v1788
    %3062 = vmatpush.bf16.msra.mxu0 %v1787
    %3063 = vmatpush.bf16.msra.mxu0 %v1786
    %3064 = vmatpush.bf16.msra.mxu0 %v1785
    %3065 = vmatpush.bf16.msra.mxu0 %v1784
    %3066 = vmatmul.bf16.gmra.mxu0 %v3057
    %v3067 = vpop.f32.mrf.mxu0
    %v3068 = vadd.f32 %v1750, %v3067
    %v3069 = vpop.f32.mrf.mxu0
    %3070 = vdwg.mxu0
    %v3071 = vmax.f32 %v3068, 0.0
    %v3072 = vpack.c.bf16 %v3071, %v3071
    %3073 = vmatpush.bf16.msra.mxu0 %v1971
    %3074 = vmatpush.bf16.msra.mxu0 %v1967
    %3075 = vmatpush.bf16.msra.mxu0 %v1963
    %3076 = vmatpush.bf16.msra.mxu0 %v1959
    %3077 = vmatpush.bf16.msra.mxu0 %v1955
    %3078 = vmatpush.bf16.msra.mxu0 %v1951
    %3079 = vmatpush.bf16.msra.mxu0 %v1947
    %3080 = vmatpush.bf16.msra.mxu0 %v1943
    %3081 = vmatmul.bf16.gmra.mxu0 %v3072
    %v3082 = vpop.f32.mrf.mxu0
    %v3083 = vadd.f32 0.0, %v3082
    %v3084 = vpop.f32.mrf.mxu0
    %3085 = vdwg.mxu0
    %3086 = vmatpush.bf16.msra.mxu0 %v1972
    %3087 = vmatpush.bf16.msra.mxu0 %v1968
    %3088 = vmatpush.bf16.msra.mxu0 %v1964
    %3089 = vmatpush.bf16.msra.mxu0 %v1960
    %3090 = vmatpush.bf16.msra.mxu0 %v1956
    %3091 = vmatpush.bf16.msra.mxu0 %v1952
    %3092 = vmatpush.bf16.msra.mxu0 %v1948
    %3093 = vmatpush.bf16.msra.mxu0 %v1944
    %3094 = vmatmul.bf16.gmra.mxu0 %v3072
    %v3095 = vpop.f32.mrf.mxu0
    %v3096 = vadd.f32 0.0, %v3095
    %v3097 = vpop.f32.mrf.mxu0
    %3098 = vdwg.mxu0
    %3099 = vmatpush.bf16.msra.mxu0 %v1973
    %3100 = vmatpush.bf16.msra.mxu0 %v1969
    %3101 = vmatpush.bf16.msra.mxu0 %v1965
    %3102 = vmatpush.bf16.msra.mxu0 %v1961
    %3103 = vmatpush.bf16.msra.mxu0 %v1957
    %3104 = vmatpush.bf16.msra.mxu0 %v1953
    %3105 = vmatpush.bf16.msra.mxu0 %v1949
    %3106 = vmatpush.bf16.msra.mxu0 %v1945
    %3107 = vmatmul.bf16.gmra.mxu0 %v3072
    %v3108 = vpop.f32.mrf.mxu0
    %v3109 = vadd.f32 0.0, %v3108
    %v3110 = vpop.f32.mrf.mxu0
    %3111 = vdwg.mxu0
    %3112 = vmatpush.bf16.msra.mxu0 %v1974
    %3113 = vmatpush.bf16.msra.mxu0 %v1970
    %3114 = vmatpush.bf16.msra.mxu0 %v1966
    %3115 = vmatpush.bf16.msra.mxu0 %v1962
    %3116 = vmatpush.bf16.msra.mxu0 %v1958
    %3117 = vmatpush.bf16.msra.mxu0 %v1954
    %3118 = vmatpush.bf16.msra.mxu0 %v1950
    %3119 = vmatpush.bf16.msra.mxu0 %v1946
    %3120 = vmatmul.bf16.gmra.mxu0 %v3072
    %v3121 = vpop.f32.mrf.mxu0
    %v3122 = vadd.f32 0.0, %v3121
    %v3123 = vpop.f32.mrf.mxu0
    %3124 = vdwg.mxu0
    %v3125 = vadd.f32 %v3083, %v2934
    %v3126 = vmax.f32 %v3125, 0.0
    %v3127 = vpack.c.bf16 %v3126, %v3126
    %3128 = vmatpush.bf16.msra.mxu0 %v2145
    %3129 = vmatpush.bf16.msra.mxu0 %v2143
    %3130 = vmatpush.bf16.msra.mxu0 %v2141
    %3131 = vmatpush.bf16.msra.mxu0 %v2139
    %3132 = vmatpush.bf16.msra.mxu0 %v2137
    %3133 = vmatpush.bf16.msra.mxu0 %v2135
    %3134 = vmatpush.bf16.msra.mxu0 %v2133
    %3135 = vmatpush.bf16.msra.mxu0 %v2131
    %3136 = vmatmul.bf16.gmra.mxu0 %v3127
    %v3137 = vpop.f32.mrf.mxu0
    %v3138 = vadd.f32 %v2079, %v3137
    %v3139 = vpop.f32.mrf.mxu0
    %3140 = vdwg.mxu0
    %3141 = vmatpush.bf16.msra.mxu0 %v2146
    %3142 = vmatpush.bf16.msra.mxu0 %v2144
    %3143 = vmatpush.bf16.msra.mxu0 %v2142
    %3144 = vmatpush.bf16.msra.mxu0 %v2140
    %3145 = vmatpush.bf16.msra.mxu0 %v2138
    %3146 = vmatpush.bf16.msra.mxu0 %v2136
    %3147 = vmatpush.bf16.msra.mxu0 %v2134
    %3148 = vmatpush.bf16.msra.mxu0 %v2132
    %3149 = vmatmul.bf16.gmra.mxu0 %v3127
    %v3150 = vpop.f32.mrf.mxu0
    %v3151 = vadd.f32 %v2080, %v3150
    %v3152 = vpop.f32.mrf.mxu0
    %3153 = vdwg.mxu0
    %v3154 = vmax.f32 %v3151, 0.0
    %v3155 = vand.u32 2147483647, %v3151
    %v3156 = vsub.f32 0.0, %v3155
    %v3157 = vmul.f32 %v3156, 1.442695
    %v3158 = vpow.pop %v3157
    %v3159 = vadd.f32 %v3158, 1.0
    %v3160 = vlog2.pop %v3159
    %v3161 = vmul.f32 %v3160, 0.6931472
    %v3162 = vadd.f32 %v3154, %v3161
    %v3163 = vadd.f32 %v3162, 1e-05
    %s3164 = scalar_lea.vmem [#allocation4], 72
    %v3165 = vld [vmem:[%s3164] sm:$0xff]
    %v3166 = vld [vmem:[%s3164 + $0x8] sm:$0xff]
    %v3167 = vld [vmem:[%s3164 + $0x10] sm:$0xff]
    %v3168 = vadd.f32 %v3165, %v3096
    %v3169 = vadd.f32 %v3166, %v3109
    %v3170 = vadd.f32 %v3167, %v3122
    %v3171 = vadd.f32 %v3168, %v2947
    %v3172 = vmul.f32 %v3171, 0.5
    %v3173 = vtanh.pop %v3172
    %v3174 = vadd.f32 %v3173, 1.0
    %v3175 = vmul.f32 %v3174, 0.5
    %v3176 = vadd.f32 %v3169, %v2960
    %v3177 = vmul.f32 %v3176, 0.5
    %v3178 = vtanh.pop %v3177
    %v3179 = vadd.f32 %v3178, 1.0
    %v3180 = vmul.f32 %v3179, 0.5
    %v3181 = vmul.f32 %v3175, %v2973
    %v3182 = vadd.f32 %v3170, %v3181
    %v3183 = vtanh.pop %v3182
    %v3184 = vsub.f32 1.0, %v3180
    %v3185 = vmul.f32 %v3184, %v3183
    %v3186 = vmul.f32 %v3180, %v2865
    %v3187 = vadd.f32 %v3185, %v3186
    %v3188 = vrcp.pop %v3013
    %v3189 = vrcp.pop %v3163
    %v3190 = vlog2.pop %v3013
    %v3191 = vmul.f32 %v3190, 0.6931472
    %v3192 = vlog2.pop %v3054
    %v3193 = vmul.f32 %v3192, 0.6931472
    %v3194 = vsub.f32 %v3191, %v3193
    %v3195 = vmul.f32 %v3054, %v3054
    %v3196 = vsub.f32 %v3029, %v2988
    %v3197 = vmul.f32 %v3196, %v3196
    %v3198 = vadd.f32 %v3195, %v3197
    %v3199 = vmul.f32 %v3188, 0.5
    %v3200 = vmul.f32 %v3199, %v3188
    %v3201 = vmul.f32 %v3198, %v3200
    %v3202 = vadd.f32 %v3194, %v3201
    %v3203 = vsub.f32 %v3202, 0.5
    %v3204 = vlog2.pop %v3163
    %v3205 = vmul.f32 %v3204, 0.6931472
    %v3206 = vmul.f32 %v3205, 2.0
    %v3207 = vadd.f32 %v3206, 1.837877
    %v3208 = vsub.f32 %v2894, %v3138
    %v3209 = vmul.f32 %v3208, %v3189
    %v3210 = vmul.f32 %v3209, %v3209
    %v3211 = vadd.f32 %v3207, %v3210
    %v3212 = vmul.f32 %v3211, 0.5
    %v3213 = vadd.f32 %v2891, %v3203
    %v3214 = vadd.f32 %v2892, %v3212
    %s3215 = scalar_lea.vmem [#allocation2], 32
    %v3216 = vld [vmem:[%s3215] sm:$0xff]
    %s3217 = scalar_lea.vmem [#allocation10], 32
    %v3218 = vld [vmem:[%s3217] sm:$0xff]
    %v3219 = vpack.c.bf16 %v3187, %v3187
    %3220 = vmatpush.bf16.msra.mxu0 %v1318
    %3221 = vmatpush.bf16.msra.mxu0 %v1312
    %3222 = vmatpush.bf16.msra.mxu0 %v1306
    %3223 = vmatpush.bf16.msra.mxu0 %v1300
    %3224 = vmatpush.bf16.msra.mxu0 %v1294
    %3225 = vmatpush.bf16.msra.mxu0 %v1288
    %3226 = vmatpush.bf16.msra.mxu0 %v1282
    %3227 = vmatpush.bf16.msra.mxu0 %v1276
    %3228 = vmatmul.bf16.gmra.mxu0 %v3219
    %v3229 = vpop.f32.mrf.mxu0
    %v3230 = vadd.f32 %v1120, %v3229
    %v3231 = vpop.f32.mrf.mxu0
    %3232 = vdwg.mxu0
    %3233 = vmatpush.bf16.msra.mxu0 %v1319
    %3234 = vmatpush.bf16.msra.mxu0 %v1313
    %3235 = vmatpush.bf16.msra.mxu0 %v1307
    %3236 = vmatpush.bf16.msra.mxu0 %v1301
    %3237 = vmatpush.bf16.msra.mxu0 %v1295
    %3238 = vmatpush.bf16.msra.mxu0 %v1289
    %3239 = vmatpush.bf16.msra.mxu0 %v1283
    %3240 = vmatpush.bf16.msra.mxu0 %v1277
    %3241 = vmatmul.bf16.gmra.mxu0 %v3219
    %v3242 = vpop.f32.mrf.mxu0
    %v3243 = vadd.f32 %v1121, %v3242
    %v3244 = vpop.f32.mrf.mxu0
    %3245 = vdwg.mxu0
    %3246 = vmatpush.bf16.msra.mxu0 %v1320
    %3247 = vmatpush.bf16.msra.mxu0 %v1314
    %3248 = vmatpush.bf16.msra.mxu0 %v1308
    %3249 = vmatpush.bf16.msra.mxu0 %v1302
    %3250 = vmatpush.bf16.msra.mxu0 %v1296
    %3251 = vmatpush.bf16.msra.mxu0 %v1290
    %3252 = vmatpush.bf16.msra.mxu0 %v1284
    %3253 = vmatpush.bf16.msra.mxu0 %v1278
    %3254 = vmatmul.bf16.gmra.mxu0 %v3219
    %v3255 = vpop.f32.mrf.mxu0
    %v3256 = vadd.f32 %v1122, %v3255
    %v3257 = vpop.f32.mrf.mxu0
    %3258 = vdwg.mxu0
    %3259 = vmatpush.bf16.msra.mxu0 %v1321
    %3260 = vmatpush.bf16.msra.mxu0 %v1315
    %3261 = vmatpush.bf16.msra.mxu0 %v1309
    %3262 = vmatpush.bf16.msra.mxu0 %v1303
    %3263 = vmatpush.bf16.msra.mxu0 %v1297
    %3264 = vmatpush.bf16.msra.mxu0 %v1291
    %3265 = vmatpush.bf16.msra.mxu0 %v1285
    %3266 = vmatpush.bf16.msra.mxu0 %v1279
    %3267 = vmatmul.bf16.gmra.mxu0 %v3219
    %v3268 = vpop.f32.mrf.mxu0
    %v3269 = vadd.f32 %v1123, %v3268
    %v3270 = vpop.f32.mrf.mxu0
    %3271 = vdwg.mxu0
    %3272 = vmatpush.bf16.msra.mxu0 %v1322
    %3273 = vmatpush.bf16.msra.mxu0 %v1316
    %3274 = vmatpush.bf16.msra.mxu0 %v1310
    %3275 = vmatpush.bf16.msra.mxu0 %v1304
    %3276 = vmatpush.bf16.msra.mxu0 %v1298
    %3277 = vmatpush.bf16.msra.mxu0 %v1292
    %3278 = vmatpush.bf16.msra.mxu0 %v1286
    %3279 = vmatpush.bf16.msra.mxu0 %v1280
    %3280 = vmatmul.bf16.gmra.mxu0 %v3219
    %v3281 = vpop.f32.mrf.mxu0
    %v3282 = vadd.f32 %v1124, %v3281
    %v3283 = vpop.f32.mrf.mxu0
    %3284 = vdwg.mxu0
    %3285 = vmatpush.bf16.msra.mxu0 %v1323
    %3286 = vmatpush.bf16.msra.mxu0 %v1317
    %3287 = vmatpush.bf16.msra.mxu0 %v1311
    %3288 = vmatpush.bf16.msra.mxu0 %v1305
    %3289 = vmatpush.bf16.msra.mxu0 %v1299
    %3290 = vmatpush.bf16.msra.mxu0 %v1293
    %3291 = vmatpush.bf16.msra.mxu0 %v1287
    %3292 = vmatpush.bf16.msra.mxu0 %v1281
    %3293 = vmatmul.bf16.gmra.mxu0 %v3219
    %v3294 = vpop.f32.mrf.mxu0
    %v3295 = vadd.f32 %v1125, %v3294
    %v3296 = vpop.f32.mrf.mxu0
    %3297 = vdwg.mxu0
    %v3298 = vmax.f32 %v3230, 0.0
    %v3299 = vpack.c.bf16 %v3298, %v3298
    %3300 = vmatpush.bf16.msra.mxu0 %v1535
    %3301 = vmatpush.bf16.msra.mxu0 %v1533
    %3302 = vmatpush.bf16.msra.mxu0 %v1531
    %3303 = vmatpush.bf16.msra.mxu0 %v1529
    %3304 = vmatpush.bf16.msra.mxu0 %v1527
    %3305 = vmatpush.bf16.msra.mxu0 %v1525
    %3306 = vmatpush.bf16.msra.mxu0 %v1523
    %3307 = vmatpush.bf16.msra.mxu0 %v1521
    %3308 = vmatmul.bf16.gmra.mxu0 %v3299
    %v3309 = vpop.f32.mrf.mxu0
    %v3310 = vadd.f32 %v1469, %v3309
    %v3311 = vpop.f32.mrf.mxu0
    %3312 = vdwg.mxu0
    %3313 = vmatpush.bf16.msra.mxu0 %v1536
    %3314 = vmatpush.bf16.msra.mxu0 %v1534
    %3315 = vmatpush.bf16.msra.mxu0 %v1532
    %3316 = vmatpush.bf16.msra.mxu0 %v1530
    %3317 = vmatpush.bf16.msra.mxu0 %v1528
    %3318 = vmatpush.bf16.msra.mxu0 %v1526
    %3319 = vmatpush.bf16.msra.mxu0 %v1524
    %3320 = vmatpush.bf16.msra.mxu0 %v1522
    %3321 = vmatmul.bf16.gmra.mxu0 %v3299
    %v3322 = vpop.f32.mrf.mxu0
    %v3323 = vadd.f32 %v1470, %v3322
    %v3324 = vpop.f32.mrf.mxu0
    %3325 = vdwg.mxu0
    %v3326 = vmax.f32 %v3323, 0.0
    %v3327 = vand.u32 2147483647, %v3323
    %v3328 = vsub.f32 0.0, %v3327
    %v3329 = vmul.f32 %v3328, 1.442695
    %v3330 = vpow.pop %v3329
    %v3331 = vadd.f32 %v3330, 1.0
    %v3332 = vlog2.pop %v3331
    %v3333 = vmul.f32 %v3332, 0.6931472
    %v3334 = vadd.f32 %v3326, %v3333
    %v3335 = vadd.f32 %v3334, 1e-05
    %s3336 = scalar_lea.vmem [#allocation3], 32
    %v3337 = vld [vmem:[%s3336] sm:$0xff]
    %v3338 = vadd.f32 %v3337, %v3243
    %v3339 = vmax.f32 %v3338, 0.0
    %v3340 = vpack.c.bf16 %v3339, %v3339
    %3341 = vmatpush.bf16.msra.mxu0 %v1676
    %3342 = vmatpush.bf16.msra.mxu0 %v1674
    %3343 = vmatpush.bf16.msra.mxu0 %v1672
    %3344 = vmatpush.bf16.msra.mxu0 %v1670
    %3345 = vmatpush.bf16.msra.mxu0 %v1668
    %3346 = vmatpush.bf16.msra.mxu0 %v1666
    %3347 = vmatpush.bf16.msra.mxu0 %v1664
    %3348 = vmatpush.bf16.msra.mxu0 %v1662
    %3349 = vmatmul.bf16.gmra.mxu0 %v3340
    %v3350 = vpop.f32.mrf.mxu0
    %v3351 = vadd.f32 %v1610, %v3350
    %v3352 = vpop.f32.mrf.mxu0
    %3353 = vdwg.mxu0
    %3354 = vmatpush.bf16.msra.mxu0 %v1677
    %3355 = vmatpush.bf16.msra.mxu0 %v1675
    %3356 = vmatpush.bf16.msra.mxu0 %v1673
    %3357 = vmatpush.bf16.msra.mxu0 %v1671
    %3358 = vmatpush.bf16.msra.mxu0 %v1669
    %3359 = vmatpush.bf16.msra.mxu0 %v1667
    %3360 = vmatpush.bf16.msra.mxu0 %v1665
    %3361 = vmatpush.bf16.msra.mxu0 %v1663
    %3362 = vmatmul.bf16.gmra.mxu0 %v3340
    %v3363 = vpop.f32.mrf.mxu0
    %v3364 = vadd.f32 %v1611, %v3363
    %v3365 = vpop.f32.mrf.mxu0
    %3366 = vdwg.mxu0
    %v3367 = vmax.f32 %v3364, 0.0
    %v3368 = vand.u32 2147483647, %v3364
    %v3369 = vsub.f32 0.0, %v3368
    %v3370 = vmul.f32 %v3369, 1.442695
    %v3371 = vpow.pop %v3370
    %v3372 = vadd.f32 %v3371, 1.0
    %v3373 = vlog2.pop %v3372
    %v3374 = vmul.f32 %v3373, 0.6931472
    %v3375 = vadd.f32 %v3367, %v3374
    %v3376 = vadd.f32 %v3375, 1e-05
    %v3377 = vmul.f32 %v3376, %v3218
    %v3378 = vadd.f32 %v3351, %v3377
    %v3379 = vpack.c.bf16 %v3378, %v3378
    %3380 = vmatpush.bf16.msra.mxu0 %v1791
    %3381 = vmatpush.bf16.msra.mxu0 %v1790
    %3382 = vmatpush.bf16.msra.mxu0 %v1789
    %3383 = vmatpush.bf16.msra.mxu0 %v1788
    %3384 = vmatpush.bf16.msra.mxu0 %v1787
    %3385 = vmatpush.bf16.msra.mxu0 %v1786
    %3386 = vmatpush.bf16.msra.mxu0 %v1785
    %3387 = vmatpush.bf16.msra.mxu0 %v1784
    %3388 = vmatmul.bf16.gmra.mxu0 %v3379
    %v3389 = vpop.f32.mrf.mxu0
    %v3390 = vadd.f32 %v1750, %v3389
    %v3391 = vpop.f32.mrf.mxu0
    %3392 = vdwg.mxu0
    %v3393 = vmax.f32 %v3390, 0.0
    %v3394 = vpack.c.bf16 %v3393, %v3393
    %3395 = vmatpush.bf16.msra.mxu0 %v1971
    %3396 = vmatpush.bf16.msra.mxu0 %v1967
    %3397 = vmatpush.bf16.msra.mxu0 %v1963
    %3398 = vmatpush.bf16.msra.mxu0 %v1959
    %3399 = vmatpush.bf16.msra.mxu0 %v1955
    %3400 = vmatpush.bf16.msra.mxu0 %v1951
    %3401 = vmatpush.bf16.msra.mxu0 %v1947
    %3402 = vmatpush.bf16.msra.mxu0 %v1943
    %3403 = vmatmul.bf16.gmra.mxu0 %v3394
    %v3404 = vpop.f32.mrf.mxu0
    %v3405 = vadd.f32 0.0, %v3404
    %v3406 = vpop.f32.mrf.mxu0
    %3407 = vdwg.mxu0
    %3408 = vmatpush.bf16.msra.mxu0 %v1972
    %3409 = vmatpush.bf16.msra.mxu0 %v1968
    %3410 = vmatpush.bf16.msra.mxu0 %v1964
    %3411 = vmatpush.bf16.msra.mxu0 %v1960
    %3412 = vmatpush.bf16.msra.mxu0 %v1956
    %3413 = vmatpush.bf16.msra.mxu0 %v1952
    %3414 = vmatpush.bf16.msra.mxu0 %v1948
    %3415 = vmatpush.bf16.msra.mxu0 %v1944
    %3416 = vmatmul.bf16.gmra.mxu0 %v3394
    %v3417 = vpop.f32.mrf.mxu0
    %v3418 = vadd.f32 0.0, %v3417
    %v3419 = vpop.f32.mrf.mxu0
    %3420 = vdwg.mxu0
    %3421 = vmatpush.bf16.msra.mxu0 %v1973
    %3422 = vmatpush.bf16.msra.mxu0 %v1969
    %3423 = vmatpush.bf16.msra.mxu0 %v1965
    %3424 = vmatpush.bf16.msra.mxu0 %v1961
    %3425 = vmatpush.bf16.msra.mxu0 %v1957
    %3426 = vmatpush.bf16.msra.mxu0 %v1953
    %3427 = vmatpush.bf16.msra.mxu0 %v1949
    %3428 = vmatpush.bf16.msra.mxu0 %v1945
    %3429 = vmatmul.bf16.gmra.mxu0 %v3394
    %v3430 = vpop.f32.mrf.mxu0
    %v3431 = vadd.f32 0.0, %v3430
    %v3432 = vpop.f32.mrf.mxu0
    %3433 = vdwg.mxu0
    %3434 = vmatpush.bf16.msra.mxu0 %v1974
    %3435 = vmatpush.bf16.msra.mxu0 %v1970
    %3436 = vmatpush.bf16.msra.mxu0 %v1966
    %3437 = vmatpush.bf16.msra.mxu0 %v1962
    %3438 = vmatpush.bf16.msra.mxu0 %v1958
    %3439 = vmatpush.bf16.msra.mxu0 %v1954
    %3440 = vmatpush.bf16.msra.mxu0 %v1950
    %3441 = vmatpush.bf16.msra.mxu0 %v1946
    %3442 = vmatmul.bf16.gmra.mxu0 %v3394
    %v3443 = vpop.f32.mrf.mxu0
    %v3444 = vadd.f32 0.0, %v3443
    %v3445 = vpop.f32.mrf.mxu0
    %3446 = vdwg.mxu0
    %v3447 = vadd.f32 %v3405, %v3256
    %v3448 = vmax.f32 %v3447, 0.0
    %v3449 = vpack.c.bf16 %v3448, %v3448
    %3450 = vmatpush.bf16.msra.mxu0 %v2145
    %3451 = vmatpush.bf16.msra.mxu0 %v2143
    %3452 = vmatpush.bf16.msra.mxu0 %v2141
    %3453 = vmatpush.bf16.msra.mxu0 %v2139
    %3454 = vmatpush.bf16.msra.mxu0 %v2137
    %3455 = vmatpush.bf16.msra.mxu0 %v2135
    %3456 = vmatpush.bf16.msra.mxu0 %v2133
    %3457 = vmatpush.bf16.msra.mxu0 %v2131
    %3458 = vmatmul.bf16.gmra.mxu0 %v3449
    %v3459 = vpop.f32.mrf.mxu0
    %v3460 = vadd.f32 %v2079, %v3459
    %v3461 = vpop.f32.mrf.mxu0
    %3462 = vdwg.mxu0
    %3463 = vmatpush.bf16.msra.mxu0 %v2146
    %3464 = vmatpush.bf16.msra.mxu0 %v2144
    %3465 = vmatpush.bf16.msra.mxu0 %v2142
    %3466 = vmatpush.bf16.msra.mxu0 %v2140
    %3467 = vmatpush.bf16.msra.mxu0 %v2138
    %3468 = vmatpush.bf16.msra.mxu0 %v2136
    %3469 = vmatpush.bf16.msra.mxu0 %v2134
    %3470 = vmatpush.bf16.msra.mxu0 %v2132
    %3471 = vmatmul.bf16.gmra.mxu0 %v3449
    %v3472 = vpop.f32.mrf.mxu0
    %v3473 = vadd.f32 %v2080, %v3472
    %v3474 = vpop.f32.mrf.mxu0
    %3475 = vdwg.mxu0
    %v3476 = vmax.f32 %v3473, 0.0
    %v3477 = vand.u32 2147483647, %v3473
    %v3478 = vsub.f32 0.0, %v3477
    %v3479 = vmul.f32 %v3478, 1.442695
    %v3480 = vpow.pop %v3479
    %v3481 = vadd.f32 %v3480, 1.0
    %v3482 = vlog2.pop %v3481
    %v3483 = vmul.f32 %v3482, 0.6931472
    %v3484 = vadd.f32 %v3476, %v3483
    %v3485 = vadd.f32 %v3484, 1e-05
    %s3486 = scalar_lea.vmem [#allocation4], 96
    %v3487 = vld [vmem:[%s3486] sm:$0xff]
    %v3488 = vld [vmem:[%s3486 + $0x8] sm:$0xff]
    %v3489 = vld [vmem:[%s3486 + $0x10] sm:$0xff]
    %v3490 = vadd.f32 %v3487, %v3418
    %v3491 = vadd.f32 %v3488, %v3431
    %v3492 = vadd.f32 %v3489, %v3444
    %v3493 = vadd.f32 %v3490, %v3269
    %v3494 = vmul.f32 %v3493, 0.5
    %v3495 = vtanh.pop %v3494
    %v3496 = vadd.f32 %v3495, 1.0
    %v3497 = vmul.f32 %v3496, 0.5
    %v3498 = vadd.f32 %v3491, %v3282
    %v3499 = vmul.f32 %v3498, 0.5
    %v3500 = vtanh.pop %v3499
    %v3501 = vadd.f32 %v3500, 1.0
    %v3502 = vmul.f32 %v3501, 0.5
    %v3503 = vmul.f32 %v3497, %v3295
    %v3504 = vadd.f32 %v3492, %v3503
    %v3505 = vtanh.pop %v3504
    %v3506 = vsub.f32 1.0, %v3502
    %v3507 = vmul.f32 %v3506, %v3505
    %v3508 = vmul.f32 %v3502, %v3187
    %v3509 = vadd.f32 %v3507, %v3508
    %v3510 = vrcp.pop %v3335
    %v3511 = vrcp.pop %v3485
    %v3512 = vlog2.pop %v3335
    %v3513 = vmul.f32 %v3512, 0.6931472
    %v3514 = vlog2.pop %v3376
    %v3515 = vmul.f32 %v3514, 0.6931472
    %v3516 = vsub.f32 %v3513, %v3515
    %v3517 = vmul.f32 %v3376, %v3376
    %v3518 = vsub.f32 %v3351, %v3310
    %v3519 = vmul.f32 %v3518, %v3518
    %v3520 = vadd.f32 %v3517, %v3519
    %v3521 = vmul.f32 %v3510, 0.5
    %v3522 = vmul.f32 %v3521, %v3510
    %v3523 = vmul.f32 %v3520, %v3522
    %v3524 = vadd.f32 %v3516, %v3523
    %v3525 = vsub.f32 %v3524, 0.5
    %v3526 = vlog2.pop %v3485
    %v3527 = vmul.f32 %v3526, 0.6931472
    %v3528 = vmul.f32 %v3527, 2.0
    %v3529 = vadd.f32 %v3528, 1.837877
    %v3530 = vsub.f32 %v3216, %v3460
    %v3531 = vmul.f32 %v3530, %v3511
    %v3532 = vmul.f32 %v3531, %v3531
    %v3533 = vadd.f32 %v3529, %v3532
    %v3534 = vmul.f32 %v3533, 0.5
    %v3535 = vadd.f32 %v3213, %v3525
    %v3536 = vadd.f32 %v3214, %v3534
    %s3537 = scalar_lea.vmem [#allocation2], 40
    %v3538 = vld [vmem:[%s3537] sm:$0xff]
    %s3539 = scalar_lea.vmem [#allocation10], 40
    %v3540 = vld [vmem:[%s3539] sm:$0xff]
    %v3541 = vpack.c.bf16 %v3509, %v3509
    %3542 = vmatpush.bf16.msra.mxu0 %v1318
    %3543 = vmatpush.bf16.msra.mxu0 %v1312
    %3544 = vmatpush.bf16.msra.mxu0 %v1306
    %3545 = vmatpush.bf16.msra.mxu0 %v1300
    %3546 = vmatpush.bf16.msra.mxu0 %v1294
    %3547 = vmatpush.bf16.msra.mxu0 %v1288
    %3548 = vmatpush.bf16.msra.mxu0 %v1282
    %3549 = vmatpush.bf16.msra.mxu0 %v1276
    %3550 = vmatmul.bf16.gmra.mxu0 %v3541
    %v3551 = vpop.f32.mrf.mxu0
    %v3552 = vadd.f32 %v1120, %v3551
    %v3553 = vpop.f32.mrf.mxu0
    %3554 = vdwg.mxu0
    %3555 = vmatpush.bf16.msra.mxu0 %v1319
    %3556 = vmatpush.bf16.msra.mxu0 %v1313
    %3557 = vmatpush.bf16.msra.mxu0 %v1307
    %3558 = vmatpush.bf16.msra.mxu0 %v1301
    %3559 = vmatpush.bf16.msra.mxu0 %v1295
    %3560 = vmatpush.bf16.msra.mxu0 %v1289
    %3561 = vmatpush.bf16.msra.mxu0 %v1283
    %3562 = vmatpush.bf16.msra.mxu0 %v1277
    %3563 = vmatmul.bf16.gmra.mxu0 %v3541
    %v3564 = vpop.f32.mrf.mxu0
    %v3565 = vadd.f32 %v1121, %v3564
    %v3566 = vpop.f32.mrf.mxu0
    %3567 = vdwg.mxu0
    %3568 = vmatpush.bf16.msra.mxu0 %v1320
    %3569 = vmatpush.bf16.msra.mxu0 %v1314
    %3570 = vmatpush.bf16.msra.mxu0 %v1308
    %3571 = vmatpush.bf16.msra.mxu0 %v1302
    %3572 = vmatpush.bf16.msra.mxu0 %v1296
    %3573 = vmatpush.bf16.msra.mxu0 %v1290
    %3574 = vmatpush.bf16.msra.mxu0 %v1284
    %3575 = vmatpush.bf16.msra.mxu0 %v1278
    %3576 = vmatmul.bf16.gmra.mxu0 %v3541
    %v3577 = vpop.f32.mrf.mxu0
    %v3578 = vadd.f32 %v1122, %v3577
    %v3579 = vpop.f32.mrf.mxu0
    %3580 = vdwg.mxu0
    %3581 = vmatpush.bf16.msra.mxu0 %v1321
    %3582 = vmatpush.bf16.msra.mxu0 %v1315
    %3583 = vmatpush.bf16.msra.mxu0 %v1309
    %3584 = vmatpush.bf16.msra.mxu0 %v1303
    %3585 = vmatpush.bf16.msra.mxu0 %v1297
    %3586 = vmatpush.bf16.msra.mxu0 %v1291
    %3587 = vmatpush.bf16.msra.mxu0 %v1285
    %3588 = vmatpush.bf16.msra.mxu0 %v1279
    %3589 = vmatmul.bf16.gmra.mxu0 %v3541
    %v3590 = vpop.f32.mrf.mxu0
    %v3591 = vadd.f32 %v1123, %v3590
    %v3592 = vpop.f32.mrf.mxu0
    %3593 = vdwg.mxu0
    %3594 = vmatpush.bf16.msra.mxu0 %v1322
    %3595 = vmatpush.bf16.msra.mxu0 %v1316
    %3596 = vmatpush.bf16.msra.mxu0 %v1310
    %3597 = vmatpush.bf16.msra.mxu0 %v1304
    %3598 = vmatpush.bf16.msra.mxu0 %v1298
    %3599 = vmatpush.bf16.msra.mxu0 %v1292
    %3600 = vmatpush.bf16.msra.mxu0 %v1286
    %3601 = vmatpush.bf16.msra.mxu0 %v1280
    %3602 = vmatmul.bf16.gmra.mxu0 %v3541
    %v3603 = vpop.f32.mrf.mxu0
    %v3604 = vadd.f32 %v1124, %v3603
    %v3605 = vpop.f32.mrf.mxu0
    %3606 = vdwg.mxu0
    %3607 = vmatpush.bf16.msra.mxu0 %v1323
    %3608 = vmatpush.bf16.msra.mxu0 %v1317
    %3609 = vmatpush.bf16.msra.mxu0 %v1311
    %3610 = vmatpush.bf16.msra.mxu0 %v1305
    %3611 = vmatpush.bf16.msra.mxu0 %v1299
    %3612 = vmatpush.bf16.msra.mxu0 %v1293
    %3613 = vmatpush.bf16.msra.mxu0 %v1287
    %3614 = vmatpush.bf16.msra.mxu0 %v1281
    %3615 = vmatmul.bf16.gmra.mxu0 %v3541
    %v3616 = vpop.f32.mrf.mxu0
    %v3617 = vadd.f32 %v1125, %v3616
    %v3618 = vpop.f32.mrf.mxu0
    %3619 = vdwg.mxu0
    %v3620 = vmax.f32 %v3552, 0.0
    %v3621 = vpack.c.bf16 %v3620, %v3620
    %3622 = vmatpush.bf16.msra.mxu0 %v1535
    %3623 = vmatpush.bf16.msra.mxu0 %v1533
    %3624 = vmatpush.bf16.msra.mxu0 %v1531
    %3625 = vmatpush.bf16.msra.mxu0 %v1529
    %3626 = vmatpush.bf16.msra.mxu0 %v1527
    %3627 = vmatpush.bf16.msra.mxu0 %v1525
    %3628 = vmatpush.bf16.msra.mxu0 %v1523
    %3629 = vmatpush.bf16.msra.mxu0 %v1521
    %3630 = vmatmul.bf16.gmra.mxu0 %v3621
    %v3631 = vpop.f32.mrf.mxu0
    %v3632 = vadd.f32 %v1469, %v3631
    %v3633 = vpop.f32.mrf.mxu0
    %3634 = vdwg.mxu0
    %3635 = vmatpush.bf16.msra.mxu0 %v1536
    %3636 = vmatpush.bf16.msra.mxu0 %v1534
    %3637 = vmatpush.bf16.msra.mxu0 %v1532
    %3638 = vmatpush.bf16.msra.mxu0 %v1530
    %3639 = vmatpush.bf16.msra.mxu0 %v1528
    %3640 = vmatpush.bf16.msra.mxu0 %v1526
    %3641 = vmatpush.bf16.msra.mxu0 %v1524
    %3642 = vmatpush.bf16.msra.mxu0 %v1522
    %3643 = vmatmul.bf16.gmra.mxu0 %v3621
    %v3644 = vpop.f32.mrf.mxu0
    %v3645 = vadd.f32 %v1470, %v3644
    %v3646 = vpop.f32.mrf.mxu0
    %3647 = vdwg.mxu0
    %v3648 = vmax.f32 %v3645, 0.0
    %v3649 = vand.u32 2147483647, %v3645
    %v3650 = vsub.f32 0.0, %v3649
    %v3651 = vmul.f32 %v3650, 1.442695
    %v3652 = vpow.pop %v3651
    %v3653 = vadd.f32 %v3652, 1.0
    %v3654 = vlog2.pop %v3653
    %v3655 = vmul.f32 %v3654, 0.6931472
    %v3656 = vadd.f32 %v3648, %v3655
    %v3657 = vadd.f32 %v3656, 1e-05
    %s3658 = scalar_lea.vmem [#allocation3], 40
    %v3659 = vld [vmem:[%s3658] sm:$0xff]
    %v3660 = vadd.f32 %v3659, %v3565
    %v3661 = vmax.f32 %v3660, 0.0
    %v3662 = vpack.c.bf16 %v3661, %v3661
    %3663 = vmatpush.bf16.msra.mxu0 %v1676
    %3664 = vmatpush.bf16.msra.mxu0 %v1674
    %3665 = vmatpush.bf16.msra.mxu0 %v1672
    %3666 = vmatpush.bf16.msra.mxu0 %v1670
    %3667 = vmatpush.bf16.msra.mxu0 %v1668
    %3668 = vmatpush.bf16.msra.mxu0 %v1666
    %3669 = vmatpush.bf16.msra.mxu0 %v1664
    %3670 = vmatpush.bf16.msra.mxu0 %v1662
    %3671 = vmatmul.bf16.gmra.mxu0 %v3662
    %v3672 = vpop.f32.mrf.mxu0
    %v3673 = vadd.f32 %v1610, %v3672
    %v3674 = vpop.f32.mrf.mxu0
    %3675 = vdwg.mxu0
    %3676 = vmatpush.bf16.msra.mxu0 %v1677
    %3677 = vmatpush.bf16.msra.mxu0 %v1675
    %3678 = vmatpush.bf16.msra.mxu0 %v1673
    %3679 = vmatpush.bf16.msra.mxu0 %v1671
    %3680 = vmatpush.bf16.msra.mxu0 %v1669
    %3681 = vmatpush.bf16.msra.mxu0 %v1667
    %3682 = vmatpush.bf16.msra.mxu0 %v1665
    %3683 = vmatpush.bf16.msra.mxu0 %v1663
    %3684 = vmatmul.bf16.gmra.mxu0 %v3662
    %v3685 = vpop.f32.mrf.mxu0
    %v3686 = vadd.f32 %v1611, %v3685
    %v3687 = vpop.f32.mrf.mxu0
    %3688 = vdwg.mxu0
    %v3689 = vmax.f32 %v3686, 0.0
    %v3690 = vand.u32 2147483647, %v3686
    %v3691 = vsub.f32 0.0, %v3690
    %v3692 = vmul.f32 %v3691, 1.442695
    %v3693 = vpow.pop %v3692
    %v3694 = vadd.f32 %v3693, 1.0
    %v3695 = vlog2.pop %v3694
    %v3696 = vmul.f32 %v3695, 0.6931472
    %v3697 = vadd.f32 %v3689, %v3696
    %v3698 = vadd.f32 %v3697, 1e-05
    %v3699 = vmul.f32 %v3698, %v3540
    %v3700 = vadd.f32 %v3673, %v3699
    %v3701 = vpack.c.bf16 %v3700, %v3700
    %3702 = vmatpush.bf16.msra.mxu0 %v1791
    %3703 = vmatpush.bf16.msra.mxu0 %v1790
    %3704 = vmatpush.bf16.msra.mxu0 %v1789
    %3705 = vmatpush.bf16.msra.mxu0 %v1788
    %3706 = vmatpush.bf16.msra.mxu0 %v1787
    %3707 = vmatpush.bf16.msra.mxu0 %v1786
    %3708 = vmatpush.bf16.msra.mxu0 %v1785
    %3709 = vmatpush.bf16.msra.mxu0 %v1784
    %3710 = vmatmul.bf16.gmra.mxu0 %v3701
    %v3711 = vpop.f32.mrf.mxu0
    %v3712 = vadd.f32 %v1750, %v3711
    %v3713 = vpop.f32.mrf.mxu0
    %3714 = vdwg.mxu0
    %v3715 = vmax.f32 %v3712, 0.0
    %v3716 = vpack.c.bf16 %v3715, %v3715
    %3717 = vmatpush.bf16.msra.mxu0 %v1971
    %3718 = vmatpush.bf16.msra.mxu0 %v1967
    %3719 = vmatpush.bf16.msra.mxu0 %v1963
    %3720 = vmatpush.bf16.msra.mxu0 %v1959
    %3721 = vmatpush.bf16.msra.mxu0 %v1955
    %3722 = vmatpush.bf16.msra.mxu0 %v1951
    %3723 = vmatpush.bf16.msra.mxu0 %v1947
    %3724 = vmatpush.bf16.msra.mxu0 %v1943
    %3725 = vmatmul.bf16.gmra.mxu0 %v3716
    %v3726 = vpop.f32.mrf.mxu0
    %v3727 = vadd.f32 0.0, %v3726
    %v3728 = vpop.f32.mrf.mxu0
    %3729 = vdwg.mxu0
    %3730 = vmatpush.bf16.msra.mxu0 %v1972
    %3731 = vmatpush.bf16.msra.mxu0 %v1968
    %3732 = vmatpush.bf16.msra.mxu0 %v1964
    %3733 = vmatpush.bf16.msra.mxu0 %v1960
    %3734 = vmatpush.bf16.msra.mxu0 %v1956
    %3735 = vmatpush.bf16.msra.mxu0 %v1952
    %3736 = vmatpush.bf16.msra.mxu0 %v1948
    %3737 = vmatpush.bf16.msra.mxu0 %v1944
    %3738 = vmatmul.bf16.gmra.mxu0 %v3716
    %v3739 = vpop.f32.mrf.mxu0
    %v3740 = vadd.f32 0.0, %v3739
    %v3741 = vpop.f32.mrf.mxu0
    %3742 = vdwg.mxu0
    %3743 = vmatpush.bf16.msra.mxu0 %v1973
    %3744 = vmatpush.bf16.msra.mxu0 %v1969
    %3745 = vmatpush.bf16.msra.mxu0 %v1965
    %3746 = vmatpush.bf16.msra.mxu0 %v1961
    %3747 = vmatpush.bf16.msra.mxu0 %v1957
    %3748 = vmatpush.bf16.msra.mxu0 %v1953
    %3749 = vmatpush.bf16.msra.mxu0 %v1949
    %3750 = vmatpush.bf16.msra.mxu0 %v1945
    %3751 = vmatmul.bf16.gmra.mxu0 %v3716
    %v3752 = vpop.f32.mrf.mxu0
    %v3753 = vadd.f32 0.0, %v3752
    %v3754 = vpop.f32.mrf.mxu0
    %3755 = vdwg.mxu0
    %3756 = vmatpush.bf16.msra.mxu0 %v1974
    %3757 = vmatpush.bf16.msra.mxu0 %v1970
    %3758 = vmatpush.bf16.msra.mxu0 %v1966
    %3759 = vmatpush.bf16.msra.mxu0 %v1962
    %3760 = vmatpush.bf16.msra.mxu0 %v1958
    %3761 = vmatpush.bf16.msra.mxu0 %v1954
    %3762 = vmatpush.bf16.msra.mxu0 %v1950
    %3763 = vmatpush.bf16.msra.mxu0 %v1946
    %3764 = vmatmul.bf16.gmra.mxu0 %v3716
    %v3765 = vpop.f32.mrf.mxu0
    %v3766 = vadd.f32 0.0, %v3765
    %v3767 = vpop.f32.mrf.mxu0
    %3768 = vdwg.mxu0
    %v3769 = vadd.f32 %v3727, %v3578
    %v3770 = vmax.f32 %v3769, 0.0
    %v3771 = vpack.c.bf16 %v3770, %v3770
    %3772 = vmatpush.bf16.msra.mxu0 %v2145
    %3773 = vmatpush.bf16.msra.mxu0 %v2143
    %3774 = vmatpush.bf16.msra.mxu0 %v2141
    %3775 = vmatpush.bf16.msra.mxu0 %v2139
    %3776 = vmatpush.bf16.msra.mxu0 %v2137
    %3777 = vmatpush.bf16.msra.mxu0 %v2135
    %3778 = vmatpush.bf16.msra.mxu0 %v2133
    %3779 = vmatpush.bf16.msra.mxu0 %v2131
    %3780 = vmatmul.bf16.gmra.mxu0 %v3771
    %v3781 = vpop.f32.mrf.mxu0
    %v3782 = vadd.f32 %v2079, %v3781
    %v3783 = vpop.f32.mrf.mxu0
    %3784 = vdwg.mxu0
    %3785 = vmatpush.bf16.msra.mxu0 %v2146
    %3786 = vmatpush.bf16.msra.mxu0 %v2144
    %3787 = vmatpush.bf16.msra.mxu0 %v2142
    %3788 = vmatpush.bf16.msra.mxu0 %v2140
    %3789 = vmatpush.bf16.msra.mxu0 %v2138
    %3790 = vmatpush.bf16.msra.mxu0 %v2136
    %3791 = vmatpush.bf16.msra.mxu0 %v2134
    %3792 = vmatpush.bf16.msra.mxu0 %v2132
    %3793 = vmatmul.bf16.gmra.mxu0 %v3771
    %v3794 = vpop.f32.mrf.mxu0
    %v3795 = vadd.f32 %v2080, %v3794
    %v3796 = vpop.f32.mrf.mxu0
    %3797 = vdwg.mxu0
    %v3798 = vmax.f32 %v3795, 0.0
    %v3799 = vand.u32 2147483647, %v3795
    %v3800 = vsub.f32 0.0, %v3799
    %v3801 = vmul.f32 %v3800, 1.442695
    %v3802 = vpow.pop %v3801
    %v3803 = vadd.f32 %v3802, 1.0
    %v3804 = vlog2.pop %v3803
    %v3805 = vmul.f32 %v3804, 0.6931472
    %v3806 = vadd.f32 %v3798, %v3805
    %v3807 = vadd.f32 %v3806, 1e-05
    %s3808 = scalar_lea.vmem [#allocation4], 120
    %v3809 = vld [vmem:[%s3808] sm:$0xff]
    %v3810 = vld [vmem:[%s3808 + $0x8] sm:$0xff]
    %v3811 = vld [vmem:[%s3808 + $0x10] sm:$0xff]
    %v3812 = vadd.f32 %v3809, %v3740
    %v3813 = vadd.f32 %v3810, %v3753
    %v3814 = vadd.f32 %v3811, %v3766
    %v3815 = vadd.f32 %v3812, %v3591
    %v3816 = vmul.f32 %v3815, 0.5
    %v3817 = vtanh.pop %v3816
    %v3818 = vadd.f32 %v3817, 1.0
    %v3819 = vmul.f32 %v3818, 0.5
    %v3820 = vadd.f32 %v3813, %v3604
    %v3821 = vmul.f32 %v3820, 0.5
    %v3822 = vtanh.pop %v3821
    %v3823 = vadd.f32 %v3822, 1.0
    %v3824 = vmul.f32 %v3823, 0.5
    %v3825 = vmul.f32 %v3819, %v3617
    %v3826 = vadd.f32 %v3814, %v3825
    %v3827 = vtanh.pop %v3826
    %v3828 = vsub.f32 1.0, %v3824
    %v3829 = vmul.f32 %v3828, %v3827
    %v3830 = vmul.f32 %v3824, %v3509
    %v3831 = vadd.f32 %v3829, %v3830
    %v3832 = vrcp.pop %v3657
    %v3833 = vrcp.pop %v3807
    %v3834 = vlog2.pop %v3657
    %v3835 = vmul.f32 %v3834, 0.6931472
    %v3836 = vlog2.pop %v3698
    %v3837 = vmul.f32 %v3836, 0.6931472
    %v3838 = vsub.f32 %v3835, %v3837
    %v3839 = vmul.f32 %v3698, %v3698
    %v3840 = vsub.f32 %v3673, %v3632
    %v3841 = vmul.f32 %v3840, %v3840
    %v3842 = vadd.f32 %v3839, %v3841
    %v3843 = vmul.f32 %v3832, 0.5
    %v3844 = vmul.f32 %v3843, %v3832
    %v3845 = vmul.f32 %v3842, %v3844
    %v3846 = vadd.f32 %v3838, %v3845
    %v3847 = vsub.f32 %v3846, 0.5
    %v3848 = vlog2.pop %v3807
    %v3849 = vmul.f32 %v3848, 0.6931472
    %v3850 = vmul.f32 %v3849, 2.0
    %v3851 = vadd.f32 %v3850, 1.837877
    %v3852 = vsub.f32 %v3538, %v3782
    %v3853 = vmul.f32 %v3852, %v3833
    %v3854 = vmul.f32 %v3853, %v3853
    %v3855 = vadd.f32 %v3851, %v3854
    %v3856 = vmul.f32 %v3855, 0.5
    %v3857 = vadd.f32 %v3535, %v3847
    %v3858 = vadd.f32 %v3536, %v3856
    %s3859 = scalar_lea.vmem [#allocation2], 48
    %v3860 = vld [vmem:[%s3859] sm:$0xff]
    %s3861 = scalar_lea.vmem [#allocation10], 48
    %v3862 = vld [vmem:[%s3861] sm:$0xff]
    %v3863 = vpack.c.bf16 %v3831, %v3831
    %3864 = vmatpush.bf16.msra.mxu0 %v1318
    %3865 = vmatpush.bf16.msra.mxu0 %v1312
    %3866 = vmatpush.bf16.msra.mxu0 %v1306
    %3867 = vmatpush.bf16.msra.mxu0 %v1300
    %3868 = vmatpush.bf16.msra.mxu0 %v1294
    %3869 = vmatpush.bf16.msra.mxu0 %v1288
    %3870 = vmatpush.bf16.msra.mxu0 %v1282
    %3871 = vmatpush.bf16.msra.mxu0 %v1276
    %3872 = vmatmul.bf16.gmra.mxu0 %v3863
    %v3873 = vpop.f32.mrf.mxu0
    %v3874 = vadd.f32 %v1120, %v3873
    %v3875 = vpop.f32.mrf.mxu0
    %3876 = vdwg.mxu0
    %3877 = vmatpush.bf16.msra.mxu0 %v1319
    %3878 = vmatpush.bf16.msra.mxu0 %v1313
    %3879 = vmatpush.bf16.msra.mxu0 %v1307
    %3880 = vmatpush.bf16.msra.mxu0 %v1301
    %3881 = vmatpush.bf16.msra.mxu0 %v1295
    %3882 = vmatpush.bf16.msra.mxu0 %v1289
    %3883 = vmatpush.bf16.msra.mxu0 %v1283
    %3884 = vmatpush.bf16.msra.mxu0 %v1277
    %3885 = vmatmul.bf16.gmra.mxu0 %v3863
    %v3886 = vpop.f32.mrf.mxu0
    %v3887 = vadd.f32 %v1121, %v3886
    %v3888 = vpop.f32.mrf.mxu0
    %3889 = vdwg.mxu0
    %3890 = vmatpush.bf16.msra.mxu0 %v1320
    %3891 = vmatpush.bf16.msra.mxu0 %v1314
    %3892 = vmatpush.bf16.msra.mxu0 %v1308
    %3893 = vmatpush.bf16.msra.mxu0 %v1302
    %3894 = vmatpush.bf16.msra.mxu0 %v1296
    %3895 = vmatpush.bf16.msra.mxu0 %v1290
    %3896 = vmatpush.bf16.msra.mxu0 %v1284
    %3897 = vmatpush.bf16.msra.mxu0 %v1278
    %3898 = vmatmul.bf16.gmra.mxu0 %v3863
    %v3899 = vpop.f32.mrf.mxu0
    %v3900 = vadd.f32 %v1122, %v3899
    %v3901 = vpop.f32.mrf.mxu0
    %3902 = vdwg.mxu0
    %3903 = vmatpush.bf16.msra.mxu0 %v1321
    %3904 = vmatpush.bf16.msra.mxu0 %v1315
    %3905 = vmatpush.bf16.msra.mxu0 %v1309
    %3906 = vmatpush.bf16.msra.mxu0 %v1303
    %3907 = vmatpush.bf16.msra.mxu0 %v1297
    %3908 = vmatpush.bf16.msra.mxu0 %v1291
    %3909 = vmatpush.bf16.msra.mxu0 %v1285
    %3910 = vmatpush.bf16.msra.mxu0 %v1279
    %3911 = vmatmul.bf16.gmra.mxu0 %v3863
    %v3912 = vpop.f32.mrf.mxu0
    %v3913 = vadd.f32 %v1123, %v3912
    %v3914 = vpop.f32.mrf.mxu0
    %3915 = vdwg.mxu0
    %3916 = vmatpush.bf16.msra.mxu0 %v1322
    %3917 = vmatpush.bf16.msra.mxu0 %v1316
    %3918 = vmatpush.bf16.msra.mxu0 %v1310
    %3919 = vmatpush.bf16.msra.mxu0 %v1304
    %3920 = vmatpush.bf16.msra.mxu0 %v1298
    %3921 = vmatpush.bf16.msra.mxu0 %v1292
    %3922 = vmatpush.bf16.msra.mxu0 %v1286
    %3923 = vmatpush.bf16.msra.mxu0 %v1280
    %3924 = vmatmul.bf16.gmra.mxu0 %v3863
    %v3925 = vpop.f32.mrf.mxu0
    %v3926 = vadd.f32 %v1124, %v3925
    %v3927 = vpop.f32.mrf.mxu0
    %3928 = vdwg.mxu0
    %3929 = vmatpush.bf16.msra.mxu0 %v1323
    %3930 = vmatpush.bf16.msra.mxu0 %v1317
    %3931 = vmatpush.bf16.msra.mxu0 %v1311
    %3932 = vmatpush.bf16.msra.mxu0 %v1305
    %3933 = vmatpush.bf16.msra.mxu0 %v1299
    %3934 = vmatpush.bf16.msra.mxu0 %v1293
    %3935 = vmatpush.bf16.msra.mxu0 %v1287
    %3936 = vmatpush.bf16.msra.mxu0 %v1281
    %3937 = vmatmul.bf16.gmra.mxu0 %v3863
    %v3938 = vpop.f32.mrf.mxu0
    %v3939 = vadd.f32 %v1125, %v3938
    %v3940 = vpop.f32.mrf.mxu0
    %3941 = vdwg.mxu0
    %v3942 = vmax.f32 %v3874, 0.0
    %v3943 = vpack.c.bf16 %v3942, %v3942
    %3944 = vmatpush.bf16.msra.mxu0 %v1535
    %3945 = vmatpush.bf16.msra.mxu0 %v1533
    %3946 = vmatpush.bf16.msra.mxu0 %v1531
    %3947 = vmatpush.bf16.msra.mxu0 %v1529
    %3948 = vmatpush.bf16.msra.mxu0 %v1527
    %3949 = vmatpush.bf16.msra.mxu0 %v1525
    %3950 = vmatpush.bf16.msra.mxu0 %v1523
    %3951 = vmatpush.bf16.msra.mxu0 %v1521
    %3952 = vmatmul.bf16.gmra.mxu0 %v3943
    %v3953 = vpop.f32.mrf.mxu0
    %v3954 = vadd.f32 %v1469, %v3953
    %v3955 = vpop.f32.mrf.mxu0
    %3956 = vdwg.mxu0
    %3957 = vmatpush.bf16.msra.mxu0 %v1536
    %3958 = vmatpush.bf16.msra.mxu0 %v1534
    %3959 = vmatpush.bf16.msra.mxu0 %v1532
    %3960 = vmatpush.bf16.msra.mxu0 %v1530
    %3961 = vmatpush.bf16.msra.mxu0 %v1528
    %3962 = vmatpush.bf16.msra.mxu0 %v1526
    %3963 = vmatpush.bf16.msra.mxu0 %v1524
    %3964 = vmatpush.bf16.msra.mxu0 %v1522
    %3965 = vmatmul.bf16.gmra.mxu0 %v3943
    %v3966 = vpop.f32.mrf.mxu0
    %v3967 = vadd.f32 %v1470, %v3966
    %v3968 = vpop.f32.mrf.mxu0
    %3969 = vdwg.mxu0
    %v3970 = vmax.f32 %v3967, 0.0
    %v3971 = vand.u32 2147483647, %v3967
    %v3972 = vsub.f32 0.0, %v3971
    %v3973 = vmul.f32 %v3972, 1.442695
    %v3974 = vpow.pop %v3973
    %v3975 = vadd.f32 %v3974, 1.0
    %v3976 = vlog2.pop %v3975
    %v3977 = vmul.f32 %v3976, 0.6931472
    %v3978 = vadd.f32 %v3970, %v3977
    %v3979 = vadd.f32 %v3978, 1e-05
    %s3980 = scalar_lea.vmem [#allocation3], 48
    %v3981 = vld [vmem:[%s3980] sm:$0xff]
    %v3982 = vadd.f32 %v3981, %v3887
    %v3983 = vmax.f32 %v3982, 0.0
    %v3984 = vpack.c.bf16 %v3983, %v3983
    %3985 = vmatpush.bf16.msra.mxu0 %v1676
    %3986 = vmatpush.bf16.msra.mxu0 %v1674
    %3987 = vmatpush.bf16.msra.mxu0 %v1672
    %3988 = vmatpush.bf16.msra.mxu0 %v1670
    %3989 = vmatpush.bf16.msra.mxu0 %v1668
    %3990 = vmatpush.bf16.msra.mxu0 %v1666
    %3991 = vmatpush.bf16.msra.mxu0 %v1664
    %3992 = vmatpush.bf16.msra.mxu0 %v1662
    %3993 = vmatmul.bf16.gmra.mxu0 %v3984
    %v3994 = vpop.f32.mrf.mxu0
    %v3995 = vadd.f32 %v1610, %v3994
    %v3996 = vpop.f32.mrf.mxu0
    %3997 = vdwg.mxu0
    %3998 = vmatpush.bf16.msra.mxu0 %v1677
    %3999 = vmatpush.bf16.msra.mxu0 %v1675
    %4000 = vmatpush.bf16.msra.mxu0 %v1673
    %4001 = vmatpush.bf16.msra.mxu0 %v1671
    %4002 = vmatpush.bf16.msra.mxu0 %v1669
    %4003 = vmatpush.bf16.msra.mxu0 %v1667
    %4004 = vmatpush.bf16.msra.mxu0 %v1665
    %4005 = vmatpush.bf16.msra.mxu0 %v1663
    %4006 = vmatmul.bf16.gmra.mxu0 %v3984
    %v4007 = vpop.f32.mrf.mxu0
    %v4008 = vadd.f32 %v1611, %v4007
    %v4009 = vpop.f32.mrf.mxu0
    %4010 = vdwg.mxu0
    %v4011 = vmax.f32 %v4008, 0.0
    %v4012 = vand.u32 2147483647, %v4008
    %v4013 = vsub.f32 0.0, %v4012
    %v4014 = vmul.f32 %v4013, 1.442695
    %v4015 = vpow.pop %v4014
    %v4016 = vadd.f32 %v4015, 1.0
    %v4017 = vlog2.pop %v4016
    %v4018 = vmul.f32 %v4017, 0.6931472
    %v4019 = vadd.f32 %v4011, %v4018
    %v4020 = vadd.f32 %v4019, 1e-05
    %v4021 = vmul.f32 %v4020, %v3862
    %v4022 = vadd.f32 %v3995, %v4021
    %v4023 = vpack.c.bf16 %v4022, %v4022
    %4024 = vmatpush.bf16.msra.mxu0 %v1791
    %4025 = vmatpush.bf16.msra.mxu0 %v1790
    %4026 = vmatpush.bf16.msra.mxu0 %v1789
    %4027 = vmatpush.bf16.msra.mxu0 %v1788
    %4028 = vmatpush.bf16.msra.mxu0 %v1787
    %4029 = vmatpush.bf16.msra.mxu0 %v1786
    %4030 = vmatpush.bf16.msra.mxu0 %v1785
    %4031 = vmatpush.bf16.msra.mxu0 %v1784
    %4032 = vmatmul.bf16.gmra.mxu0 %v4023
    %v4033 = vpop.f32.mrf.mxu0
    %v4034 = vadd.f32 %v1750, %v4033
    %v4035 = vpop.f32.mrf.mxu0
    %4036 = vdwg.mxu0
    %v4037 = vmax.f32 %v4034, 0.0
    %v4038 = vpack.c.bf16 %v4037, %v4037
    %4039 = vmatpush.bf16.msra.mxu0 %v1971
    %4040 = vmatpush.bf16.msra.mxu0 %v1967
    %4041 = vmatpush.bf16.msra.mxu0 %v1963
    %4042 = vmatpush.bf16.msra.mxu0 %v1959
    %4043 = vmatpush.bf16.msra.mxu0 %v1955
    %4044 = vmatpush.bf16.msra.mxu0 %v1951
    %4045 = vmatpush.bf16.msra.mxu0 %v1947
    %4046 = vmatpush.bf16.msra.mxu0 %v1943
    %4047 = vmatmul.bf16.gmra.mxu0 %v4038
    %v4048 = vpop.f32.mrf.mxu0
    %v4049 = vadd.f32 0.0, %v4048
    %v4050 = vpop.f32.mrf.mxu0
    %4051 = vdwg.mxu0
    %4052 = vmatpush.bf16.msra.mxu0 %v1972
    %4053 = vmatpush.bf16.msra.mxu0 %v1968
    %4054 = vmatpush.bf16.msra.mxu0 %v1964
    %4055 = vmatpush.bf16.msra.mxu0 %v1960
    %4056 = vmatpush.bf16.msra.mxu0 %v1956
    %4057 = vmatpush.bf16.msra.mxu0 %v1952
    %4058 = vmatpush.bf16.msra.mxu0 %v1948
    %4059 = vmatpush.bf16.msra.mxu0 %v1944
    %4060 = vmatmul.bf16.gmra.mxu0 %v4038
    %v4061 = vpop.f32.mrf.mxu0
    %v4062 = vadd.f32 0.0, %v4061
    %v4063 = vpop.f32.mrf.mxu0
    %4064 = vdwg.mxu0
    %4065 = vmatpush.bf16.msra.mxu0 %v1973
    %4066 = vmatpush.bf16.msra.mxu0 %v1969
    %4067 = vmatpush.bf16.msra.mxu0 %v1965
    %4068 = vmatpush.bf16.msra.mxu0 %v1961
    %4069 = vmatpush.bf16.msra.mxu0 %v1957
    %4070 = vmatpush.bf16.msra.mxu0 %v1953
    %4071 = vmatpush.bf16.msra.mxu0 %v1949
    %4072 = vmatpush.bf16.msra.mxu0 %v1945
    %4073 = vmatmul.bf16.gmra.mxu0 %v4038
    %v4074 = vpop.f32.mrf.mxu0
    %v4075 = vadd.f32 0.0, %v4074
    %v4076 = vpop.f32.mrf.mxu0
    %4077 = vdwg.mxu0
    %4078 = vmatpush.bf16.msra.mxu0 %v1974
    %4079 = vmatpush.bf16.msra.mxu0 %v1970
    %4080 = vmatpush.bf16.msra.mxu0 %v1966
    %4081 = vmatpush.bf16.msra.mxu0 %v1962
    %4082 = vmatpush.bf16.msra.mxu0 %v1958
    %4083 = vmatpush.bf16.msra.mxu0 %v1954
    %4084 = vmatpush.bf16.msra.mxu0 %v1950
    %4085 = vmatpush.bf16.msra.mxu0 %v1946
    %4086 = vmatmul.bf16.gmra.mxu0 %v4038
    %v4087 = vpop.f32.mrf.mxu0
    %v4088 = vadd.f32 0.0, %v4087
    %v4089 = vpop.f32.mrf.mxu0
    %4090 = vdwg.mxu0
    %v4091 = vadd.f32 %v4049, %v3900
    %v4092 = vmax.f32 %v4091, 0.0
    %v4093 = vpack.c.bf16 %v4092, %v4092
    %4094 = vmatpush.bf16.msra.mxu0 %v2145
    %4095 = vmatpush.bf16.msra.mxu0 %v2143
    %4096 = vmatpush.bf16.msra.mxu0 %v2141
    %4097 = vmatpush.bf16.msra.mxu0 %v2139
    %4098 = vmatpush.bf16.msra.mxu0 %v2137
    %4099 = vmatpush.bf16.msra.mxu0 %v2135
    %4100 = vmatpush.bf16.msra.mxu0 %v2133
    %4101 = vmatpush.bf16.msra.mxu0 %v2131
    %4102 = vmatmul.bf16.gmra.mxu0 %v4093
    %v4103 = vpop.f32.mrf.mxu0
    %v4104 = vadd.f32 %v2079, %v4103
    %v4105 = vpop.f32.mrf.mxu0
    %4106 = vdwg.mxu0
    %4107 = vmatpush.bf16.msra.mxu0 %v2146
    %4108 = vmatpush.bf16.msra.mxu0 %v2144
    %4109 = vmatpush.bf16.msra.mxu0 %v2142
    %4110 = vmatpush.bf16.msra.mxu0 %v2140
    %4111 = vmatpush.bf16.msra.mxu0 %v2138
    %4112 = vmatpush.bf16.msra.mxu0 %v2136
    %4113 = vmatpush.bf16.msra.mxu0 %v2134
    %4114 = vmatpush.bf16.msra.mxu0 %v2132
    %4115 = vmatmul.bf16.gmra.mxu0 %v4093
    %v4116 = vpop.f32.mrf.mxu0
    %v4117 = vadd.f32 %v2080, %v4116
    %v4118 = vpop.f32.mrf.mxu0
    %4119 = vdwg.mxu0
    %v4120 = vmax.f32 %v4117, 0.0
    %v4121 = vand.u32 2147483647, %v4117
    %v4122 = vsub.f32 0.0, %v4121
    %v4123 = vmul.f32 %v4122, 1.442695
    %v4124 = vpow.pop %v4123
    %v4125 = vadd.f32 %v4124, 1.0
    %v4126 = vlog2.pop %v4125
    %v4127 = vmul.f32 %v4126, 0.6931472
    %v4128 = vadd.f32 %v4120, %v4127
    %v4129 = vadd.f32 %v4128, 1e-05
    %s4130 = scalar_lea.vmem [#allocation4], 144
    %v4131 = vld [vmem:[%s4130] sm:$0xff]
    %v4132 = vld [vmem:[%s4130 + $0x8] sm:$0xff]
    %v4133 = vld [vmem:[%s4130 + $0x10] sm:$0xff]
    %v4134 = vadd.f32 %v4131, %v4062
    %v4135 = vadd.f32 %v4132, %v4075
    %v4136 = vadd.f32 %v4133, %v4088
    %v4137 = vadd.f32 %v4134, %v3913
    %v4138 = vmul.f32 %v4137, 0.5
    %v4139 = vtanh.pop %v4138
    %v4140 = vadd.f32 %v4139, 1.0
    %v4141 = vmul.f32 %v4140, 0.5
    %v4142 = vadd.f32 %v4135, %v3926
    %v4143 = vmul.f32 %v4142, 0.5
    %v4144 = vtanh.pop %v4143
    %v4145 = vadd.f32 %v4144, 1.0
    %v4146 = vmul.f32 %v4145, 0.5
    %v4147 = vmul.f32 %v4141, %v3939
    %v4148 = vadd.f32 %v4136, %v4147
    %v4149 = vtanh.pop %v4148
    %v4150 = vsub.f32 1.0, %v4146
    %v4151 = vmul.f32 %v4150, %v4149
    %v4152 = vmul.f32 %v4146, %v3831
    %v4153 = vadd.f32 %v4151, %v4152
    %v4154 = vrcp.pop %v3979
    %v4155 = vrcp.pop %v4129
    %v4156 = vlog2.pop %v3979
    %v4157 = vmul.f32 %v4156, 0.6931472
    %v4158 = vlog2.pop %v4020
    %v4159 = vmul.f32 %v4158, 0.6931472
    %v4160 = vsub.f32 %v4157, %v4159
    %v4161 = vmul.f32 %v4020, %v4020
    %v4162 = vsub.f32 %v3995, %v3954
    %v4163 = vmul.f32 %v4162, %v4162
    %v4164 = vadd.f32 %v4161, %v4163
    %v4165 = vmul.f32 %v4154, 0.5
    %v4166 = vmul.f32 %v4165, %v4154
    %v4167 = vmul.f32 %v4164, %v4166
    %v4168 = vadd.f32 %v4160, %v4167
    %v4169 = vsub.f32 %v4168, 0.5
    %v4170 = vlog2.pop %v4129
    %v4171 = vmul.f32 %v4170, 0.6931472
    %v4172 = vmul.f32 %v4171, 2.0
    %v4173 = vadd.f32 %v4172, 1.837877
    %v4174 = vsub.f32 %v3860, %v4104
    %v4175 = vmul.f32 %v4174, %v4155
    %v4176 = vmul.f32 %v4175, %v4175
    %v4177 = vadd.f32 %v4173, %v4176
    %v4178 = vmul.f32 %v4177, 0.5
    %v4179 = vadd.f32 %v3857, %v4169
    %v4180 = vadd.f32 %v3858, %v4178
    %s4181 = scalar_lea.vmem [#allocation2], 56
    %v4182 = vld [vmem:[%s4181] sm:$0xff]
    %s4183 = scalar_lea.vmem [#allocation10], 56
    %v4184 = vld [vmem:[%s4183] sm:$0xff]
    %v4185 = vpack.c.bf16 %v4153, %v4153
    %4186 = vmatpush.bf16.msra.mxu0 %v1318
    %4187 = vmatpush.bf16.msra.mxu0 %v1312
    %4188 = vmatpush.bf16.msra.mxu0 %v1306
    %4189 = vmatpush.bf16.msra.mxu0 %v1300
    %4190 = vmatpush.bf16.msra.mxu0 %v1294
    %4191 = vmatpush.bf16.msra.mxu0 %v1288
    %4192 = vmatpush.bf16.msra.mxu0 %v1282
    %4193 = vmatpush.bf16.msra.mxu0 %v1276
    %4194 = vmatmul.bf16.gmra.mxu0 %v4185
    %v4195 = vpop.f32.mrf.mxu0
    %v4196 = vadd.f32 %v1120, %v4195
    %v4197 = vpop.f32.mrf.mxu0
    %4198 = vdwg.mxu0
    %4199 = vmatpush.bf16.msra.mxu0 %v1319
    %4200 = vmatpush.bf16.msra.mxu0 %v1313
    %4201 = vmatpush.bf16.msra.mxu0 %v1307
    %4202 = vmatpush.bf16.msra.mxu0 %v1301
    %4203 = vmatpush.bf16.msra.mxu0 %v1295
    %4204 = vmatpush.bf16.msra.mxu0 %v1289
    %4205 = vmatpush.bf16.msra.mxu0 %v1283
    %4206 = vmatpush.bf16.msra.mxu0 %v1277
    %4207 = vmatmul.bf16.gmra.mxu0 %v4185
    %v4208 = vpop.f32.mrf.mxu0
    %v4209 = vadd.f32 %v1121, %v4208
    %v4210 = vpop.f32.mrf.mxu0
    %4211 = vdwg.mxu0
    %4212 = vmatpush.bf16.msra.mxu0 %v1320
    %4213 = vmatpush.bf16.msra.mxu0 %v1314
    %4214 = vmatpush.bf16.msra.mxu0 %v1308
    %4215 = vmatpush.bf16.msra.mxu0 %v1302
    %4216 = vmatpush.bf16.msra.mxu0 %v1296
    %4217 = vmatpush.bf16.msra.mxu0 %v1290
    %4218 = vmatpush.bf16.msra.mxu0 %v1284
    %4219 = vmatpush.bf16.msra.mxu0 %v1278
    %4220 = vmatmul.bf16.gmra.mxu0 %v4185
    %v4221 = vpop.f32.mrf.mxu0
    %v4222 = vadd.f32 %v1122, %v4221
    %v4223 = vpop.f32.mrf.mxu0
    %4224 = vdwg.mxu0
    %v4225 = vmax.f32 %v4196, 0.0
    %v4226 = vpack.c.bf16 %v4225, %v4225
    %4227 = vmatpush.bf16.msra.mxu0 %v1535
    %4228 = vmatpush.bf16.msra.mxu0 %v1533
    %4229 = vmatpush.bf16.msra.mxu0 %v1531
    %4230 = vmatpush.bf16.msra.mxu0 %v1529
    %4231 = vmatpush.bf16.msra.mxu0 %v1527
    %4232 = vmatpush.bf16.msra.mxu0 %v1525
    %4233 = vmatpush.bf16.msra.mxu0 %v1523
    %4234 = vmatpush.bf16.msra.mxu0 %v1521
    %4235 = vmatmul.bf16.gmra.mxu0 %v4226
    %v4236 = vpop.f32.mrf.mxu0
    %v4237 = vadd.f32 %v1469, %v4236
    %v4238 = vpop.f32.mrf.mxu0
    %4239 = vdwg.mxu0
    %4240 = vmatpush.bf16.msra.mxu0 %v1536
    %4241 = vmatpush.bf16.msra.mxu0 %v1534
    %4242 = vmatpush.bf16.msra.mxu0 %v1532
    %4243 = vmatpush.bf16.msra.mxu0 %v1530
    %4244 = vmatpush.bf16.msra.mxu0 %v1528
    %4245 = vmatpush.bf16.msra.mxu0 %v1526
    %4246 = vmatpush.bf16.msra.mxu0 %v1524
    %4247 = vmatpush.bf16.msra.mxu0 %v1522
    %4248 = vmatmul.bf16.gmra.mxu0 %v4226
    %v4249 = vpop.f32.mrf.mxu0
    %v4250 = vadd.f32 %v1470, %v4249
    %v4251 = vpop.f32.mrf.mxu0
    %4252 = vdwg.mxu0
    %v4253 = vmax.f32 %v4250, 0.0
    %v4254 = vand.u32 2147483647, %v4250
    %v4255 = vsub.f32 0.0, %v4254
    %v4256 = vmul.f32 %v4255, 1.442695
    %v4257 = vpow.pop %v4256
    %v4258 = vadd.f32 %v4257, 1.0
    %v4259 = vlog2.pop %v4258
    %v4260 = vmul.f32 %v4259, 0.6931472
    %v4261 = vadd.f32 %v4253, %v4260
    %v4262 = vadd.f32 %v4261, 1e-05
    %s4263 = scalar_lea.vmem [#allocation3], 56
    %v4264 = vld [vmem:[%s4263] sm:$0xff]
    %v4265 = vadd.f32 %v4264, %v4209
    %v4266 = vmax.f32 %v4265, 0.0
    %v4267 = vpack.c.bf16 %v4266, %v4266
    %4268 = vmatpush.bf16.msra.mxu0 %v1676
    %4269 = vmatpush.bf16.msra.mxu0 %v1674
    %4270 = vmatpush.bf16.msra.mxu0 %v1672
    %4271 = vmatpush.bf16.msra.mxu0 %v1670
    %4272 = vmatpush.bf16.msra.mxu0 %v1668
    %4273 = vmatpush.bf16.msra.mxu0 %v1666
    %4274 = vmatpush.bf16.msra.mxu0 %v1664
    %4275 = vmatpush.bf16.msra.mxu0 %v1662
    %4276 = vmatmul.bf16.gmra.mxu0 %v4267
    %v4277 = vpop.f32.mrf.mxu0
    %v4278 = vadd.f32 %v1610, %v4277
    %v4279 = vpop.f32.mrf.mxu0
    %4280 = vdwg.mxu0
    %4281 = vmatpush.bf16.msra.mxu0 %v1677
    %4282 = vmatpush.bf16.msra.mxu0 %v1675
    %4283 = vmatpush.bf16.msra.mxu0 %v1673
    %4284 = vmatpush.bf16.msra.mxu0 %v1671
    %4285 = vmatpush.bf16.msra.mxu0 %v1669
    %4286 = vmatpush.bf16.msra.mxu0 %v1667
    %4287 = vmatpush.bf16.msra.mxu0 %v1665
    %4288 = vmatpush.bf16.msra.mxu0 %v1663
    %4289 = vmatmul.bf16.gmra.mxu0 %v4267
    %v4290 = vpop.f32.mrf.mxu0
    %v4291 = vadd.f32 %v1611, %v4290
    %v4292 = vpop.f32.mrf.mxu0
    %4293 = vdwg.mxu0
    %v4294 = vmax.f32 %v4291, 0.0
    %v4295 = vand.u32 2147483647, %v4291
    %v4296 = vsub.f32 0.0, %v4295
    %v4297 = vmul.f32 %v4296, 1.442695
    %v4298 = vpow.pop %v4297
    %v4299 = vadd.f32 %v4298, 1.0
    %v4300 = vlog2.pop %v4299
    %v4301 = vmul.f32 %v4300, 0.6931472
    %v4302 = vadd.f32 %v4294, %v4301
    %v4303 = vadd.f32 %v4302, 1e-05
    %v4304 = vmul.f32 %v4303, %v4184
    %v4305 = vadd.f32 %v4278, %v4304
    %v4306 = vpack.c.bf16 %v4305, %v4305
    %4307 = vmatpush.bf16.msra.mxu0 %v1791
    %4308 = vmatpush.bf16.msra.mxu0 %v1790
    %4309 = vmatpush.bf16.msra.mxu0 %v1789
    %4310 = vmatpush.bf16.msra.mxu0 %v1788
    %4311 = vmatpush.bf16.msra.mxu0 %v1787
    %4312 = vmatpush.bf16.msra.mxu0 %v1786
    %4313 = vmatpush.bf16.msra.mxu0 %v1785
    %4314 = vmatpush.bf16.msra.mxu0 %v1784
    %4315 = vmatmul.bf16.gmra.mxu0 %v4306
    %v4316 = vpop.f32.mrf.mxu0
    %v4317 = vadd.f32 %v1750, %v4316
    %v4318 = vpop.f32.mrf.mxu0
    %4319 = vdwg.mxu0
    %v4320 = vmax.f32 %v4317, 0.0
    %v4321 = vpack.c.bf16 %v4320, %v4320
    %4322 = vmatpush.bf16.msra.mxu0 %v1971
    %4323 = vmatpush.bf16.msra.mxu0 %v1967
    %4324 = vmatpush.bf16.msra.mxu0 %v1963
    %4325 = vmatpush.bf16.msra.mxu0 %v1959
    %4326 = vmatpush.bf16.msra.mxu0 %v1955
    %4327 = vmatpush.bf16.msra.mxu0 %v1951
    %4328 = vmatpush.bf16.msra.mxu0 %v1947
    %4329 = vmatpush.bf16.msra.mxu0 %v1943
    %4330 = vmatmul.bf16.gmra.mxu0 %v4321
    %v4331 = vpop.f32.mrf.mxu0
    %v4332 = vadd.f32 0.0, %v4331
    %v4333 = vpop.f32.mrf.mxu0
    %4334 = vdwg.mxu0
    %v4335 = vadd.f32 %v4332, %v4222
    %v4336 = vmax.f32 %v4335, 0.0
    %v4337 = vpack.c.bf16 %v4336, %v4336
    %4338 = vmatpush.bf16.msra.mxu0 %v2145
    %4339 = vmatpush.bf16.msra.mxu0 %v2143
    %4340 = vmatpush.bf16.msra.mxu0 %v2141
    %4341 = vmatpush.bf16.msra.mxu0 %v2139
    %4342 = vmatpush.bf16.msra.mxu0 %v2137
    %4343 = vmatpush.bf16.msra.mxu0 %v2135
    %4344 = vmatpush.bf16.msra.mxu0 %v2133
    %4345 = vmatpush.bf16.msra.mxu0 %v2131
    %4346 = vmatmul.bf16.gmra.mxu0 %v4337
    %v4347 = vpop.f32.mrf.mxu0
    %v4348 = vadd.f32 %v2079, %v4347
    %v4349 = vpop.f32.mrf.mxu0
    %4350 = vdwg.mxu0
    %4351 = vmatpush.bf16.msra.mxu0 %v2146
    %4352 = vmatpush.bf16.msra.mxu0 %v2144
    %4353 = vmatpush.bf16.msra.mxu0 %v2142
    %4354 = vmatpush.bf16.msra.mxu0 %v2140
    %4355 = vmatpush.bf16.msra.mxu0 %v2138
    %4356 = vmatpush.bf16.msra.mxu0 %v2136
    %4357 = vmatpush.bf16.msra.mxu0 %v2134
    %4358 = vmatpush.bf16.msra.mxu0 %v2132
    %4359 = vmatmul.bf16.gmra.mxu0 %v4337
    %v4360 = vpop.f32.mrf.mxu0
    %v4361 = vadd.f32 %v2080, %v4360
    %v4362 = vpop.f32.mrf.mxu0
    %4363 = vdwg.mxu0
    %v4364 = vmax.f32 %v4361, 0.0
    %v4365 = vand.u32 2147483647, %v4361
    %v4366 = vsub.f32 0.0, %v4365
    %v4367 = vmul.f32 %v4366, 1.442695
    %v4368 = vpow.pop %v4367
    %v4369 = vadd.f32 %v4368, 1.0
    %v4370 = vlog2.pop %v4369
    %v4371 = vmul.f32 %v4370, 0.6931472
    %v4372 = vadd.f32 %v4364, %v4371
    %v4373 = vadd.f32 %v4372, 1e-05
    %v4374 = vrcp.pop %v4262
    %v4375 = vrcp.pop %v4373
    %v4376 = vlog2.pop %v4262
    %v4377 = vmul.f32 %v4376, 0.6931472
    %v4378 = vlog2.pop %v4303
    %v4379 = vmul.f32 %v4378, 0.6931472
    %v4380 = vsub.f32 %v4377, %v4379
    %v4381 = vmul.f32 %v4303, %v4303
    %v4382 = vsub.f32 %v4278, %v4237
    %v4383 = vmul.f32 %v4382, %v4382
    %v4384 = vadd.f32 %v4381, %v4383
    %v4385 = vmul.f32 %v4374, 0.5
    %v4386 = vmul.f32 %v4385, %v4374
    %v4387 = vmul.f32 %v4384, %v4386
    %v4388 = vadd.f32 %v4380, %v4387
    %v4389 = vsub.f32 %v4388, 0.5
    %v4390 = vlog2.pop %v4373
    %v4391 = vmul.f32 %v4390, 0.6931472
    %v4392 = vmul.f32 %v4391, 2.0
    %v4393 = vadd.f32 %v4392, 1.837877
    %v4394 = vsub.f32 %v4182, %v4348
    %v4395 = vmul.f32 %v4394, %v4375
    %v4396 = vmul.f32 %v4395, %v4395
    %v4397 = vadd.f32 %v4393, %v4396
    %v4398 = vmul.f32 %v4397, 0.5
    %v4399 = vadd.f32 %v4179, %v4389
    %v4400 = vadd.f32 %v4180, %v4398
    %v4401 = vlaneseq
    %v4402 = vand.u32 %v4401, 127
    %vm4403 = vcmp.lt.s32.totalorder %v4402, 8
    %vm4404 = vmand %vm367, %vm4403
    %v4405 = vsel %vm4404, 1, 0
    %v4406 = vcvt.s32.f32 %v4405
    %vm4407 = vcmp.lt.s32.totalorder %v4402, 2
    %vm4408 = vmand %vm367, %vm4407
    %v4409 = vsel %vm4408, 1, 0
    %v4410 = vcvt.s32.f32 %v4409
    %v4411 = vmul.f32 %v4399, %v4406
    %4412 = vadd.xlane.f32.xlu0 %v4411
    %v4413 = vpop.xlane.xlu0 %4412
    %v4414 = vrot.slane %v4413, 4
    %v4415 = vadd.f32 %v4413, %v4414
    %v4416 = vrot.slane %v4415, 2
    %v4417 = vadd.f32 %v4415, %v4416
    %v4418 = vrot.slane %v4417, 1
    %v4419 = vadd.f32 %v4417, %v4418
    %s4420 = vtos %v4419
    %v4421 = vstv %s4420
    %v4422 = vmul.f32 %v4400, %v4410
    %4423 = vadd.xlane.f32.xlu0 %v4422
    %v4424 = vpop.xlane.xlu0 %4423
    %v4425 = vrot.slane %v4424, 4
    %v4426 = vadd.f32 %v4424, %v4425
    %v4427 = vrot.slane %v4426, 2
    %v4428 = vadd.f32 %v4426, %v4427
    %v4429 = vrot.slane %v4428, 1
    %v4430 = vadd.f32 %v4428, %v4429
    %s4431 = vtos %v4430
    %v4432 = vstv %s4431
    %v4433 = vadd.f32 %v4421, %v4432
    %v4434 = vrcp.pop 2.0
    %v4435 = vmul.f32 2.0, %v4434
    %v4436 = vsub.f32 1.0, %v4435
    %v4437 = vmul.f32 %v4434, %v4436
    %v4438 = vadd.f32 %v4434, %v4437
    %vm4439 = vweird.f32 %v4434
    %v4440 = vsel %vm4439, %v4434, %v4438
    %v4441 = vmul.f32 %v4433, %v4440
    %vm4442 = vcmask 0
    %4443 = vst.msk [vmem:[#allocation35] sm:$0x1] %vm4442, %v4441
    // Predicated region
    $region178: #{tpu_custom_call.1} parent=1 // pred_check
      _
    $region179: #{tpu_custom_call.1} parent=1 // pred_check_branch
      %4445 = sbr.rel (0) target = $region181
    $region180: #{tpu_custom_call.1} parent=1 // pred_region
      %4447 = vsyncadd [#allocation7], 0
      %s4449 = sshll.u32 [#allocation35], 4
      %s4450 = int_to_ptr.vmem [resolvable:$true] %s4449
      %s4451 = sshll.u32 %s25, 4
      %s4452 = int_to_ptr.hbm [resolvable:$true] %s4451
      %4454 = dma.vmem_to_hbm [thread:$0]  %s4450, 16, %s4452, [#allocation7]
    $region181: #{tpu_custom_call.1} parent=1 // pred_fallthru
      _
    // Predicated region
    $region182: #{tpu_custom_call.1} parent=1 // pred_check
      _
    $region183: #{tpu_custom_call.1} parent=1 // pred_check_branch
      %4456 = sbr.rel (0) target = $region185
    $region184: #{tpu_custom_call.1} parent=1 // pred_region
      %4458 = dma.done [#allocation7], 16
    $region185: #{tpu_custom_call.1} parent=1 // pred_fallthru
      _
    %4459 = vsyncpa [#allocation6], 1
    %4460 = vsyncpa [#allocation9], 1
    %4461 = vsyncpa [#allocation12], 1
    %4462 = vsyncpa [#allocation15], 1
    %4463 = vsyncpa [#allocation18], 1
    %4464 = vsyncpa [#allocation21], 1
    %4465 = vsyncpa [#allocation24], 1
    %4466 = vsyncpa [#allocation27], 1
    %4467 = vsyncpa [#allocation30], 1
    %4468 = vsyncpa [#allocation33], 1
    %4469 = vsyncpa [#allocation7], 1

</llo_original>
